<compile_context>
chip_gen: v7x
topology: tpu7x:2x2x1
jax: 0.10.0
libtpu: 0.0.40
codegen_flags: <defaults>
</compile_context>

<pallas_src>
import functools
import math

import jax
import jax.numpy as jnp
from jax.experimental import pallas as pl
from jax.experimental.pallas import tpu as pltpu


NUM_BASEBLOCKS = 4
_BN_EPS = 1e-5

_PACK_KEYS = ("a_in", "w_in", "sc_in", "sh_in",
              "a_hid", "w_hid", "sc_hid", "sh_hid",
              "a_out", "w_out", "sc_out", "sh_out")


# ----------------------------------------------------------------------------
# Fused kernel: the whole 4-stage model for one batch tile.  All params live
# in VMEM for the duration of the call; activations live in vregs.
# ----------------------------------------------------------------------------
def _fused_multistage_kernel(src_ref,
                             a_in_ref, w_in_ref, sc_in_ref, sh_in_ref,
                             a_hid_ref, w_hid_ref, sc_hid_ref, sh_hid_ref,
                             a_out_ref, w_out_ref, sc_out_ref, sh_out_ref,
                             out_ref):
    num_stage = a_hid_ref.shape[0] // (NUM_BASEBLOCKS * 2)

    def gc(x, a, w, sc, sh, apply_tanh):
        # x : [N, BT*Fin] node-major, a : [N, N], w : [Fin, Fout], sc/sh : [N, Fout]
        f_in, f_out = w.shape
        bt = x.shape[1] // f_in
        # Feature projection first (same op order as PyTorch: support = X @ W).
        # One exact [N,Fin]x[Fin,Fout] dot per sample in the batch tile --
        # no block-diagonal operands, no wasted MXU work, no O(batch^2) memory.
        cols = [jnp.dot(x[:, b * f_in:(b + 1) * f_in], w,
                        preferred_element_type=jnp.float32)
                for b in range(bt)]
        xw = cols[0] if bt == 1 else jnp.concatenate(cols, axis=-1)  # [N, BT*Fout]
        # Node mixing: single [N,N] x [N, BT*Fout] dot -- batch never enters A.
        y = jnp.dot(a, xw, preferred_element_type=jnp.float32)
        # Bias folded into the eval-mode BatchNorm shift; broadcast the
        # per-(node,feature) affine across the batch tile with a cheap lane
        # concat instead of tiling it over batch in HBM.
        scb = sc if bt == 1 else jnp.concatenate([sc] * bt, axis=-1)
        shb = sh if bt == 1 else jnp.concatenate([sh] * bt, axis=-1)
        y = y * scb + shb
        return jnp.tanh(y) if apply_tanh else y

    x = src_ref[...]                         # [N, BT*SEQ] node-major activations
    # Fully unrolled 24-layer chain (tiny tensors, no spills at these sizes).
    # TODO(synk): switch the hidden-block loop to lax.fori_loop with dynamic
    # a_hid_ref indexing if a bundle dump ever shows vreg spill traffic.
    for s in range(NUM_BASEBLOCKS):
        y = gc(x, a_in_ref[s], w_in_ref[s], sc_in_ref[s], sh_in_ref[s], True)
        # TODO(synk): dropout layers are identity in eval mode and are omitted.
        for k in range(num_stage):
            li = s * (2 * num_stage) + 2 * k
            z = gc(y, a_hid_ref[li], w_hid_ref[li],
                   sc_hid_ref[li], sh_hid_ref[li], True)
            z = gc(z, a_hid_ref[li + 1], w_hid_ref[li + 1],
                   sc_hid_ref[li + 1], sh_hid_ref[li + 1], True)
            y = y + z                        # GC_Block residual (in vregs)
        o = gc(y, a_out_ref[s], w_out_ref[s], sc_out_ref[s], sh_out_ref[s],
               False)
        x = o + x                            # outer BaseBlock residual
        out_ref[s] = x.astype(out_ref.dtype)


# ----------------------------------------------------------------------------
# Parameter construction (deterministic, torch-style uniform init).
# ----------------------------------------------------------------------------
def _init_graph_conv(key, in_f, out_f, node_n, with_bn):
    k1, k2, k3 = jax.random.split(key, 3)
    stdv = 1.0 / math.sqrt(out_f)
    if with_bn:
        # Eval-mode BatchNorm1d(node_n*out_f) folded to a per-(node,feature)
        # affine: scale = gamma / sqrt(running_var + eps), shift = beta - scale*mean
        # (fresh BN stats: gamma=1, beta=0, mean=0, var=1).
        scale = jnp.full((node_n, out_f), 1.0 / math.sqrt(1.0 + _BN_EPS),
                         jnp.float32)
    else:
        scale = jnp.ones((node_n, out_f), jnp.float32)
    return {
        "A": jax.random.uniform(k1, (node_n, node_n), jnp.float32, -stdv, stdv),
        "W": jax.random.uniform(k2, (in_f, out_f), jnp.float32, -stdv, stdv),
        "b": jax.random.uniform(k3, (1, out_f), jnp.float32, -stdv, stdv),
        "scale": scale,
        "shift": jnp.zeros((node_n, out_f), jnp.float32),
    }


def init_baseblock(key, node_n, seq, hidden, num_stage):
    keys = jax.random.split(key, 2 + 2 * num_stage)
    params = {
        "gc_in": _init_graph_conv(keys[0], seq, hidden, node_n, with_bn=True),
        # gc_out (gc7 in PGBIG) has no BatchNorm / activation.
        "gc_out": _init_graph_conv(keys[1], hidden, seq, node_n, with_bn=False),
        "blocks": [],
    }
    for s in range(num_stage):
        params["blocks"].append({
            "a": _init_graph_conv(keys[2 + 2 * s], hidden, hidden, node_n, True),
            "b": _init_graph_conv(keys[3 + 2 * s], hidden, hidden, node_n, True),
        })
    return params


def init_multistage(key, node_n, seq, hidden, num_stage):
    ks = jax.random.split(key, NUM_BASEBLOCKS)
    return [init_baseblock(k, node_n, seq, hidden, num_stage) for k in ks]


# ----------------------------------------------------------------------------
# Host-side packing: stack per-layer params, fold bias into the BN shift.
# Batch-independent (no kron, no batch tiling) -> reusable for any batch.
# ----------------------------------------------------------------------------
def pack_params(all_params):
    def fold(p):
        # BN(output + b) = scale*output + (shift + scale*b)
        return p["A"], p["W"], p["scale"], p["shift"] + p["scale"] * p["b"]

    a_in, w_in, sc_in, sh_in = [], [], [], []
    a_hid, w_hid, sc_hid, sh_hid = [], [], [], []
    a_out, w_out, sc_out, sh_out = [], [], [], []
    for bp in all_params:
        a, w, sc, sh = fold(bp["gc_in"])
        a_in.append(a); w_in.append(w); sc_in.append(sc); sh_in.append(sh)
        for blk in bp["blocks"]:
            for name in ("a", "b"):
                a, w, sc, sh = fold(blk[name])
                a_hid.append(a); w_hid.append(w)
                sc_hid.append(sc); sh_hid.append(sh)
        a, w, sc, sh = fold(bp["gc_out"])
        a_out.append(a); w_out.append(w); sc_out.append(sc); sh_out.append(sh)

    return {
        "a_in": jnp.stack(a_in), "w_in": jnp.stack(w_in),
        "sc_in": jnp.stack(sc_in), "sh_in": jnp.stack(sh_in),
        "a_hid": jnp.stack(a_hid), "w_hid": jnp.stack(w_hid),
        "sc_hid": jnp.stack(sc_hid), "sh_hid": jnp.stack(sh_hid),
        "a_out": jnp.stack(a_out), "w_out": jnp.stack(w_out),
        "sc_out": jnp.stack(sc_out), "sh_out": jnp.stack(sh_out),
    }


# ----------------------------------------------------------------------------
# Forward pass: ONE pallas_call, batch-tiled "parallel" grid over the lane dim.
# ----------------------------------------------------------------------------
def _pick_batch_tile(batch, seq, hidden):
    # Prefer a tile that (a) divides the batch, (b) keeps the lane dim of the
    # src/out BlockSpecs a multiple of 128, and (c) fills the 128-wide
    # vregs/MXU (bt*hidden >= 128) -> multi-step parallel grid (2nd TC on v7x)
    # for larger batches.  For tiny batches it degenerates to a single step.
    for bt in range(1, batch):
        if batch % bt == 0 and (bt * seq) % 128 == 0 and bt * hidden >= 128:
            return bt
    return batch


@functools.partial(jax.jit, static_argnames=("batch_tile",))
def _multistage_forward_impl(packed, src, batch_tile):
    B, N, SEQ = src.shape
    BT = batch_tile
    grid = (B // BT,)

    # Node-major, batch-in-lanes layout: x[n, b*SEQ + t] = src[b, n, t].
    x_nm = jnp.transpose(src, (1, 0, 2)).reshape(N, B * SEQ)

    def full_vmem_spec(arr):
        nd = arr.ndim

        def idx(i):
            return (0,) * nd

        # Whole array, grid-constant index map -> DMA'd once, VMEM-resident.
        return pl.BlockSpec(arr.shape, idx, memory_space=pltpu.MemorySpace.VMEM)

    in_specs = [pl.BlockSpec((N, BT * SEQ), lambda i: (0, i),
                             memory_space=pltpu.MemorySpace.VMEM)]
    in_specs += [full_vmem_spec(packed[k]) for k in _PACK_KEYS]
    out_specs = pl.BlockSpec((NUM_BASEBLOCKS, N, BT * SEQ),
                             lambda i: (0, 0, i),
                             memory_space=pltpu.MemorySpace.VMEM)
    out_shape = jax.ShapeDtypeStruct((NUM_BASEBLOCKS, N, B * SEQ), src.dtype)

    # Explicit scoped-VMEM budget (generous headroom; footprint here is <1 MB,
    # cap below v7x's 64 MiB physical VMEM).
    param_bytes = sum(int(packed[k].size) * packed[k].dtype.itemsize
                      for k in _PACK_KEYS)
    io_bytes = int(x_nm.size) * x_nm.dtype.itemsize * (1 + NUM_BASEBLOCKS)
    vmem_limit = int(min(48 * 2**20,
                         max(32 * 2**20, 8 * (param_bytes + io_bytes))))

    out = pl.pallas_call(
        _fused_multistage_kernel,
        out_shape=out_shape,
        grid_spec=pltpu.PrefetchScalarGridSpec(
            num_scalar_prefetch=0,
            grid=grid,
            in_specs=in_specs,
            out_specs=out_specs,
        ),
        compiler_params=pltpu.CompilerParams(
            dimension_semantics=("parallel",),
            vmem_limit_bytes=vmem_limit,
        ),
    )(x_nm, *[packed[k] for k in _PACK_KEYS])

    # Back to (B, N, SEQ) per stage (tiny XLA transpose outside the kernel).
    outs = jnp.transpose(out.reshape(NUM_BASEBLOCKS, N, B, SEQ), (0, 2, 1, 3))
    return outs[3], outs[2], outs[1], outs[0]   # (init_4, init_3, init_2, init_1)


def multistage_forward(packed, src, batch_tile=None):
    B, N, SEQ = src.shape
    hidden = packed["w_in"].shape[2]
    if batch_tile is None:
        batch_tile = _pick_batch_tile(B, SEQ, hidden)
    assert B % batch_tile == 0, "batch_tile must divide the batch"
    assert batch_tile == B or (batch_tile * SEQ) % 128 == 0, (
        "batch_tile must cover the whole batch or keep the lane dim a "
        "multiple of 128")
    return _multistage_forward_impl(packed, src, batch_tile)


# ----------------------------------------------------------------------------
# Pure-JAX reference (matches the PyTorch forward semantics in eval mode).
# ----------------------------------------------------------------------------
def _gc_ref(p, x, apply_tanh):
    y = jnp.einsum("bnf,fh->bnh", x, p["W"])        # support = x @ W
    y = jnp.einsum("nm,bmh->bnh", p["A"], y)        # output  = A @ support
    y = y + p["b"][None]
    y = y * p["scale"][None] + p["shift"][None]     # eval-mode BN affine
    return jnp.tanh(y) if apply_tanh else y


def multistage_reference(all_params, src):
    outs = []
    x = src
    for bp in all_params:
        y = _gc_ref(bp["gc_in"], x, True)
        for blk in bp["blocks"]:
            z = _gc_ref(blk["a"], y, True)
            z = _gc_ref(blk["b"], z, True)
            y = y + z
        o = _gc_ref(bp["gc_out"], y, False)
        x = o + x
        outs.append(x)
    return outs[3], outs[2], outs[1], outs[0]


# ----------------------------------------------------------------------------
if __name__ == "__main__":
    key = jax.random.PRNGKey(0)
    k_param, k_data = jax.random.split(key)

    B, NODE_N, SEQ, HIDDEN, NUM_STAGE = 2, 16, 8, 32, 2

    params = init_multistage(k_param, NODE_N, SEQ, HIDDEN, NUM_STAGE)
    packed = pack_params(params)                 # batch-independent packing
    src = jax.random.normal(k_data, (B, NODE_N, SEQ), jnp.float32)

    outs = multistage_forward(packed, src)
    outs = jax.block_until_ready(outs)

    refs = multistage_reference(params, src)

    assert len(outs) == 4
    for o, r in zip(outs, refs):
        assert o.shape == (B, NODE_N, SEQ)
        assert o.dtype == jnp.float32
        assert bool(jnp.all(jnp.isfinite(o)))
        assert bool(jnp.allclose(o, r, atol=1e-4, rtol=1e-4))

    print("KERNEL_OK")
</pallas_src>

<mosaic_0001>
module attributes {stable_mosaic.version = 11 : i64} {
  func.func @_fused_multistage_kernel(%arg0: i32, %arg1: memref<16x16xf32, #tpu.memory_space<vmem>>, %arg2: memref<4x16x16xf32, #tpu.memory_space<vmem>>, %arg3: memref<4x8x32xf32, #tpu.memory_space<vmem>>, %arg4: memref<4x16x32xf32, #tpu.memory_space<vmem>>, %arg5: memref<4x16x32xf32, #tpu.memory_space<vmem>>, %arg6: memref<16x16x16xf32, #tpu.memory_space<vmem>>, %arg7: memref<16x32x32xf32, #tpu.memory_space<vmem>>, %arg8: memref<16x16x32xf32, #tpu.memory_space<vmem>>, %arg9: memref<16x16x32xf32, #tpu.memory_space<vmem>>, %arg10: memref<4x16x16xf32, #tpu.memory_space<vmem>>, %arg11: memref<4x32x8xf32, #tpu.memory_space<vmem>>, %arg12: memref<4x16x8xf32, #tpu.memory_space<vmem>>, %arg13: memref<4x16x8xf32, #tpu.memory_space<vmem>>, %arg14: memref<4x16x16xf32, #tpu.memory_space<vmem>>) attributes {dimension_semantics = [#tpu.dimension_semantics<parallel>], iteration_bounds = array<i64: 1>, scalar_prefetch = 0 : i64, scratch_operands = 0 : i64, tpu.core_type = #tpu.core_type<tc>, window_params = [{transform_indices = @transform_0, window_bounds = array<i64: 16, 16>}, {pipeline_mode = #tpu.pipeline_mode<synchronous>, transform_indices = @transform_1, window_bounds = array<i64: 4, 16, 16>}, {pipeline_mode = #tpu.pipeline_mode<synchronous>, transform_indices = @transform_2, window_bounds = array<i64: 4, 8, 32>}, {pipeline_mode = #tpu.pipeline_mode<synchronous>, transform_indices = @transform_3, window_bounds = array<i64: 4, 16, 32>}, {pipeline_mode = #tpu.pipeline_mode<synchronous>, transform_indices = @transform_4, window_bounds = array<i64: 4, 16, 32>}, {pipeline_mode = #tpu.pipeline_mode<synchronous>, transform_indices = @transform_5, window_bounds = array<i64: 16, 16, 16>}, {pipeline_mode = #tpu.pipeline_mode<synchronous>, transform_indices = @transform_6, window_bounds = array<i64: 16, 32, 32>}, {pipeline_mode = #tpu.pipeline_mode<synchronous>, transform_indices = @transform_7, window_bounds = array<i64: 16, 16, 32>}, {pipeline_mode = #tpu.pipeline_mode<synchronous>, transform_indices = @transform_8, window_bounds = array<i64: 16, 16, 32>}, {pipeline_mode = #tpu.pipeline_mode<synchronous>, transform_indices = @transform_9, window_bounds = array<i64: 4, 16, 16>}, {pipeline_mode = #tpu.pipeline_mode<synchronous>, transform_indices = @transform_10, window_bounds = array<i64: 4, 32, 8>}, {pipeline_mode = #tpu.pipeline_mode<synchronous>, transform_indices = @transform_11, window_bounds = array<i64: 4, 16, 8>}, {pipeline_mode = #tpu.pipeline_mode<synchronous>, transform_indices = @transform_12, window_bounds = array<i64: 4, 16, 8>}, {transform_indices = @transform_13, window_bounds = array<i64: 4, 16, 16>}]} {
    %c0 = arith.constant 0 : index
    %c0_0 = arith.constant 0 : index
    %0 = vector.load %arg1[%c0, %c0_0] : memref<16x16xf32, #tpu.memory_space<vmem>>, vector<16x16xf32>
    %c0_1 = arith.constant 0 : index
    %c0_2 = arith.constant 0 : index
    %c0_3 = arith.constant 0 : index
    %1 = vector.load %arg2[%c0_1, %c0_2, %c0_3] : memref<4x16x16xf32, #tpu.memory_space<vmem>>, vector<1x16x16xf32>
    %2 = vector.shape_cast %1 : vector<1x16x16xf32> to vector<16x16xf32>
    %c0_4 = arith.constant 0 : index
    %c0_5 = arith.constant 0 : index
    %c0_6 = arith.constant 0 : index
    %3 = vector.load %arg3[%c0_4, %c0_5, %c0_6] : memref<4x8x32xf32, #tpu.memory_space<vmem>>, vector<1x8x32xf32>
    %4 = vector.shape_cast %3 : vector<1x8x32xf32> to vector<8x32xf32>
    %c0_7 = arith.constant 0 : index
    %c0_8 = arith.constant 0 : index
    %c0_9 = arith.constant 0 : index
    %5 = vector.load %arg4[%c0_7, %c0_8, %c0_9] : memref<4x16x32xf32, #tpu.memory_space<vmem>>, vector<1x16x32xf32>
    %6 = vector.shape_cast %5 : vector<1x16x32xf32> to vector<16x32xf32>
    %c0_10 = arith.constant 0 : index
    %c0_11 = arith.constant 0 : index
    %c0_12 = arith.constant 0 : index
    %7 = vector.load %arg5[%c0_10, %c0_11, %c0_12] : memref<4x16x32xf32, #tpu.memory_space<vmem>>, vector<1x16x32xf32>
    %8 = vector.shape_cast %7 : vector<1x16x32xf32> to vector<16x32xf32>
    %9 = vector.extract_strided_slice %0 {offsets = [0, 0], sizes = [16, 8], strides = [1, 1]} : vector<16x16xf32> to vector<16x8xf32>
    %cst = arith.constant dense<0.000000e+00> : vector<16x32xf32>
    %10 = tpu.matmul %9, %4, %cst {dimension_numbers = #tpu.dot_dimension_numbers<[1], [0], [0], [1], [0, 0, 1, 1], [], []>} : vector<16x8xf32>, vector<8x32xf32>, vector<16x32xf32> -> vector<16x32xf32>
    %11 = vector.extract_strided_slice %0 {offsets = [0, 8], sizes = [16, 8], strides = [1, 1]} : vector<16x16xf32> to vector<16x8xf32>
    %cst_13 = arith.constant dense<0.000000e+00> : vector<16x32xf32>
    %12 = tpu.matmul %11, %4, %cst_13 {dimension_numbers = #tpu.dot_dimension_numbers<[1], [0], [0], [1], [0, 0, 1, 1], [], []>} : vector<16x8xf32>, vector<8x32xf32>, vector<16x32xf32> -> vector<16x32xf32>
    %13 = tpu.concatenate %10, %12 in 1 : vector<16x32xf32>, vector<16x32xf32> -> vector<16x64xf32>
    %cst_14 = arith.constant dense<0.000000e+00> : vector<16x64xf32>
    %14 = tpu.matmul %2, %13, %cst_14 {dimension_numbers = #tpu.dot_dimension_numbers<[1], [0], [0], [1], [0, 0, 1, 1], [], []>} : vector<16x16xf32>, vector<16x64xf32>, vector<16x64xf32> -> vector<16x64xf32>
    %15 = tpu.concatenate %6, %6 in 1 : vector<16x32xf32>, vector<16x32xf32> -> vector<16x64xf32>
    %16 = tpu.concatenate %8, %8 in 1 : vector<16x32xf32>, vector<16x32xf32> -> vector<16x64xf32>
    %17 = arith.mulf %14, %15 : vector<16x64xf32>
    %18 = arith.addf %17, %16 : vector<16x64xf32>
    %19 = math.tanh %18 : vector<16x64xf32>
    %c0_15 = arith.constant 0 : index
    %c0_16 = arith.constant 0 : index
    %c0_17 = arith.constant 0 : index
    %20 = vector.load %arg6[%c0_15, %c0_16, %c0_17] : memref<16x16x16xf32, #tpu.memory_space<vmem>>, vector<1x16x16xf32>
    %21 = vector.shape_cast %20 : vector<1x16x16xf32> to vector<16x16xf32>
    %c0_18 = arith.constant 0 : index
    %c0_19 = arith.constant 0 : index
    %c0_20 = arith.constant 0 : index
    %22 = vector.load %arg7[%c0_18, %c0_19, %c0_20] : memref<16x32x32xf32, #tpu.memory_space<vmem>>, vector<1x32x32xf32>
    %23 = vector.shape_cast %22 : vector<1x32x32xf32> to vector<32x32xf32>
    %c0_21 = arith.constant 0 : index
    %c0_22 = arith.constant 0 : index
    %c0_23 = arith.constant 0 : index
    %24 = vector.load %arg8[%c0_21, %c0_22, %c0_23] : memref<16x16x32xf32, #tpu.memory_space<vmem>>, vector<1x16x32xf32>
    %25 = vector.shape_cast %24 : vector<1x16x32xf32> to vector<16x32xf32>
    %c0_24 = arith.constant 0 : index
    %c0_25 = arith.constant 0 : index
    %c0_26 = arith.constant 0 : index
    %26 = vector.load %arg9[%c0_24, %c0_25, %c0_26] : memref<16x16x32xf32, #tpu.memory_space<vmem>>, vector<1x16x32xf32>
    %27 = vector.shape_cast %26 : vector<1x16x32xf32> to vector<16x32xf32>
    %28 = vector.extract_strided_slice %19 {offsets = [0, 0], sizes = [16, 32], strides = [1, 1]} : vector<16x64xf32> to vector<16x32xf32>
    %cst_27 = arith.constant dense<0.000000e+00> : vector<16x32xf32>
    %29 = tpu.matmul %28, %23, %cst_27 {dimension_numbers = #tpu.dot_dimension_numbers<[1], [0], [0], [1], [0, 0, 1, 1], [], []>} : vector<16x32xf32>, vector<32x32xf32>, vector<16x32xf32> -> vector<16x32xf32>
    %30 = vector.extract_strided_slice %19 {offsets = [0, 32], sizes = [16, 32], strides = [1, 1]} : vector<16x64xf32> to vector<16x32xf32>
    %cst_28 = arith.constant dense<0.000000e+00> : vector<16x32xf32>
    %31 = tpu.matmul %30, %23, %cst_28 {dimension_numbers = #tpu.dot_dimension_numbers<[1], [0], [0], [1], [0, 0, 1, 1], [], []>} : vector<16x32xf32>, vector<32x32xf32>, vector<16x32xf32> -> vector<16x32xf32>
    %32 = tpu.concatenate %29, %31 in 1 : vector<16x32xf32>, vector<16x32xf32> -> vector<16x64xf32>
    %cst_29 = arith.constant dense<0.000000e+00> : vector<16x64xf32>
    %33 = tpu.matmul %21, %32, %cst_29 {dimension_numbers = #tpu.dot_dimension_numbers<[1], [0], [0], [1], [0, 0, 1, 1], [], []>} : vector<16x16xf32>, vector<16x64xf32>, vector<16x64xf32> -> vector<16x64xf32>
    %34 = tpu.concatenate %25, %25 in 1 : vector<16x32xf32>, vector<16x32xf32> -> vector<16x64xf32>
    %35 = tpu.concatenate %27, %27 in 1 : vector<16x32xf32>, vector<16x32xf32> -> vector<16x64xf32>
    %36 = arith.mulf %33, %34 : vector<16x64xf32>
    %37 = arith.addf %36, %35 : vector<16x64xf32>
    %38 = math.tanh %37 : vector<16x64xf32>
    %c1 = arith.constant 1 : index
    %c0_30 = arith.constant 0 : index
    %c0_31 = arith.constant 0 : index
    %39 = vector.load %arg6[%c1, %c0_30, %c0_31] : memref<16x16x16xf32, #tpu.memory_space<vmem>>, vector<1x16x16xf32>
    %40 = vector.shape_cast %39 : vector<1x16x16xf32> to vector<16x16xf32>
    %c1_32 = arith.constant 1 : index
    %c0_33 = arith.constant 0 : index
    %c0_34 = arith.constant 0 : index
    %41 = vector.load %arg7[%c1_32, %c0_33, %c0_34] : memref<16x32x32xf32, #tpu.memory_space<vmem>>, vector<1x32x32xf32>
    %42 = vector.shape_cast %41 : vector<1x32x32xf32> to vector<32x32xf32>
    %c1_35 = arith.constant 1 : index
    %c0_36 = arith.constant 0 : index
    %c0_37 = arith.constant 0 : index
    %43 = vector.load %arg8[%c1_35, %c0_36, %c0_37] : memref<16x16x32xf32, #tpu.memory_space<vmem>>, vector<1x16x32xf32>
    %44 = vector.shape_cast %43 : vector<1x16x32xf32> to vector<16x32xf32>
    %c1_38 = arith.constant 1 : index
    %c0_39 = arith.constant 0 : index
    %c0_40 = arith.constant 0 : index
    %45 = vector.load %arg9[%c1_38, %c0_39, %c0_40] : memref<16x16x32xf32, #tpu.memory_space<vmem>>, vector<1x16x32xf32>
    %46 = vector.shape_cast %45 : vector<1x16x32xf32> to vector<16x32xf32>
    %47 = vector.extract_strided_slice %38 {offsets = [0, 0], sizes = [16, 32], strides = [1, 1]} : vector<16x64xf32> to vector<16x32xf32>
    %cst_41 = arith.constant dense<0.000000e+00> : vector<16x32xf32>
    %48 = tpu.matmul %47, %42, %cst_41 {dimension_numbers = #tpu.dot_dimension_numbers<[1], [0], [0], [1], [0, 0, 1, 1], [], []>} : vector<16x32xf32>, vector<32x32xf32>, vector<16x32xf32> -> vector<16x32xf32>
    %49 = vector.extract_strided_slice %38 {offsets = [0, 32], sizes = [16, 32], strides = [1, 1]} : vector<16x64xf32> to vector<16x32xf32>
    %cst_42 = arith.constant dense<0.000000e+00> : vector<16x32xf32>
    %50 = tpu.matmul %49, %42, %cst_42 {dimension_numbers = #tpu.dot_dimension_numbers<[1], [0], [0], [1], [0, 0, 1, 1], [], []>} : vector<16x32xf32>, vector<32x32xf32>, vector<16x32xf32> -> vector<16x32xf32>
    %51 = tpu.concatenate %48, %50 in 1 : vector<16x32xf32>, vector<16x32xf32> -> vector<16x64xf32>
    %cst_43 = arith.constant dense<0.000000e+00> : vector<16x64xf32>
    %52 = tpu.matmul %40, %51, %cst_43 {dimension_numbers = #tpu.dot_dimension_numbers<[1], [0], [0], [1], [0, 0, 1, 1], [], []>} : vector<16x16xf32>, vector<16x64xf32>, vector<16x64xf32> -> vector<16x64xf32>
    %53 = tpu.concatenate %44, %44 in 1 : vector<16x32xf32>, vector<16x32xf32> -> vector<16x64xf32>
    %54 = tpu.concatenate %46, %46 in 1 : vector<16x32xf32>, vector<16x32xf32> -> vector<16x64xf32>
    %55 = arith.mulf %52, %53 : vector<16x64xf32>
    %56 = arith.addf %55, %54 : vector<16x64xf32>
    %57 = math.tanh %56 : vector<16x64xf32>
    %58 = arith.addf %19, %57 : vector<16x64xf32>
    %c2 = arith.constant 2 : index
    %c0_44 = arith.constant 0 : index
    %c0_45 = arith.constant 0 : index
    %59 = vector.load %arg6[%c2, %c0_44, %c0_45] : memref<16x16x16xf32, #tpu.memory_space<vmem>>, vector<1x16x16xf32>
    %60 = vector.shape_cast %59 : vector<1x16x16xf32> to vector<16x16xf32>
    %c2_46 = arith.constant 2 : index
    %c0_47 = arith.constant 0 : index
    %c0_48 = arith.constant 0 : index
    %61 = vector.load %arg7[%c2_46, %c0_47, %c0_48] : memref<16x32x32xf32, #tpu.memory_space<vmem>>, vector<1x32x32xf32>
    %62 = vector.shape_cast %61 : vector<1x32x32xf32> to vector<32x32xf32>
    %c2_49 = arith.constant 2 : index
    %c0_50 = arith.constant 0 : index
    %c0_51 = arith.constant 0 : index
    %63 = vector.load %arg8[%c2_49, %c0_50, %c0_51] : memref<16x16x32xf32, #tpu.memory_space<vmem>>, vector<1x16x32xf32>
    %64 = vector.shape_cast %63 : vector<1x16x32xf32> to vector<16x32xf32>
    %c2_52 = arith.constant 2 : index
    %c0_53 = arith.constant 0 : index
    %c0_54 = arith.constant 0 : index
    %65 = vector.load %arg9[%c2_52, %c0_53, %c0_54] : memref<16x16x32xf32, #tpu.memory_space<vmem>>, vector<1x16x32xf32>
    %66 = vector.shape_cast %65 : vector<1x16x32xf32> to vector<16x32xf32>
    %67 = vector.extract_strided_slice %58 {offsets = [0, 0], sizes = [16, 32], strides = [1, 1]} : vector<16x64xf32> to vector<16x32xf32>
    %cst_55 = arith.constant dense<0.000000e+00> : vector<16x32xf32>
    %68 = tpu.matmul %67, %62, %cst_55 {dimension_numbers = #tpu.dot_dimension_numbers<[1], [0], [0], [1], [0, 0, 1, 1], [], []>} : vector<16x32xf32>, vector<32x32xf32>, vector<16x32xf32> -> vector<16x32xf32>
    %69 = vector.extract_strided_slice %58 {offsets = [0, 32], sizes = [16, 32], strides = [1, 1]} : vector<16x64xf32> to vector<16x32xf32>
    %cst_56 = arith.constant dense<0.000000e+00> : vector<16x32xf32>
    %70 = tpu.matmul %69, %62, %cst_56 {dimension_numbers = #tpu.dot_dimension_numbers<[1], [0], [0], [1], [0, 0, 1, 1], [], []>} : vector<16x32xf32>, vector<32x32xf32>, vector<16x32xf32> -> vector<16x32xf32>
    %71 = tpu.concatenate %68, %70 in 1 : vector<16x32xf32>, vector<16x32xf32> -> vector<16x64xf32>
    %cst_57 = arith.constant dense<0.000000e+00> : vector<16x64xf32>
    %72 = tpu.matmul %60, %71, %cst_57 {dimension_numbers = #tpu.dot_dimension_numbers<[1], [0], [0], [1], [0, 0, 1, 1], [], []>} : vector<16x16xf32>, vector<16x64xf32>, vector<16x64xf32> -> vector<16x64xf32>
    %73 = tpu.concatenate %64, %64 in 1 : vector<16x32xf32>, vector<16x32xf32> -> vector<16x64xf32>
    %74 = tpu.concatenate %66, %66 in 1 : vector<16x32xf32>, vector<16x32xf32> -> vector<16x64xf32>
    %75 = arith.mulf %72, %73 : vector<16x64xf32>
    %76 = arith.addf %75, %74 : vector<16x64xf32>
    %77 = math.tanh %76 : vector<16x64xf32>
    %c3 = arith.constant 3 : index
    %c0_58 = arith.constant 0 : index
    %c0_59 = arith.constant 0 : index
    %78 = vector.load %arg6[%c3, %c0_58, %c0_59] : memref<16x16x16xf32, #tpu.memory_space<vmem>>, vector<1x16x16xf32>
    %79 = vector.shape_cast %78 : vector<1x16x16xf32> to vector<16x16xf32>
    %c3_60 = arith.constant 3 : index
    %c0_61 = arith.constant 0 : index
    %c0_62 = arith.constant 0 : index
    %80 = vector.load %arg7[%c3_60, %c0_61, %c0_62] : memref<16x32x32xf32, #tpu.memory_space<vmem>>, vector<1x32x32xf32>
    %81 = vector.shape_cast %80 : vector<1x32x32xf32> to vector<32x32xf32>
    %c3_63 = arith.constant 3 : index
    %c0_64 = arith.constant 0 : index
    %c0_65 = arith.constant 0 : index
    %82 = vector.load %arg8[%c3_63, %c0_64, %c0_65] : memref<16x16x32xf32, #tpu.memory_space<vmem>>, vector<1x16x32xf32>
    %83 = vector.shape_cast %82 : vector<1x16x32xf32> to vector<16x32xf32>
    %c3_66 = arith.constant 3 : index
    %c0_67 = arith.constant 0 : index
    %c0_68 = arith.constant 0 : index
    %84 = vector.load %arg9[%c3_66, %c0_67, %c0_68] : memref<16x16x32xf32, #tpu.memory_space<vmem>>, vector<1x16x32xf32>
    %85 = vector.shape_cast %84 : vector<1x16x32xf32> to vector<16x32xf32>
    %86 = vector.extract_strided_slice %77 {offsets = [0, 0], sizes = [16, 32], strides = [1, 1]} : vector<16x64xf32> to vector<16x32xf32>
    %cst_69 = arith.constant dense<0.000000e+00> : vector<16x32xf32>
    %87 = tpu.matmul %86, %81, %cst_69 {dimension_numbers = #tpu.dot_dimension_numbers<[1], [0], [0], [1], [0, 0, 1, 1], [], []>} : vector<16x32xf32>, vector<32x32xf32>, vector<16x32xf32> -> vector<16x32xf32>
    %88 = vector.extract_strided_slice %77 {offsets = [0, 32], sizes = [16, 32], strides = [1, 1]} : vector<16x64xf32> to vector<16x32xf32>
    %cst_70 = arith.constant dense<0.000000e+00> : vector<16x32xf32>
    %89 = tpu.matmul %88, %81, %cst_70 {dimension_numbers = #tpu.dot_dimension_numbers<[1], [0], [0], [1], [0, 0, 1, 1], [], []>} : vector<16x32xf32>, vector<32x32xf32>, vector<16x32xf32> -> vector<16x32xf32>
    %90 = tpu.concatenate %87, %89 in 1 : vector<16x32xf32>, vector<16x32xf32> -> vector<16x64xf32>
    %cst_71 = arith.constant dense<0.000000e+00> : vector<16x64xf32>
    %91 = tpu.matmul %79, %90, %cst_71 {dimension_numbers = #tpu.dot_dimension_numbers<[1], [0], [0], [1], [0, 0, 1, 1], [], []>} : vector<16x16xf32>, vector<16x64xf32>, vector<16x64xf32> -> vector<16x64xf32>
    %92 = tpu.concatenate %83, %83 in 1 : vector<16x32xf32>, vector<16x32xf32> -> vector<16x64xf32>
    %93 = tpu.concatenate %85, %85 in 1 : vector<16x32xf32>, vector<16x32xf32> -> vector<16x64xf32>
    %94 = arith.mulf %91, %92 : vector<16x64xf32>
    %95 = arith.addf %94, %93 : vector<16x64xf32>
    %96 = math.tanh %95 : vector<16x64xf32>
    %97 = arith.addf %58, %96 : vector<16x64xf32>
    %c0_72 = arith.constant 0 : index
    %c0_73 = arith.constant 0 : index
    %c0_74 = arith.constant 0 : index
    %98 = vector.load %arg10[%c0_72, %c0_73, %c0_74] : memref<4x16x16xf32, #tpu.memory_space<vmem>>, vector<1x16x16xf32>
    %99 = vector.shape_cast %98 : vector<1x16x16xf32> to vector<16x16xf32>
    %c0_75 = arith.constant 0 : index
    %c0_76 = arith.constant 0 : index
    %c0_77 = arith.constant 0 : index
    %100 = vector.load %arg11[%c0_75, %c0_76, %c0_77] : memref<4x32x8xf32, #tpu.memory_space<vmem>>, vector<1x32x8xf32>
    %101 = vector.shape_cast %100 : vector<1x32x8xf32> to vector<32x8xf32>
    %c0_78 = arith.constant 0 : index
    %c0_79 = arith.constant 0 : index
    %c0_80 = arith.constant 0 : index
    %102 = vector.load %arg12[%c0_78, %c0_79, %c0_80] : memref<4x16x8xf32, #tpu.memory_space<vmem>>, vector<1x16x8xf32>
    %103 = vector.shape_cast %102 : vector<1x16x8xf32> to vector<16x8xf32>
    %c0_81 = arith.constant 0 : index
    %c0_82 = arith.constant 0 : index
    %c0_83 = arith.constant 0 : index
    %104 = vector.load %arg13[%c0_81, %c0_82, %c0_83] : memref<4x16x8xf32, #tpu.memory_space<vmem>>, vector<1x16x8xf32>
    %105 = vector.shape_cast %104 : vector<1x16x8xf32> to vector<16x8xf32>
    %106 = vector.extract_strided_slice %97 {offsets = [0, 0], sizes = [16, 32], strides = [1, 1]} : vector<16x64xf32> to vector<16x32xf32>
    %cst_84 = arith.constant dense<0.000000e+00> : vector<16x8xf32>
    %107 = tpu.matmul %106, %101, %cst_84 {dimension_numbers = #tpu.dot_dimension_numbers<[1], [0], [0], [1], [0, 0, 1, 1], [], []>} : vector<16x32xf32>, vector<32x8xf32>, vector<16x8xf32> -> vector<16x8xf32>
    %108 = vector.extract_strided_slice %97 {offsets = [0, 32], sizes = [16, 32], strides = [1, 1]} : vector<16x64xf32> to vector<16x32xf32>
    %cst_85 = arith.constant dense<0.000000e+00> : vector<16x8xf32>
    %109 = tpu.matmul %108, %101, %cst_85 {dimension_numbers = #tpu.dot_dimension_numbers<[1], [0], [0], [1], [0, 0, 1, 1], [], []>} : vector<16x32xf32>, vector<32x8xf32>, vector<16x8xf32> -> vector<16x8xf32>
    %110 = tpu.concatenate %107, %109 in 1 : vector<16x8xf32>, vector<16x8xf32> -> vector<16x16xf32>
    %cst_86 = arith.constant dense<0.000000e+00> : vector<16x16xf32>
    %111 = tpu.matmul %99, %110, %cst_86 {dimension_numbers = #tpu.dot_dimension_numbers<[1], [0], [0], [1], [0, 0, 1, 1], [], []>} : vector<16x16xf32>, vector<16x16xf32>, vector<16x16xf32> -> vector<16x16xf32>
    %112 = tpu.concatenate %103, %103 in 1 : vector<16x8xf32>, vector<16x8xf32> -> vector<16x16xf32>
    %113 = tpu.concatenate %105, %105 in 1 : vector<16x8xf32>, vector<16x8xf32> -> vector<16x16xf32>
    %114 = arith.mulf %111, %112 : vector<16x16xf32>
    %115 = arith.addf %114, %113 : vector<16x16xf32>
    %116 = arith.addf %115, %0 : vector<16x16xf32>
    %c0_87 = arith.constant 0 : index
    %c0_88 = arith.constant 0 : index
    %c0_89 = arith.constant 0 : index
    %117 = vector.load %arg14[%c0_87, %c0_88, %c0_89] : memref<4x16x16xf32, #tpu.memory_space<vmem>>, vector<1x16x16xf32>
    %118 = vector.shape_cast %117 : vector<1x16x16xf32> to vector<16x16xf32>
    %119 = vector.shape_cast %116 : vector<16x16xf32> to vector<1x16x16xf32>
    tpu.vector_store %arg14[%c0_87, %c0_88, %c0_89], %119 {strides = array<i32>} : memref<4x16x16xf32, #tpu.memory_space<vmem>>, vector<1x16x16xf32>,
    %c1_90 = arith.constant 1 : index
    %c0_91 = arith.constant 0 : index
    %c0_92 = arith.constant 0 : index
    %120 = vector.load %arg2[%c1_90, %c0_91, %c0_92] : memref<4x16x16xf32, #tpu.memory_space<vmem>>, vector<1x16x16xf32>
    %121 = vector.shape_cast %120 : vector<1x16x16xf32> to vector<16x16xf32>
    %c1_93 = arith.constant 1 : index
    %c0_94 = arith.constant 0 : index
    %c0_95 = arith.constant 0 : index
    %122 = vector.load %arg3[%c1_93, %c0_94, %c0_95] : memref<4x8x32xf32, #tpu.memory_space<vmem>>, vector<1x8x32xf32>
    %123 = vector.shape_cast %122 : vector<1x8x32xf32> to vector<8x32xf32>
    %c1_96 = arith.constant 1 : index
    %c0_97 = arith.constant 0 : index
    %c0_98 = arith.constant 0 : index
    %124 = vector.load %arg4[%c1_96, %c0_97, %c0_98] : memref<4x16x32xf32, #tpu.memory_space<vmem>>, vector<1x16x32xf32>
    %125 = vector.shape_cast %124 : vector<1x16x32xf32> to vector<16x32xf32>
    %c1_99 = arith.constant 1 : index
    %c0_100 = arith.constant 0 : index
    %c0_101 = arith.constant 0 : index
    %126 = vector.load %arg5[%c1_99, %c0_100, %c0_101] : memref<4x16x32xf32, #tpu.memory_space<vmem>>, vector<1x16x32xf32>
    %127 = vector.shape_cast %126 : vector<1x16x32xf32> to vector<16x32xf32>
    %128 = vector.extract_strided_slice %116 {offsets = [0, 0], sizes = [16, 8], strides = [1, 1]} : vector<16x16xf32> to vector<16x8xf32>
    %cst_102 = arith.constant dense<0.000000e+00> : vector<16x32xf32>
    %129 = tpu.matmul %128, %123, %cst_102 {dimension_numbers = #tpu.dot_dimension_numbers<[1], [0], [0], [1], [0, 0, 1, 1], [], []>} : vector<16x8xf32>, vector<8x32xf32>, vector<16x32xf32> -> vector<16x32xf32>
    %130 = vector.extract_strided_slice %116 {offsets = [0, 8], sizes = [16, 8], strides = [1, 1]} : vector<16x16xf32> to vector<16x8xf32>
    %cst_103 = arith.constant dense<0.000000e+00> : vector<16x32xf32>
    %131 = tpu.matmul %130, %123, %cst_103 {dimension_numbers = #tpu.dot_dimension_numbers<[1], [0], [0], [1], [0, 0, 1, 1], [], []>} : vector<16x8xf32>, vector<8x32xf32>, vector<16x32xf32> -> vector<16x32xf32>
    %132 = tpu.concatenate %129, %131 in 1 : vector<16x32xf32>, vector<16x32xf32> -> vector<16x64xf32>
    %cst_104 = arith.constant dense<0.000000e+00> : vector<16x64xf32>
    %133 = tpu.matmul %121, %132, %cst_104 {dimension_numbers = #tpu.dot_dimension_numbers<[1], [0], [0], [1], [0, 0, 1, 1], [], []>} : vector<16x16xf32>, vector<16x64xf32>, vector<16x64xf32> -> vector<16x64xf32>
    %134 = tpu.concatenate %125, %125 in 1 : vector<16x32xf32>, vector<16x32xf32> -> vector<16x64xf32>
    %135 = tpu.concatenate %127, %127 in 1 : vector<16x32xf32>, vector<16x32xf32> -> vector<16x64xf32>
    %136 = arith.mulf %133, %134 : vector<16x64xf32>
    %137 = arith.addf %136, %135 : vector<16x64xf32>
    %138 = math.tanh %137 : vector<16x64xf32>
    %c4 = arith.constant 4 : index
    %c0_105 = arith.constant 0 : index
    %c0_106 = arith.constant 0 : index
    %139 = vector.load %arg6[%c4, %c0_105, %c0_106] : memref<16x16x16xf32, #tpu.memory_space<vmem>>, vector<1x16x16xf32>
    %140 = vector.shape_cast %139 : vector<1x16x16xf32> to vector<16x16xf32>
    %c4_107 = arith.constant 4 : index
    %c0_108 = arith.constant 0 : index
    %c0_109 = arith.constant 0 : index
    %141 = vector.load %arg7[%c4_107, %c0_108, %c0_109] : memref<16x32x32xf32, #tpu.memory_space<vmem>>, vector<1x32x32xf32>
    %142 = vector.shape_cast %141 : vector<1x32x32xf32> to vector<32x32xf32>
    %c4_110 = arith.constant 4 : index
    %c0_111 = arith.constant 0 : index
    %c0_112 = arith.constant 0 : index
    %143 = vector.load %arg8[%c4_110, %c0_111, %c0_112] : memref<16x16x32xf32, #tpu.memory_space<vmem>>, vector<1x16x32xf32>
    %144 = vector.shape_cast %143 : vector<1x16x32xf32> to vector<16x32xf32>
    %c4_113 = arith.constant 4 : index
    %c0_114 = arith.constant 0 : index
    %c0_115 = arith.constant 0 : index
    %145 = vector.load %arg9[%c4_113, %c0_114, %c0_115] : memref<16x16x32xf32, #tpu.memory_space<vmem>>, vector<1x16x32xf32>
    %146 = vector.shape_cast %145 : vector<1x16x32xf32> to vector<16x32xf32>
    %147 = vector.extract_strided_slice %138 {offsets = [0, 0], sizes = [16, 32], strides = [1, 1]} : vector<16x64xf32> to vector<16x32xf32>
    %cst_116 = arith.constant dense<0.000000e+00> : vector<16x32xf32>
    %148 = tpu.matmul %147, %142, %cst_116 {dimension_numbers = #tpu.dot_dimension_numbers<[1], [0], [0], [1], [0, 0, 1, 1], [], []>} : vector<16x32xf32>, vector<32x32xf32>, vector<16x32xf32> -> vector<16x32xf32>
    %149 = vector.extract_strided_slice %138 {offsets = [0, 32], sizes = [16, 32], strides = [1, 1]} : vector<16x64xf32> to vector<16x32xf32>
    %cst_117 = arith.constant dense<0.000000e+00> : vector<16x32xf32>
    %150 = tpu.matmul %149, %142, %cst_117 {dimension_numbers = #tpu.dot_dimension_numbers<[1], [0], [0], [1], [0, 0, 1, 1], [], []>} : vector<16x32xf32>, vector<32x32xf32>, vector<16x32xf32> -> vector<16x32xf32>
    %151 = tpu.concatenate %148, %150 in 1 : vector<16x32xf32>, vector<16x32xf32> -> vector<16x64xf32>
    %cst_118 = arith.constant dense<0.000000e+00> : vector<16x64xf32>
    %152 = tpu.matmul %140, %151, %cst_118 {dimension_numbers = #tpu.dot_dimension_numbers<[1], [0], [0], [1], [0, 0, 1, 1], [], []>} : vector<16x16xf32>, vector<16x64xf32>, vector<16x64xf32> -> vector<16x64xf32>
    %153 = tpu.concatenate %144, %144 in 1 : vector<16x32xf32>, vector<16x32xf32> -> vector<16x64xf32>
    %154 = tpu.concatenate %146, %146 in 1 : vector<16x32xf32>, vector<16x32xf32> -> vector<16x64xf32>
    %155 = arith.mulf %152, %153 : vector<16x64xf32>
    %156 = arith.addf %155, %154 : vector<16x64xf32>
    %157 = math.tanh %156 : vector<16x64xf32>
    %c5 = arith.constant 5 : index
    %c0_119 = arith.constant 0 : index
    %c0_120 = arith.constant 0 : index
    %158 = vector.load %arg6[%c5, %c0_119, %c0_120] : memref<16x16x16xf32, #tpu.memory_space<vmem>>, vector<1x16x16xf32>
    %159 = vector.shape_cast %158 : vector<1x16x16xf32> to vector<16x16xf32>
    %c5_121 = arith.constant 5 : index
    %c0_122 = arith.constant 0 : index
    %c0_123 = arith.constant 0 : index
    %160 = vector.load %arg7[%c5_121, %c0_122, %c0_123] : memref<16x32x32xf32, #tpu.memory_space<vmem>>, vector<1x32x32xf32>
    %161 = vector.shape_cast %160 : vector<1x32x32xf32> to vector<32x32xf32>
    %c5_124 = arith.constant 5 : index
    %c0_125 = arith.constant 0 : index
    %c0_126 = arith.constant 0 : index
    %162 = vector.load %arg8[%c5_124, %c0_125, %c0_126] : memref<16x16x32xf32, #tpu.memory_space<vmem>>, vector<1x16x32xf32>
    %163 = vector.shape_cast %162 : vector<1x16x32xf32> to vector<16x32xf32>
    %c5_127 = arith.constant 5 : index
    %c0_128 = arith.constant 0 : index
    %c0_129 = arith.constant 0 : index
    %164 = vector.load %arg9[%c5_127, %c0_128, %c0_129] : memref<16x16x32xf32, #tpu.memory_space<vmem>>, vector<1x16x32xf32>
    %165 = vector.shape_cast %164 : vector<1x16x32xf32> to vector<16x32xf32>
    %166 = vector.extract_strided_slice %157 {offsets = [0, 0], sizes = [16, 32], strides = [1, 1]} : vector<16x64xf32> to vector<16x32xf32>
    %cst_130 = arith.constant dense<0.000000e+00> : vector<16x32xf32>
    %167 = tpu.matmul %166, %161, %cst_130 {dimension_numbers = #tpu.dot_dimension_numbers<[1], [0], [0], [1], [0, 0, 1, 1], [], []>} : vector<16x32xf32>, vector<32x32xf32>, vector<16x32xf32> -> vector<16x32xf32>
    %168 = vector.extract_strided_slice %157 {offsets = [0, 32], sizes = [16, 32], strides = [1, 1]} : vector<16x64xf32> to vector<16x32xf32>
    %cst_131 = arith.constant dense<0.000000e+00> : vector<16x32xf32>
    %169 = tpu.matmul %168, %161, %cst_131 {dimension_numbers = #tpu.dot_dimension_numbers<[1], [0], [0], [1], [0, 0, 1, 1], [], []>} : vector<16x32xf32>, vector<32x32xf32>, vector<16x32xf32> -> vector<16x32xf32>
    %170 = tpu.concatenate %167, %169 in 1 : vector<16x32xf32>, vector<16x32xf32> -> vector<16x64xf32>
    %cst_132 = arith.constant dense<0.000000e+00> : vector<16x64xf32>
    %171 = tpu.matmul %159, %170, %cst_132 {dimension_numbers = #tpu.dot_dimension_numbers<[1], [0], [0], [1], [0, 0, 1, 1], [], []>} : vector<16x16xf32>, vector<16x64xf32>, vector<16x64xf32> -> vector<16x64xf32>
    %172 = tpu.concatenate %163, %163 in 1 : vector<16x32xf32>, vector<16x32xf32> -> vector<16x64xf32>
    %173 = tpu.concatenate %165, %165 in 1 : vector<16x32xf32>, vector<16x32xf32> -> vector<16x64xf32>
    %174 = arith.mulf %171, %172 : vector<16x64xf32>
    %175 = arith.addf %174, %173 : vector<16x64xf32>
    %176 = math.tanh %175 : vector<16x64xf32>
    %177 = arith.addf %138, %176 : vector<16x64xf32>
    %c6 = arith.constant 6 : index
    %c0_133 = arith.constant 0 : index
    %c0_134 = arith.constant 0 : index
    %178 = vector.load %arg6[%c6, %c0_133, %c0_134] : memref<16x16x16xf32, #tpu.memory_space<vmem>>, vector<1x16x16xf32>
    %179 = vector.shape_cast %178 : vector<1x16x16xf32> to vector<16x16xf32>
    %c6_135 = arith.constant 6 : index
    %c0_136 = arith.constant 0 : index
    %c0_137 = arith.constant 0 : index
    %180 = vector.load %arg7[%c6_135, %c0_136, %c0_137] : memref<16x32x32xf32, #tpu.memory_space<vmem>>, vector<1x32x32xf32>
    %181 = vector.shape_cast %180 : vector<1x32x32xf32> to vector<32x32xf32>
    %c6_138 = arith.constant 6 : index
    %c0_139 = arith.constant 0 : index
    %c0_140 = arith.constant 0 : index
    %182 = vector.load %arg8[%c6_138, %c0_139, %c0_140] : memref<16x16x32xf32, #tpu.memory_space<vmem>>, vector<1x16x32xf32>
    %183 = vector.shape_cast %182 : vector<1x16x32xf32> to vector<16x32xf32>
    %c6_141 = arith.constant 6 : index
    %c0_142 = arith.constant 0 : index
    %c0_143 = arith.constant 0 : index
    %184 = vector.load %arg9[%c6_141, %c0_142, %c0_143] : memref<16x16x32xf32, #tpu.memory_space<vmem>>, vector<1x16x32xf32>
    %185 = vector.shape_cast %184 : vector<1x16x32xf32> to vector<16x32xf32>
    %186 = vector.extract_strided_slice %177 {offsets = [0, 0], sizes = [16, 32], strides = [1, 1]} : vector<16x64xf32> to vector<16x32xf32>
    %cst_144 = arith.constant dense<0.000000e+00> : vector<16x32xf32>
    %187 = tpu.matmul %186, %181, %cst_144 {dimension_numbers = #tpu.dot_dimension_numbers<[1], [0], [0], [1], [0, 0, 1, 1], [], []>} : vector<16x32xf32>, vector<32x32xf32>, vector<16x32xf32> -> vector<16x32xf32>
    %188 = vector.extract_strided_slice %177 {offsets = [0, 32], sizes = [16, 32], strides = [1, 1]} : vector<16x64xf32> to vector<16x32xf32>
    %cst_145 = arith.constant dense<0.000000e+00> : vector<16x32xf32>
    %189 = tpu.matmul %188, %181, %cst_145 {dimension_numbers = #tpu.dot_dimension_numbers<[1], [0], [0], [1], [0, 0, 1, 1], [], []>} : vector<16x32xf32>, vector<32x32xf32>, vector<16x32xf32> -> vector<16x32xf32>
    %190 = tpu.concatenate %187, %189 in 1 : vector<16x32xf32>, vector<16x32xf32> -> vector<16x64xf32>
    %cst_146 = arith.constant dense<0.000000e+00> : vector<16x64xf32>
    %191 = tpu.matmul %179, %190, %cst_146 {dimension_numbers = #tpu.dot_dimension_numbers<[1], [0], [0], [1], [0, 0, 1, 1], [], []>} : vector<16x16xf32>, vector<16x64xf32>, vector<16x64xf32> -> vector<16x64xf32>
    %192 = tpu.concatenate %183, %183 in 1 : vector<16x32xf32>, vector<16x32xf32> -> vector<16x64xf32>
    %193 = tpu.concatenate %185, %185 in 1 : vector<16x32xf32>, vector<16x32xf32> -> vector<16x64xf32>
    %194 = arith.mulf %191, %192 : vector<16x64xf32>
    %195 = arith.addf %194, %193 : vector<16x64xf32>
    %196 = math.tanh %195 : vector<16x64xf32>
    %c7 = arith.constant 7 : index
    %c0_147 = arith.constant 0 : index
    %c0_148 = arith.constant 0 : index
    %197 = vector.load %arg6[%c7, %c0_147, %c0_148] : memref<16x16x16xf32, #tpu.memory_space<vmem>>, vector<1x16x16xf32>
    %198 = vector.shape_cast %197 : vector<1x16x16xf32> to vector<16x16xf32>
    %c7_149 = arith.constant 7 : index
    %c0_150 = arith.constant 0 : index
    %c0_151 = arith.constant 0 : index
    %199 = vector.load %arg7[%c7_149, %c0_150, %c0_151] : memref<16x32x32xf32, #tpu.memory_space<vmem>>, vector<1x32x32xf32>
    %200 = vector.shape_cast %199 : vector<1x32x32xf32> to vector<32x32xf32>
    %c7_152 = arith.constant 7 : index
    %c0_153 = arith.constant 0 : index
    %c0_154 = arith.constant 0 : index
    %201 = vector.load %arg8[%c7_152, %c0_153, %c0_154] : memref<16x16x32xf32, #tpu.memory_space<vmem>>, vector<1x16x32xf32>
    %202 = vector.shape_cast %201 : vector<1x16x32xf32> to vector<16x32xf32>
    %c7_155 = arith.constant 7 : index
    %c0_156 = arith.constant 0 : index
    %c0_157 = arith.constant 0 : index
    %203 = vector.load %arg9[%c7_155, %c0_156, %c0_157] : memref<16x16x32xf32, #tpu.memory_space<vmem>>, vector<1x16x32xf32>
    %204 = vector.shape_cast %203 : vector<1x16x32xf32> to vector<16x32xf32>
    %205 = vector.extract_strided_slice %196 {offsets = [0, 0], sizes = [16, 32], strides = [1, 1]} : vector<16x64xf32> to vector<16x32xf32>
    %cst_158 = arith.constant dense<0.000000e+00> : vector<16x32xf32>
    %206 = tpu.matmul %205, %200, %cst_158 {dimension_numbers = #tpu.dot_dimension_numbers<[1], [0], [0], [1], [0, 0, 1, 1], [], []>} : vector<16x32xf32>, vector<32x32xf32>, vector<16x32xf32> -> vector<16x32xf32>
    %207 = vector.extract_strided_slice %196 {offsets = [0, 32], sizes = [16, 32], strides = [1, 1]} : vector<16x64xf32> to vector<16x32xf32>
    %cst_159 = arith.constant dense<0.000000e+00> : vector<16x32xf32>
    %208 = tpu.matmul %207, %200, %cst_159 {dimension_numbers = #tpu.dot_dimension_numbers<[1], [0], [0], [1], [0, 0, 1, 1], [], []>} : vector<16x32xf32>, vector<32x32xf32>, vector<16x32xf32> -> vector<16x32xf32>
    %209 = tpu.concatenate %206, %208 in 1 : vector<16x32xf32>, vector<16x32xf32> -> vector<16x64xf32>
    %cst_160 = arith.constant dense<0.000000e+00> : vector<16x64xf32>
    %210 = tpu.matmul %198, %209, %cst_160 {dimension_numbers = #tpu.dot_dimension_numbers<[1], [0], [0], [1], [0, 0, 1, 1], [], []>} : vector<16x16xf32>, vector<16x64xf32>, vector<16x64xf32> -> vector<16x64xf32>
    %211 = tpu.concatenate %202, %202 in 1 : vector<16x32xf32>, vector<16x32xf32> -> vector<16x64xf32>
    %212 = tpu.concatenate %204, %204 in 1 : vector<16x32xf32>, vector<16x32xf32> -> vector<16x64xf32>
    %213 = arith.mulf %210, %211 : vector<16x64xf32>
    %214 = arith.addf %213, %212 : vector<16x64xf32>
    %215 = math.tanh %214 : vector<16x64xf32>
    %216 = arith.addf %177, %215 : vector<16x64xf32>
    %c1_161 = arith.constant 1 : index
    %c0_162 = arith.constant 0 : index
    %c0_163 = arith.constant 0 : index
    %217 = vector.load %arg10[%c1_161, %c0_162, %c0_163] : memref<4x16x16xf32, #tpu.memory_space<vmem>>, vector<1x16x16xf32>
    %218 = vector.shape_cast %217 : vector<1x16x16xf32> to vector<16x16xf32>
    %c1_164 = arith.constant 1 : index
    %c0_165 = arith.constant 0 : index
    %c0_166 = arith.constant 0 : index
    %219 = vector.load %arg11[%c1_164, %c0_165, %c0_166] : memref<4x32x8xf32, #tpu.memory_space<vmem>>, vector<1x32x8xf32>
    %220 = vector.shape_cast %219 : vector<1x32x8xf32> to vector<32x8xf32>
    %c1_167 = arith.constant 1 : index
    %c0_168 = arith.constant 0 : index
    %c0_169 = arith.constant 0 : index
    %221 = vector.load %arg12[%c1_167, %c0_168, %c0_169] : memref<4x16x8xf32, #tpu.memory_space<vmem>>, vector<1x16x8xf32>
    %222 = vector.shape_cast %221 : vector<1x16x8xf32> to vector<16x8xf32>
    %c1_170 = arith.constant 1 : index
    %c0_171 = arith.constant 0 : index
    %c0_172 = arith.constant 0 : index
    %223 = vector.load %arg13[%c1_170, %c0_171, %c0_172] : memref<4x16x8xf32, #tpu.memory_space<vmem>>, vector<1x16x8xf32>
    %224 = vector.shape_cast %223 : vector<1x16x8xf32> to vector<16x8xf32>
    %225 = vector.extract_strided_slice %216 {offsets = [0, 0], sizes = [16, 32], strides = [1, 1]} : vector<16x64xf32> to vector<16x32xf32>
    %cst_173 = arith.constant dense<0.000000e+00> : vector<16x8xf32>
    %226 = tpu.matmul %225, %220, %cst_173 {dimension_numbers = #tpu.dot_dimension_numbers<[1], [0], [0], [1], [0, 0, 1, 1], [], []>} : vector<16x32xf32>, vector<32x8xf32>, vector<16x8xf32> -> vector<16x8xf32>
    %227 = vector.extract_strided_slice %216 {offsets = [0, 32], sizes = [16, 32], strides = [1, 1]} : vector<16x64xf32> to vector<16x32xf32>
    %cst_174 = arith.constant dense<0.000000e+00> : vector<16x8xf32>
    %228 = tpu.matmul %227, %220, %cst_174 {dimension_numbers = #tpu.dot_dimension_numbers<[1], [0], [0], [1], [0, 0, 1, 1], [], []>} : vector<16x32xf32>, vector<32x8xf32>, vector<16x8xf32> -> vector<16x8xf32>
    %229 = tpu.concatenate %226, %228 in 1 : vector<16x8xf32>, vector<16x8xf32> -> vector<16x16xf32>
    %cst_175 = arith.constant dense<0.000000e+00> : vector<16x16xf32>
    %230 = tpu.matmul %218, %229, %cst_175 {dimension_numbers = #tpu.dot_dimension_numbers<[1], [0], [0], [1], [0, 0, 1, 1], [], []>} : vector<16x16xf32>, vector<16x16xf32>, vector<16x16xf32> -> vector<16x16xf32>
    %231 = tpu.concatenate %222, %222 in 1 : vector<16x8xf32>, vector<16x8xf32> -> vector<16x16xf32>
    %232 = tpu.concatenate %224, %224 in 1 : vector<16x8xf32>, vector<16x8xf32> -> vector<16x16xf32>
    %233 = arith.mulf %230, %231 : vector<16x16xf32>
    %234 = arith.addf %233, %232 : vector<16x16xf32>
    %235 = arith.addf %234, %116 : vector<16x16xf32>
    %c1_176 = arith.constant 1 : index
    %c0_177 = arith.constant 0 : index
    %c0_178 = arith.constant 0 : index
    %236 = vector.load %arg14[%c1_176, %c0_177, %c0_178] : memref<4x16x16xf32, #tpu.memory_space<vmem>>, vector<1x16x16xf32>
    %237 = vector.shape_cast %236 : vector<1x16x16xf32> to vector<16x16xf32>
    %238 = vector.shape_cast %235 : vector<16x16xf32> to vector<1x16x16xf32>
    tpu.vector_store %arg14[%c1_176, %c0_177, %c0_178], %238 {strides = array<i32>} : memref<4x16x16xf32, #tpu.memory_space<vmem>>, vector<1x16x16xf32>,
    %c2_179 = arith.constant 2 : index
    %c0_180 = arith.constant 0 : index
    %c0_181 = arith.constant 0 : index
    %239 = vector.load %arg2[%c2_179, %c0_180, %c0_181] : memref<4x16x16xf32, #tpu.memory_space<vmem>>, vector<1x16x16xf32>
    %240 = vector.shape_cast %239 : vector<1x16x16xf32> to vector<16x16xf32>
    %c2_182 = arith.constant 2 : index
    %c0_183 = arith.constant 0 : index
    %c0_184 = arith.constant 0 : index
    %241 = vector.load %arg3[%c2_182, %c0_183, %c0_184] : memref<4x8x32xf32, #tpu.memory_space<vmem>>, vector<1x8x32xf32>
    %242 = vector.shape_cast %241 : vector<1x8x32xf32> to vector<8x32xf32>
    %c2_185 = arith.constant 2 : index
    %c0_186 = arith.constant 0 : index
    %c0_187 = arith.constant 0 : index
    %243 = vector.load %arg4[%c2_185, %c0_186, %c0_187] : memref<4x16x32xf32, #tpu.memory_space<vmem>>, vector<1x16x32xf32>
    %244 = vector.shape_cast %243 : vector<1x16x32xf32> to vector<16x32xf32>
    %c2_188 = arith.constant 2 : index
    %c0_189 = arith.constant 0 : index
    %c0_190 = arith.constant 0 : index
    %245 = vector.load %arg5[%c2_188, %c0_189, %c0_190] : memref<4x16x32xf32, #tpu.memory_space<vmem>>, vector<1x16x32xf32>
    %246 = vector.shape_cast %245 : vector<1x16x32xf32> to vector<16x32xf32>
    %247 = vector.extract_strided_slice %235 {offsets = [0, 0], sizes = [16, 8], strides = [1, 1]} : vector<16x16xf32> to vector<16x8xf32>
    %cst_191 = arith.constant dense<0.000000e+00> : vector<16x32xf32>
    %248 = tpu.matmul %247, %242, %cst_191 {dimension_numbers = #tpu.dot_dimension_numbers<[1], [0], [0], [1], [0, 0, 1, 1], [], []>} : vector<16x8xf32>, vector<8x32xf32>, vector<16x32xf32> -> vector<16x32xf32>
    %249 = vector.extract_strided_slice %235 {offsets = [0, 8], sizes = [16, 8], strides = [1, 1]} : vector<16x16xf32> to vector<16x8xf32>
    %cst_192 = arith.constant dense<0.000000e+00> : vector<16x32xf32>
    %250 = tpu.matmul %249, %242, %cst_192 {dimension_numbers = #tpu.dot_dimension_numbers<[1], [0], [0], [1], [0, 0, 1, 1], [], []>} : vector<16x8xf32>, vector<8x32xf32>, vector<16x32xf32> -> vector<16x32xf32>
    %251 = tpu.concatenate %248, %250 in 1 : vector<16x32xf32>, vector<16x32xf32> -> vector<16x64xf32>
    %cst_193 = arith.constant dense<0.000000e+00> : vector<16x64xf32>
    %252 = tpu.matmul %240, %251, %cst_193 {dimension_numbers = #tpu.dot_dimension_numbers<[1], [0], [0], [1], [0, 0, 1, 1], [], []>} : vector<16x16xf32>, vector<16x64xf32>, vector<16x64xf32> -> vector<16x64xf32>
    %253 = tpu.concatenate %244, %244 in 1 : vector<16x32xf32>, vector<16x32xf32> -> vector<16x64xf32>
    %254 = tpu.concatenate %246, %246 in 1 : vector<16x32xf32>, vector<16x32xf32> -> vector<16x64xf32>
    %255 = arith.mulf %252, %253 : vector<16x64xf32>
    %256 = arith.addf %255, %254 : vector<16x64xf32>
    %257 = math.tanh %256 : vector<16x64xf32>
    %c8 = arith.constant 8 : index
    %c0_194 = arith.constant 0 : index
    %c0_195 = arith.constant 0 : index
    %258 = vector.load %arg6[%c8, %c0_194, %c0_195] : memref<16x16x16xf32, #tpu.memory_space<vmem>>, vector<1x16x16xf32>
    %259 = vector.shape_cast %258 : vector<1x16x16xf32> to vector<16x16xf32>
    %c8_196 = arith.constant 8 : index
    %c0_197 = arith.constant 0 : index
    %c0_198 = arith.constant 0 : index
    %260 = vector.load %arg7[%c8_196, %c0_197, %c0_198] : memref<16x32x32xf32, #tpu.memory_space<vmem>>, vector<1x32x32xf32>
    %261 = vector.shape_cast %260 : vector<1x32x32xf32> to vector<32x32xf32>
    %c8_199 = arith.constant 8 : index
    %c0_200 = arith.constant 0 : index
    %c0_201 = arith.constant 0 : index
    %262 = vector.load %arg8[%c8_199, %c0_200, %c0_201] : memref<16x16x32xf32, #tpu.memory_space<vmem>>, vector<1x16x32xf32>
    %263 = vector.shape_cast %262 : vector<1x16x32xf32> to vector<16x32xf32>
    %c8_202 = arith.constant 8 : index
    %c0_203 = arith.constant 0 : index
    %c0_204 = arith.constant 0 : index
    %264 = vector.load %arg9[%c8_202, %c0_203, %c0_204] : memref<16x16x32xf32, #tpu.memory_space<vmem>>, vector<1x16x32xf32>
    %265 = vector.shape_cast %264 : vector<1x16x32xf32> to vector<16x32xf32>
    %266 = vector.extract_strided_slice %257 {offsets = [0, 0], sizes = [16, 32], strides = [1, 1]} : vector<16x64xf32> to vector<16x32xf32>
    %cst_205 = arith.constant dense<0.000000e+00> : vector<16x32xf32>
    %267 = tpu.matmul %266, %261, %cst_205 {dimension_numbers = #tpu.dot_dimension_numbers<[1], [0], [0], [1], [0, 0, 1, 1], [], []>} : vector<16x32xf32>, vector<32x32xf32>, vector<16x32xf32> -> vector<16x32xf32>
    %268 = vector.extract_strided_slice %257 {offsets = [0, 32], sizes = [16, 32], strides = [1, 1]} : vector<16x64xf32> to vector<16x32xf32>
    %cst_206 = arith.constant dense<0.000000e+00> : vector<16x32xf32>
    %269 = tpu.matmul %268, %261, %cst_206 {dimension_numbers = #tpu.dot_dimension_numbers<[1], [0], [0], [1], [0, 0, 1, 1], [], []>} : vector<16x32xf32>, vector<32x32xf32>, vector<16x32xf32> -> vector<16x32xf32>
    %270 = tpu.concatenate %267, %269 in 1 : vector<16x32xf32>, vector<16x32xf32> -> vector<16x64xf32>
    %cst_207 = arith.constant dense<0.000000e+00> : vector<16x64xf32>
    %271 = tpu.matmul %259, %270, %cst_207 {dimension_numbers = #tpu.dot_dimension_numbers<[1], [0], [0], [1], [0, 0, 1, 1], [], []>} : vector<16x16xf32>, vector<16x64xf32>, vector<16x64xf32> -> vector<16x64xf32>
    %272 = tpu.concatenate %263, %263 in 1 : vector<16x32xf32>, vector<16x32xf32> -> vector<16x64xf32>
    %273 = tpu.concatenate %265, %265 in 1 : vector<16x32xf32>, vector<16x32xf32> -> vector<16x64xf32>
    %274 = arith.mulf %271, %272 : vector<16x64xf32>
    %275 = arith.addf %274, %273 : vector<16x64xf32>
    %276 = math.tanh %275 : vector<16x64xf32>
    %c9 = arith.constant 9 : index
    %c0_208 = arith.constant 0 : index
    %c0_209 = arith.constant 0 : index
    %277 = vector.load %arg6[%c9, %c0_208, %c0_209] : memref<16x16x16xf32, #tpu.memory_space<vmem>>, vector<1x16x16xf32>
    %278 = vector.shape_cast %277 : vector<1x16x16xf32> to vector<16x16xf32>
    %c9_210 = arith.constant 9 : index
    %c0_211 = arith.constant 0 : index
    %c0_212 = arith.constant 0 : index
    %279 = vector.load %arg7[%c9_210, %c0_211, %c0_212] : memref<16x32x32xf32, #tpu.memory_space<vmem>>, vector<1x32x32xf32>
    %280 = vector.shape_cast %279 : vector<1x32x32xf32> to vector<32x32xf32>
    %c9_213 = arith.constant 9 : index
    %c0_214 = arith.constant 0 : index
    %c0_215 = arith.constant 0 : index
    %281 = vector.load %arg8[%c9_213, %c0_214, %c0_215] : memref<16x16x32xf32, #tpu.memory_space<vmem>>, vector<1x16x32xf32>
    %282 = vector.shape_cast %281 : vector<1x16x32xf32> to vector<16x32xf32>
    %c9_216 = arith.constant 9 : index
    %c0_217 = arith.constant 0 : index
    %c0_218 = arith.constant 0 : index
    %283 = vector.load %arg9[%c9_216, %c0_217, %c0_218] : memref<16x16x32xf32, #tpu.memory_space<vmem>>, vector<1x16x32xf32>
    %284 = vector.shape_cast %283 : vector<1x16x32xf32> to vector<16x32xf32>
    %285 = vector.extract_strided_slice %276 {offsets = [0, 0], sizes = [16, 32], strides = [1, 1]} : vector<16x64xf32> to vector<16x32xf32>
    %cst_219 = arith.constant dense<0.000000e+00> : vector<16x32xf32>
    %286 = tpu.matmul %285, %280, %cst_219 {dimension_numbers = #tpu.dot_dimension_numbers<[1], [0], [0], [1], [0, 0, 1, 1], [], []>} : vector<16x32xf32>, vector<32x32xf32>, vector<16x32xf32> -> vector<16x32xf32>
    %287 = vector.extract_strided_slice %276 {offsets = [0, 32], sizes = [16, 32], strides = [1, 1]} : vector<16x64xf32> to vector<16x32xf32>
    %cst_220 = arith.constant dense<0.000000e+00> : vector<16x32xf32>
    %288 = tpu.matmul %287, %280, %cst_220 {dimension_numbers = #tpu.dot_dimension_numbers<[1], [0], [0], [1], [0, 0, 1, 1], [], []>} : vector<16x32xf32>, vector<32x32xf32>, vector<16x32xf32> -> vector<16x32xf32>
    %289 = tpu.concatenate %286, %288 in 1 : vector<16x32xf32>, vector<16x32xf32> -> vector<16x64xf32>
    %cst_221 = arith.constant dense<0.000000e+00> : vector<16x64xf32>
    %290 = tpu.matmul %278, %289, %cst_221 {dimension_numbers = #tpu.dot_dimension_numbers<[1], [0], [0], [1], [0, 0, 1, 1], [], []>} : vector<16x16xf32>, vector<16x64xf32>, vector<16x64xf32> -> vector<16x64xf32>
    %291 = tpu.concatenate %282, %282 in 1 : vector<16x32xf32>, vector<16x32xf32> -> vector<16x64xf32>
    %292 = tpu.concatenate %284, %284 in 1 : vector<16x32xf32>, vector<16x32xf32> -> vector<16x64xf32>
    %293 = arith.mulf %290, %291 : vector<16x64xf32>
    %294 = arith.addf %293, %292 : vector<16x64xf32>
    %295 = math.tanh %294 : vector<16x64xf32>
    %296 = arith.addf %257, %295 : vector<16x64xf32>
    %c10 = arith.constant 10 : index
    %c0_222 = arith.constant 0 : index
    %c0_223 = arith.constant 0 : index
    %297 = vector.load %arg6[%c10, %c0_222, %c0_223] : memref<16x16x16xf32, #tpu.memory_space<vmem>>, vector<1x16x16xf32>
    %298 = vector.shape_cast %297 : vector<1x16x16xf32> to vector<16x16xf32>
    %c10_224 = arith.constant 10 : index
    %c0_225 = arith.constant 0 : index
    %c0_226 = arith.constant 0 : index
    %299 = vector.load %arg7[%c10_224, %c0_225, %c0_226] : memref<16x32x32xf32, #tpu.memory_space<vmem>>, vector<1x32x32xf32>
    %300 = vector.shape_cast %299 : vector<1x32x32xf32> to vector<32x32xf32>
    %c10_227 = arith.constant 10 : index
    %c0_228 = arith.constant 0 : index
    %c0_229 = arith.constant 0 : index
    %301 = vector.load %arg8[%c10_227, %c0_228, %c0_229] : memref<16x16x32xf32, #tpu.memory_space<vmem>>, vector<1x16x32xf32>
    %302 = vector.shape_cast %301 : vector<1x16x32xf32> to vector<16x32xf32>
    %c10_230 = arith.constant 10 : index
    %c0_231 = arith.constant 0 : index
    %c0_232 = arith.constant 0 : index
    %303 = vector.load %arg9[%c10_230, %c0_231, %c0_232] : memref<16x16x32xf32, #tpu.memory_space<vmem>>, vector<1x16x32xf32>
    %304 = vector.shape_cast %303 : vector<1x16x32xf32> to vector<16x32xf32>
    %305 = vector.extract_strided_slice %296 {offsets = [0, 0], sizes = [16, 32], strides = [1, 1]} : vector<16x64xf32> to vector<16x32xf32>
    %cst_233 = arith.constant dense<0.000000e+00> : vector<16x32xf32>
    %306 = tpu.matmul %305, %300, %cst_233 {dimension_numbers = #tpu.dot_dimension_numbers<[1], [0], [0], [1], [0, 0, 1, 1], [], []>} : vector<16x32xf32>, vector<32x32xf32>, vector<16x32xf32> -> vector<16x32xf32>
    %307 = vector.extract_strided_slice %296 {offsets = [0, 32], sizes = [16, 32], strides = [1, 1]} : vector<16x64xf32> to vector<16x32xf32>
    %cst_234 = arith.constant dense<0.000000e+00> : vector<16x32xf32>
    %308 = tpu.matmul %307, %300, %cst_234 {dimension_numbers = #tpu.dot_dimension_numbers<[1], [0], [0], [1], [0, 0, 1, 1], [], []>} : vector<16x32xf32>, vector<32x32xf32>, vector<16x32xf32> -> vector<16x32xf32>
    %309 = tpu.concatenate %306, %308 in 1 : vector<16x32xf32>, vector<16x32xf32> -> vector<16x64xf32>
    %cst_235 = arith.constant dense<0.000000e+00> : vector<16x64xf32>
    %310 = tpu.matmul %298, %309, %cst_235 {dimension_numbers = #tpu.dot_dimension_numbers<[1], [0], [0], [1], [0, 0, 1, 1], [], []>} : vector<16x16xf32>, vector<16x64xf32>, vector<16x64xf32> -> vector<16x64xf32>
    %311 = tpu.concatenate %302, %302 in 1 : vector<16x32xf32>, vector<16x32xf32> -> vector<16x64xf32>
    %312 = tpu.concatenate %304, %304 in 1 : vector<16x32xf32>, vector<16x32xf32> -> vector<16x64xf32>
    %313 = arith.mulf %310, %311 : vector<16x64xf32>
    %314 = arith.addf %313, %312 : vector<16x64xf32>
    %315 = math.tanh %314 : vector<16x64xf32>
    %c11 = arith.constant 11 : index
    %c0_236 = arith.constant 0 : index
    %c0_237 = arith.constant 0 : index
    %316 = vector.load %arg6[%c11, %c0_236, %c0_237] : memref<16x16x16xf32, #tpu.memory_space<vmem>>, vector<1x16x16xf32>
    %317 = vector.shape_cast %316 : vector<1x16x16xf32> to vector<16x16xf32>
    %c11_238 = arith.constant 11 : index
    %c0_239 = arith.constant 0 : index
    %c0_240 = arith.constant 0 : index
    %318 = vector.load %arg7[%c11_238, %c0_239, %c0_240] : memref<16x32x32xf32, #tpu.memory_space<vmem>>, vector<1x32x32xf32>
    %319 = vector.shape_cast %318 : vector<1x32x32xf32> to vector<32x32xf32>
    %c11_241 = arith.constant 11 : index
    %c0_242 = arith.constant 0 : index
    %c0_243 = arith.constant 0 : index
    %320 = vector.load %arg8[%c11_241, %c0_242, %c0_243] : memref<16x16x32xf32, #tpu.memory_space<vmem>>, vector<1x16x32xf32>
    %321 = vector.shape_cast %320 : vector<1x16x32xf32> to vector<16x32xf32>
    %c11_244 = arith.constant 11 : index
    %c0_245 = arith.constant 0 : index
    %c0_246 = arith.constant 0 : index
    %322 = vector.load %arg9[%c11_244, %c0_245, %c0_246] : memref<16x16x32xf32, #tpu.memory_space<vmem>>, vector<1x16x32xf32>
    %323 = vector.shape_cast %322 : vector<1x16x32xf32> to vector<16x32xf32>
    %324 = vector.extract_strided_slice %315 {offsets = [0, 0], sizes = [16, 32], strides = [1, 1]} : vector<16x64xf32> to vector<16x32xf32>
    %cst_247 = arith.constant dense<0.000000e+00> : vector<16x32xf32>
    %325 = tpu.matmul %324, %319, %cst_247 {dimension_numbers = #tpu.dot_dimension_numbers<[1], [0], [0], [1], [0, 0, 1, 1], [], []>} : vector<16x32xf32>, vector<32x32xf32>, vector<16x32xf32> -> vector<16x32xf32>
    %326 = vector.extract_strided_slice %315 {offsets = [0, 32], sizes = [16, 32], strides = [1, 1]} : vector<16x64xf32> to vector<16x32xf32>
    %cst_248 = arith.constant dense<0.000000e+00> : vector<16x32xf32>
    %327 = tpu.matmul %326, %319, %cst_248 {dimension_numbers = #tpu.dot_dimension_numbers<[1], [0], [0], [1], [0, 0, 1, 1], [], []>} : vector<16x32xf32>, vector<32x32xf32>, vector<16x32xf32> -> vector<16x32xf32>
    %328 = tpu.concatenate %325, %327 in 1 : vector<16x32xf32>, vector<16x32xf32> -> vector<16x64xf32>
    %cst_249 = arith.constant dense<0.000000e+00> : vector<16x64xf32>
    %329 = tpu.matmul %317, %328, %cst_249 {dimension_numbers = #tpu.dot_dimension_numbers<[1], [0], [0], [1], [0, 0, 1, 1], [], []>} : vector<16x16xf32>, vector<16x64xf32>, vector<16x64xf32> -> vector<16x64xf32>
    %330 = tpu.concatenate %321, %321 in 1 : vector<16x32xf32>, vector<16x32xf32> -> vector<16x64xf32>
    %331 = tpu.concatenate %323, %323 in 1 : vector<16x32xf32>, vector<16x32xf32> -> vector<16x64xf32>
    %332 = arith.mulf %329, %330 : vector<16x64xf32>
    %333 = arith.addf %332, %331 : vector<16x64xf32>
    %334 = math.tanh %333 : vector<16x64xf32>
    %335 = arith.addf %296, %334 : vector<16x64xf32>
    %c2_250 = arith.constant 2 : index
    %c0_251 = arith.constant 0 : index
    %c0_252 = arith.constant 0 : index
    %336 = vector.load %arg10[%c2_250, %c0_251, %c0_252] : memref<4x16x16xf32, #tpu.memory_space<vmem>>, vector<1x16x16xf32>
    %337 = vector.shape_cast %336 : vector<1x16x16xf32> to vector<16x16xf32>
    %c2_253 = arith.constant 2 : index
    %c0_254 = arith.constant 0 : index
    %c0_255 = arith.constant 0 : index
    %338 = vector.load %arg11[%c2_253, %c0_254, %c0_255] : memref<4x32x8xf32, #tpu.memory_space<vmem>>, vector<1x32x8xf32>
    %339 = vector.shape_cast %338 : vector<1x32x8xf32> to vector<32x8xf32>
    %c2_256 = arith.constant 2 : index
    %c0_257 = arith.constant 0 : index
    %c0_258 = arith.constant 0 : index
    %340 = vector.load %arg12[%c2_256, %c0_257, %c0_258] : memref<4x16x8xf32, #tpu.memory_space<vmem>>, vector<1x16x8xf32>
    %341 = vector.shape_cast %340 : vector<1x16x8xf32> to vector<16x8xf32>
    %c2_259 = arith.constant 2 : index
    %c0_260 = arith.constant 0 : index
    %c0_261 = arith.constant 0 : index
    %342 = vector.load %arg13[%c2_259, %c0_260, %c0_261] : memref<4x16x8xf32, #tpu.memory_space<vmem>>, vector<1x16x8xf32>
    %343 = vector.shape_cast %342 : vector<1x16x8xf32> to vector<16x8xf32>
    %344 = vector.extract_strided_slice %335 {offsets = [0, 0], sizes = [16, 32], strides = [1, 1]} : vector<16x64xf32> to vector<16x32xf32>
    %cst_262 = arith.constant dense<0.000000e+00> : vector<16x8xf32>
    %345 = tpu.matmul %344, %339, %cst_262 {dimension_numbers = #tpu.dot_dimension_numbers<[1], [0], [0], [1], [0, 0, 1, 1], [], []>} : vector<16x32xf32>, vector<32x8xf32>, vector<16x8xf32> -> vector<16x8xf32>
    %346 = vector.extract_strided_slice %335 {offsets = [0, 32], sizes = [16, 32], strides = [1, 1]} : vector<16x64xf32> to vector<16x32xf32>
    %cst_263 = arith.constant dense<0.000000e+00> : vector<16x8xf32>
    %347 = tpu.matmul %346, %339, %cst_263 {dimension_numbers = #tpu.dot_dimension_numbers<[1], [0], [0], [1], [0, 0, 1, 1], [], []>} : vector<16x32xf32>, vector<32x8xf32>, vector<16x8xf32> -> vector<16x8xf32>
    %348 = tpu.concatenate %345, %347 in 1 : vector<16x8xf32>, vector<16x8xf32> -> vector<16x16xf32>
    %cst_264 = arith.constant dense<0.000000e+00> : vector<16x16xf32>
    %349 = tpu.matmul %337, %348, %cst_264 {dimension_numbers = #tpu.dot_dimension_numbers<[1], [0], [0], [1], [0, 0, 1, 1], [], []>} : vector<16x16xf32>, vector<16x16xf32>, vector<16x16xf32> -> vector<16x16xf32>
    %350 = tpu.concatenate %341, %341 in 1 : vector<16x8xf32>, vector<16x8xf32> -> vector<16x16xf32>
    %351 = tpu.concatenate %343, %343 in 1 : vector<16x8xf32>, vector<16x8xf32> -> vector<16x16xf32>
    %352 = arith.mulf %349, %350 : vector<16x16xf32>
    %353 = arith.addf %352, %351 : vector<16x16xf32>
    %354 = arith.addf %353, %235 : vector<16x16xf32>
    %c2_265 = arith.constant 2 : index
    %c0_266 = arith.constant 0 : index
    %c0_267 = arith.constant 0 : index
    %355 = vector.load %arg14[%c2_265, %c0_266, %c0_267] : memref<4x16x16xf32, #tpu.memory_space<vmem>>, vector<1x16x16xf32>
    %356 = vector.shape_cast %355 : vector<1x16x16xf32> to vector<16x16xf32>
    %357 = vector.shape_cast %354 : vector<16x16xf32> to vector<1x16x16xf32>
    tpu.vector_store %arg14[%c2_265, %c0_266, %c0_267], %357 {strides = array<i32>} : memref<4x16x16xf32, #tpu.memory_space<vmem>>, vector<1x16x16xf32>,
    %c3_268 = arith.constant 3 : index
    %c0_269 = arith.constant 0 : index
    %c0_270 = arith.constant 0 : index
    %358 = vector.load %arg2[%c3_268, %c0_269, %c0_270] : memref<4x16x16xf32, #tpu.memory_space<vmem>>, vector<1x16x16xf32>
    %359 = vector.shape_cast %358 : vector<1x16x16xf32> to vector<16x16xf32>
    %c3_271 = arith.constant 3 : index
    %c0_272 = arith.constant 0 : index
    %c0_273 = arith.constant 0 : index
    %360 = vector.load %arg3[%c3_271, %c0_272, %c0_273] : memref<4x8x32xf32, #tpu.memory_space<vmem>>, vector<1x8x32xf32>
    %361 = vector.shape_cast %360 : vector<1x8x32xf32> to vector<8x32xf32>
    %c3_274 = arith.constant 3 : index
    %c0_275 = arith.constant 0 : index
    %c0_276 = arith.constant 0 : index
    %362 = vector.load %arg4[%c3_274, %c0_275, %c0_276] : memref<4x16x32xf32, #tpu.memory_space<vmem>>, vector<1x16x32xf32>
    %363 = vector.shape_cast %362 : vector<1x16x32xf32> to vector<16x32xf32>
    %c3_277 = arith.constant 3 : index
    %c0_278 = arith.constant 0 : index
    %c0_279 = arith.constant 0 : index
    %364 = vector.load %arg5[%c3_277, %c0_278, %c0_279] : memref<4x16x32xf32, #tpu.memory_space<vmem>>, vector<1x16x32xf32>
    %365 = vector.shape_cast %364 : vector<1x16x32xf32> to vector<16x32xf32>
    %366 = vector.extract_strided_slice %354 {offsets = [0, 0], sizes = [16, 8], strides = [1, 1]} : vector<16x16xf32> to vector<16x8xf32>
    %cst_280 = arith.constant dense<0.000000e+00> : vector<16x32xf32>
    %367 = tpu.matmul %366, %361, %cst_280 {dimension_numbers = #tpu.dot_dimension_numbers<[1], [0], [0], [1], [0, 0, 1, 1], [], []>} : vector<16x8xf32>, vector<8x32xf32>, vector<16x32xf32> -> vector<16x32xf32>
    %368 = vector.extract_strided_slice %354 {offsets = [0, 8], sizes = [16, 8], strides = [1, 1]} : vector<16x16xf32> to vector<16x8xf32>
    %cst_281 = arith.constant dense<0.000000e+00> : vector<16x32xf32>
    %369 = tpu.matmul %368, %361, %cst_281 {dimension_numbers = #tpu.dot_dimension_numbers<[1], [0], [0], [1], [0, 0, 1, 1], [], []>} : vector<16x8xf32>, vector<8x32xf32>, vector<16x32xf32> -> vector<16x32xf32>
    %370 = tpu.concatenate %367, %369 in 1 : vector<16x32xf32>, vector<16x32xf32> -> vector<16x64xf32>
    %cst_282 = arith.constant dense<0.000000e+00> : vector<16x64xf32>
    %371 = tpu.matmul %359, %370, %cst_282 {dimension_numbers = #tpu.dot_dimension_numbers<[1], [0], [0], [1], [0, 0, 1, 1], [], []>} : vector<16x16xf32>, vector<16x64xf32>, vector<16x64xf32> -> vector<16x64xf32>
    %372 = tpu.concatenate %363, %363 in 1 : vector<16x32xf32>, vector<16x32xf32> -> vector<16x64xf32>
    %373 = tpu.concatenate %365, %365 in 1 : vector<16x32xf32>, vector<16x32xf32> -> vector<16x64xf32>
    %374 = arith.mulf %371, %372 : vector<16x64xf32>
    %375 = arith.addf %374, %373 : vector<16x64xf32>
    %376 = math.tanh %375 : vector<16x64xf32>
    %c12 = arith.constant 12 : index
    %c0_283 = arith.constant 0 : index
    %c0_284 = arith.constant 0 : index
    %377 = vector.load %arg6[%c12, %c0_283, %c0_284] : memref<16x16x16xf32, #tpu.memory_space<vmem>>, vector<1x16x16xf32>
    %378 = vector.shape_cast %377 : vector<1x16x16xf32> to vector<16x16xf32>
    %c12_285 = arith.constant 12 : index
    %c0_286 = arith.constant 0 : index
    %c0_287 = arith.constant 0 : index
    %379 = vector.load %arg7[%c12_285, %c0_286, %c0_287] : memref<16x32x32xf32, #tpu.memory_space<vmem>>, vector<1x32x32xf32>
    %380 = vector.shape_cast %379 : vector<1x32x32xf32> to vector<32x32xf32>
    %c12_288 = arith.constant 12 : index
    %c0_289 = arith.constant 0 : index
    %c0_290 = arith.constant 0 : index
    %381 = vector.load %arg8[%c12_288, %c0_289, %c0_290] : memref<16x16x32xf32, #tpu.memory_space<vmem>>, vector<1x16x32xf32>
    %382 = vector.shape_cast %381 : vector<1x16x32xf32> to vector<16x32xf32>
    %c12_291 = arith.constant 12 : index
    %c0_292 = arith.constant 0 : index
    %c0_293 = arith.constant 0 : index
    %383 = vector.load %arg9[%c12_291, %c0_292, %c0_293] : memref<16x16x32xf32, #tpu.memory_space<vmem>>, vector<1x16x32xf32>
    %384 = vector.shape_cast %383 : vector<1x16x32xf32> to vector<16x32xf32>
    %385 = vector.extract_strided_slice %376 {offsets = [0, 0], sizes = [16, 32], strides = [1, 1]} : vector<16x64xf32> to vector<16x32xf32>
    %cst_294 = arith.constant dense<0.000000e+00> : vector<16x32xf32>
    %386 = tpu.matmul %385, %380, %cst_294 {dimension_numbers = #tpu.dot_dimension_numbers<[1], [0], [0], [1], [0, 0, 1, 1], [], []>} : vector<16x32xf32>, vector<32x32xf32>, vector<16x32xf32> -> vector<16x32xf32>
    %387 = vector.extract_strided_slice %376 {offsets = [0, 32], sizes = [16, 32], strides = [1, 1]} : vector<16x64xf32> to vector<16x32xf32>
    %cst_295 = arith.constant dense<0.000000e+00> : vector<16x32xf32>
    %388 = tpu.matmul %387, %380, %cst_295 {dimension_numbers = #tpu.dot_dimension_numbers<[1], [0], [0], [1], [0, 0, 1, 1], [], []>} : vector<16x32xf32>, vector<32x32xf32>, vector<16x32xf32> -> vector<16x32xf32>
    %389 = tpu.concatenate %386, %388 in 1 : vector<16x32xf32>, vector<16x32xf32> -> vector<16x64xf32>
    %cst_296 = arith.constant dense<0.000000e+00> : vector<16x64xf32>
    %390 = tpu.matmul %378, %389, %cst_296 {dimension_numbers = #tpu.dot_dimension_numbers<[1], [0], [0], [1], [0, 0, 1, 1], [], []>} : vector<16x16xf32>, vector<16x64xf32>, vector<16x64xf32> -> vector<16x64xf32>
    %391 = tpu.concatenate %382, %382 in 1 : vector<16x32xf32>, vector<16x32xf32> -> vector<16x64xf32>
    %392 = tpu.concatenate %384, %384 in 1 : vector<16x32xf32>, vector<16x32xf32> -> vector<16x64xf32>
    %393 = arith.mulf %390, %391 : vector<16x64xf32>
    %394 = arith.addf %393, %392 : vector<16x64xf32>
    %395 = math.tanh %394 : vector<16x64xf32>
    %c13 = arith.constant 13 : index
    %c0_297 = arith.constant 0 : index
    %c0_298 = arith.constant 0 : index
    %396 = vector.load %arg6[%c13, %c0_297, %c0_298] : memref<16x16x16xf32, #tpu.memory_space<vmem>>, vector<1x16x16xf32>
    %397 = vector.shape_cast %396 : vector<1x16x16xf32> to vector<16x16xf32>
    %c13_299 = arith.constant 13 : index
    %c0_300 = arith.constant 0 : index
    %c0_301 = arith.constant 0 : index
    %398 = vector.load %arg7[%c13_299, %c0_300, %c0_301] : memref<16x32x32xf32, #tpu.memory_space<vmem>>, vector<1x32x32xf32>
    %399 = vector.shape_cast %398 : vector<1x32x32xf32> to vector<32x32xf32>
    %c13_302 = arith.constant 13 : index
    %c0_303 = arith.constant 0 : index
    %c0_304 = arith.constant 0 : index
    %400 = vector.load %arg8[%c13_302, %c0_303, %c0_304] : memref<16x16x32xf32, #tpu.memory_space<vmem>>, vector<1x16x32xf32>
    %401 = vector.shape_cast %400 : vector<1x16x32xf32> to vector<16x32xf32>
    %c13_305 = arith.constant 13 : index
    %c0_306 = arith.constant 0 : index
    %c0_307 = arith.constant 0 : index
    %402 = vector.load %arg9[%c13_305, %c0_306, %c0_307] : memref<16x16x32xf32, #tpu.memory_space<vmem>>, vector<1x16x32xf32>
    %403 = vector.shape_cast %402 : vector<1x16x32xf32> to vector<16x32xf32>
    %404 = vector.extract_strided_slice %395 {offsets = [0, 0], sizes = [16, 32], strides = [1, 1]} : vector<16x64xf32> to vector<16x32xf32>
    %cst_308 = arith.constant dense<0.000000e+00> : vector<16x32xf32>
    %405 = tpu.matmul %404, %399, %cst_308 {dimension_numbers = #tpu.dot_dimension_numbers<[1], [0], [0], [1], [0, 0, 1, 1], [], []>} : vector<16x32xf32>, vector<32x32xf32>, vector<16x32xf32> -> vector<16x32xf32>
    %406 = vector.extract_strided_slice %395 {offsets = [0, 32], sizes = [16, 32], strides = [1, 1]} : vector<16x64xf32> to vector<16x32xf32>
    %cst_309 = arith.constant dense<0.000000e+00> : vector<16x32xf32>
    %407 = tpu.matmul %406, %399, %cst_309 {dimension_numbers = #tpu.dot_dimension_numbers<[1], [0], [0], [1], [0, 0, 1, 1], [], []>} : vector<16x32xf32>, vector<32x32xf32>, vector<16x32xf32> -> vector<16x32xf32>
    %408 = tpu.concatenate %405, %407 in 1 : vector<16x32xf32>, vector<16x32xf32> -> vector<16x64xf32>
    %cst_310 = arith.constant dense<0.000000e+00> : vector<16x64xf32>
    %409 = tpu.matmul %397, %408, %cst_310 {dimension_numbers = #tpu.dot_dimension_numbers<[1], [0], [0], [1], [0, 0, 1, 1], [], []>} : vector<16x16xf32>, vector<16x64xf32>, vector<16x64xf32> -> vector<16x64xf32>
    %410 = tpu.concatenate %401, %401 in 1 : vector<16x32xf32>, vector<16x32xf32> -> vector<16x64xf32>
    %411 = tpu.concatenate %403, %403 in 1 : vector<16x32xf32>, vector<16x32xf32> -> vector<16x64xf32>
    %412 = arith.mulf %409, %410 : vector<16x64xf32>
    %413 = arith.addf %412, %411 : vector<16x64xf32>
    %414 = math.tanh %413 : vector<16x64xf32>
    %415 = arith.addf %376, %414 : vector<16x64xf32>
    %c14 = arith.constant 14 : index
    %c0_311 = arith.constant 0 : index
    %c0_312 = arith.constant 0 : index
    %416 = vector.load %arg6[%c14, %c0_311, %c0_312] : memref<16x16x16xf32, #tpu.memory_space<vmem>>, vector<1x16x16xf32>
    %417 = vector.shape_cast %416 : vector<1x16x16xf32> to vector<16x16xf32>
    %c14_313 = arith.constant 14 : index
    %c0_314 = arith.constant 0 : index
    %c0_315 = arith.constant 0 : index
    %418 = vector.load %arg7[%c14_313, %c0_314, %c0_315] : memref<16x32x32xf32, #tpu.memory_space<vmem>>, vector<1x32x32xf32>
    %419 = vector.shape_cast %418 : vector<1x32x32xf32> to vector<32x32xf32>
    %c14_316 = arith.constant 14 : index
    %c0_317 = arith.constant 0 : index
    %c0_318 = arith.constant 0 : index
    %420 = vector.load %arg8[%c14_316, %c0_317, %c0_318] : memref<16x16x32xf32, #tpu.memory_space<vmem>>, vector<1x16x32xf32>
    %421 = vector.shape_cast %420 : vector<1x16x32xf32> to vector<16x32xf32>
    %c14_319 = arith.constant 14 : index
    %c0_320 = arith.constant 0 : index
    %c0_321 = arith.constant 0 : index
    %422 = vector.load %arg9[%c14_319, %c0_320, %c0_321] : memref<16x16x32xf32, #tpu.memory_space<vmem>>, vector<1x16x32xf32>
    %423 = vector.shape_cast %422 : vector<1x16x32xf32> to vector<16x32xf32>
    %424 = vector.extract_strided_slice %415 {offsets = [0, 0], sizes = [16, 32], strides = [1, 1]} : vector<16x64xf32> to vector<16x32xf32>
    %cst_322 = arith.constant dense<0.000000e+00> : vector<16x32xf32>
    %425 = tpu.matmul %424, %419, %cst_322 {dimension_numbers = #tpu.dot_dimension_numbers<[1], [0], [0], [1], [0, 0, 1, 1], [], []>} : vector<16x32xf32>, vector<32x32xf32>, vector<16x32xf32> -> vector<16x32xf32>
    %426 = vector.extract_strided_slice %415 {offsets = [0, 32], sizes = [16, 32], strides = [1, 1]} : vector<16x64xf32> to vector<16x32xf32>
    %cst_323 = arith.constant dense<0.000000e+00> : vector<16x32xf32>
    %427 = tpu.matmul %426, %419, %cst_323 {dimension_numbers = #tpu.dot_dimension_numbers<[1], [0], [0], [1], [0, 0, 1, 1], [], []>} : vector<16x32xf32>, vector<32x32xf32>, vector<16x32xf32> -> vector<16x32xf32>
    %428 = tpu.concatenate %425, %427 in 1 : vector<16x32xf32>, vector<16x32xf32> -> vector<16x64xf32>
    %cst_324 = arith.constant dense<0.000000e+00> : vector<16x64xf32>
    %429 = tpu.matmul %417, %428, %cst_324 {dimension_numbers = #tpu.dot_dimension_numbers<[1], [0], [0], [1], [0, 0, 1, 1], [], []>} : vector<16x16xf32>, vector<16x64xf32>, vector<16x64xf32> -> vector<16x64xf32>
    %430 = tpu.concatenate %421, %421 in 1 : vector<16x32xf32>, vector<16x32xf32> -> vector<16x64xf32>
    %431 = tpu.concatenate %423, %423 in 1 : vector<16x32xf32>, vector<16x32xf32> -> vector<16x64xf32>
    %432 = arith.mulf %429, %430 : vector<16x64xf32>
    %433 = arith.addf %432, %431 : vector<16x64xf32>
    %434 = math.tanh %433 : vector<16x64xf32>
    %c15 = arith.constant 15 : index
    %c0_325 = arith.constant 0 : index
    %c0_326 = arith.constant 0 : index
    %435 = vector.load %arg6[%c15, %c0_325, %c0_326] : memref<16x16x16xf32, #tpu.memory_space<vmem>>, vector<1x16x16xf32>
    %436 = vector.shape_cast %435 : vector<1x16x16xf32> to vector<16x16xf32>
    %c15_327 = arith.constant 15 : index
    %c0_328 = arith.constant 0 : index
    %c0_329 = arith.constant 0 : index
    %437 = vector.load %arg7[%c15_327, %c0_328, %c0_329] : memref<16x32x32xf32, #tpu.memory_space<vmem>>, vector<1x32x32xf32>
    %438 = vector.shape_cast %437 : vector<1x32x32xf32> to vector<32x32xf32>
    %c15_330 = arith.constant 15 : index
    %c0_331 = arith.constant 0 : index
    %c0_332 = arith.constant 0 : index
    %439 = vector.load %arg8[%c15_330, %c0_331, %c0_332] : memref<16x16x32xf32, #tpu.memory_space<vmem>>, vector<1x16x32xf32>
    %440 = vector.shape_cast %439 : vector<1x16x32xf32> to vector<16x32xf32>
    %c15_333 = arith.constant 15 : index
    %c0_334 = arith.constant 0 : index
    %c0_335 = arith.constant 0 : index
    %441 = vector.load %arg9[%c15_333, %c0_334, %c0_335] : memref<16x16x32xf32, #tpu.memory_space<vmem>>, vector<1x16x32xf32>
    %442 = vector.shape_cast %441 : vector<1x16x32xf32> to vector<16x32xf32>
    %443 = vector.extract_strided_slice %434 {offsets = [0, 0], sizes = [16, 32], strides = [1, 1]} : vector<16x64xf32> to vector<16x32xf32>
    %cst_336 = arith.constant dense<0.000000e+00> : vector<16x32xf32>
    %444 = tpu.matmul %443, %438, %cst_336 {dimension_numbers = #tpu.dot_dimension_numbers<[1], [0], [0], [1], [0, 0, 1, 1], [], []>} : vector<16x32xf32>, vector<32x32xf32>, vector<16x32xf32> -> vector<16x32xf32>
    %445 = vector.extract_strided_slice %434 {offsets = [0, 32], sizes = [16, 32], strides = [1, 1]} : vector<16x64xf32> to vector<16x32xf32>
    %cst_337 = arith.constant dense<0.000000e+00> : vector<16x32xf32>
    %446 = tpu.matmul %445, %438, %cst_337 {dimension_numbers = #tpu.dot_dimension_numbers<[1], [0], [0], [1], [0, 0, 1, 1], [], []>} : vector<16x32xf32>, vector<32x32xf32>, vector<16x32xf32> -> vector<16x32xf32>
    %447 = tpu.concatenate %444, %446 in 1 : vector<16x32xf32>, vector<16x32xf32> -> vector<16x64xf32>
    %cst_338 = arith.constant dense<0.000000e+00> : vector<16x64xf32>
    %448 = tpu.matmul %436, %447, %cst_338 {dimension_numbers = #tpu.dot_dimension_numbers<[1], [0], [0], [1], [0, 0, 1, 1], [], []>} : vector<16x16xf32>, vector<16x64xf32>, vector<16x64xf32> -> vector<16x64xf32>
    %449 = tpu.concatenate %440, %440 in 1 : vector<16x32xf32>, vector<16x32xf32> -> vector<16x64xf32>
    %450 = tpu.concatenate %442, %442 in 1 : vector<16x32xf32>, vector<16x32xf32> -> vector<16x64xf32>
    %451 = arith.mulf %448, %449 : vector<16x64xf32>
    %452 = arith.addf %451, %450 : vector<16x64xf32>
    %453 = math.tanh %452 : vector<16x64xf32>
    %454 = arith.addf %415, %453 : vector<16x64xf32>
    %c3_339 = arith.constant 3 : index
    %c0_340 = arith.constant 0 : index
    %c0_341 = arith.constant 0 : index
    %455 = vector.load %arg10[%c3_339, %c0_340, %c0_341] : memref<4x16x16xf32, #tpu.memory_space<vmem>>, vector<1x16x16xf32>
    %456 = vector.shape_cast %455 : vector<1x16x16xf32> to vector<16x16xf32>
    %c3_342 = arith.constant 3 : index
    %c0_343 = arith.constant 0 : index
    %c0_344 = arith.constant 0 : index
    %457 = vector.load %arg11[%c3_342, %c0_343, %c0_344] : memref<4x32x8xf32, #tpu.memory_space<vmem>>, vector<1x32x8xf32>
    %458 = vector.shape_cast %457 : vector<1x32x8xf32> to vector<32x8xf32>
    %c3_345 = arith.constant 3 : index
    %c0_346 = arith.constant 0 : index
    %c0_347 = arith.constant 0 : index
    %459 = vector.load %arg12[%c3_345, %c0_346, %c0_347] : memref<4x16x8xf32, #tpu.memory_space<vmem>>, vector<1x16x8xf32>
    %460 = vector.shape_cast %459 : vector<1x16x8xf32> to vector<16x8xf32>
    %c3_348 = arith.constant 3 : index
    %c0_349 = arith.constant 0 : index
    %c0_350 = arith.constant 0 : index
    %461 = vector.load %arg13[%c3_348, %c0_349, %c0_350] : memref<4x16x8xf32, #tpu.memory_space<vmem>>, vector<1x16x8xf32>
    %462 = vector.shape_cast %461 : vector<1x16x8xf32> to vector<16x8xf32>
    %463 = vector.extract_strided_slice %454 {offsets = [0, 0], sizes = [16, 32], strides = [1, 1]} : vector<16x64xf32> to vector<16x32xf32>
    %cst_351 = arith.constant dense<0.000000e+00> : vector<16x8xf32>
    %464 = tpu.matmul %463, %458, %cst_351 {dimension_numbers = #tpu.dot_dimension_numbers<[1], [0], [0], [1], [0, 0, 1, 1], [], []>} : vector<16x32xf32>, vector<32x8xf32>, vector<16x8xf32> -> vector<16x8xf32>
    %465 = vector.extract_strided_slice %454 {offsets = [0, 32], sizes = [16, 32], strides = [1, 1]} : vector<16x64xf32> to vector<16x32xf32>
    %cst_352 = arith.constant dense<0.000000e+00> : vector<16x8xf32>
    %466 = tpu.matmul %465, %458, %cst_352 {dimension_numbers = #tpu.dot_dimension_numbers<[1], [0], [0], [1], [0, 0, 1, 1], [], []>} : vector<16x32xf32>, vector<32x8xf32>, vector<16x8xf32> -> vector<16x8xf32>
    %467 = tpu.concatenate %464, %466 in 1 : vector<16x8xf32>, vector<16x8xf32> -> vector<16x16xf32>
    %cst_353 = arith.constant dense<0.000000e+00> : vector<16x16xf32>
    %468 = tpu.matmul %456, %467, %cst_353 {dimension_numbers = #tpu.dot_dimension_numbers<[1], [0], [0], [1], [0, 0, 1, 1], [], []>} : vector<16x16xf32>, vector<16x16xf32>, vector<16x16xf32> -> vector<16x16xf32>
    %469 = tpu.concatenate %460, %460 in 1 : vector<16x8xf32>, vector<16x8xf32> -> vector<16x16xf32>
    %470 = tpu.concatenate %462, %462 in 1 : vector<16x8xf32>, vector<16x8xf32> -> vector<16x16xf32>
    %471 = arith.mulf %468, %469 : vector<16x16xf32>
    %472 = arith.addf %471, %470 : vector<16x16xf32>
    %473 = arith.addf %472, %354 : vector<16x16xf32>
    %c3_354 = arith.constant 3 : index
    %c0_355 = arith.constant 0 : index
    %c0_356 = arith.constant 0 : index
    %474 = vector.load %arg14[%c3_354, %c0_355, %c0_356] : memref<4x16x16xf32, #tpu.memory_space<vmem>>, vector<1x16x16xf32>
    %475 = vector.shape_cast %474 : vector<1x16x16xf32> to vector<16x16xf32>
    %476 = vector.shape_cast %473 : vector<16x16xf32> to vector<1x16x16xf32>
    tpu.vector_store %arg14[%c3_354, %c0_355, %c0_356], %476 {strides = array<i32>} : memref<4x16x16xf32, #tpu.memory_space<vmem>>, vector<1x16x16xf32>,
    return
  }
  func.func @transform_0(%arg0: i32) -> (i32, i32) {
    %c0_i32 = arith.constant 0 : i32
    %c0_i32_0 = arith.constant 0 : i32
    return %c0_i32, %arg0 : i32, i32
  }
  func.func @transform_1(%arg0: i32) -> (i32, i32, i32) {
    %c0_i32 = arith.constant 0 : i32
    %c0_i32_0 = arith.constant 0 : i32
    %c0_i32_1 = arith.constant 0 : i32
    %c0_i32_2 = arith.constant 0 : i32
    return %c0_i32, %c0_i32_0, %c0_i32_1 : i32, i32, i32
  }
  func.func @transform_2(%arg0: i32) -> (i32, i32, i32) {
    %c0_i32 = arith.constant 0 : i32
    %c0_i32_0 = arith.constant 0 : i32
    %c0_i32_1 = arith.constant 0 : i32
    %c0_i32_2 = arith.constant 0 : i32
    return %c0_i32, %c0_i32_0, %c0_i32_1 : i32, i32, i32
  }
  func.func @transform_3(%arg0: i32) -> (i32, i32, i32) {
    %c0_i32 = arith.constant 0 : i32
    %c0_i32_0 = arith.constant 0 : i32
    %c0_i32_1 = arith.constant 0 : i32
    %c0_i32_2 = arith.constant 0 : i32
    return %c0_i32, %c0_i32_0, %c0_i32_1 : i32, i32, i32
  }
  func.func @transform_4(%arg0: i32) -> (i32, i32, i32) {
    %c0_i32 = arith.constant 0 : i32
    %c0_i32_0 = arith.constant 0 : i32
    %c0_i32_1 = arith.constant 0 : i32
    %c0_i32_2 = arith.constant 0 : i32
    return %c0_i32, %c0_i32_0, %c0_i32_1 : i32, i32, i32
  }
  func.func @transform_5(%arg0: i32) -> (i32, i32, i32) {
    %c0_i32 = arith.constant 0 : i32
    %c0_i32_0 = arith.constant 0 : i32
    %c0_i32_1 = arith.constant 0 : i32
    %c0_i32_2 = arith.constant 0 : i32
    return %c0_i32, %c0_i32_0, %c0_i32_1 : i32, i32, i32
  }
  func.func @transform_6(%arg0: i32) -> (i32, i32, i32) {
    %c0_i32 = arith.constant 0 : i32
    %c0_i32_0 = arith.constant 0 : i32
    %c0_i32_1 = arith.constant 0 : i32
    %c0_i32_2 = arith.constant 0 : i32
    return %c0_i32, %c0_i32_0, %c0_i32_1 : i32, i32, i32
  }
  func.func @transform_7(%arg0: i32) -> (i32, i32, i32) {
    %c0_i32 = arith.constant 0 : i32
    %c0_i32_0 = arith.constant 0 : i32
    %c0_i32_1 = arith.constant 0 : i32
    %c0_i32_2 = arith.constant 0 : i32
    return %c0_i32, %c0_i32_0, %c0_i32_1 : i32, i32, i32
  }
  func.func @transform_8(%arg0: i32) -> (i32, i32, i32) {
    %c0_i32 = arith.constant 0 : i32
    %c0_i32_0 = arith.constant 0 : i32
    %c0_i32_1 = arith.constant 0 : i32
    %c0_i32_2 = arith.constant 0 : i32
    return %c0_i32, %c0_i32_0, %c0_i32_1 : i32, i32, i32
  }
  func.func @transform_9(%arg0: i32) -> (i32, i32, i32) {
    %c0_i32 = arith.constant 0 : i32
    %c0_i32_0 = arith.constant 0 : i32
    %c0_i32_1 = arith.constant 0 : i32
    %c0_i32_2 = arith.constant 0 : i32
    return %c0_i32, %c0_i32_0, %c0_i32_1 : i32, i32, i32
  }
  func.func @transform_10(%arg0: i32) -> (i32, i32, i32) {
    %c0_i32 = arith.constant 0 : i32
    %c0_i32_0 = arith.constant 0 : i32
    %c0_i32_1 = arith.constant 0 : i32
    %c0_i32_2 = arith.constant 0 : i32
    return %c0_i32, %c0_i32_0, %c0_i32_1 : i32, i32, i32
  }
  func.func @transform_11(%arg0: i32) -> (i32, i32, i32) {
    %c0_i32 = arith.constant 0 : i32
    %c0_i32_0 = arith.constant 0 : i32
    %c0_i32_1 = arith.constant 0 : i32
    %c0_i32_2 = arith.constant 0 : i32
    return %c0_i32, %c0_i32_0, %c0_i32_1 : i32, i32, i32
  }
  func.func @transform_12(%arg0: i32) -> (i32, i32, i32) {
    %c0_i32 = arith.constant 0 : i32
    %c0_i32_0 = arith.constant 0 : i32
    %c0_i32_1 = arith.constant 0 : i32
    %c0_i32_2 = arith.constant 0 : i32
    return %c0_i32, %c0_i32_0, %c0_i32_1 : i32, i32, i32
  }
  func.func @transform_13(%arg0: i32) -> (i32, i32, i32) {
    %c0_i32 = arith.constant 0 : i32
    %c0_i32_0 = arith.constant 0 : i32
    %c0_i32_1 = arith.constant 0 : i32
    return %c0_i32, %c0_i32_0, %arg0 : i32, i32, i32
  }
}

</mosaic_0001>

<llo_original>
// kernel: _multistage_forward_impl.1
$region0: #{_multistage_forward_impl.1}
  #allocation0 [shape = 'u32[]', space=smem, size = 0x4, offset = 0x4, fixed_abs, tag = 'smem constant byte address 0x4 - core index']
  #allocation1 [shape = 'u32[144,128]{1,0:T(1,128)}', space=vmem, size = 0x12000, scoped, tag = 'internal scratch']
  %s0 = inlined_call_operand.vmem [shape: f32[16,16], index: 0, kind: input, shape index: {}]
  %s1 = inlined_call_operand.vmem [shape: f32[4,16,16], index: 1, kind: input, shape index: {}]
  %s2 = inlined_call_operand.vmem [shape: f32[4,8,32], index: 2, kind: input, shape index: {}]
  %s3 = inlined_call_operand.vmem [shape: f32[4,16,32], index: 3, kind: input, shape index: {}]
  %s4 = inlined_call_operand.hbm [shape: f32[4,16,32], index: 4, kind: input, shape index: {}]
  %s5 = inlined_call_operand.vmem [shape: f32[16,16,16], index: 5, kind: input, shape index: {}]
  %s6 = inlined_call_operand.hbm [shape: f32[16,32,32], index: 6, kind: input, shape index: {}]
  %s7 = inlined_call_operand.hbm [shape: f32[16,16,32], index: 7, kind: input, shape index: {}]
  %s8 = inlined_call_operand.hbm [shape: f32[16,16,32], index: 8, kind: input, shape index: {}]
  %s9 = inlined_call_operand.hbm [shape: f32[4,16,16], index: 9, kind: input, shape index: {}]
  %s10 = inlined_call_operand.vmem [shape: f32[4,32,8], index: 10, kind: input, shape index: {}]
  %s11 = inlined_call_operand.vmem [shape: f32[4,16,8], index: 11, kind: input, shape index: {}]
  %s12 = inlined_call_operand.vmem [shape: f32[4,16,8], index: 12, kind: input, shape index: {}]
  %s13 = inlined_call_operand.vmem [shape: f32[4,16,16], index: 13, kind: output, shape index: {}]
  %s14 = sld [smem:[#allocation0]]
  $region82: #{_multistage_forward_impl.1} parent=0
    _
  %s16 = ssub.s32 1, %s14
  %s17 = scalar_select 0, %s16, %s14
  $region1: #{_multistage_forward_impl.1} parent=0
    #allocation2 [shape = 'u8[32768]{0}', space=vmem, size = 0x8000, scoped, tag = 'input window, operand 4, single buffered']
    #allocation3 [shape = 's32[1]{0}', space=sflag, size = 0x4, scoped, tag = 'scoped memory for _multistage_forward_impl.1']
    #allocation4 [shape = 'u8[262144]{0}', space=vmem, size = 0x40000, scoped, tag = 'input window, operand 6, single buffered']
    #allocation5 [shape = 's32[1]{0}', space=sflag, size = 0x4, scoped, tag = 'scoped memory for _multistage_forward_impl.1']
    #allocation6 [shape = 'u8[131072]{0}', space=vmem, size = 0x20000, scoped, tag = 'input window, operand 7, single buffered']
    #allocation7 [shape = 'u8[131072]{0}', space=vmem, size = 0x20000, scoped, tag = 'input window, operand 8, single buffered']
    #allocation8 [shape = 's32[1]{0}', space=sflag, size = 0x4, scoped, tag = 'scoped memory for _multistage_forward_impl.1']
    #allocation9 [shape = 'u8[32768]{0}', space=vmem, size = 0x8000, scoped, tag = 'input window, operand 9, single buffered']
    %18 = vsyncpa [#allocation3], 0
    %19 = vsyncpa [#allocation5], 0
    %20 = vsyncpa [#allocation8], 0
    // Predicated region
    $region2: #{_multistage_forward_impl.1} parent=1 // pred_check
      _
    $region3: #{_multistage_forward_impl.1} parent=1 // pred_check_branch
      %22 = sbr.rel (0) target = $region5
    $region4: #{_multistage_forward_impl.1} parent=1 // pred_region
      _
    $region5: #{_multistage_forward_impl.1} parent=1 // pred_fallthru
      _
    // Predicated region
    $region6: #{_multistage_forward_impl.1} parent=1 // pred_check
      _
    $region7: #{_multistage_forward_impl.1} parent=1 // pred_check_branch
      %24 = sbr.rel (0) target = $region9
    $region8: #{_multistage_forward_impl.1} parent=1 // pred_region
      _
    $region9: #{_multistage_forward_impl.1} parent=1 // pred_fallthru
      _
    // Predicated region
    $region10: #{_multistage_forward_impl.1} parent=1 // pred_check
      _
    $region11: #{_multistage_forward_impl.1} parent=1 // pred_check_branch
      %26 = sbr.rel (0) target = $region13
    $region12: #{_multistage_forward_impl.1} parent=1 // pred_region
      _
    $region13: #{_multistage_forward_impl.1} parent=1 // pred_fallthru
      _
    // Predicated region
    $region14: #{_multistage_forward_impl.1} parent=1 // pred_check
      _
    $region15: #{_multistage_forward_impl.1} parent=1 // pred_check_branch
      %28 = sbr.rel (0) target = $region17
    $region16: #{_multistage_forward_impl.1} parent=1 // pred_region
      _
    $region17: #{_multistage_forward_impl.1} parent=1 // pred_fallthru
      _
    // Predicated region
    $region18: #{_multistage_forward_impl.1} parent=1 // pred_check
      _
    $region19: #{_multistage_forward_impl.1} parent=1 // pred_check_branch
      %30 = sbr.rel (0) target = $region21
    $region20: #{_multistage_forward_impl.1} parent=1 // pred_region
      %s32 = ssub.s32 1024, 1024
      %33 = vsyncadd [#allocation3], %s32
      %s34 = sshll.u32 [#allocation2], 4
      %s35 = int_to_ptr.vmem [resolvable:$true] %s34
      %40 = dma.hbm_to_vmem [thread:$0]  %s4, 1024, %s35, [#allocation3], 128, 128, 8
    $region21: #{_multistage_forward_impl.1} parent=1 // pred_fallthru
      _
    // Predicated region
    $region22: #{_multistage_forward_impl.1} parent=1 // pred_check
      _
    $region23: #{_multistage_forward_impl.1} parent=1 // pred_check_branch
      %42 = sbr.rel (0) target = $region25
    $region24: #{_multistage_forward_impl.1} parent=1 // pred_region
      _
    $region25: #{_multistage_forward_impl.1} parent=1 // pred_fallthru
      _
    // Predicated region
    $region26: #{_multistage_forward_impl.1} parent=1 // pred_check
      _
    $region27: #{_multistage_forward_impl.1} parent=1 // pred_check_branch
      %44 = sbr.rel (0) target = $region29
    $region28: #{_multistage_forward_impl.1} parent=1 // pred_region
      %s46 = ssub.s32 8192, 8192
      %47 = vsyncadd [#allocation5], %s46
      %s48 = sshll.u32 [#allocation4], 4
      %s49 = int_to_ptr.vmem [resolvable:$true] %s48
      %54 = dma.hbm_to_vmem [thread:$0]  %s6, 8192, %s49, [#allocation5], 128, 128, 8
    $region29: #{_multistage_forward_impl.1} parent=1 // pred_fallthru
      _
    // Predicated region
    $region30: #{_multistage_forward_impl.1} parent=1 // pred_check
      _
    $region31: #{_multistage_forward_impl.1} parent=1 // pred_check_branch
      %56 = sbr.rel (0) target = $region33
    $region32: #{_multistage_forward_impl.1} parent=1 // pred_region
      %s58 = ssub.s32 4096, 4096
      %59 = vsyncadd [#allocation5], %s58
      %s60 = sshll.u32 [#allocation6], 4
      %s61 = int_to_ptr.vmem [resolvable:$true] %s60
      %66 = dma.hbm_to_vmem [thread:$0]  %s7, 4096, %s61, [#allocation5], 128, 128, 8
    $region33: #{_multistage_forward_impl.1} parent=1 // pred_fallthru
      _
    // Predicated region
    $region34: #{_multistage_forward_impl.1} parent=1 // pred_check
      _
    $region35: #{_multistage_forward_impl.1} parent=1 // pred_check_branch
      %68 = sbr.rel (0) target = $region37
    $region36: #{_multistage_forward_impl.1} parent=1 // pred_region
      %s70 = ssub.s32 4096, 4096
      %71 = vsyncadd [#allocation8], %s70
      %s72 = sshll.u32 [#allocation7], 4
      %s73 = int_to_ptr.vmem [resolvable:$true] %s72
      %78 = dma.hbm_to_vmem [thread:$0]  %s8, 4096, %s73, [#allocation8], 128, 128, 8
    $region37: #{_multistage_forward_impl.1} parent=1 // pred_fallthru
      _
    // Predicated region
    $region38: #{_multistage_forward_impl.1} parent=1 // pred_check
      _
    $region39: #{_multistage_forward_impl.1} parent=1 // pred_check_branch
      %80 = sbr.rel (0) target = $region41
    $region40: #{_multistage_forward_impl.1} parent=1 // pred_region
      %s82 = ssub.s32 1024, 1024
      %83 = vsyncadd [#allocation8], %s82
      %s84 = sshll.u32 [#allocation9], 4
      %s85 = int_to_ptr.vmem [resolvable:$true] %s84
      %90 = dma.hbm_to_vmem [thread:$0]  %s9, 1024, %s85, [#allocation8], 128, 128, 8
    $region41: #{_multistage_forward_impl.1} parent=1 // pred_fallthru
      _
    // Predicated region
    $region42: #{_multistage_forward_impl.1} parent=1 // pred_check
      _
    $region43: #{_multistage_forward_impl.1} parent=1 // pred_check_branch
      %92 = sbr.rel (0) target = $region45
    $region44: #{_multistage_forward_impl.1} parent=1 // pred_region
      _
    $region45: #{_multistage_forward_impl.1} parent=1 // pred_fallthru
      _
    // Predicated region
    $region46: #{_multistage_forward_impl.1} parent=1 // pred_check
      _
    $region47: #{_multistage_forward_impl.1} parent=1 // pred_check_branch
      %94 = sbr.rel (0) target = $region49
    $region48: #{_multistage_forward_impl.1} parent=1 // pred_region
      _
    $region49: #{_multistage_forward_impl.1} parent=1 // pred_fallthru
      _
    // Predicated region
    $region50: #{_multistage_forward_impl.1} parent=1 // pred_check
      _
    $region51: #{_multistage_forward_impl.1} parent=1 // pred_check_branch
      %96 = sbr.rel (0) target = $region53
    $region52: #{_multistage_forward_impl.1} parent=1 // pred_region
      _
    $region53: #{_multistage_forward_impl.1} parent=1 // pred_fallthru
      _
    // Predicated region
    $region54: #{_multistage_forward_impl.1} parent=1 // pred_check
      _
    $region55: #{_multistage_forward_impl.1} parent=1 // pred_check_branch
      %98 = sbr.rel (0) target = $region57
    $region56: #{_multistage_forward_impl.1} parent=1 // pred_region
      %99 = dma.done [#allocation3], 1024
    $region57: #{_multistage_forward_impl.1} parent=1 // pred_fallthru
      _
    // Predicated region
    $region58: #{_multistage_forward_impl.1} parent=1 // pred_check
      _
    $region59: #{_multistage_forward_impl.1} parent=1 // pred_check_branch
      %101 = sbr.rel (0) target = $region61
    $region60: #{_multistage_forward_impl.1} parent=1 // pred_region
      %102 = dma.done [#allocation5], 8192
    $region61: #{_multistage_forward_impl.1} parent=1 // pred_fallthru
      _
    // Predicated region
    $region62: #{_multistage_forward_impl.1} parent=1 // pred_check
      _
    $region63: #{_multistage_forward_impl.1} parent=1 // pred_check_branch
      %104 = sbr.rel (0) target = $region65
    $region64: #{_multistage_forward_impl.1} parent=1 // pred_region
      %105 = dma.done [#allocation5], 4096
    $region65: #{_multistage_forward_impl.1} parent=1 // pred_fallthru
      _
    // Predicated region
    $region66: #{_multistage_forward_impl.1} parent=1 // pred_check
      _
    $region67: #{_multistage_forward_impl.1} parent=1 // pred_check_branch
      %107 = sbr.rel (0) target = $region69
    $region68: #{_multistage_forward_impl.1} parent=1 // pred_region
      %108 = dma.done [#allocation8], 4096
    $region69: #{_multistage_forward_impl.1} parent=1 // pred_fallthru
      _
    // Predicated region
    $region70: #{_multistage_forward_impl.1} parent=1 // pred_check
      _
    $region71: #{_multistage_forward_impl.1} parent=1 // pred_check_branch
      %110 = sbr.rel (0) target = $region73
    $region72: #{_multistage_forward_impl.1} parent=1 // pred_region
      %111 = dma.done [#allocation8], 1024
    $region73: #{_multistage_forward_impl.1} parent=1 // pred_fallthru
      _
    %v112 = vld [vmem:[%s0] sm:$0xff]
    %v113 = vld [vmem:[%s0 + $0x8] sm:$0xff]
    %v114 = vld [vmem:[%s1] sm:$0xff]
    %v115 = vld [vmem:[%s1 + $0x8] sm:$0xff]
    %v116 = vld [vmem:[%s2] sm:$0xff]
    %v117 = vld [vmem:[%s3] sm:$0xff]
    %v118 = vld [vmem:[%s3 + $0x8] sm:$0xff]
    %v119 = vld [vmem:[#allocation2] sm:$0xff]
    %v120 = vld [vmem:[#allocation2 + $0x8] sm:$0xff]
    %vm121 = vcmask 64512
    %v123 = vsel %vm121, %v112, 0
    %v126 = vsel %vm121, %v113, 0
    %128 = vmatprep.subr.mxu0 0.0
    %129 = vmatpush1.msra.mxu0 %v116
    %130 = vmatprep.subr.mxu0 0.0
    %131 = vmatpush1.msra.mxu0 0.0
    %132 = vmatprep.subr.mxu0 0.0
    %133 = vmatpush1.msra.mxu0 0.0
    %134 = vmatprep.subr.mxu0 0.0
    %135 = vmatpush1.msra.mxu0 0.0
    %136 = vmatprep.subr.mxu0 0.0
    %137 = vmatpush1.msra.mxu0 0.0
    %138 = vmatprep.subr.mxu0 0.0
    %139 = vmatpush1.msra.mxu0 0.0
    %140 = vmatprep.subr.mxu0 0.0
    %141 = vmatpush1.msra.mxu0 0.0
    %142 = vmatprep.subr.mxu0 0.0
    %143 = vmatpush1.msra.mxu0 0.0
    %144 = vmatprep.subr.mxu0 0.0
    %145 = vmatpush1.msra.mxu0 0.0
    %146 = vmatprep.subr.mxu0 0.0
    %147 = vmatpush1.msra.mxu0 0.0
    %148 = vmatprep.subr.mxu0 0.0
    %149 = vmatpush1.msra.mxu0 0.0
    %150 = vmatprep.subr.mxu0 0.0
    %151 = vmatpush1.msra.mxu0 0.0
    %152 = vmatprep.subr.mxu0 0.0
    %153 = vmatpush1.msra.mxu0 0.0
    %154 = vmatprep.subr.mxu0 0.0
    %155 = vmatpush1.msra.mxu0 0.0
    %156 = vmatprep.subr.mxu0 0.0
    %157 = vmatpush1.msra.mxu0 0.0
    %158 = vmatprep.subr.mxu0 0.0
    %159 = vmatpush1.msra.mxu0 0.0
    %160 = vmatprep.subr.mxu0 0.0
    %161 = vmatpush1.msra.mxu0 0.0
    %162 = vmatprep.subr.mxu0 0.0
    %163 = vmatpush1.msra.mxu0 0.0
    %164 = vmatprep.subr.mxu0 0.0
    %165 = vmatpush1.msra.mxu0 0.0
    %166 = vmatprep.subr.mxu0 0.0
    %167 = vmatpush1.msra.mxu0 0.0
    %168 = vmatprep.subr.mxu0 0.0
    %169 = vmatpush1.msra.mxu0 0.0
    %170 = vmatprep.subr.mxu0 0.0
    %171 = vmatpush1.msra.mxu0 0.0
    %172 = vmatprep.subr.mxu0 0.0
    %173 = vmatpush1.msra.mxu0 0.0
    %174 = vmatprep.subr.mxu0 0.0
    %175 = vmatpush1.msra.mxu0 0.0
    %176 = vmatprep.subr.mxu0 0.0
    %177 = vmatpush1.msra.mxu0 0.0
    %178 = vmatprep.subr.mxu0 0.0
    %179 = vmatpush1.msra.mxu0 0.0
    %180 = vmatprep.subr.mxu0 0.0
    %181 = vmatpush1.msra.mxu0 0.0
    %182 = vmatprep.subr.mxu0 0.0
    %183 = vmatpush1.msra.mxu0 0.0
    %184 = vmatprep.subr.mxu0 0.0
    %185 = vmatpush1.msra.mxu0 0.0
    %186 = vmatprep.subr.mxu0 0.0
    %187 = vmatpush1.msra.mxu0 0.0
    %188 = vmatprep.subr.mxu0 0.0
    %189 = vmatpush1.msra.mxu0 0.0
    %190 = vmatprep.subr.mxu0 0.0
    %191 = vmatpush1.msra.mxu0 0.0
    %192 = vmatprep.mubr.f32.mxu0 0.0
    %193 = vmatmul.mubr.f32.gmra.mrb[0].mxu0 %v123
    %v194 = vpop.f32.mrb[0].mxu0
    %v195 = vadd.f32 0.0, %v194
    %v196 = vpop.f32.mrb[0].mxu0
    %197 = vmatprep.mubr.f32.mxu0 0.0
    %198 = vmatmul.mubr.f32.gmra.mrb[0].mxu0 %v126
    %v199 = vpop.f32.mrb[0].mxu0
    %v200 = vadd.f32 0.0, %v199
    %v201 = vpop.f32.mrb[0].mxu0
    %202 = vdwg.mxu0
    %203 = vrot.lane.b32.xlu0 %v112, 120
    %v204 = vpop.permute.xlu0 %203
    %205 = vrot.lane.b32.xlu0 %v113, 120
    %v206 = vpop.permute.xlu0 %205
    %v207 = vsel %vm121, %v204, 0
    %v209 = vsel %vm121, %v206, 0
    %211 = vmatprep.subr.mxu0 0.0
    %212 = vmatpush1.msra.mxu0 %v116
    %213 = vmatprep.subr.mxu0 0.0
    %214 = vmatpush1.msra.mxu0 0.0
    %215 = vmatprep.subr.mxu0 0.0
    %216 = vmatpush1.msra.mxu0 0.0
    %217 = vmatprep.subr.mxu0 0.0
    %218 = vmatpush1.msra.mxu0 0.0
    %219 = vmatprep.subr.mxu0 0.0
    %220 = vmatpush1.msra.mxu0 0.0
    %221 = vmatprep.subr.mxu0 0.0
    %222 = vmatpush1.msra.mxu0 0.0
    %223 = vmatprep.subr.mxu0 0.0
    %224 = vmatpush1.msra.mxu0 0.0
    %225 = vmatprep.subr.mxu0 0.0
    %226 = vmatpush1.msra.mxu0 0.0
    %227 = vmatprep.subr.mxu0 0.0
    %228 = vmatpush1.msra.mxu0 0.0
    %229 = vmatprep.subr.mxu0 0.0
    %230 = vmatpush1.msra.mxu0 0.0
    %231 = vmatprep.subr.mxu0 0.0
    %232 = vmatpush1.msra.mxu0 0.0
    %233 = vmatprep.subr.mxu0 0.0
    %234 = vmatpush1.msra.mxu0 0.0
    %235 = vmatprep.subr.mxu0 0.0
    %236 = vmatpush1.msra.mxu0 0.0
    %237 = vmatprep.subr.mxu0 0.0
    %238 = vmatpush1.msra.mxu0 0.0
    %239 = vmatprep.subr.mxu0 0.0
    %240 = vmatpush1.msra.mxu0 0.0
    %241 = vmatprep.subr.mxu0 0.0
    %242 = vmatpush1.msra.mxu0 0.0
    %243 = vmatprep.subr.mxu0 0.0
    %244 = vmatpush1.msra.mxu0 0.0
    %245 = vmatprep.subr.mxu0 0.0
    %246 = vmatpush1.msra.mxu0 0.0
    %247 = vmatprep.subr.mxu0 0.0
    %248 = vmatpush1.msra.mxu0 0.0
    %249 = vmatprep.subr.mxu0 0.0
    %250 = vmatpush1.msra.mxu0 0.0
    %251 = vmatprep.subr.mxu0 0.0
    %252 = vmatpush1.msra.mxu0 0.0
    %253 = vmatprep.subr.mxu0 0.0
    %254 = vmatpush1.msra.mxu0 0.0
    %255 = vmatprep.subr.mxu0 0.0
    %256 = vmatpush1.msra.mxu0 0.0
    %257 = vmatprep.subr.mxu0 0.0
    %258 = vmatpush1.msra.mxu0 0.0
    %259 = vmatprep.subr.mxu0 0.0
    %260 = vmatpush1.msra.mxu0 0.0
    %261 = vmatprep.subr.mxu0 0.0
    %262 = vmatpush1.msra.mxu0 0.0
    %263 = vmatprep.subr.mxu0 0.0
    %264 = vmatpush1.msra.mxu0 0.0
    %265 = vmatprep.subr.mxu0 0.0
    %266 = vmatpush1.msra.mxu0 0.0
    %267 = vmatprep.subr.mxu0 0.0
    %268 = vmatpush1.msra.mxu0 0.0
    %269 = vmatprep.subr.mxu0 0.0
    %270 = vmatpush1.msra.mxu0 0.0
    %271 = vmatprep.subr.mxu0 0.0
    %272 = vmatpush1.msra.mxu0 0.0
    %273 = vmatprep.subr.mxu0 0.0
    %274 = vmatpush1.msra.mxu0 0.0
    %275 = vmatprep.mubr.f32.mxu0 0.0
    %276 = vmatmul.mubr.f32.gmra.mrb[0].mxu0 %v207
    %v277 = vpop.f32.mrb[0].mxu0
    %v278 = vadd.f32 0.0, %v277
    %v279 = vpop.f32.mrb[0].mxu0
    %280 = vmatprep.mubr.f32.mxu0 0.0
    %281 = vmatmul.mubr.f32.gmra.mrb[0].mxu0 %v209
    %v282 = vpop.f32.mrb[0].mxu0
    %v283 = vadd.f32 0.0, %v282
    %v284 = vpop.f32.mrb[0].mxu0
    %285 = vdwg.mxu0
    %288 = vrot.lane.b32.xlu0 %v278, 32
    %v289 = vpop.permute.xlu0 %288
    %290 = vrot.lane.b32.xlu0 %v283, 32
    %v291 = vpop.permute.xlu0 %290
    %vm294 = vcmask 261120
    %v295 = vsel %vm294, %v195, %v289
    %v296 = vsel %vm294, %v200, %v291
    %vm297 = vcmask 130048
    %v299 = vsel %vm297, %v114, 0
    %v302 = vsel %vm297, %v115, 0
    %304 = vmatprep.subr.mxu0 0.0
    %305 = vmatpush1.msra.mxu0 %v295
    %306 = vmatprep.subr.mxu0 0.0
    %307 = vmatpush1.msra.mxu0 %v296
    %308 = vmatprep.subr.mxu0 0.0
    %309 = vmatpush1.msra.mxu0 0.0
    %310 = vmatprep.subr.mxu0 0.0
    %311 = vmatpush1.msra.mxu0 0.0
    %312 = vmatprep.subr.mxu0 0.0
    %313 = vmatpush1.msra.mxu0 0.0
    %314 = vmatprep.subr.mxu0 0.0
    %315 = vmatpush1.msra.mxu0 0.0
    %316 = vmatprep.subr.mxu0 0.0
    %317 = vmatpush1.msra.mxu0 0.0
    %318 = vmatprep.subr.mxu0 0.0
    %319 = vmatpush1.msra.mxu0 0.0
    %320 = vmatprep.subr.mxu0 0.0
    %321 = vmatpush1.msra.mxu0 0.0
    %322 = vmatprep.subr.mxu0 0.0
    %323 = vmatpush1.msra.mxu0 0.0
    %324 = vmatprep.subr.mxu0 0.0
    %325 = vmatpush1.msra.mxu0 0.0
    %326 = vmatprep.subr.mxu0 0.0
    %327 = vmatpush1.msra.mxu0 0.0
    %328 = vmatprep.subr.mxu0 0.0
    %329 = vmatpush1.msra.mxu0 0.0
    %330 = vmatprep.subr.mxu0 0.0
    %331 = vmatpush1.msra.mxu0 0.0
    %332 = vmatprep.subr.mxu0 0.0
    %333 = vmatpush1.msra.mxu0 0.0
    %334 = vmatprep.subr.mxu0 0.0
    %335 = vmatpush1.msra.mxu0 0.0
    %336 = vmatprep.subr.mxu0 0.0
    %337 = vmatpush1.msra.mxu0 0.0
    %338 = vmatprep.subr.mxu0 0.0
    %339 = vmatpush1.msra.mxu0 0.0
    %340 = vmatprep.subr.mxu0 0.0
    %341 = vmatpush1.msra.mxu0 0.0
    %342 = vmatprep.subr.mxu0 0.0
    %343 = vmatpush1.msra.mxu0 0.0
    %344 = vmatprep.subr.mxu0 0.0
    %345 = vmatpush1.msra.mxu0 0.0
    %346 = vmatprep.subr.mxu0 0.0
    %347 = vmatpush1.msra.mxu0 0.0
    %348 = vmatprep.subr.mxu0 0.0
    %349 = vmatpush1.msra.mxu0 0.0
    %350 = vmatprep.subr.mxu0 0.0
    %351 = vmatpush1.msra.mxu0 0.0
    %352 = vmatprep.subr.mxu0 0.0
    %353 = vmatpush1.msra.mxu0 0.0
    %354 = vmatprep.subr.mxu0 0.0
    %355 = vmatpush1.msra.mxu0 0.0
    %356 = vmatprep.subr.mxu0 0.0
    %357 = vmatpush1.msra.mxu0 0.0
    %358 = vmatprep.subr.mxu0 0.0
    %359 = vmatpush1.msra.mxu0 0.0
    %360 = vmatprep.subr.mxu0 0.0
    %361 = vmatpush1.msra.mxu0 0.0
    %362 = vmatprep.subr.mxu0 0.0
    %363 = vmatpush1.msra.mxu0 0.0
    %364 = vmatprep.subr.mxu0 0.0
    %365 = vmatpush1.msra.mxu0 0.0
    %366 = vmatprep.subr.mxu0 0.0
    %367 = vmatpush1.msra.mxu0 0.0
    %368 = vmatprep.mubr.f32.mxu0 0.0
    %369 = vmatmul.mubr.f32.gmra.mrb[0].mxu0 %v299
    %v370 = vpop.f32.mrb[0].mxu0
    %v371 = vadd.f32 0.0, %v370
    %v372 = vpop.f32.mrb[0].mxu0
    %373 = vmatprep.mubr.f32.mxu0 0.0
    %374 = vmatmul.mubr.f32.gmra.mrb[0].mxu0 %v302
    %v375 = vpop.f32.mrb[0].mxu0
    %v376 = vadd.f32 0.0, %v375
    %v377 = vpop.f32.mrb[0].mxu0
    %378 = vdwg.mxu0
    %381 = vrot.lane.b32.xlu0 %v117, 32
    %v382 = vpop.permute.xlu0 %381
    %383 = vrot.lane.b32.xlu0 %v118, 32
    %v384 = vpop.permute.xlu0 %383
    %v387 = vsel %vm294, %v117, %v382
    %v388 = vsel %vm294, %v118, %v384
    %391 = vrot.lane.b32.xlu0 %v119, 32
    %v392 = vpop.permute.xlu0 %391
    %393 = vrot.lane.b32.xlu0 %v120, 32
    %v394 = vpop.permute.xlu0 %393
    %v397 = vsel %vm294, %v119, %v392
    %v398 = vsel %vm294, %v120, %v394
    %v399 = vmul.f32 %v371, %v387
    %v400 = vmul.f32 %v376, %v388
    %v401 = vadd.f32 %v399, %v397
    %v402 = vadd.f32 %v400, %v398
    %v403 = vtanh.pop %v401
    %v404 = vtanh.pop %v402
    %v405 = vld [vmem:[%s5] sm:$0xff]
    %v406 = vld [vmem:[%s5 + $0x8] sm:$0xff]
    %v407 = vld [vmem:[#allocation4] sm:$0xff]
    %v408 = vld [vmem:[#allocation4 + $0x8] sm:$0xff]
    %v409 = vld [vmem:[#allocation4 + $0x10] sm:$0xff]
    %v410 = vld [vmem:[#allocation4 + $0x18] sm:$0xff]
    %v411 = vld [vmem:[#allocation6] sm:$0xff]
    %v412 = vld [vmem:[#allocation6 + $0x8] sm:$0xff]
    %v413 = vld [vmem:[#allocation7] sm:$0xff]
    %v414 = vld [vmem:[#allocation7 + $0x8] sm:$0xff]
    %v416 = vsel %vm294, %v403, 0
    %v419 = vsel %vm294, %v404, 0
    %421 = vmatprep.subr.mxu0 0.0
    %422 = vmatpush1.msra.mxu0 %v407
    %423 = vmatprep.subr.mxu0 0.0
    %424 = vmatpush1.msra.mxu0 %v408
    %425 = vmatprep.subr.mxu0 0.0
    %426 = vmatpush1.msra.mxu0 %v409
    %427 = vmatprep.subr.mxu0 0.0
    %428 = vmatpush1.msra.mxu0 %v410
    %429 = vmatprep.subr.mxu0 0.0
    %430 = vmatpush1.msra.mxu0 0.0
    %431 = vmatprep.subr.mxu0 0.0
    %432 = vmatpush1.msra.mxu0 0.0
    %433 = vmatprep.subr.mxu0 0.0
    %434 = vmatpush1.msra.mxu0 0.0
    %435 = vmatprep.subr.mxu0 0.0
    %436 = vmatpush1.msra.mxu0 0.0
    %437 = vmatprep.subr.mxu0 0.0
    %438 = vmatpush1.msra.mxu0 0.0
    %439 = vmatprep.subr.mxu0 0.0
    %440 = vmatpush1.msra.mxu0 0.0
    %441 = vmatprep.subr.mxu0 0.0
    %442 = vmatpush1.msra.mxu0 0.0
    %443 = vmatprep.subr.mxu0 0.0
    %444 = vmatpush1.msra.mxu0 0.0
    %445 = vmatprep.subr.mxu0 0.0
    %446 = vmatpush1.msra.mxu0 0.0
    %447 = vmatprep.subr.mxu0 0.0
    %448 = vmatpush1.msra.mxu0 0.0
    %449 = vmatprep.subr.mxu0 0.0
    %450 = vmatpush1.msra.mxu0 0.0
    %451 = vmatprep.subr.mxu0 0.0
    %452 = vmatpush1.msra.mxu0 0.0
    %453 = vmatprep.subr.mxu0 0.0
    %454 = vmatpush1.msra.mxu0 0.0
    %455 = vmatprep.subr.mxu0 0.0
    %456 = vmatpush1.msra.mxu0 0.0
    %457 = vmatprep.subr.mxu0 0.0
    %458 = vmatpush1.msra.mxu0 0.0
    %459 = vmatprep.subr.mxu0 0.0
    %460 = vmatpush1.msra.mxu0 0.0
    %461 = vmatprep.subr.mxu0 0.0
    %462 = vmatpush1.msra.mxu0 0.0
    %463 = vmatprep.subr.mxu0 0.0
    %464 = vmatpush1.msra.mxu0 0.0
    %465 = vmatprep.subr.mxu0 0.0
    %466 = vmatpush1.msra.mxu0 0.0
    %467 = vmatprep.subr.mxu0 0.0
    %468 = vmatpush1.msra.mxu0 0.0
    %469 = vmatprep.subr.mxu0 0.0
    %470 = vmatpush1.msra.mxu0 0.0
    %471 = vmatprep.subr.mxu0 0.0
    %472 = vmatpush1.msra.mxu0 0.0
    %473 = vmatprep.subr.mxu0 0.0
    %474 = vmatpush1.msra.mxu0 0.0
    %475 = vmatprep.subr.mxu0 0.0
    %476 = vmatpush1.msra.mxu0 0.0
    %477 = vmatprep.subr.mxu0 0.0
    %478 = vmatpush1.msra.mxu0 0.0
    %479 = vmatprep.subr.mxu0 0.0
    %480 = vmatpush1.msra.mxu0 0.0
    %481 = vmatprep.subr.mxu0 0.0
    %482 = vmatpush1.msra.mxu0 0.0
    %483 = vmatprep.subr.mxu0 0.0
    %484 = vmatpush1.msra.mxu0 0.0
    %485 = vmatprep.mubr.f32.mxu0 0.0
    %486 = vmatmul.mubr.f32.gmra.mrb[0].mxu0 %v416
    %v487 = vpop.f32.mrb[0].mxu0
    %v488 = vadd.f32 0.0, %v487
    %v489 = vpop.f32.mrb[0].mxu0
    %490 = vmatprep.mubr.f32.mxu0 0.0
    %491 = vmatmul.mubr.f32.gmra.mrb[0].mxu0 %v419
    %v492 = vpop.f32.mrb[0].mxu0
    %v493 = vadd.f32 0.0, %v492
    %v494 = vpop.f32.mrb[0].mxu0
    %495 = vdwg.mxu0
    %496 = vrot.lane.b32.xlu0 %v403, 96
    %v497 = vpop.permute.xlu0 %496
    %498 = vrot.lane.b32.xlu0 %v404, 96
    %v499 = vpop.permute.xlu0 %498
    %v500 = vsel %vm294, %v497, 0
    %v502 = vsel %vm294, %v499, 0
    %504 = vmatprep.subr.mxu0 0.0
    %505 = vmatpush1.msra.mxu0 %v407
    %506 = vmatprep.subr.mxu0 0.0
    %507 = vmatpush1.msra.mxu0 %v408
    %508 = vmatprep.subr.mxu0 0.0
    %509 = vmatpush1.msra.mxu0 %v409
    %510 = vmatprep.subr.mxu0 0.0
    %511 = vmatpush1.msra.mxu0 %v410
    %512 = vmatprep.subr.mxu0 0.0
    %513 = vmatpush1.msra.mxu0 0.0
    %514 = vmatprep.subr.mxu0 0.0
    %515 = vmatpush1.msra.mxu0 0.0
    %516 = vmatprep.subr.mxu0 0.0
    %517 = vmatpush1.msra.mxu0 0.0
    %518 = vmatprep.subr.mxu0 0.0
    %519 = vmatpush1.msra.mxu0 0.0
    %520 = vmatprep.subr.mxu0 0.0
    %521 = vmatpush1.msra.mxu0 0.0
    %522 = vmatprep.subr.mxu0 0.0
    %523 = vmatpush1.msra.mxu0 0.0
    %524 = vmatprep.subr.mxu0 0.0
    %525 = vmatpush1.msra.mxu0 0.0
    %526 = vmatprep.subr.mxu0 0.0
    %527 = vmatpush1.msra.mxu0 0.0
    %528 = vmatprep.subr.mxu0 0.0
    %529 = vmatpush1.msra.mxu0 0.0
    %530 = vmatprep.subr.mxu0 0.0
    %531 = vmatpush1.msra.mxu0 0.0
    %532 = vmatprep.subr.mxu0 0.0
    %533 = vmatpush1.msra.mxu0 0.0
    %534 = vmatprep.subr.mxu0 0.0
    %535 = vmatpush1.msra.mxu0 0.0
    %536 = vmatprep.subr.mxu0 0.0
    %537 = vmatpush1.msra.mxu0 0.0
    %538 = vmatprep.subr.mxu0 0.0
    %539 = vmatpush1.msra.mxu0 0.0
    %540 = vmatprep.subr.mxu0 0.0
    %541 = vmatpush1.msra.mxu0 0.0
    %542 = vmatprep.subr.mxu0 0.0
    %543 = vmatpush1.msra.mxu0 0.0
    %544 = vmatprep.subr.mxu0 0.0
    %545 = vmatpush1.msra.mxu0 0.0
    %546 = vmatprep.subr.mxu0 0.0
    %547 = vmatpush1.msra.mxu0 0.0
    %548 = vmatprep.subr.mxu0 0.0
    %549 = vmatpush1.msra.mxu0 0.0
    %550 = vmatprep.subr.mxu0 0.0
    %551 = vmatpush1.msra.mxu0 0.0
    %552 = vmatprep.subr.mxu0 0.0
    %553 = vmatpush1.msra.mxu0 0.0
    %554 = vmatprep.subr.mxu0 0.0
    %555 = vmatpush1.msra.mxu0 0.0
    %556 = vmatprep.subr.mxu0 0.0
    %557 = vmatpush1.msra.mxu0 0.0
    %558 = vmatprep.subr.mxu0 0.0
    %559 = vmatpush1.msra.mxu0 0.0
    %560 = vmatprep.subr.mxu0 0.0
    %561 = vmatpush1.msra.mxu0 0.0
    %562 = vmatprep.subr.mxu0 0.0
    %563 = vmatpush1.msra.mxu0 0.0
    %564 = vmatprep.subr.mxu0 0.0
    %565 = vmatpush1.msra.mxu0 0.0
    %566 = vmatprep.subr.mxu0 0.0
    %567 = vmatpush1.msra.mxu0 0.0
    %568 = vmatprep.mubr.f32.mxu0 0.0
    %569 = vmatmul.mubr.f32.gmra.mrb[0].mxu0 %v500
    %v570 = vpop.f32.mrb[0].mxu0
    %v571 = vadd.f32 0.0, %v570
    %v572 = vpop.f32.mrb[0].mxu0
    %573 = vmatprep.mubr.f32.mxu0 0.0
    %574 = vmatmul.mubr.f32.gmra.mrb[0].mxu0 %v502
    %v575 = vpop.f32.mrb[0].mxu0
    %v576 = vadd.f32 0.0, %v575
    %v577 = vpop.f32.mrb[0].mxu0
    %578 = vdwg.mxu0
    %581 = vrot.lane.b32.xlu0 %v571, 32
    %v582 = vpop.permute.xlu0 %581
    %583 = vrot.lane.b32.xlu0 %v576, 32
    %v584 = vpop.permute.xlu0 %583
    %v587 = vsel %vm294, %v488, %v582
    %v588 = vsel %vm294, %v493, %v584
    %v590 = vsel %vm297, %v405, 0
    %v593 = vsel %vm297, %v406, 0
    %595 = vmatprep.subr.mxu0 0.0
    %596 = vmatpush1.msra.mxu0 %v587
    %597 = vmatprep.subr.mxu0 0.0
    %598 = vmatpush1.msra.mxu0 %v588
    %599 = vmatprep.subr.mxu0 0.0
    %600 = vmatpush1.msra.mxu0 0.0
    %601 = vmatprep.subr.mxu0 0.0
    %602 = vmatpush1.msra.mxu0 0.0
    %603 = vmatprep.subr.mxu0 0.0
    %604 = vmatpush1.msra.mxu0 0.0
    %605 = vmatprep.subr.mxu0 0.0
    %606 = vmatpush1.msra.mxu0 0.0
    %607 = vmatprep.subr.mxu0 0.0
    %608 = vmatpush1.msra.mxu0 0.0
    %609 = vmatprep.subr.mxu0 0.0
    %610 = vmatpush1.msra.mxu0 0.0
    %611 = vmatprep.subr.mxu0 0.0
    %612 = vmatpush1.msra.mxu0 0.0
    %613 = vmatprep.subr.mxu0 0.0
    %614 = vmatpush1.msra.mxu0 0.0
    %615 = vmatprep.subr.mxu0 0.0
    %616 = vmatpush1.msra.mxu0 0.0
    %617 = vmatprep.subr.mxu0 0.0
    %618 = vmatpush1.msra.mxu0 0.0
    %619 = vmatprep.subr.mxu0 0.0
    %620 = vmatpush1.msra.mxu0 0.0
    %621 = vmatprep.subr.mxu0 0.0
    %622 = vmatpush1.msra.mxu0 0.0
    %623 = vmatprep.subr.mxu0 0.0
    %624 = vmatpush1.msra.mxu0 0.0
    %625 = vmatprep.subr.mxu0 0.0
    %626 = vmatpush1.msra.mxu0 0.0
    %627 = vmatprep.subr.mxu0 0.0
    %628 = vmatpush1.msra.mxu0 0.0
    %629 = vmatprep.subr.mxu0 0.0
    %630 = vmatpush1.msra.mxu0 0.0
    %631 = vmatprep.subr.mxu0 0.0
    %632 = vmatpush1.msra.mxu0 0.0
    %633 = vmatprep.subr.mxu0 0.0
    %634 = vmatpush1.msra.mxu0 0.0
    %635 = vmatprep.subr.mxu0 0.0
    %636 = vmatpush1.msra.mxu0 0.0
    %637 = vmatprep.subr.mxu0 0.0
    %638 = vmatpush1.msra.mxu0 0.0
    %639 = vmatprep.subr.mxu0 0.0
    %640 = vmatpush1.msra.mxu0 0.0
    %641 = vmatprep.subr.mxu0 0.0
    %642 = vmatpush1.msra.mxu0 0.0
    %643 = vmatprep.subr.mxu0 0.0
    %644 = vmatpush1.msra.mxu0 0.0
    %645 = vmatprep.subr.mxu0 0.0
    %646 = vmatpush1.msra.mxu0 0.0
    %647 = vmatprep.subr.mxu0 0.0
    %648 = vmatpush1.msra.mxu0 0.0
    %649 = vmatprep.subr.mxu0 0.0
    %650 = vmatpush1.msra.mxu0 0.0
    %651 = vmatprep.subr.mxu0 0.0
    %652 = vmatpush1.msra.mxu0 0.0
    %653 = vmatprep.subr.mxu0 0.0
    %654 = vmatpush1.msra.mxu0 0.0
    %655 = vmatprep.subr.mxu0 0.0
    %656 = vmatpush1.msra.mxu0 0.0
    %657 = vmatprep.subr.mxu0 0.0
    %658 = vmatpush1.msra.mxu0 0.0
    %659 = vmatprep.mubr.f32.mxu0 0.0
    %660 = vmatmul.mubr.f32.gmra.mrb[0].mxu0 %v590
    %v661 = vpop.f32.mrb[0].mxu0
    %v662 = vadd.f32 0.0, %v661
    %v663 = vpop.f32.mrb[0].mxu0
    %664 = vmatprep.mubr.f32.mxu0 0.0
    %665 = vmatmul.mubr.f32.gmra.mrb[0].mxu0 %v593
    %v666 = vpop.f32.mrb[0].mxu0
    %v667 = vadd.f32 0.0, %v666
    %v668 = vpop.f32.mrb[0].mxu0
    %669 = vdwg.mxu0
    %672 = vrot.lane.b32.xlu0 %v411, 32
    %v673 = vpop.permute.xlu0 %672
    %674 = vrot.lane.b32.xlu0 %v412, 32
    %v675 = vpop.permute.xlu0 %674
    %v678 = vsel %vm294, %v411, %v673
    %v679 = vsel %vm294, %v412, %v675
    %682 = vrot.lane.b32.xlu0 %v413, 32
    %v683 = vpop.permute.xlu0 %682
    %684 = vrot.lane.b32.xlu0 %v414, 32
    %v685 = vpop.permute.xlu0 %684
    %v688 = vsel %vm294, %v413, %v683
    %v689 = vsel %vm294, %v414, %v685
    %v690 = vmul.f32 %v662, %v678
    %v691 = vmul.f32 %v667, %v679
    %v692 = vadd.f32 %v690, %v688
    %v693 = vadd.f32 %v691, %v689
    %v694 = vtanh.pop %v692
    %v695 = vtanh.pop %v693
    %s696 = scalar_lea.vmem %s5, 16
    %v697 = vld [vmem:[%s696] sm:$0xff]
    %v698 = vld [vmem:[%s696 + $0x8] sm:$0xff]
    %s699 = scalar_lea.vmem [#allocation4], 32
    %v700 = vld [vmem:[%s699] sm:$0xff]
    %v701 = vld [vmem:[%s699 + $0x8] sm:$0xff]
    %v702 = vld [vmem:[%s699 + $0x10] sm:$0xff]
    %v703 = vld [vmem:[%s699 + $0x18] sm:$0xff]
    %s704 = scalar_lea.vmem [#allocation6], 16
    %v705 = vld [vmem:[%s704] sm:$0xff]
    %v706 = vld [vmem:[%s704 + $0x8] sm:$0xff]
    %s707 = scalar_lea.vmem [#allocation7], 16
    %v708 = vld [vmem:[%s707] sm:$0xff]
    %v709 = vld [vmem:[%s707 + $0x8] sm:$0xff]
    %v711 = vsel %vm294, %v694, 0
    %v714 = vsel %vm294, %v695, 0
    %716 = vmatprep.subr.mxu0 0.0
    %717 = vmatpush1.msra.mxu0 %v700
    %718 = vmatprep.subr.mxu0 0.0
    %719 = vmatpush1.msra.mxu0 %v701
    %720 = vmatprep.subr.mxu0 0.0
    %721 = vmatpush1.msra.mxu0 %v702
    %722 = vmatprep.subr.mxu0 0.0
    %723 = vmatpush1.msra.mxu0 %v703
    %724 = vmatprep.subr.mxu0 0.0
    %725 = vmatpush1.msra.mxu0 0.0
    %726 = vmatprep.subr.mxu0 0.0
    %727 = vmatpush1.msra.mxu0 0.0
    %728 = vmatprep.subr.mxu0 0.0
    %729 = vmatpush1.msra.mxu0 0.0
    %730 = vmatprep.subr.mxu0 0.0
    %731 = vmatpush1.msra.mxu0 0.0
    %732 = vmatprep.subr.mxu0 0.0
    %733 = vmatpush1.msra.mxu0 0.0
    %734 = vmatprep.subr.mxu0 0.0
    %735 = vmatpush1.msra.mxu0 0.0
    %736 = vmatprep.subr.mxu0 0.0
    %737 = vmatpush1.msra.mxu0 0.0
    %738 = vmatprep.subr.mxu0 0.0
    %739 = vmatpush1.msra.mxu0 0.0
    %740 = vmatprep.subr.mxu0 0.0
    %741 = vmatpush1.msra.mxu0 0.0
    %742 = vmatprep.subr.mxu0 0.0
    %743 = vmatpush1.msra.mxu0 0.0
    %744 = vmatprep.subr.mxu0 0.0
    %745 = vmatpush1.msra.mxu0 0.0
    %746 = vmatprep.subr.mxu0 0.0
    %747 = vmatpush1.msra.mxu0 0.0
    %748 = vmatprep.subr.mxu0 0.0
    %749 = vmatpush1.msra.mxu0 0.0
    %750 = vmatprep.subr.mxu0 0.0
    %751 = vmatpush1.msra.mxu0 0.0
    %752 = vmatprep.subr.mxu0 0.0
    %753 = vmatpush1.msra.mxu0 0.0
    %754 = vmatprep.subr.mxu0 0.0
    %755 = vmatpush1.msra.mxu0 0.0
    %756 = vmatprep.subr.mxu0 0.0
    %757 = vmatpush1.msra.mxu0 0.0
    %758 = vmatprep.subr.mxu0 0.0
    %759 = vmatpush1.msra.mxu0 0.0
    %760 = vmatprep.subr.mxu0 0.0
    %761 = vmatpush1.msra.mxu0 0.0
    %762 = vmatprep.subr.mxu0 0.0
    %763 = vmatpush1.msra.mxu0 0.0
    %764 = vmatprep.subr.mxu0 0.0
    %765 = vmatpush1.msra.mxu0 0.0
    %766 = vmatprep.subr.mxu0 0.0
    %767 = vmatpush1.msra.mxu0 0.0
    %768 = vmatprep.subr.mxu0 0.0
    %769 = vmatpush1.msra.mxu0 0.0
    %770 = vmatprep.subr.mxu0 0.0
    %771 = vmatpush1.msra.mxu0 0.0
    %772 = vmatprep.subr.mxu0 0.0
    %773 = vmatpush1.msra.mxu0 0.0
    %774 = vmatprep.subr.mxu0 0.0
    %775 = vmatpush1.msra.mxu0 0.0
    %776 = vmatprep.subr.mxu0 0.0
    %777 = vmatpush1.msra.mxu0 0.0
    %778 = vmatprep.subr.mxu0 0.0
    %779 = vmatpush1.msra.mxu0 0.0
    %780 = vmatprep.mubr.f32.mxu0 0.0
    %781 = vmatmul.mubr.f32.gmra.mrb[0].mxu0 %v711
    %v782 = vpop.f32.mrb[0].mxu0
    %v783 = vadd.f32 0.0, %v782
    %v784 = vpop.f32.mrb[0].mxu0
    %785 = vmatprep.mubr.f32.mxu0 0.0
    %786 = vmatmul.mubr.f32.gmra.mrb[0].mxu0 %v714
    %v787 = vpop.f32.mrb[0].mxu0
    %v788 = vadd.f32 0.0, %v787
    %v789 = vpop.f32.mrb[0].mxu0
    %790 = vdwg.mxu0
    %791 = vrot.lane.b32.xlu0 %v694, 96
    %v792 = vpop.permute.xlu0 %791
    %793 = vrot.lane.b32.xlu0 %v695, 96
    %v794 = vpop.permute.xlu0 %793
    %v795 = vsel %vm294, %v792, 0
    %v797 = vsel %vm294, %v794, 0
    %799 = vmatprep.subr.mxu0 0.0
    %800 = vmatpush1.msra.mxu0 %v700
    %801 = vmatprep.subr.mxu0 0.0
    %802 = vmatpush1.msra.mxu0 %v701
    %803 = vmatprep.subr.mxu0 0.0
    %804 = vmatpush1.msra.mxu0 %v702
    %805 = vmatprep.subr.mxu0 0.0
    %806 = vmatpush1.msra.mxu0 %v703
    %807 = vmatprep.subr.mxu0 0.0
    %808 = vmatpush1.msra.mxu0 0.0
    %809 = vmatprep.subr.mxu0 0.0
    %810 = vmatpush1.msra.mxu0 0.0
    %811 = vmatprep.subr.mxu0 0.0
    %812 = vmatpush1.msra.mxu0 0.0
    %813 = vmatprep.subr.mxu0 0.0
    %814 = vmatpush1.msra.mxu0 0.0
    %815 = vmatprep.subr.mxu0 0.0
    %816 = vmatpush1.msra.mxu0 0.0
    %817 = vmatprep.subr.mxu0 0.0
    %818 = vmatpush1.msra.mxu0 0.0
    %819 = vmatprep.subr.mxu0 0.0
    %820 = vmatpush1.msra.mxu0 0.0
    %821 = vmatprep.subr.mxu0 0.0
    %822 = vmatpush1.msra.mxu0 0.0
    %823 = vmatprep.subr.mxu0 0.0
    %824 = vmatpush1.msra.mxu0 0.0
    %825 = vmatprep.subr.mxu0 0.0
    %826 = vmatpush1.msra.mxu0 0.0
    %827 = vmatprep.subr.mxu0 0.0
    %828 = vmatpush1.msra.mxu0 0.0
    %829 = vmatprep.subr.mxu0 0.0
    %830 = vmatpush1.msra.mxu0 0.0
    %831 = vmatprep.subr.mxu0 0.0
    %832 = vmatpush1.msra.mxu0 0.0
    %833 = vmatprep.subr.mxu0 0.0
    %834 = vmatpush1.msra.mxu0 0.0
    %835 = vmatprep.subr.mxu0 0.0
    %836 = vmatpush1.msra.mxu0 0.0
    %837 = vmatprep.subr.mxu0 0.0
    %838 = vmatpush1.msra.mxu0 0.0
    %839 = vmatprep.subr.mxu0 0.0
    %840 = vmatpush1.msra.mxu0 0.0
    %841 = vmatprep.subr.mxu0 0.0
    %842 = vmatpush1.msra.mxu0 0.0
    %843 = vmatprep.subr.mxu0 0.0
    %844 = vmatpush1.msra.mxu0 0.0
    %845 = vmatprep.subr.mxu0 0.0
    %846 = vmatpush1.msra.mxu0 0.0
    %847 = vmatprep.subr.mxu0 0.0
    %848 = vmatpush1.msra.mxu0 0.0
    %849 = vmatprep.subr.mxu0 0.0
    %850 = vmatpush1.msra.mxu0 0.0
    %851 = vmatprep.subr.mxu0 0.0
    %852 = vmatpush1.msra.mxu0 0.0
    %853 = vmatprep.subr.mxu0 0.0
    %854 = vmatpush1.msra.mxu0 0.0
    %855 = vmatprep.subr.mxu0 0.0
    %856 = vmatpush1.msra.mxu0 0.0
    %857 = vmatprep.subr.mxu0 0.0
    %858 = vmatpush1.msra.mxu0 0.0
    %859 = vmatprep.subr.mxu0 0.0
    %860 = vmatpush1.msra.mxu0 0.0
    %861 = vmatprep.subr.mxu0 0.0
    %862 = vmatpush1.msra.mxu0 0.0
    %863 = vmatprep.mubr.f32.mxu0 0.0
    %864 = vmatmul.mubr.f32.gmra.mrb[0].mxu0 %v795
    %v865 = vpop.f32.mrb[0].mxu0
    %v866 = vadd.f32 0.0, %v865
    %v867 = vpop.f32.mrb[0].mxu0
    %868 = vmatprep.mubr.f32.mxu0 0.0
    %869 = vmatmul.mubr.f32.gmra.mrb[0].mxu0 %v797
    %v870 = vpop.f32.mrb[0].mxu0
    %v871 = vadd.f32 0.0, %v870
    %v872 = vpop.f32.mrb[0].mxu0
    %873 = vdwg.mxu0
    %876 = vrot.lane.b32.xlu0 %v866, 32
    %v877 = vpop.permute.xlu0 %876
    %878 = vrot.lane.b32.xlu0 %v871, 32
    %v879 = vpop.permute.xlu0 %878
    %v882 = vsel %vm294, %v783, %v877
    %v883 = vsel %vm294, %v788, %v879
    %v885 = vsel %vm297, %v697, 0
    %v888 = vsel %vm297, %v698, 0
    %890 = vmatprep.subr.mxu0 0.0
    %891 = vmatpush1.msra.mxu0 %v882
    %892 = vmatprep.subr.mxu0 0.0
    %893 = vmatpush1.msra.mxu0 %v883
    %894 = vmatprep.subr.mxu0 0.0
    %895 = vmatpush1.msra.mxu0 0.0
    %896 = vmatprep.subr.mxu0 0.0
    %897 = vmatpush1.msra.mxu0 0.0
    %898 = vmatprep.subr.mxu0 0.0
    %899 = vmatpush1.msra.mxu0 0.0
    %900 = vmatprep.subr.mxu0 0.0
    %901 = vmatpush1.msra.mxu0 0.0
    %902 = vmatprep.subr.mxu0 0.0
    %903 = vmatpush1.msra.mxu0 0.0
    %904 = vmatprep.subr.mxu0 0.0
    %905 = vmatpush1.msra.mxu0 0.0
    %906 = vmatprep.subr.mxu0 0.0
    %907 = vmatpush1.msra.mxu0 0.0
    %908 = vmatprep.subr.mxu0 0.0
    %909 = vmatpush1.msra.mxu0 0.0
    %910 = vmatprep.subr.mxu0 0.0
    %911 = vmatpush1.msra.mxu0 0.0
    %912 = vmatprep.subr.mxu0 0.0
    %913 = vmatpush1.msra.mxu0 0.0
    %914 = vmatprep.subr.mxu0 0.0
    %915 = vmatpush1.msra.mxu0 0.0
    %916 = vmatprep.subr.mxu0 0.0
    %917 = vmatpush1.msra.mxu0 0.0
    %918 = vmatprep.subr.mxu0 0.0
    %919 = vmatpush1.msra.mxu0 0.0
    %920 = vmatprep.subr.mxu0 0.0
    %921 = vmatpush1.msra.mxu0 0.0
    %922 = vmatprep.subr.mxu0 0.0
    %923 = vmatpush1.msra.mxu0 0.0
    %924 = vmatprep.subr.mxu0 0.0
    %925 = vmatpush1.msra.mxu0 0.0
    %926 = vmatprep.subr.mxu0 0.0
    %927 = vmatpush1.msra.mxu0 0.0
    %928 = vmatprep.subr.mxu0 0.0
    %929 = vmatpush1.msra.mxu0 0.0
    %930 = vmatprep.subr.mxu0 0.0
    %931 = vmatpush1.msra.mxu0 0.0
    %932 = vmatprep.subr.mxu0 0.0
    %933 = vmatpush1.msra.mxu0 0.0
    %934 = vmatprep.subr.mxu0 0.0
    %935 = vmatpush1.msra.mxu0 0.0
    %936 = vmatprep.subr.mxu0 0.0
    %937 = vmatpush1.msra.mxu0 0.0
    %938 = vmatprep.subr.mxu0 0.0
    %939 = vmatpush1.msra.mxu0 0.0
    %940 = vmatprep.subr.mxu0 0.0
    %941 = vmatpush1.msra.mxu0 0.0
    %942 = vmatprep.subr.mxu0 0.0
    %943 = vmatpush1.msra.mxu0 0.0
    %944 = vmatprep.subr.mxu0 0.0
    %945 = vmatpush1.msra.mxu0 0.0
    %946 = vmatprep.subr.mxu0 0.0
    %947 = vmatpush1.msra.mxu0 0.0
    %948 = vmatprep.subr.mxu0 0.0
    %949 = vmatpush1.msra.mxu0 0.0
    %950 = vmatprep.subr.mxu0 0.0
    %951 = vmatpush1.msra.mxu0 0.0
    %952 = vmatprep.subr.mxu0 0.0
    %953 = vmatpush1.msra.mxu0 0.0
    %954 = vmatprep.mubr.f32.mxu0 0.0
    %955 = vmatmul.mubr.f32.gmra.mrb[0].mxu0 %v885
    %v956 = vpop.f32.mrb[0].mxu0
    %v957 = vadd.f32 0.0, %v956
    %v958 = vpop.f32.mrb[0].mxu0
    %959 = vmatprep.mubr.f32.mxu0 0.0
    %960 = vmatmul.mubr.f32.gmra.mrb[0].mxu0 %v888
    %v961 = vpop.f32.mrb[0].mxu0
    %v962 = vadd.f32 0.0, %v961
    %v963 = vpop.f32.mrb[0].mxu0
    %964 = vdwg.mxu0
    %967 = vrot.lane.b32.xlu0 %v705, 32
    %v968 = vpop.permute.xlu0 %967
    %969 = vrot.lane.b32.xlu0 %v706, 32
    %v970 = vpop.permute.xlu0 %969
    %v973 = vsel %vm294, %v705, %v968
    %v974 = vsel %vm294, %v706, %v970
    %977 = vrot.lane.b32.xlu0 %v708, 32
    %v978 = vpop.permute.xlu0 %977
    %979 = vrot.lane.b32.xlu0 %v709, 32
    %v980 = vpop.permute.xlu0 %979
    %v983 = vsel %vm294, %v708, %v978
    %v984 = vsel %vm294, %v709, %v980
    %v985 = vmul.f32 %v957, %v973
    %v986 = vmul.f32 %v962, %v974
    %v987 = vadd.f32 %v985, %v983
    %v988 = vadd.f32 %v986, %v984
    %v989 = vtanh.pop %v987
    %v990 = vtanh.pop %v988
    %v991 = vadd.f32 %v403, %v989
    %v992 = vadd.f32 %v404, %v990
    %s993 = scalar_lea.vmem %s5, 32
    %v994 = vld [vmem:[%s993] sm:$0xff]
    %v995 = vld [vmem:[%s993 + $0x8] sm:$0xff]
    %s996 = scalar_lea.vmem [#allocation4], 64
    %v997 = vld [vmem:[%s996] sm:$0xff]
    %v998 = vld [vmem:[%s996 + $0x8] sm:$0xff]
    %v999 = vld [vmem:[%s996 + $0x10] sm:$0xff]
    %v1000 = vld [vmem:[%s996 + $0x18] sm:$0xff]
    %s1001 = scalar_lea.vmem [#allocation6], 32
    %v1002 = vld [vmem:[%s1001] sm:$0xff]
    %v1003 = vld [vmem:[%s1001 + $0x8] sm:$0xff]
    %s1004 = scalar_lea.vmem [#allocation7], 32
    %v1005 = vld [vmem:[%s1004] sm:$0xff]
    %v1006 = vld [vmem:[%s1004 + $0x8] sm:$0xff]
    %v1008 = vsel %vm294, %v991, 0
    %v1011 = vsel %vm294, %v992, 0
    %1013 = vmatprep.subr.mxu0 0.0
    %1014 = vmatpush1.msra.mxu0 %v997
    %1015 = vmatprep.subr.mxu0 0.0
    %1016 = vmatpush1.msra.mxu0 %v998
    %1017 = vmatprep.subr.mxu0 0.0
    %1018 = vmatpush1.msra.mxu0 %v999
    %1019 = vmatprep.subr.mxu0 0.0
    %1020 = vmatpush1.msra.mxu0 %v1000
    %1021 = vmatprep.subr.mxu0 0.0
    %1022 = vmatpush1.msra.mxu0 0.0
    %1023 = vmatprep.subr.mxu0 0.0
    %1024 = vmatpush1.msra.mxu0 0.0
    %1025 = vmatprep.subr.mxu0 0.0
    %1026 = vmatpush1.msra.mxu0 0.0
    %1027 = vmatprep.subr.mxu0 0.0
    %1028 = vmatpush1.msra.mxu0 0.0
    %1029 = vmatprep.subr.mxu0 0.0
    %1030 = vmatpush1.msra.mxu0 0.0
    %1031 = vmatprep.subr.mxu0 0.0
    %1032 = vmatpush1.msra.mxu0 0.0
    %1033 = vmatprep.subr.mxu0 0.0
    %1034 = vmatpush1.msra.mxu0 0.0
    %1035 = vmatprep.subr.mxu0 0.0
    %1036 = vmatpush1.msra.mxu0 0.0
    %1037 = vmatprep.subr.mxu0 0.0
    %1038 = vmatpush1.msra.mxu0 0.0
    %1039 = vmatprep.subr.mxu0 0.0
    %1040 = vmatpush1.msra.mxu0 0.0
    %1041 = vmatprep.subr.mxu0 0.0
    %1042 = vmatpush1.msra.mxu0 0.0
    %1043 = vmatprep.subr.mxu0 0.0
    %1044 = vmatpush1.msra.mxu0 0.0
    %1045 = vmatprep.subr.mxu0 0.0
    %1046 = vmatpush1.msra.mxu0 0.0
    %1047 = vmatprep.subr.mxu0 0.0
    %1048 = vmatpush1.msra.mxu0 0.0
    %1049 = vmatprep.subr.mxu0 0.0
    %1050 = vmatpush1.msra.mxu0 0.0
    %1051 = vmatprep.subr.mxu0 0.0
    %1052 = vmatpush1.msra.mxu0 0.0
    %1053 = vmatprep.subr.mxu0 0.0
    %1054 = vmatpush1.msra.mxu0 0.0
    %1055 = vmatprep.subr.mxu0 0.0
    %1056 = vmatpush1.msra.mxu0 0.0
    %1057 = vmatprep.subr.mxu0 0.0
    %1058 = vmatpush1.msra.mxu0 0.0
    %1059 = vmatprep.subr.mxu0 0.0
    %1060 = vmatpush1.msra.mxu0 0.0
    %1061 = vmatprep.subr.mxu0 0.0
    %1062 = vmatpush1.msra.mxu0 0.0
    %1063 = vmatprep.subr.mxu0 0.0
    %1064 = vmatpush1.msra.mxu0 0.0
    %1065 = vmatprep.subr.mxu0 0.0
    %1066 = vmatpush1.msra.mxu0 0.0
    %1067 = vmatprep.subr.mxu0 0.0
    %1068 = vmatpush1.msra.mxu0 0.0
    %1069 = vmatprep.subr.mxu0 0.0
    %1070 = vmatpush1.msra.mxu0 0.0
    %1071 = vmatprep.subr.mxu0 0.0
    %1072 = vmatpush1.msra.mxu0 0.0
    %1073 = vmatprep.subr.mxu0 0.0
    %1074 = vmatpush1.msra.mxu0 0.0
    %1075 = vmatprep.subr.mxu0 0.0
    %1076 = vmatpush1.msra.mxu0 0.0
    %1077 = vmatprep.mubr.f32.mxu0 0.0
    %1078 = vmatmul.mubr.f32.gmra.mrb[0].mxu0 %v1008
    %v1079 = vpop.f32.mrb[0].mxu0
    %v1080 = vadd.f32 0.0, %v1079
    %v1081 = vpop.f32.mrb[0].mxu0
    %1082 = vmatprep.mubr.f32.mxu0 0.0
    %1083 = vmatmul.mubr.f32.gmra.mrb[0].mxu0 %v1011
    %v1084 = vpop.f32.mrb[0].mxu0
    %v1085 = vadd.f32 0.0, %v1084
    %v1086 = vpop.f32.mrb[0].mxu0
    %1087 = vdwg.mxu0
    %1088 = vrot.lane.b32.xlu0 %v991, 96
    %v1089 = vpop.permute.xlu0 %1088
    %1090 = vrot.lane.b32.xlu0 %v992, 96
    %v1091 = vpop.permute.xlu0 %1090
    %v1092 = vsel %vm294, %v1089, 0
    %v1094 = vsel %vm294, %v1091, 0
    %1096 = vmatprep.subr.mxu0 0.0
    %1097 = vmatpush1.msra.mxu0 %v997
    %1098 = vmatprep.subr.mxu0 0.0
    %1099 = vmatpush1.msra.mxu0 %v998
    %1100 = vmatprep.subr.mxu0 0.0
    %1101 = vmatpush1.msra.mxu0 %v999
    %1102 = vmatprep.subr.mxu0 0.0
    %1103 = vmatpush1.msra.mxu0 %v1000
    %1104 = vmatprep.subr.mxu0 0.0
    %1105 = vmatpush1.msra.mxu0 0.0
    %1106 = vmatprep.subr.mxu0 0.0
    %1107 = vmatpush1.msra.mxu0 0.0
    %1108 = vmatprep.subr.mxu0 0.0
    %1109 = vmatpush1.msra.mxu0 0.0
    %1110 = vmatprep.subr.mxu0 0.0
    %1111 = vmatpush1.msra.mxu0 0.0
    %1112 = vmatprep.subr.mxu0 0.0
    %1113 = vmatpush1.msra.mxu0 0.0
    %1114 = vmatprep.subr.mxu0 0.0
    %1115 = vmatpush1.msra.mxu0 0.0
    %1116 = vmatprep.subr.mxu0 0.0
    %1117 = vmatpush1.msra.mxu0 0.0
    %1118 = vmatprep.subr.mxu0 0.0
    %1119 = vmatpush1.msra.mxu0 0.0
    %1120 = vmatprep.subr.mxu0 0.0
    %1121 = vmatpush1.msra.mxu0 0.0
    %1122 = vmatprep.subr.mxu0 0.0
    %1123 = vmatpush1.msra.mxu0 0.0
    %1124 = vmatprep.subr.mxu0 0.0
    %1125 = vmatpush1.msra.mxu0 0.0
    %1126 = vmatprep.subr.mxu0 0.0
    %1127 = vmatpush1.msra.mxu0 0.0
    %1128 = vmatprep.subr.mxu0 0.0
    %1129 = vmatpush1.msra.mxu0 0.0
    %1130 = vmatprep.subr.mxu0 0.0
    %1131 = vmatpush1.msra.mxu0 0.0
    %1132 = vmatprep.subr.mxu0 0.0
    %1133 = vmatpush1.msra.mxu0 0.0
    %1134 = vmatprep.subr.mxu0 0.0
    %1135 = vmatpush1.msra.mxu0 0.0
    %1136 = vmatprep.subr.mxu0 0.0
    %1137 = vmatpush1.msra.mxu0 0.0
    %1138 = vmatprep.subr.mxu0 0.0
    %1139 = vmatpush1.msra.mxu0 0.0
    %1140 = vmatprep.subr.mxu0 0.0
    %1141 = vmatpush1.msra.mxu0 0.0
    %1142 = vmatprep.subr.mxu0 0.0
    %1143 = vmatpush1.msra.mxu0 0.0
    %1144 = vmatprep.subr.mxu0 0.0
    %1145 = vmatpush1.msra.mxu0 0.0
    %1146 = vmatprep.subr.mxu0 0.0
    %1147 = vmatpush1.msra.mxu0 0.0
    %1148 = vmatprep.subr.mxu0 0.0
    %1149 = vmatpush1.msra.mxu0 0.0
    %1150 = vmatprep.subr.mxu0 0.0
    %1151 = vmatpush1.msra.mxu0 0.0
    %1152 = vmatprep.subr.mxu0 0.0
    %1153 = vmatpush1.msra.mxu0 0.0
    %1154 = vmatprep.subr.mxu0 0.0
    %1155 = vmatpush1.msra.mxu0 0.0
    %1156 = vmatprep.subr.mxu0 0.0
    %1157 = vmatpush1.msra.mxu0 0.0
    %1158 = vmatprep.subr.mxu0 0.0
    %1159 = vmatpush1.msra.mxu0 0.0
    %1160 = vmatprep.mubr.f32.mxu0 0.0
    %1161 = vmatmul.mubr.f32.gmra.mrb[0].mxu0 %v1092
    %v1162 = vpop.f32.mrb[0].mxu0
    %v1163 = vadd.f32 0.0, %v1162
    %v1164 = vpop.f32.mrb[0].mxu0
    %1165 = vmatprep.mubr.f32.mxu0 0.0
    %1166 = vmatmul.mubr.f32.gmra.mrb[0].mxu0 %v1094
    %v1167 = vpop.f32.mrb[0].mxu0
    %v1168 = vadd.f32 0.0, %v1167
    %v1169 = vpop.f32.mrb[0].mxu0
    %1170 = vdwg.mxu0
    %1173 = vrot.lane.b32.xlu0 %v1163, 32
    %v1174 = vpop.permute.xlu0 %1173
    %1175 = vrot.lane.b32.xlu0 %v1168, 32
    %v1176 = vpop.permute.xlu0 %1175
    %v1179 = vsel %vm294, %v1080, %v1174
    %v1180 = vsel %vm294, %v1085, %v1176
    %v1182 = vsel %vm297, %v994, 0
    %v1185 = vsel %vm297, %v995, 0
    %1187 = vmatprep.subr.mxu0 0.0
    %1188 = vmatpush1.msra.mxu0 %v1179
    %1189 = vmatprep.subr.mxu0 0.0
    %1190 = vmatpush1.msra.mxu0 %v1180
    %1191 = vmatprep.subr.mxu0 0.0
    %1192 = vmatpush1.msra.mxu0 0.0
    %1193 = vmatprep.subr.mxu0 0.0
    %1194 = vmatpush1.msra.mxu0 0.0
    %1195 = vmatprep.subr.mxu0 0.0
    %1196 = vmatpush1.msra.mxu0 0.0
    %1197 = vmatprep.subr.mxu0 0.0
    %1198 = vmatpush1.msra.mxu0 0.0
    %1199 = vmatprep.subr.mxu0 0.0
    %1200 = vmatpush1.msra.mxu0 0.0
    %1201 = vmatprep.subr.mxu0 0.0
    %1202 = vmatpush1.msra.mxu0 0.0
    %1203 = vmatprep.subr.mxu0 0.0
    %1204 = vmatpush1.msra.mxu0 0.0
    %1205 = vmatprep.subr.mxu0 0.0
    %1206 = vmatpush1.msra.mxu0 0.0
    %1207 = vmatprep.subr.mxu0 0.0
    %1208 = vmatpush1.msra.mxu0 0.0
    %1209 = vmatprep.subr.mxu0 0.0
    %1210 = vmatpush1.msra.mxu0 0.0
    %1211 = vmatprep.subr.mxu0 0.0
    %1212 = vmatpush1.msra.mxu0 0.0
    %1213 = vmatprep.subr.mxu0 0.0
    %1214 = vmatpush1.msra.mxu0 0.0
    %1215 = vmatprep.subr.mxu0 0.0
    %1216 = vmatpush1.msra.mxu0 0.0
    %1217 = vmatprep.subr.mxu0 0.0
    %1218 = vmatpush1.msra.mxu0 0.0
    %1219 = vmatprep.subr.mxu0 0.0
    %1220 = vmatpush1.msra.mxu0 0.0
    %1221 = vmatprep.subr.mxu0 0.0
    %1222 = vmatpush1.msra.mxu0 0.0
    %1223 = vmatprep.subr.mxu0 0.0
    %1224 = vmatpush1.msra.mxu0 0.0
    %1225 = vmatprep.subr.mxu0 0.0
    %1226 = vmatpush1.msra.mxu0 0.0
    %1227 = vmatprep.subr.mxu0 0.0
    %1228 = vmatpush1.msra.mxu0 0.0
    %1229 = vmatprep.subr.mxu0 0.0
    %1230 = vmatpush1.msra.mxu0 0.0
    %1231 = vmatprep.subr.mxu0 0.0
    %1232 = vmatpush1.msra.mxu0 0.0
    %1233 = vmatprep.subr.mxu0 0.0
    %1234 = vmatpush1.msra.mxu0 0.0
    %1235 = vmatprep.subr.mxu0 0.0
    %1236 = vmatpush1.msra.mxu0 0.0
    %1237 = vmatprep.subr.mxu0 0.0
    %1238 = vmatpush1.msra.mxu0 0.0
    %1239 = vmatprep.subr.mxu0 0.0
    %1240 = vmatpush1.msra.mxu0 0.0
    %1241 = vmatprep.subr.mxu0 0.0
    %1242 = vmatpush1.msra.mxu0 0.0
    %1243 = vmatprep.subr.mxu0 0.0
    %1244 = vmatpush1.msra.mxu0 0.0
    %1245 = vmatprep.subr.mxu0 0.0
    %1246 = vmatpush1.msra.mxu0 0.0
    %1247 = vmatprep.subr.mxu0 0.0
    %1248 = vmatpush1.msra.mxu0 0.0
    %1249 = vmatprep.subr.mxu0 0.0
    %1250 = vmatpush1.msra.mxu0 0.0
    %1251 = vmatprep.mubr.f32.mxu0 0.0
    %1252 = vmatmul.mubr.f32.gmra.mrb[0].mxu0 %v1182
    %v1253 = vpop.f32.mrb[0].mxu0
    %v1254 = vadd.f32 0.0, %v1253
    %v1255 = vpop.f32.mrb[0].mxu0
    %1256 = vmatprep.mubr.f32.mxu0 0.0
    %1257 = vmatmul.mubr.f32.gmra.mrb[0].mxu0 %v1185
    %v1258 = vpop.f32.mrb[0].mxu0
    %v1259 = vadd.f32 0.0, %v1258
    %v1260 = vpop.f32.mrb[0].mxu0
    %1261 = vdwg.mxu0
    %1264 = vrot.lane.b32.xlu0 %v1002, 32
    %v1265 = vpop.permute.xlu0 %1264
    %1266 = vrot.lane.b32.xlu0 %v1003, 32
    %v1267 = vpop.permute.xlu0 %1266
    %v1270 = vsel %vm294, %v1002, %v1265
    %v1271 = vsel %vm294, %v1003, %v1267
    %1274 = vrot.lane.b32.xlu0 %v1005, 32
    %v1275 = vpop.permute.xlu0 %1274
    %1276 = vrot.lane.b32.xlu0 %v1006, 32
    %v1277 = vpop.permute.xlu0 %1276
    %v1280 = vsel %vm294, %v1005, %v1275
    %v1281 = vsel %vm294, %v1006, %v1277
    %v1282 = vmul.f32 %v1254, %v1270
    %v1283 = vmul.f32 %v1259, %v1271
    %v1284 = vadd.f32 %v1282, %v1280
    %v1285 = vadd.f32 %v1283, %v1281
    %v1286 = vtanh.pop %v1284
    %v1287 = vtanh.pop %v1285
    %s1288 = scalar_lea.vmem %s5, 48
    %v1289 = vld [vmem:[%s1288] sm:$0xff]
    %v1290 = vld [vmem:[%s1288 + $0x8] sm:$0xff]
    %s1291 = scalar_lea.vmem [#allocation4], 96
    %v1292 = vld [vmem:[%s1291] sm:$0xff]
    %v1293 = vld [vmem:[%s1291 + $0x8] sm:$0xff]
    %v1294 = vld [vmem:[%s1291 + $0x10] sm:$0xff]
    %v1295 = vld [vmem:[%s1291 + $0x18] sm:$0xff]
    %s1296 = scalar_lea.vmem [#allocation6], 48
    %v1297 = vld [vmem:[%s1296] sm:$0xff]
    %v1298 = vld [vmem:[%s1296 + $0x8] sm:$0xff]
    %s1299 = scalar_lea.vmem [#allocation7], 48
    %v1300 = vld [vmem:[%s1299] sm:$0xff]
    %v1301 = vld [vmem:[%s1299 + $0x8] sm:$0xff]
    %v1303 = vsel %vm294, %v1286, 0
    %v1306 = vsel %vm294, %v1287, 0
    %1308 = vmatprep.subr.mxu0 0.0
    %1309 = vmatpush1.msra.mxu0 %v1292
    %1310 = vmatprep.subr.mxu0 0.0
    %1311 = vmatpush1.msra.mxu0 %v1293
    %1312 = vmatprep.subr.mxu0 0.0
    %1313 = vmatpush1.msra.mxu0 %v1294
    %1314 = vmatprep.subr.mxu0 0.0
    %1315 = vmatpush1.msra.mxu0 %v1295
    %1316 = vmatprep.subr.mxu0 0.0
    %1317 = vmatpush1.msra.mxu0 0.0
    %1318 = vmatprep.subr.mxu0 0.0
    %1319 = vmatpush1.msra.mxu0 0.0
    %1320 = vmatprep.subr.mxu0 0.0
    %1321 = vmatpush1.msra.mxu0 0.0
    %1322 = vmatprep.subr.mxu0 0.0
    %1323 = vmatpush1.msra.mxu0 0.0
    %1324 = vmatprep.subr.mxu0 0.0
    %1325 = vmatpush1.msra.mxu0 0.0
    %1326 = vmatprep.subr.mxu0 0.0
    %1327 = vmatpush1.msra.mxu0 0.0
    %1328 = vmatprep.subr.mxu0 0.0
    %1329 = vmatpush1.msra.mxu0 0.0
    %1330 = vmatprep.subr.mxu0 0.0
    %1331 = vmatpush1.msra.mxu0 0.0
    %1332 = vmatprep.subr.mxu0 0.0
    %1333 = vmatpush1.msra.mxu0 0.0
    %1334 = vmatprep.subr.mxu0 0.0
    %1335 = vmatpush1.msra.mxu0 0.0
    %1336 = vmatprep.subr.mxu0 0.0
    %1337 = vmatpush1.msra.mxu0 0.0
    %1338 = vmatprep.subr.mxu0 0.0
    %1339 = vmatpush1.msra.mxu0 0.0
    %1340 = vmatprep.subr.mxu0 0.0
    %1341 = vmatpush1.msra.mxu0 0.0
    %1342 = vmatprep.subr.mxu0 0.0
    %1343 = vmatpush1.msra.mxu0 0.0
    %1344 = vmatprep.subr.mxu0 0.0
    %1345 = vmatpush1.msra.mxu0 0.0
    %1346 = vmatprep.subr.mxu0 0.0
    %1347 = vmatpush1.msra.mxu0 0.0
    %1348 = vmatprep.subr.mxu0 0.0
    %1349 = vmatpush1.msra.mxu0 0.0
    %1350 = vmatprep.subr.mxu0 0.0
    %1351 = vmatpush1.msra.mxu0 0.0
    %1352 = vmatprep.subr.mxu0 0.0
    %1353 = vmatpush1.msra.mxu0 0.0
    %1354 = vmatprep.subr.mxu0 0.0
    %1355 = vmatpush1.msra.mxu0 0.0
    %1356 = vmatprep.subr.mxu0 0.0
    %1357 = vmatpush1.msra.mxu0 0.0
    %1358 = vmatprep.subr.mxu0 0.0
    %1359 = vmatpush1.msra.mxu0 0.0
    %1360 = vmatprep.subr.mxu0 0.0
    %1361 = vmatpush1.msra.mxu0 0.0
    %1362 = vmatprep.subr.mxu0 0.0
    %1363 = vmatpush1.msra.mxu0 0.0
    %1364 = vmatprep.subr.mxu0 0.0
    %1365 = vmatpush1.msra.mxu0 0.0
    %1366 = vmatprep.subr.mxu0 0.0
    %1367 = vmatpush1.msra.mxu0 0.0
    %1368 = vmatprep.subr.mxu0 0.0
    %1369 = vmatpush1.msra.mxu0 0.0
    %1370 = vmatprep.subr.mxu0 0.0
    %1371 = vmatpush1.msra.mxu0 0.0
    %1372 = vmatprep.mubr.f32.mxu0 0.0
    %1373 = vmatmul.mubr.f32.gmra.mrb[0].mxu0 %v1303
    %v1374 = vpop.f32.mrb[0].mxu0
    %v1375 = vadd.f32 0.0, %v1374
    %v1376 = vpop.f32.mrb[0].mxu0
    %1377 = vmatprep.mubr.f32.mxu0 0.0
    %1378 = vmatmul.mubr.f32.gmra.mrb[0].mxu0 %v1306
    %v1379 = vpop.f32.mrb[0].mxu0
    %v1380 = vadd.f32 0.0, %v1379
    %v1381 = vpop.f32.mrb[0].mxu0
    %1382 = vdwg.mxu0
    %1383 = vrot.lane.b32.xlu0 %v1286, 96
    %v1384 = vpop.permute.xlu0 %1383
    %1385 = vrot.lane.b32.xlu0 %v1287, 96
    %v1386 = vpop.permute.xlu0 %1385
    %v1387 = vsel %vm294, %v1384, 0
    %v1389 = vsel %vm294, %v1386, 0
    %1391 = vmatprep.subr.mxu0 0.0
    %1392 = vmatpush1.msra.mxu0 %v1292
    %1393 = vmatprep.subr.mxu0 0.0
    %1394 = vmatpush1.msra.mxu0 %v1293
    %1395 = vmatprep.subr.mxu0 0.0
    %1396 = vmatpush1.msra.mxu0 %v1294
    %1397 = vmatprep.subr.mxu0 0.0
    %1398 = vmatpush1.msra.mxu0 %v1295
    %1399 = vmatprep.subr.mxu0 0.0
    %1400 = vmatpush1.msra.mxu0 0.0
    %1401 = vmatprep.subr.mxu0 0.0
    %1402 = vmatpush1.msra.mxu0 0.0
    %1403 = vmatprep.subr.mxu0 0.0
    %1404 = vmatpush1.msra.mxu0 0.0
    %1405 = vmatprep.subr.mxu0 0.0
    %1406 = vmatpush1.msra.mxu0 0.0
    %1407 = vmatprep.subr.mxu0 0.0
    %1408 = vmatpush1.msra.mxu0 0.0
    %1409 = vmatprep.subr.mxu0 0.0
    %1410 = vmatpush1.msra.mxu0 0.0
    %1411 = vmatprep.subr.mxu0 0.0
    %1412 = vmatpush1.msra.mxu0 0.0
    %1413 = vmatprep.subr.mxu0 0.0
    %1414 = vmatpush1.msra.mxu0 0.0
    %1415 = vmatprep.subr.mxu0 0.0
    %1416 = vmatpush1.msra.mxu0 0.0
    %1417 = vmatprep.subr.mxu0 0.0
    %1418 = vmatpush1.msra.mxu0 0.0
    %1419 = vmatprep.subr.mxu0 0.0
    %1420 = vmatpush1.msra.mxu0 0.0
    %1421 = vmatprep.subr.mxu0 0.0
    %1422 = vmatpush1.msra.mxu0 0.0
    %1423 = vmatprep.subr.mxu0 0.0
    %1424 = vmatpush1.msra.mxu0 0.0
    %1425 = vmatprep.subr.mxu0 0.0
    %1426 = vmatpush1.msra.mxu0 0.0
    %1427 = vmatprep.subr.mxu0 0.0
    %1428 = vmatpush1.msra.mxu0 0.0
    %1429 = vmatprep.subr.mxu0 0.0
    %1430 = vmatpush1.msra.mxu0 0.0
    %1431 = vmatprep.subr.mxu0 0.0
    %1432 = vmatpush1.msra.mxu0 0.0
    %1433 = vmatprep.subr.mxu0 0.0
    %1434 = vmatpush1.msra.mxu0 0.0
    %1435 = vmatprep.subr.mxu0 0.0
    %1436 = vmatpush1.msra.mxu0 0.0
    %1437 = vmatprep.subr.mxu0 0.0
    %1438 = vmatpush1.msra.mxu0 0.0
    %1439 = vmatprep.subr.mxu0 0.0
    %1440 = vmatpush1.msra.mxu0 0.0
    %1441 = vmatprep.subr.mxu0 0.0
    %1442 = vmatpush1.msra.mxu0 0.0
    %1443 = vmatprep.subr.mxu0 0.0
    %1444 = vmatpush1.msra.mxu0 0.0
    %1445 = vmatprep.subr.mxu0 0.0
    %1446 = vmatpush1.msra.mxu0 0.0
    %1447 = vmatprep.subr.mxu0 0.0
    %1448 = vmatpush1.msra.mxu0 0.0
    %1449 = vmatprep.subr.mxu0 0.0
    %1450 = vmatpush1.msra.mxu0 0.0
    %1451 = vmatprep.subr.mxu0 0.0
    %1452 = vmatpush1.msra.mxu0 0.0
    %1453 = vmatprep.subr.mxu0 0.0
    %1454 = vmatpush1.msra.mxu0 0.0
    %1455 = vmatprep.mubr.f32.mxu0 0.0
    %1456 = vmatmul.mubr.f32.gmra.mrb[0].mxu0 %v1387
    %v1457 = vpop.f32.mrb[0].mxu0
    %v1458 = vadd.f32 0.0, %v1457
    %v1459 = vpop.f32.mrb[0].mxu0
    %1460 = vmatprep.mubr.f32.mxu0 0.0
    %1461 = vmatmul.mubr.f32.gmra.mrb[0].mxu0 %v1389
    %v1462 = vpop.f32.mrb[0].mxu0
    %v1463 = vadd.f32 0.0, %v1462
    %v1464 = vpop.f32.mrb[0].mxu0
    %1465 = vdwg.mxu0
    %1468 = vrot.lane.b32.xlu0 %v1458, 32
    %v1469 = vpop.permute.xlu0 %1468
    %1470 = vrot.lane.b32.xlu0 %v1463, 32
    %v1471 = vpop.permute.xlu0 %1470
    %v1474 = vsel %vm294, %v1375, %v1469
    %v1475 = vsel %vm294, %v1380, %v1471
    %v1477 = vsel %vm297, %v1289, 0
    %v1480 = vsel %vm297, %v1290, 0
    %1482 = vmatprep.subr.mxu0 0.0
    %1483 = vmatpush1.msra.mxu0 %v1474
    %1484 = vmatprep.subr.mxu0 0.0
    %1485 = vmatpush1.msra.mxu0 %v1475
    %1486 = vmatprep.subr.mxu0 0.0
    %1487 = vmatpush1.msra.mxu0 0.0
    %1488 = vmatprep.subr.mxu0 0.0
    %1489 = vmatpush1.msra.mxu0 0.0
    %1490 = vmatprep.subr.mxu0 0.0
    %1491 = vmatpush1.msra.mxu0 0.0
    %1492 = vmatprep.subr.mxu0 0.0
    %1493 = vmatpush1.msra.mxu0 0.0
    %1494 = vmatprep.subr.mxu0 0.0
    %1495 = vmatpush1.msra.mxu0 0.0
    %1496 = vmatprep.subr.mxu0 0.0
    %1497 = vmatpush1.msra.mxu0 0.0
    %1498 = vmatprep.subr.mxu0 0.0
    %1499 = vmatpush1.msra.mxu0 0.0
    %1500 = vmatprep.subr.mxu0 0.0
    %1501 = vmatpush1.msra.mxu0 0.0
    %1502 = vmatprep.subr.mxu0 0.0
    %1503 = vmatpush1.msra.mxu0 0.0
    %1504 = vmatprep.subr.mxu0 0.0
    %1505 = vmatpush1.msra.mxu0 0.0
    %1506 = vmatprep.subr.mxu0 0.0
    %1507 = vmatpush1.msra.mxu0 0.0
    %1508 = vmatprep.subr.mxu0 0.0
    %1509 = vmatpush1.msra.mxu0 0.0
    %1510 = vmatprep.subr.mxu0 0.0
    %1511 = vmatpush1.msra.mxu0 0.0
    %1512 = vmatprep.subr.mxu0 0.0
    %1513 = vmatpush1.msra.mxu0 0.0
    %1514 = vmatprep.subr.mxu0 0.0
    %1515 = vmatpush1.msra.mxu0 0.0
    %1516 = vmatprep.subr.mxu0 0.0
    %1517 = vmatpush1.msra.mxu0 0.0
    %1518 = vmatprep.subr.mxu0 0.0
    %1519 = vmatpush1.msra.mxu0 0.0
    %1520 = vmatprep.subr.mxu0 0.0
    %1521 = vmatpush1.msra.mxu0 0.0
    %1522 = vmatprep.subr.mxu0 0.0
    %1523 = vmatpush1.msra.mxu0 0.0
    %1524 = vmatprep.subr.mxu0 0.0
    %1525 = vmatpush1.msra.mxu0 0.0
    %1526 = vmatprep.subr.mxu0 0.0
    %1527 = vmatpush1.msra.mxu0 0.0
    %1528 = vmatprep.subr.mxu0 0.0
    %1529 = vmatpush1.msra.mxu0 0.0
    %1530 = vmatprep.subr.mxu0 0.0
    %1531 = vmatpush1.msra.mxu0 0.0
    %1532 = vmatprep.subr.mxu0 0.0
    %1533 = vmatpush1.msra.mxu0 0.0
    %1534 = vmatprep.subr.mxu0 0.0
    %1535 = vmatpush1.msra.mxu0 0.0
    %1536 = vmatprep.subr.mxu0 0.0
    %1537 = vmatpush1.msra.mxu0 0.0
    %1538 = vmatprep.subr.mxu0 0.0
    %1539 = vmatpush1.msra.mxu0 0.0
    %1540 = vmatprep.subr.mxu0 0.0
    %1541 = vmatpush1.msra.mxu0 0.0
    %1542 = vmatprep.subr.mxu0 0.0
    %1543 = vmatpush1.msra.mxu0 0.0
    %1544 = vmatprep.subr.mxu0 0.0
    %1545 = vmatpush1.msra.mxu0 0.0
    %1546 = vmatprep.mubr.f32.mxu0 0.0
    %1547 = vmatmul.mubr.f32.gmra.mrb[0].mxu0 %v1477
    %v1548 = vpop.f32.mrb[0].mxu0
    %v1549 = vadd.f32 0.0, %v1548
    %v1550 = vpop.f32.mrb[0].mxu0
    %1551 = vmatprep.mubr.f32.mxu0 0.0
    %1552 = vmatmul.mubr.f32.gmra.mrb[0].mxu0 %v1480
    %v1553 = vpop.f32.mrb[0].mxu0
    %v1554 = vadd.f32 0.0, %v1553
    %v1555 = vpop.f32.mrb[0].mxu0
    %1556 = vdwg.mxu0
    %1559 = vrot.lane.b32.xlu0 %v1297, 32
    %v1560 = vpop.permute.xlu0 %1559
    %1561 = vrot.lane.b32.xlu0 %v1298, 32
    %v1562 = vpop.permute.xlu0 %1561
    %v1565 = vsel %vm294, %v1297, %v1560
    %v1566 = vsel %vm294, %v1298, %v1562
    %1569 = vrot.lane.b32.xlu0 %v1300, 32
    %v1570 = vpop.permute.xlu0 %1569
    %1571 = vrot.lane.b32.xlu0 %v1301, 32
    %v1572 = vpop.permute.xlu0 %1571
    %v1575 = vsel %vm294, %v1300, %v1570
    %v1576 = vsel %vm294, %v1301, %v1572
    %v1577 = vmul.f32 %v1549, %v1565
    %v1578 = vmul.f32 %v1554, %v1566
    %v1579 = vadd.f32 %v1577, %v1575
    %v1580 = vadd.f32 %v1578, %v1576
    %v1581 = vtanh.pop %v1579
    %v1582 = vtanh.pop %v1580
    %v1583 = vadd.f32 %v991, %v1581
    %v1584 = vadd.f32 %v992, %v1582
    %v1585 = vld [vmem:[#allocation9] sm:$0xff]
    %v1586 = vld [vmem:[#allocation9 + $0x8] sm:$0xff]
    %v1587 = vld [vmem:[%s10] sm:$0xff]
    %v1588 = vld [vmem:[%s10 + $0x8] sm:$0xff]
    %v1589 = vld [vmem:[%s10 + $0x10] sm:$0xff]
    %v1590 = vld [vmem:[%s10 + $0x18] sm:$0xff]
    %v1591 = vld [vmem:[%s11] sm:$0xff]
    %v1592 = vld [vmem:[%s11 + $0x8] sm:$0xff]
    %v1593 = vld [vmem:[%s12] sm:$0xff]
    %v1594 = vld [vmem:[%s12 + $0x8] sm:$0xff]
    %v1596 = vsel %vm294, %v1583, 0
    %v1599 = vsel %vm294, %v1584, 0
    %1601 = vmatprep.subr.mxu0 0.0
    %1602 = vmatpush1.msra.mxu0 %v1587
    %1603 = vmatprep.subr.mxu0 0.0
    %1604 = vmatpush1.msra.mxu0 %v1588
    %1605 = vmatprep.subr.mxu0 0.0
    %1606 = vmatpush1.msra.mxu0 %v1589
    %1607 = vmatprep.subr.mxu0 0.0
    %1608 = vmatpush1.msra.mxu0 %v1590
    %1609 = vmatprep.subr.mxu0 0.0
    %1610 = vmatpush1.msra.mxu0 0.0
    %1611 = vmatprep.subr.mxu0 0.0
    %1612 = vmatpush1.msra.mxu0 0.0
    %1613 = vmatprep.subr.mxu0 0.0
    %1614 = vmatpush1.msra.mxu0 0.0
    %1615 = vmatprep.subr.mxu0 0.0
    %1616 = vmatpush1.msra.mxu0 0.0
    %1617 = vmatprep.subr.mxu0 0.0
    %1618 = vmatpush1.msra.mxu0 0.0
    %1619 = vmatprep.subr.mxu0 0.0
    %1620 = vmatpush1.msra.mxu0 0.0
    %1621 = vmatprep.subr.mxu0 0.0
    %1622 = vmatpush1.msra.mxu0 0.0
    %1623 = vmatprep.subr.mxu0 0.0
    %1624 = vmatpush1.msra.mxu0 0.0
    %1625 = vmatprep.subr.mxu0 0.0
    %1626 = vmatpush1.msra.mxu0 0.0
    %1627 = vmatprep.subr.mxu0 0.0
    %1628 = vmatpush1.msra.mxu0 0.0
    %1629 = vmatprep.subr.mxu0 0.0
    %1630 = vmatpush1.msra.mxu0 0.0
    %1631 = vmatprep.subr.mxu0 0.0
    %1632 = vmatpush1.msra.mxu0 0.0
    %1633 = vmatprep.subr.mxu0 0.0
    %1634 = vmatpush1.msra.mxu0 0.0
    %1635 = vmatprep.subr.mxu0 0.0
    %1636 = vmatpush1.msra.mxu0 0.0
    %1637 = vmatprep.subr.mxu0 0.0
    %1638 = vmatpush1.msra.mxu0 0.0
    %1639 = vmatprep.subr.mxu0 0.0
    %1640 = vmatpush1.msra.mxu0 0.0
    %1641 = vmatprep.subr.mxu0 0.0
    %1642 = vmatpush1.msra.mxu0 0.0
    %1643 = vmatprep.subr.mxu0 0.0
    %1644 = vmatpush1.msra.mxu0 0.0
    %1645 = vmatprep.subr.mxu0 0.0
    %1646 = vmatpush1.msra.mxu0 0.0
    %1647 = vmatprep.subr.mxu0 0.0
    %1648 = vmatpush1.msra.mxu0 0.0
    %1649 = vmatprep.subr.mxu0 0.0
    %1650 = vmatpush1.msra.mxu0 0.0
    %1651 = vmatprep.subr.mxu0 0.0
    %1652 = vmatpush1.msra.mxu0 0.0
    %1653 = vmatprep.subr.mxu0 0.0
    %1654 = vmatpush1.msra.mxu0 0.0
    %1655 = vmatprep.subr.mxu0 0.0
    %1656 = vmatpush1.msra.mxu0 0.0
    %1657 = vmatprep.subr.mxu0 0.0
    %1658 = vmatpush1.msra.mxu0 0.0
    %1659 = vmatprep.subr.mxu0 0.0
    %1660 = vmatpush1.msra.mxu0 0.0
    %1661 = vmatprep.subr.mxu0 0.0
    %1662 = vmatpush1.msra.mxu0 0.0
    %1663 = vmatprep.subr.mxu0 0.0
    %1664 = vmatpush1.msra.mxu0 0.0
    %1665 = vmatprep.mubr.f32.mxu0 0.0
    %1666 = vmatmul.mubr.f32.gmra.mrb[0].mxu0 %v1596
    %v1667 = vpop.f32.mrb[0].mxu0
    %v1668 = vadd.f32 0.0, %v1667
    %v1669 = vpop.f32.mrb[0].mxu0
    %1670 = vmatprep.mubr.f32.mxu0 0.0
    %1671 = vmatmul.mubr.f32.gmra.mrb[0].mxu0 %v1599
    %v1672 = vpop.f32.mrb[0].mxu0
    %v1673 = vadd.f32 0.0, %v1672
    %v1674 = vpop.f32.mrb[0].mxu0
    %1675 = vdwg.mxu0
    %1676 = vrot.lane.b32.xlu0 %v1583, 96
    %v1677 = vpop.permute.xlu0 %1676
    %1678 = vrot.lane.b32.xlu0 %v1584, 96
    %v1679 = vpop.permute.xlu0 %1678
    %v1680 = vsel %vm294, %v1677, 0
    %v1682 = vsel %vm294, %v1679, 0
    %1684 = vmatprep.subr.mxu0 0.0
    %1685 = vmatpush1.msra.mxu0 %v1587
    %1686 = vmatprep.subr.mxu0 0.0
    %1687 = vmatpush1.msra.mxu0 %v1588
    %1688 = vmatprep.subr.mxu0 0.0
    %1689 = vmatpush1.msra.mxu0 %v1589
    %1690 = vmatprep.subr.mxu0 0.0
    %1691 = vmatpush1.msra.mxu0 %v1590
    %1692 = vmatprep.subr.mxu0 0.0
    %1693 = vmatpush1.msra.mxu0 0.0
    %1694 = vmatprep.subr.mxu0 0.0
    %1695 = vmatpush1.msra.mxu0 0.0
    %1696 = vmatprep.subr.mxu0 0.0
    %1697 = vmatpush1.msra.mxu0 0.0
    %1698 = vmatprep.subr.mxu0 0.0
    %1699 = vmatpush1.msra.mxu0 0.0
    %1700 = vmatprep.subr.mxu0 0.0
    %1701 = vmatpush1.msra.mxu0 0.0
    %1702 = vmatprep.subr.mxu0 0.0
    %1703 = vmatpush1.msra.mxu0 0.0
    %1704 = vmatprep.subr.mxu0 0.0
    %1705 = vmatpush1.msra.mxu0 0.0
    %1706 = vmatprep.subr.mxu0 0.0
    %1707 = vmatpush1.msra.mxu0 0.0
    %1708 = vmatprep.subr.mxu0 0.0
    %1709 = vmatpush1.msra.mxu0 0.0
    %1710 = vmatprep.subr.mxu0 0.0
    %1711 = vmatpush1.msra.mxu0 0.0
    %1712 = vmatprep.subr.mxu0 0.0
    %1713 = vmatpush1.msra.mxu0 0.0
    %1714 = vmatprep.subr.mxu0 0.0
    %1715 = vmatpush1.msra.mxu0 0.0
    %1716 = vmatprep.subr.mxu0 0.0
    %1717 = vmatpush1.msra.mxu0 0.0
    %1718 = vmatprep.subr.mxu0 0.0
    %1719 = vmatpush1.msra.mxu0 0.0
    %1720 = vmatprep.subr.mxu0 0.0
    %1721 = vmatpush1.msra.mxu0 0.0
    %1722 = vmatprep.subr.mxu0 0.0
    %1723 = vmatpush1.msra.mxu0 0.0
    %1724 = vmatprep.subr.mxu0 0.0
    %1725 = vmatpush1.msra.mxu0 0.0
    %1726 = vmatprep.subr.mxu0 0.0
    %1727 = vmatpush1.msra.mxu0 0.0
    %1728 = vmatprep.subr.mxu0 0.0
    %1729 = vmatpush1.msra.mxu0 0.0
    %1730 = vmatprep.subr.mxu0 0.0
    %1731 = vmatpush1.msra.mxu0 0.0
    %1732 = vmatprep.subr.mxu0 0.0
    %1733 = vmatpush1.msra.mxu0 0.0
    %1734 = vmatprep.subr.mxu0 0.0
    %1735 = vmatpush1.msra.mxu0 0.0
    %1736 = vmatprep.subr.mxu0 0.0
    %1737 = vmatpush1.msra.mxu0 0.0
    %1738 = vmatprep.subr.mxu0 0.0
    %1739 = vmatpush1.msra.mxu0 0.0
    %1740 = vmatprep.subr.mxu0 0.0
    %1741 = vmatpush1.msra.mxu0 0.0
    %1742 = vmatprep.subr.mxu0 0.0
    %1743 = vmatpush1.msra.mxu0 0.0
    %1744 = vmatprep.subr.mxu0 0.0
    %1745 = vmatpush1.msra.mxu0 0.0
    %1746 = vmatprep.subr.mxu0 0.0
    %1747 = vmatpush1.msra.mxu0 0.0
    %1748 = vmatprep.mubr.f32.mxu0 0.0
    %1749 = vmatmul.mubr.f32.gmra.mrb[0].mxu0 %v1680
    %v1750 = vpop.f32.mrb[0].mxu0
    %v1751 = vadd.f32 0.0, %v1750
    %v1752 = vpop.f32.mrb[0].mxu0
    %1753 = vmatprep.mubr.f32.mxu0 0.0
    %1754 = vmatmul.mubr.f32.gmra.mrb[0].mxu0 %v1682
    %v1755 = vpop.f32.mrb[0].mxu0
    %v1756 = vadd.f32 0.0, %v1755
    %v1757 = vpop.f32.mrb[0].mxu0
    %1758 = vdwg.mxu0
    %1761 = vrot.lane.b32.xlu0 %v1751, 8
    %v1762 = vpop.permute.xlu0 %1761
    %1763 = vrot.lane.b32.xlu0 %v1756, 8
    %v1764 = vpop.permute.xlu0 %1763
    %v1767 = vsel %vm121, %v1668, %v1762
    %v1768 = vsel %vm121, %v1673, %v1764
    %v1770 = vsel %vm297, %v1585, 0
    %v1773 = vsel %vm297, %v1586, 0
    %1775 = vmatprep.subr.mxu0 0.0
    %1776 = vmatpush1.msra.mxu0 %v1767
    %1777 = vmatprep.subr.mxu0 0.0
    %1778 = vmatpush1.msra.mxu0 %v1768
    %1779 = vmatprep.subr.mxu0 0.0
    %1780 = vmatpush1.msra.mxu0 0.0
    %1781 = vmatprep.subr.mxu0 0.0
    %1782 = vmatpush1.msra.mxu0 0.0
    %1783 = vmatprep.subr.mxu0 0.0
    %1784 = vmatpush1.msra.mxu0 0.0
    %1785 = vmatprep.subr.mxu0 0.0
    %1786 = vmatpush1.msra.mxu0 0.0
    %1787 = vmatprep.subr.mxu0 0.0
    %1788 = vmatpush1.msra.mxu0 0.0
    %1789 = vmatprep.subr.mxu0 0.0
    %1790 = vmatpush1.msra.mxu0 0.0
    %1791 = vmatprep.subr.mxu0 0.0
    %1792 = vmatpush1.msra.mxu0 0.0
    %1793 = vmatprep.subr.mxu0 0.0
    %1794 = vmatpush1.msra.mxu0 0.0
    %1795 = vmatprep.subr.mxu0 0.0
    %1796 = vmatpush1.msra.mxu0 0.0
    %1797 = vmatprep.subr.mxu0 0.0
    %1798 = vmatpush1.msra.mxu0 0.0
    %1799 = vmatprep.subr.mxu0 0.0
    %1800 = vmatpush1.msra.mxu0 0.0
    %1801 = vmatprep.subr.mxu0 0.0
    %1802 = vmatpush1.msra.mxu0 0.0
    %1803 = vmatprep.subr.mxu0 0.0
    %1804 = vmatpush1.msra.mxu0 0.0
    %1805 = vmatprep.subr.mxu0 0.0
    %1806 = vmatpush1.msra.mxu0 0.0
    %1807 = vmatprep.subr.mxu0 0.0
    %1808 = vmatpush1.msra.mxu0 0.0
    %1809 = vmatprep.subr.mxu0 0.0
    %1810 = vmatpush1.msra.mxu0 0.0
    %1811 = vmatprep.subr.mxu0 0.0
    %1812 = vmatpush1.msra.mxu0 0.0
    %1813 = vmatprep.subr.mxu0 0.0
    %1814 = vmatpush1.msra.mxu0 0.0
    %1815 = vmatprep.subr.mxu0 0.0
    %1816 = vmatpush1.msra.mxu0 0.0
    %1817 = vmatprep.subr.mxu0 0.0
    %1818 = vmatpush1.msra.mxu0 0.0
    %1819 = vmatprep.subr.mxu0 0.0
    %1820 = vmatpush1.msra.mxu0 0.0
    %1821 = vmatprep.subr.mxu0 0.0
    %1822 = vmatpush1.msra.mxu0 0.0
    %1823 = vmatprep.subr.mxu0 0.0
    %1824 = vmatpush1.msra.mxu0 0.0
    %1825 = vmatprep.subr.mxu0 0.0
    %1826 = vmatpush1.msra.mxu0 0.0
    %1827 = vmatprep.subr.mxu0 0.0
    %1828 = vmatpush1.msra.mxu0 0.0
    %1829 = vmatprep.subr.mxu0 0.0
    %1830 = vmatpush1.msra.mxu0 0.0
    %1831 = vmatprep.subr.mxu0 0.0
    %1832 = vmatpush1.msra.mxu0 0.0
    %1833 = vmatprep.subr.mxu0 0.0
    %1834 = vmatpush1.msra.mxu0 0.0
    %1835 = vmatprep.subr.mxu0 0.0
    %1836 = vmatpush1.msra.mxu0 0.0
    %1837 = vmatprep.subr.mxu0 0.0
    %1838 = vmatpush1.msra.mxu0 0.0
    %1839 = vmatprep.mubr.f32.mxu0 0.0
    %1840 = vmatmul.mubr.f32.gmra.mrb[0].mxu0 %v1770
    %v1841 = vpop.f32.mrb[0].mxu0
    %v1842 = vadd.f32 0.0, %v1841
    %v1843 = vpop.f32.mrb[0].mxu0
    %1844 = vmatprep.mubr.f32.mxu0 0.0
    %1845 = vmatmul.mubr.f32.gmra.mrb[0].mxu0 %v1773
    %v1846 = vpop.f32.mrb[0].mxu0
    %v1847 = vadd.f32 0.0, %v1846
    %v1848 = vpop.f32.mrb[0].mxu0
    %1849 = vdwg.mxu0
    %1852 = vrot.lane.b32.xlu0 %v1591, 8
    %v1853 = vpop.permute.xlu0 %1852
    %1854 = vrot.lane.b32.xlu0 %v1592, 8
    %v1855 = vpop.permute.xlu0 %1854
    %v1858 = vsel %vm121, %v1591, %v1853
    %v1859 = vsel %vm121, %v1592, %v1855
    %1862 = vrot.lane.b32.xlu0 %v1593, 8
    %v1863 = vpop.permute.xlu0 %1862
    %1864 = vrot.lane.b32.xlu0 %v1594, 8
    %v1865 = vpop.permute.xlu0 %1864
    %v1868 = vsel %vm121, %v1593, %v1863
    %v1869 = vsel %vm121, %v1594, %v1865
    %v1870 = vmul.f32 %v1842, %v1858
    %v1871 = vmul.f32 %v1847, %v1859
    %v1872 = vadd.f32 %v1870, %v1868
    %v1873 = vadd.f32 %v1871, %v1869
    %v1874 = vadd.f32 %v1872, %v112
    %v1875 = vadd.f32 %v1873, %v113
    %1876 = vst.msk [vmem:[%s13] sm:$0xff] %vm297, %v1874
    %1877 = vst.msk [vmem:[%s13 + $0x8] sm:$0xff] %vm297, %v1875
    %s1878 = scalar_lea.vmem %s1, 16
    %v1879 = vld [vmem:[%s1878] sm:$0xff]
    %v1880 = vld [vmem:[%s1878 + $0x8] sm:$0xff]
    %s1881 = scalar_lea.vmem %s2, 8
    %v1882 = vld [vmem:[%s1881] sm:$0xff]
    %s1883 = scalar_lea.vmem %s3, 16
    %v1884 = vld [vmem:[%s1883] sm:$0xff]
    %v1885 = vld [vmem:[%s1883 + $0x8] sm:$0xff]
    %s1886 = scalar_lea.vmem [#allocation2], 16
    %v1887 = vld [vmem:[%s1886] sm:$0xff]
    %v1888 = vld [vmem:[%s1886 + $0x8] sm:$0xff]
    %v1890 = vsel %vm121, %v1874, 0
    %v1893 = vsel %vm121, %v1875, 0
    %1895 = vmatprep.subr.mxu0 0.0
    %1896 = vmatpush1.msra.mxu0 %v1882
    %1897 = vmatprep.subr.mxu0 0.0
    %1898 = vmatpush1.msra.mxu0 0.0
    %1899 = vmatprep.subr.mxu0 0.0
    %1900 = vmatpush1.msra.mxu0 0.0
    %1901 = vmatprep.subr.mxu0 0.0
    %1902 = vmatpush1.msra.mxu0 0.0
    %1903 = vmatprep.subr.mxu0 0.0
    %1904 = vmatpush1.msra.mxu0 0.0
    %1905 = vmatprep.subr.mxu0 0.0
    %1906 = vmatpush1.msra.mxu0 0.0
    %1907 = vmatprep.subr.mxu0 0.0
    %1908 = vmatpush1.msra.mxu0 0.0
    %1909 = vmatprep.subr.mxu0 0.0
    %1910 = vmatpush1.msra.mxu0 0.0
    %1911 = vmatprep.subr.mxu0 0.0
    %1912 = vmatpush1.msra.mxu0 0.0
    %1913 = vmatprep.subr.mxu0 0.0
    %1914 = vmatpush1.msra.mxu0 0.0
    %1915 = vmatprep.subr.mxu0 0.0
    %1916 = vmatpush1.msra.mxu0 0.0
    %1917 = vmatprep.subr.mxu0 0.0
    %1918 = vmatpush1.msra.mxu0 0.0
    %1919 = vmatprep.subr.mxu0 0.0
    %1920 = vmatpush1.msra.mxu0 0.0
    %1921 = vmatprep.subr.mxu0 0.0
    %1922 = vmatpush1.msra.mxu0 0.0
    %1923 = vmatprep.subr.mxu0 0.0
    %1924 = vmatpush1.msra.mxu0 0.0
    %1925 = vmatprep.subr.mxu0 0.0
    %1926 = vmatpush1.msra.mxu0 0.0
    %1927 = vmatprep.subr.mxu0 0.0
    %1928 = vmatpush1.msra.mxu0 0.0
    %1929 = vmatprep.subr.mxu0 0.0
    %1930 = vmatpush1.msra.mxu0 0.0
    %1931 = vmatprep.subr.mxu0 0.0
    %1932 = vmatpush1.msra.mxu0 0.0
    %1933 = vmatprep.subr.mxu0 0.0
    %1934 = vmatpush1.msra.mxu0 0.0
    %1935 = vmatprep.subr.mxu0 0.0
    %1936 = vmatpush1.msra.mxu0 0.0
    %1937 = vmatprep.subr.mxu0 0.0
    %1938 = vmatpush1.msra.mxu0 0.0
    %1939 = vmatprep.subr.mxu0 0.0
    %1940 = vmatpush1.msra.mxu0 0.0
    %1941 = vmatprep.subr.mxu0 0.0
    %1942 = vmatpush1.msra.mxu0 0.0
    %1943 = vmatprep.subr.mxu0 0.0
    %1944 = vmatpush1.msra.mxu0 0.0
    %1945 = vmatprep.subr.mxu0 0.0
    %1946 = vmatpush1.msra.mxu0 0.0
    %1947 = vmatprep.subr.mxu0 0.0
    %1948 = vmatpush1.msra.mxu0 0.0
    %1949 = vmatprep.subr.mxu0 0.0
    %1950 = vmatpush1.msra.mxu0 0.0
    %1951 = vmatprep.subr.mxu0 0.0
    %1952 = vmatpush1.msra.mxu0 0.0
    %1953 = vmatprep.subr.mxu0 0.0
    %1954 = vmatpush1.msra.mxu0 0.0
    %1955 = vmatprep.subr.mxu0 0.0
    %1956 = vmatpush1.msra.mxu0 0.0
    %1957 = vmatprep.subr.mxu0 0.0
    %1958 = vmatpush1.msra.mxu0 0.0
    %1959 = vmatprep.mubr.f32.mxu0 0.0
    %1960 = vmatmul.mubr.f32.gmra.mrb[0].mxu0 %v1890
    %v1961 = vpop.f32.mrb[0].mxu0
    %v1962 = vadd.f32 0.0, %v1961
    %v1963 = vpop.f32.mrb[0].mxu0
    %1964 = vmatprep.mubr.f32.mxu0 0.0
    %1965 = vmatmul.mubr.f32.gmra.mrb[0].mxu0 %v1893
    %v1966 = vpop.f32.mrb[0].mxu0
    %v1967 = vadd.f32 0.0, %v1966
    %v1968 = vpop.f32.mrb[0].mxu0
    %1969 = vdwg.mxu0
    %1970 = vrot.lane.b32.xlu0 %v1874, 120
    %v1971 = vpop.permute.xlu0 %1970
    %1972 = vrot.lane.b32.xlu0 %v1875, 120
    %v1973 = vpop.permute.xlu0 %1972
    %v1974 = vsel %vm121, %v1971, 0
    %v1976 = vsel %vm121, %v1973, 0
    %1978 = vmatprep.subr.mxu0 0.0
    %1979 = vmatpush1.msra.mxu0 %v1882
    %1980 = vmatprep.subr.mxu0 0.0
    %1981 = vmatpush1.msra.mxu0 0.0
    %1982 = vmatprep.subr.mxu0 0.0
    %1983 = vmatpush1.msra.mxu0 0.0
    %1984 = vmatprep.subr.mxu0 0.0
    %1985 = vmatpush1.msra.mxu0 0.0
    %1986 = vmatprep.subr.mxu0 0.0
    %1987 = vmatpush1.msra.mxu0 0.0
    %1988 = vmatprep.subr.mxu0 0.0
    %1989 = vmatpush1.msra.mxu0 0.0
    %1990 = vmatprep.subr.mxu0 0.0
    %1991 = vmatpush1.msra.mxu0 0.0
    %1992 = vmatprep.subr.mxu0 0.0
    %1993 = vmatpush1.msra.mxu0 0.0
    %1994 = vmatprep.subr.mxu0 0.0
    %1995 = vmatpush1.msra.mxu0 0.0
    %1996 = vmatprep.subr.mxu0 0.0
    %1997 = vmatpush1.msra.mxu0 0.0
    %1998 = vmatprep.subr.mxu0 0.0
    %1999 = vmatpush1.msra.mxu0 0.0
    %2000 = vmatprep.subr.mxu0 0.0
    %2001 = vmatpush1.msra.mxu0 0.0
    %2002 = vmatprep.subr.mxu0 0.0
    %2003 = vmatpush1.msra.mxu0 0.0
    %2004 = vmatprep.subr.mxu0 0.0
    %2005 = vmatpush1.msra.mxu0 0.0
    %2006 = vmatprep.subr.mxu0 0.0
    %2007 = vmatpush1.msra.mxu0 0.0
    %2008 = vmatprep.subr.mxu0 0.0
    %2009 = vmatpush1.msra.mxu0 0.0
    %2010 = vmatprep.subr.mxu0 0.0
    %2011 = vmatpush1.msra.mxu0 0.0
    %2012 = vmatprep.subr.mxu0 0.0
    %2013 = vmatpush1.msra.mxu0 0.0
    %2014 = vmatprep.subr.mxu0 0.0
    %2015 = vmatpush1.msra.mxu0 0.0
    %2016 = vmatprep.subr.mxu0 0.0
    %2017 = vmatpush1.msra.mxu0 0.0
    %2018 = vmatprep.subr.mxu0 0.0
    %2019 = vmatpush1.msra.mxu0 0.0
    %2020 = vmatprep.subr.mxu0 0.0
    %2021 = vmatpush1.msra.mxu0 0.0
    %2022 = vmatprep.subr.mxu0 0.0
    %2023 = vmatpush1.msra.mxu0 0.0
    %2024 = vmatprep.subr.mxu0 0.0
    %2025 = vmatpush1.msra.mxu0 0.0
    %2026 = vmatprep.subr.mxu0 0.0
    %2027 = vmatpush1.msra.mxu0 0.0
    %2028 = vmatprep.subr.mxu0 0.0
    %2029 = vmatpush1.msra.mxu0 0.0
    %2030 = vmatprep.subr.mxu0 0.0
    %2031 = vmatpush1.msra.mxu0 0.0
    %2032 = vmatprep.subr.mxu0 0.0
    %2033 = vmatpush1.msra.mxu0 0.0
    %2034 = vmatprep.subr.mxu0 0.0
    %2035 = vmatpush1.msra.mxu0 0.0
    %2036 = vmatprep.subr.mxu0 0.0
    %2037 = vmatpush1.msra.mxu0 0.0
    %2038 = vmatprep.subr.mxu0 0.0
    %2039 = vmatpush1.msra.mxu0 0.0
    %2040 = vmatprep.subr.mxu0 0.0
    %2041 = vmatpush1.msra.mxu0 0.0
    %2042 = vmatprep.mubr.f32.mxu0 0.0
    %2043 = vmatmul.mubr.f32.gmra.mrb[0].mxu0 %v1974
    %v2044 = vpop.f32.mrb[0].mxu0
    %v2045 = vadd.f32 0.0, %v2044
    %v2046 = vpop.f32.mrb[0].mxu0
    %2047 = vmatprep.mubr.f32.mxu0 0.0
    %2048 = vmatmul.mubr.f32.gmra.mrb[0].mxu0 %v1976
    %v2049 = vpop.f32.mrb[0].mxu0
    %v2050 = vadd.f32 0.0, %v2049
    %v2051 = vpop.f32.mrb[0].mxu0
    %2052 = vdwg.mxu0
    %2055 = vrot.lane.b32.xlu0 %v2045, 32
    %v2056 = vpop.permute.xlu0 %2055
    %2057 = vrot.lane.b32.xlu0 %v2050, 32
    %v2058 = vpop.permute.xlu0 %2057
    %v2061 = vsel %vm294, %v1962, %v2056
    %v2062 = vsel %vm294, %v1967, %v2058
    %v2064 = vsel %vm297, %v1879, 0
    %v2067 = vsel %vm297, %v1880, 0
    %2069 = vmatprep.subr.mxu0 0.0
    %2070 = vmatpush1.msra.mxu0 %v2061
    %2071 = vmatprep.subr.mxu0 0.0
    %2072 = vmatpush1.msra.mxu0 %v2062
    %2073 = vmatprep.subr.mxu0 0.0
    %2074 = vmatpush1.msra.mxu0 0.0
    %2075 = vmatprep.subr.mxu0 0.0
    %2076 = vmatpush1.msra.mxu0 0.0
    %2077 = vmatprep.subr.mxu0 0.0
    %2078 = vmatpush1.msra.mxu0 0.0
    %2079 = vmatprep.subr.mxu0 0.0
    %2080 = vmatpush1.msra.mxu0 0.0
    %2081 = vmatprep.subr.mxu0 0.0
    %2082 = vmatpush1.msra.mxu0 0.0
    %2083 = vmatprep.subr.mxu0 0.0
    %2084 = vmatpush1.msra.mxu0 0.0
    %2085 = vmatprep.subr.mxu0 0.0
    %2086 = vmatpush1.msra.mxu0 0.0
    %2087 = vmatprep.subr.mxu0 0.0
    %2088 = vmatpush1.msra.mxu0 0.0
    %2089 = vmatprep.subr.mxu0 0.0
    %2090 = vmatpush1.msra.mxu0 0.0
    %2091 = vmatprep.subr.mxu0 0.0
    %2092 = vmatpush1.msra.mxu0 0.0
    %2093 = vmatprep.subr.mxu0 0.0
    %2094 = vmatpush1.msra.mxu0 0.0
    %2095 = vmatprep.subr.mxu0 0.0
    %2096 = vmatpush1.msra.mxu0 0.0
    %2097 = vmatprep.subr.mxu0 0.0
    %2098 = vmatpush1.msra.mxu0 0.0
    %2099 = vmatprep.subr.mxu0 0.0
    %2100 = vmatpush1.msra.mxu0 0.0
    %2101 = vmatprep.subr.mxu0 0.0
    %2102 = vmatpush1.msra.mxu0 0.0
    %2103 = vmatprep.subr.mxu0 0.0
    %2104 = vmatpush1.msra.mxu0 0.0
    %2105 = vmatprep.subr.mxu0 0.0
    %2106 = vmatpush1.msra.mxu0 0.0
    %2107 = vmatprep.subr.mxu0 0.0
    %2108 = vmatpush1.msra.mxu0 0.0
    %2109 = vmatprep.subr.mxu0 0.0
    %2110 = vmatpush1.msra.mxu0 0.0
    %2111 = vmatprep.subr.mxu0 0.0
    %2112 = vmatpush1.msra.mxu0 0.0
    %2113 = vmatprep.subr.mxu0 0.0
    %2114 = vmatpush1.msra.mxu0 0.0
    %2115 = vmatprep.subr.mxu0 0.0
    %2116 = vmatpush1.msra.mxu0 0.0
    %2117 = vmatprep.subr.mxu0 0.0
    %2118 = vmatpush1.msra.mxu0 0.0
    %2119 = vmatprep.subr.mxu0 0.0
    %2120 = vmatpush1.msra.mxu0 0.0
    %2121 = vmatprep.subr.mxu0 0.0
    %2122 = vmatpush1.msra.mxu0 0.0
    %2123 = vmatprep.subr.mxu0 0.0
    %2124 = vmatpush1.msra.mxu0 0.0
    %2125 = vmatprep.subr.mxu0 0.0
    %2126 = vmatpush1.msra.mxu0 0.0
    %2127 = vmatprep.subr.mxu0 0.0
    %2128 = vmatpush1.msra.mxu0 0.0
    %2129 = vmatprep.subr.mxu0 0.0
    %2130 = vmatpush1.msra.mxu0 0.0
    %2131 = vmatprep.subr.mxu0 0.0
    %2132 = vmatpush1.msra.mxu0 0.0
    %2133 = vmatprep.mubr.f32.mxu0 0.0
    %2134 = vmatmul.mubr.f32.gmra.mrb[0].mxu0 %v2064
    %v2135 = vpop.f32.mrb[0].mxu0
    %v2136 = vadd.f32 0.0, %v2135
    %v2137 = vpop.f32.mrb[0].mxu0
    %2138 = vmatprep.mubr.f32.mxu0 0.0
    %2139 = vmatmul.mubr.f32.gmra.mrb[0].mxu0 %v2067
    %v2140 = vpop.f32.mrb[0].mxu0
    %v2141 = vadd.f32 0.0, %v2140
    %v2142 = vpop.f32.mrb[0].mxu0
    %2143 = vdwg.mxu0
    %2146 = vrot.lane.b32.xlu0 %v1884, 32
    %v2147 = vpop.permute.xlu0 %2146
    %2148 = vrot.lane.b32.xlu0 %v1885, 32
    %v2149 = vpop.permute.xlu0 %2148
    %v2152 = vsel %vm294, %v1884, %v2147
    %v2153 = vsel %vm294, %v1885, %v2149
    %2156 = vrot.lane.b32.xlu0 %v1887, 32
    %v2157 = vpop.permute.xlu0 %2156
    %2158 = vrot.lane.b32.xlu0 %v1888, 32
    %v2159 = vpop.permute.xlu0 %2158
    %v2162 = vsel %vm294, %v1887, %v2157
    %v2163 = vsel %vm294, %v1888, %v2159
    %v2164 = vmul.f32 %v2136, %v2152
    %v2165 = vmul.f32 %v2141, %v2153
    %v2166 = vadd.f32 %v2164, %v2162
    %v2167 = vadd.f32 %v2165, %v2163
    %v2168 = vtanh.pop %v2166
    %v2169 = vtanh.pop %v2167
    %s2170 = scalar_lea.vmem %s5, 64
    %v2171 = vld [vmem:[%s2170] sm:$0xff]
    %v2172 = vld [vmem:[%s2170 + $0x8] sm:$0xff]
    %s2173 = scalar_lea.vmem [#allocation4], 128
    %v2174 = vld [vmem:[%s2173] sm:$0xff]
    %v2175 = vld [vmem:[%s2173 + $0x8] sm:$0xff]
    %v2176 = vld [vmem:[%s2173 + $0x10] sm:$0xff]
    %v2177 = vld [vmem:[%s2173 + $0x18] sm:$0xff]
    %s2178 = scalar_lea.vmem [#allocation6], 64
    %v2179 = vld [vmem:[%s2178] sm:$0xff]
    %v2180 = vld [vmem:[%s2178 + $0x8] sm:$0xff]
    %s2181 = scalar_lea.vmem [#allocation7], 64
    %v2182 = vld [vmem:[%s2181] sm:$0xff]
    %v2183 = vld [vmem:[%s2181 + $0x8] sm:$0xff]
    %v2185 = vsel %vm294, %v2168, 0
    %v2188 = vsel %vm294, %v2169, 0
    %2190 = vmatprep.subr.mxu0 0.0
    %2191 = vmatpush1.msra.mxu0 %v2174
    %2192 = vmatprep.subr.mxu0 0.0
    %2193 = vmatpush1.msra.mxu0 %v2175
    %2194 = vmatprep.subr.mxu0 0.0
    %2195 = vmatpush1.msra.mxu0 %v2176
    %2196 = vmatprep.subr.mxu0 0.0
    %2197 = vmatpush1.msra.mxu0 %v2177
    %2198 = vmatprep.subr.mxu0 0.0
    %2199 = vmatpush1.msra.mxu0 0.0
    %2200 = vmatprep.subr.mxu0 0.0
    %2201 = vmatpush1.msra.mxu0 0.0
    %2202 = vmatprep.subr.mxu0 0.0
    %2203 = vmatpush1.msra.mxu0 0.0
    %2204 = vmatprep.subr.mxu0 0.0
    %2205 = vmatpush1.msra.mxu0 0.0
    %2206 = vmatprep.subr.mxu0 0.0
    %2207 = vmatpush1.msra.mxu0 0.0
    %2208 = vmatprep.subr.mxu0 0.0
    %2209 = vmatpush1.msra.mxu0 0.0
    %2210 = vmatprep.subr.mxu0 0.0
    %2211 = vmatpush1.msra.mxu0 0.0
    %2212 = vmatprep.subr.mxu0 0.0
    %2213 = vmatpush1.msra.mxu0 0.0
    %2214 = vmatprep.subr.mxu0 0.0
    %2215 = vmatpush1.msra.mxu0 0.0
    %2216 = vmatprep.subr.mxu0 0.0
    %2217 = vmatpush1.msra.mxu0 0.0
    %2218 = vmatprep.subr.mxu0 0.0
    %2219 = vmatpush1.msra.mxu0 0.0
    %2220 = vmatprep.subr.mxu0 0.0
    %2221 = vmatpush1.msra.mxu0 0.0
    %2222 = vmatprep.subr.mxu0 0.0
    %2223 = vmatpush1.msra.mxu0 0.0
    %2224 = vmatprep.subr.mxu0 0.0
    %2225 = vmatpush1.msra.mxu0 0.0
    %2226 = vmatprep.subr.mxu0 0.0
    %2227 = vmatpush1.msra.mxu0 0.0
    %2228 = vmatprep.subr.mxu0 0.0
    %2229 = vmatpush1.msra.mxu0 0.0
    %2230 = vmatprep.subr.mxu0 0.0
    %2231 = vmatpush1.msra.mxu0 0.0
    %2232 = vmatprep.subr.mxu0 0.0
    %2233 = vmatpush1.msra.mxu0 0.0
    %2234 = vmatprep.subr.mxu0 0.0
    %2235 = vmatpush1.msra.mxu0 0.0
    %2236 = vmatprep.subr.mxu0 0.0
    %2237 = vmatpush1.msra.mxu0 0.0
    %2238 = vmatprep.subr.mxu0 0.0
    %2239 = vmatpush1.msra.mxu0 0.0
    %2240 = vmatprep.subr.mxu0 0.0
    %2241 = vmatpush1.msra.mxu0 0.0
    %2242 = vmatprep.subr.mxu0 0.0
    %2243 = vmatpush1.msra.mxu0 0.0
    %2244 = vmatprep.subr.mxu0 0.0
    %2245 = vmatpush1.msra.mxu0 0.0
    %2246 = vmatprep.subr.mxu0 0.0
    %2247 = vmatpush1.msra.mxu0 0.0
    %2248 = vmatprep.subr.mxu0 0.0
    %2249 = vmatpush1.msra.mxu0 0.0
    %2250 = vmatprep.subr.mxu0 0.0
    %2251 = vmatpush1.msra.mxu0 0.0
    %2252 = vmatprep.subr.mxu0 0.0
    %2253 = vmatpush1.msra.mxu0 0.0
    %2254 = vmatprep.mubr.f32.mxu0 0.0
    %2255 = vmatmul.mubr.f32.gmra.mrb[0].mxu0 %v2185
    %v2256 = vpop.f32.mrb[0].mxu0
    %v2257 = vadd.f32 0.0, %v2256
    %v2258 = vpop.f32.mrb[0].mxu0
    %2259 = vmatprep.mubr.f32.mxu0 0.0
    %2260 = vmatmul.mubr.f32.gmra.mrb[0].mxu0 %v2188
    %v2261 = vpop.f32.mrb[0].mxu0
    %v2262 = vadd.f32 0.0, %v2261
    %v2263 = vpop.f32.mrb[0].mxu0
    %2264 = vdwg.mxu0
    %2265 = vrot.lane.b32.xlu0 %v2168, 96
    %v2266 = vpop.permute.xlu0 %2265
    %2267 = vrot.lane.b32.xlu0 %v2169, 96
    %v2268 = vpop.permute.xlu0 %2267
    %v2269 = vsel %vm294, %v2266, 0
    %v2271 = vsel %vm294, %v2268, 0
    %2273 = vmatprep.subr.mxu0 0.0
    %2274 = vmatpush1.msra.mxu0 %v2174
    %2275 = vmatprep.subr.mxu0 0.0
    %2276 = vmatpush1.msra.mxu0 %v2175
    %2277 = vmatprep.subr.mxu0 0.0
    %2278 = vmatpush1.msra.mxu0 %v2176
    %2279 = vmatprep.subr.mxu0 0.0
    %2280 = vmatpush1.msra.mxu0 %v2177
    %2281 = vmatprep.subr.mxu0 0.0
    %2282 = vmatpush1.msra.mxu0 0.0
    %2283 = vmatprep.subr.mxu0 0.0
    %2284 = vmatpush1.msra.mxu0 0.0
    %2285 = vmatprep.subr.mxu0 0.0
    %2286 = vmatpush1.msra.mxu0 0.0
    %2287 = vmatprep.subr.mxu0 0.0
    %2288 = vmatpush1.msra.mxu0 0.0
    %2289 = vmatprep.subr.mxu0 0.0
    %2290 = vmatpush1.msra.mxu0 0.0
    %2291 = vmatprep.subr.mxu0 0.0
    %2292 = vmatpush1.msra.mxu0 0.0
    %2293 = vmatprep.subr.mxu0 0.0
    %2294 = vmatpush1.msra.mxu0 0.0
    %2295 = vmatprep.subr.mxu0 0.0
    %2296 = vmatpush1.msra.mxu0 0.0
    %2297 = vmatprep.subr.mxu0 0.0
    %2298 = vmatpush1.msra.mxu0 0.0
    %2299 = vmatprep.subr.mxu0 0.0
    %2300 = vmatpush1.msra.mxu0 0.0
    %2301 = vmatprep.subr.mxu0 0.0
    %2302 = vmatpush1.msra.mxu0 0.0
    %2303 = vmatprep.subr.mxu0 0.0
    %2304 = vmatpush1.msra.mxu0 0.0
    %2305 = vmatprep.subr.mxu0 0.0
    %2306 = vmatpush1.msra.mxu0 0.0
    %2307 = vmatprep.subr.mxu0 0.0
    %2308 = vmatpush1.msra.mxu0 0.0
    %2309 = vmatprep.subr.mxu0 0.0
    %2310 = vmatpush1.msra.mxu0 0.0
    %2311 = vmatprep.subr.mxu0 0.0
    %2312 = vmatpush1.msra.mxu0 0.0
    %2313 = vmatprep.subr.mxu0 0.0
    %2314 = vmatpush1.msra.mxu0 0.0
    %2315 = vmatprep.subr.mxu0 0.0
    %2316 = vmatpush1.msra.mxu0 0.0
    %2317 = vmatprep.subr.mxu0 0.0
    %2318 = vmatpush1.msra.mxu0 0.0
    %2319 = vmatprep.subr.mxu0 0.0
    %2320 = vmatpush1.msra.mxu0 0.0
    %2321 = vmatprep.subr.mxu0 0.0
    %2322 = vmatpush1.msra.mxu0 0.0
    %2323 = vmatprep.subr.mxu0 0.0
    %2324 = vmatpush1.msra.mxu0 0.0
    %2325 = vmatprep.subr.mxu0 0.0
    %2326 = vmatpush1.msra.mxu0 0.0
    %2327 = vmatprep.subr.mxu0 0.0
    %2328 = vmatpush1.msra.mxu0 0.0
    %2329 = vmatprep.subr.mxu0 0.0
    %2330 = vmatpush1.msra.mxu0 0.0
    %2331 = vmatprep.subr.mxu0 0.0
    %2332 = vmatpush1.msra.mxu0 0.0
    %2333 = vmatprep.subr.mxu0 0.0
    %2334 = vmatpush1.msra.mxu0 0.0
    %2335 = vmatprep.subr.mxu0 0.0
    %2336 = vmatpush1.msra.mxu0 0.0
    %2337 = vmatprep.mubr.f32.mxu0 0.0
    %2338 = vmatmul.mubr.f32.gmra.mrb[0].mxu0 %v2269
    %v2339 = vpop.f32.mrb[0].mxu0
    %v2340 = vadd.f32 0.0, %v2339
    %v2341 = vpop.f32.mrb[0].mxu0
    %2342 = vmatprep.mubr.f32.mxu0 0.0
    %2343 = vmatmul.mubr.f32.gmra.mrb[0].mxu0 %v2271
    %v2344 = vpop.f32.mrb[0].mxu0
    %v2345 = vadd.f32 0.0, %v2344
    %v2346 = vpop.f32.mrb[0].mxu0
    %2347 = vdwg.mxu0
    %2350 = vrot.lane.b32.xlu0 %v2340, 32
    %v2351 = vpop.permute.xlu0 %2350
    %2352 = vrot.lane.b32.xlu0 %v2345, 32
    %v2353 = vpop.permute.xlu0 %2352
    %v2356 = vsel %vm294, %v2257, %v2351
    %v2357 = vsel %vm294, %v2262, %v2353
    %v2359 = vsel %vm297, %v2171, 0
    %v2362 = vsel %vm297, %v2172, 0
    %2364 = vmatprep.subr.mxu0 0.0
    %2365 = vmatpush1.msra.mxu0 %v2356
    %2366 = vmatprep.subr.mxu0 0.0
    %2367 = vmatpush1.msra.mxu0 %v2357
    %2368 = vmatprep.subr.mxu0 0.0
    %2369 = vmatpush1.msra.mxu0 0.0
    %2370 = vmatprep.subr.mxu0 0.0
    %2371 = vmatpush1.msra.mxu0 0.0
    %2372 = vmatprep.subr.mxu0 0.0
    %2373 = vmatpush1.msra.mxu0 0.0
    %2374 = vmatprep.subr.mxu0 0.0
    %2375 = vmatpush1.msra.mxu0 0.0
    %2376 = vmatprep.subr.mxu0 0.0
    %2377 = vmatpush1.msra.mxu0 0.0
    %2378 = vmatprep.subr.mxu0 0.0
    %2379 = vmatpush1.msra.mxu0 0.0
    %2380 = vmatprep.subr.mxu0 0.0
    %2381 = vmatpush1.msra.mxu0 0.0
    %2382 = vmatprep.subr.mxu0 0.0
    %2383 = vmatpush1.msra.mxu0 0.0
    %2384 = vmatprep.subr.mxu0 0.0
    %2385 = vmatpush1.msra.mxu0 0.0
    %2386 = vmatprep.subr.mxu0 0.0
    %2387 = vmatpush1.msra.mxu0 0.0
    %2388 = vmatprep.subr.mxu0 0.0
    %2389 = vmatpush1.msra.mxu0 0.0
    %2390 = vmatprep.subr.mxu0 0.0
    %2391 = vmatpush1.msra.mxu0 0.0
    %2392 = vmatprep.subr.mxu0 0.0
    %2393 = vmatpush1.msra.mxu0 0.0
    %2394 = vmatprep.subr.mxu0 0.0
    %2395 = vmatpush1.msra.mxu0 0.0
    %2396 = vmatprep.subr.mxu0 0.0
    %2397 = vmatpush1.msra.mxu0 0.0
    %2398 = vmatprep.subr.mxu0 0.0
    %2399 = vmatpush1.msra.mxu0 0.0
    %2400 = vmatprep.subr.mxu0 0.0
    %2401 = vmatpush1.msra.mxu0 0.0
    %2402 = vmatprep.subr.mxu0 0.0
    %2403 = vmatpush1.msra.mxu0 0.0
    %2404 = vmatprep.subr.mxu0 0.0
    %2405 = vmatpush1.msra.mxu0 0.0
    %2406 = vmatprep.subr.mxu0 0.0
    %2407 = vmatpush1.msra.mxu0 0.0
    %2408 = vmatprep.subr.mxu0 0.0
    %2409 = vmatpush1.msra.mxu0 0.0
    %2410 = vmatprep.subr.mxu0 0.0
    %2411 = vmatpush1.msra.mxu0 0.0
    %2412 = vmatprep.subr.mxu0 0.0
    %2413 = vmatpush1.msra.mxu0 0.0
    %2414 = vmatprep.subr.mxu0 0.0
    %2415 = vmatpush1.msra.mxu0 0.0
    %2416 = vmatprep.subr.mxu0 0.0
    %2417 = vmatpush1.msra.mxu0 0.0
    %2418 = vmatprep.subr.mxu0 0.0
    %2419 = vmatpush1.msra.mxu0 0.0
    %2420 = vmatprep.subr.mxu0 0.0
    %2421 = vmatpush1.msra.mxu0 0.0
    %2422 = vmatprep.subr.mxu0 0.0
    %2423 = vmatpush1.msra.mxu0 0.0
    %2424 = vmatprep.subr.mxu0 0.0
    %2425 = vmatpush1.msra.mxu0 0.0
    %2426 = vmatprep.subr.mxu0 0.0
    %2427 = vmatpush1.msra.mxu0 0.0
    %2428 = vmatprep.mubr.f32.mxu0 0.0
    %2429 = vmatmul.mubr.f32.gmra.mrb[0].mxu0 %v2359
    %v2430 = vpop.f32.mrb[0].mxu0
    %v2431 = vadd.f32 0.0, %v2430
    %v2432 = vpop.f32.mrb[0].mxu0
    %2433 = vmatprep.mubr.f32.mxu0 0.0
    %2434 = vmatmul.mubr.f32.gmra.mrb[0].mxu0 %v2362
    %v2435 = vpop.f32.mrb[0].mxu0
    %v2436 = vadd.f32 0.0, %v2435
    %v2437 = vpop.f32.mrb[0].mxu0
    %2438 = vdwg.mxu0
    %2441 = vrot.lane.b32.xlu0 %v2179, 32
    %v2442 = vpop.permute.xlu0 %2441
    %2443 = vrot.lane.b32.xlu0 %v2180, 32
    %v2444 = vpop.permute.xlu0 %2443
    %v2447 = vsel %vm294, %v2179, %v2442
    %v2448 = vsel %vm294, %v2180, %v2444
    %2451 = vrot.lane.b32.xlu0 %v2182, 32
    %v2452 = vpop.permute.xlu0 %2451
    %2453 = vrot.lane.b32.xlu0 %v2183, 32
    %v2454 = vpop.permute.xlu0 %2453
    %v2457 = vsel %vm294, %v2182, %v2452
    %v2458 = vsel %vm294, %v2183, %v2454
    %v2459 = vmul.f32 %v2431, %v2447
    %v2460 = vmul.f32 %v2436, %v2448
    %v2461 = vadd.f32 %v2459, %v2457
    %v2462 = vadd.f32 %v2460, %v2458
    %v2463 = vtanh.pop %v2461
    %v2464 = vtanh.pop %v2462
    %s2465 = scalar_lea.vmem %s5, 80
    %v2466 = vld [vmem:[%s2465] sm:$0xff]
    %v2467 = vld [vmem:[%s2465 + $0x8] sm:$0xff]
    %s2468 = scalar_lea.vmem [#allocation4], 160
    %v2469 = vld [vmem:[%s2468] sm:$0xff]
    %v2470 = vld [vmem:[%s2468 + $0x8] sm:$0xff]
    %v2471 = vld [vmem:[%s2468 + $0x10] sm:$0xff]
    %v2472 = vld [vmem:[%s2468 + $0x18] sm:$0xff]
    %s2473 = scalar_lea.vmem [#allocation6], 80
    %v2474 = vld [vmem:[%s2473] sm:$0xff]
    %v2475 = vld [vmem:[%s2473 + $0x8] sm:$0xff]
    %s2476 = scalar_lea.vmem [#allocation7], 80
    %v2477 = vld [vmem:[%s2476] sm:$0xff]
    %v2478 = vld [vmem:[%s2476 + $0x8] sm:$0xff]
    %v2480 = vsel %vm294, %v2463, 0
    %v2483 = vsel %vm294, %v2464, 0
    %2485 = vmatprep.subr.mxu0 0.0
    %2486 = vmatpush1.msra.mxu0 %v2469
    %2487 = vmatprep.subr.mxu0 0.0
    %2488 = vmatpush1.msra.mxu0 %v2470
    %2489 = vmatprep.subr.mxu0 0.0
    %2490 = vmatpush1.msra.mxu0 %v2471
    %2491 = vmatprep.subr.mxu0 0.0
    %2492 = vmatpush1.msra.mxu0 %v2472
    %2493 = vmatprep.subr.mxu0 0.0
    %2494 = vmatpush1.msra.mxu0 0.0
    %2495 = vmatprep.subr.mxu0 0.0
    %2496 = vmatpush1.msra.mxu0 0.0
    %2497 = vmatprep.subr.mxu0 0.0
    %2498 = vmatpush1.msra.mxu0 0.0
    %2499 = vmatprep.subr.mxu0 0.0
    %2500 = vmatpush1.msra.mxu0 0.0
    %2501 = vmatprep.subr.mxu0 0.0
    %2502 = vmatpush1.msra.mxu0 0.0
    %2503 = vmatprep.subr.mxu0 0.0
    %2504 = vmatpush1.msra.mxu0 0.0
    %2505 = vmatprep.subr.mxu0 0.0
    %2506 = vmatpush1.msra.mxu0 0.0
    %2507 = vmatprep.subr.mxu0 0.0
    %2508 = vmatpush1.msra.mxu0 0.0
    %2509 = vmatprep.subr.mxu0 0.0
    %2510 = vmatpush1.msra.mxu0 0.0
    %2511 = vmatprep.subr.mxu0 0.0
    %2512 = vmatpush1.msra.mxu0 0.0
    %2513 = vmatprep.subr.mxu0 0.0
    %2514 = vmatpush1.msra.mxu0 0.0
    %2515 = vmatprep.subr.mxu0 0.0
    %2516 = vmatpush1.msra.mxu0 0.0
    %2517 = vmatprep.subr.mxu0 0.0
    %2518 = vmatpush1.msra.mxu0 0.0
    %2519 = vmatprep.subr.mxu0 0.0
    %2520 = vmatpush1.msra.mxu0 0.0
    %2521 = vmatprep.subr.mxu0 0.0
    %2522 = vmatpush1.msra.mxu0 0.0
    %2523 = vmatprep.subr.mxu0 0.0
    %2524 = vmatpush1.msra.mxu0 0.0
    %2525 = vmatprep.subr.mxu0 0.0
    %2526 = vmatpush1.msra.mxu0 0.0
    %2527 = vmatprep.subr.mxu0 0.0
    %2528 = vmatpush1.msra.mxu0 0.0
    %2529 = vmatprep.subr.mxu0 0.0
    %2530 = vmatpush1.msra.mxu0 0.0
    %2531 = vmatprep.subr.mxu0 0.0
    %2532 = vmatpush1.msra.mxu0 0.0
    %2533 = vmatprep.subr.mxu0 0.0
    %2534 = vmatpush1.msra.mxu0 0.0
    %2535 = vmatprep.subr.mxu0 0.0
    %2536 = vmatpush1.msra.mxu0 0.0
    %2537 = vmatprep.subr.mxu0 0.0
    %2538 = vmatpush1.msra.mxu0 0.0
    %2539 = vmatprep.subr.mxu0 0.0
    %2540 = vmatpush1.msra.mxu0 0.0
    %2541 = vmatprep.subr.mxu0 0.0
    %2542 = vmatpush1.msra.mxu0 0.0
    %2543 = vmatprep.subr.mxu0 0.0
    %2544 = vmatpush1.msra.mxu0 0.0
    %2545 = vmatprep.subr.mxu0 0.0
    %2546 = vmatpush1.msra.mxu0 0.0
    %2547 = vmatprep.subr.mxu0 0.0
    %2548 = vmatpush1.msra.mxu0 0.0
    %2549 = vmatprep.mubr.f32.mxu0 0.0
    %2550 = vmatmul.mubr.f32.gmra.mrb[0].mxu0 %v2480
    %v2551 = vpop.f32.mrb[0].mxu0
    %v2552 = vadd.f32 0.0, %v2551
    %v2553 = vpop.f32.mrb[0].mxu0
    %2554 = vmatprep.mubr.f32.mxu0 0.0
    %2555 = vmatmul.mubr.f32.gmra.mrb[0].mxu0 %v2483
    %v2556 = vpop.f32.mrb[0].mxu0
    %v2557 = vadd.f32 0.0, %v2556
    %v2558 = vpop.f32.mrb[0].mxu0
    %2559 = vdwg.mxu0
    %2560 = vrot.lane.b32.xlu0 %v2463, 96
    %v2561 = vpop.permute.xlu0 %2560
    %2562 = vrot.lane.b32.xlu0 %v2464, 96
    %v2563 = vpop.permute.xlu0 %2562
    %v2564 = vsel %vm294, %v2561, 0
    %v2566 = vsel %vm294, %v2563, 0
    %2568 = vmatprep.subr.mxu0 0.0
    %2569 = vmatpush1.msra.mxu0 %v2469
    %2570 = vmatprep.subr.mxu0 0.0
    %2571 = vmatpush1.msra.mxu0 %v2470
    %2572 = vmatprep.subr.mxu0 0.0
    %2573 = vmatpush1.msra.mxu0 %v2471
    %2574 = vmatprep.subr.mxu0 0.0
    %2575 = vmatpush1.msra.mxu0 %v2472
    %2576 = vmatprep.subr.mxu0 0.0
    %2577 = vmatpush1.msra.mxu0 0.0
    %2578 = vmatprep.subr.mxu0 0.0
    %2579 = vmatpush1.msra.mxu0 0.0
    %2580 = vmatprep.subr.mxu0 0.0
    %2581 = vmatpush1.msra.mxu0 0.0
    %2582 = vmatprep.subr.mxu0 0.0
    %2583 = vmatpush1.msra.mxu0 0.0
    %2584 = vmatprep.subr.mxu0 0.0
    %2585 = vmatpush1.msra.mxu0 0.0
    %2586 = vmatprep.subr.mxu0 0.0
    %2587 = vmatpush1.msra.mxu0 0.0
    %2588 = vmatprep.subr.mxu0 0.0
    %2589 = vmatpush1.msra.mxu0 0.0
    %2590 = vmatprep.subr.mxu0 0.0
    %2591 = vmatpush1.msra.mxu0 0.0
    %2592 = vmatprep.subr.mxu0 0.0
    %2593 = vmatpush1.msra.mxu0 0.0
    %2594 = vmatprep.subr.mxu0 0.0
    %2595 = vmatpush1.msra.mxu0 0.0
    %2596 = vmatprep.subr.mxu0 0.0
    %2597 = vmatpush1.msra.mxu0 0.0
    %2598 = vmatprep.subr.mxu0 0.0
    %2599 = vmatpush1.msra.mxu0 0.0
    %2600 = vmatprep.subr.mxu0 0.0
    %2601 = vmatpush1.msra.mxu0 0.0
    %2602 = vmatprep.subr.mxu0 0.0
    %2603 = vmatpush1.msra.mxu0 0.0
    %2604 = vmatprep.subr.mxu0 0.0
    %2605 = vmatpush1.msra.mxu0 0.0
    %2606 = vmatprep.subr.mxu0 0.0
    %2607 = vmatpush1.msra.mxu0 0.0
    %2608 = vmatprep.subr.mxu0 0.0
    %2609 = vmatpush1.msra.mxu0 0.0
    %2610 = vmatprep.subr.mxu0 0.0
    %2611 = vmatpush1.msra.mxu0 0.0
    %2612 = vmatprep.subr.mxu0 0.0
    %2613 = vmatpush1.msra.mxu0 0.0
    %2614 = vmatprep.subr.mxu0 0.0
    %2615 = vmatpush1.msra.mxu0 0.0
    %2616 = vmatprep.subr.mxu0 0.0
    %2617 = vmatpush1.msra.mxu0 0.0
    %2618 = vmatprep.subr.mxu0 0.0
    %2619 = vmatpush1.msra.mxu0 0.0
    %2620 = vmatprep.subr.mxu0 0.0
    %2621 = vmatpush1.msra.mxu0 0.0
    %2622 = vmatprep.subr.mxu0 0.0
    %2623 = vmatpush1.msra.mxu0 0.0
    %2624 = vmatprep.subr.mxu0 0.0
    %2625 = vmatpush1.msra.mxu0 0.0
    %2626 = vmatprep.subr.mxu0 0.0
    %2627 = vmatpush1.msra.mxu0 0.0
    %2628 = vmatprep.subr.mxu0 0.0
    %2629 = vmatpush1.msra.mxu0 0.0
    %2630 = vmatprep.subr.mxu0 0.0
    %2631 = vmatpush1.msra.mxu0 0.0
    %2632 = vmatprep.mubr.f32.mxu0 0.0
    %2633 = vmatmul.mubr.f32.gmra.mrb[0].mxu0 %v2564
    %v2634 = vpop.f32.mrb[0].mxu0
    %v2635 = vadd.f32 0.0, %v2634
    %v2636 = vpop.f32.mrb[0].mxu0
    %2637 = vmatprep.mubr.f32.mxu0 0.0
    %2638 = vmatmul.mubr.f32.gmra.mrb[0].mxu0 %v2566
    %v2639 = vpop.f32.mrb[0].mxu0
    %v2640 = vadd.f32 0.0, %v2639
    %v2641 = vpop.f32.mrb[0].mxu0
    %2642 = vdwg.mxu0
    %2645 = vrot.lane.b32.xlu0 %v2635, 32
    %v2646 = vpop.permute.xlu0 %2645
    %2647 = vrot.lane.b32.xlu0 %v2640, 32
    %v2648 = vpop.permute.xlu0 %2647
    %v2651 = vsel %vm294, %v2552, %v2646
    %v2652 = vsel %vm294, %v2557, %v2648
    %v2654 = vsel %vm297, %v2466, 0
    %v2657 = vsel %vm297, %v2467, 0
    %2659 = vmatprep.subr.mxu0 0.0
    %2660 = vmatpush1.msra.mxu0 %v2651
    %2661 = vmatprep.subr.mxu0 0.0
    %2662 = vmatpush1.msra.mxu0 %v2652
    %2663 = vmatprep.subr.mxu0 0.0
    %2664 = vmatpush1.msra.mxu0 0.0
    %2665 = vmatprep.subr.mxu0 0.0
    %2666 = vmatpush1.msra.mxu0 0.0
    %2667 = vmatprep.subr.mxu0 0.0
    %2668 = vmatpush1.msra.mxu0 0.0
    %2669 = vmatprep.subr.mxu0 0.0
    %2670 = vmatpush1.msra.mxu0 0.0
    %2671 = vmatprep.subr.mxu0 0.0
    %2672 = vmatpush1.msra.mxu0 0.0
    %2673 = vmatprep.subr.mxu0 0.0
    %2674 = vmatpush1.msra.mxu0 0.0
    %2675 = vmatprep.subr.mxu0 0.0
    %2676 = vmatpush1.msra.mxu0 0.0
    %2677 = vmatprep.subr.mxu0 0.0
    %2678 = vmatpush1.msra.mxu0 0.0
    %2679 = vmatprep.subr.mxu0 0.0
    %2680 = vmatpush1.msra.mxu0 0.0
    %2681 = vmatprep.subr.mxu0 0.0
    %2682 = vmatpush1.msra.mxu0 0.0
    %2683 = vmatprep.subr.mxu0 0.0
    %2684 = vmatpush1.msra.mxu0 0.0
    %2685 = vmatprep.subr.mxu0 0.0
    %2686 = vmatpush1.msra.mxu0 0.0
    %2687 = vmatprep.subr.mxu0 0.0
    %2688 = vmatpush1.msra.mxu0 0.0
    %2689 = vmatprep.subr.mxu0 0.0
    %2690 = vmatpush1.msra.mxu0 0.0
    %2691 = vmatprep.subr.mxu0 0.0
    %2692 = vmatpush1.msra.mxu0 0.0
    %2693 = vmatprep.subr.mxu0 0.0
    %2694 = vmatpush1.msra.mxu0 0.0
    %2695 = vmatprep.subr.mxu0 0.0
    %2696 = vmatpush1.msra.mxu0 0.0
    %2697 = vmatprep.subr.mxu0 0.0
    %2698 = vmatpush1.msra.mxu0 0.0
    %2699 = vmatprep.subr.mxu0 0.0
    %2700 = vmatpush1.msra.mxu0 0.0
    %2701 = vmatprep.subr.mxu0 0.0
    %2702 = vmatpush1.msra.mxu0 0.0
    %2703 = vmatprep.subr.mxu0 0.0
    %2704 = vmatpush1.msra.mxu0 0.0
    %2705 = vmatprep.subr.mxu0 0.0
    %2706 = vmatpush1.msra.mxu0 0.0
    %2707 = vmatprep.subr.mxu0 0.0
    %2708 = vmatpush1.msra.mxu0 0.0
    %2709 = vmatprep.subr.mxu0 0.0
    %2710 = vmatpush1.msra.mxu0 0.0
    %2711 = vmatprep.subr.mxu0 0.0
    %2712 = vmatpush1.msra.mxu0 0.0
    %2713 = vmatprep.subr.mxu0 0.0
    %2714 = vmatpush1.msra.mxu0 0.0
    %2715 = vmatprep.subr.mxu0 0.0
    %2716 = vmatpush1.msra.mxu0 0.0
    %2717 = vmatprep.subr.mxu0 0.0
    %2718 = vmatpush1.msra.mxu0 0.0
    %2719 = vmatprep.subr.mxu0 0.0
    %2720 = vmatpush1.msra.mxu0 0.0
    %2721 = vmatprep.subr.mxu0 0.0
    %2722 = vmatpush1.msra.mxu0 0.0
    %2723 = vmatprep.mubr.f32.mxu0 0.0
    %2724 = vmatmul.mubr.f32.gmra.mrb[0].mxu0 %v2654
    %v2725 = vpop.f32.mrb[0].mxu0
    %v2726 = vadd.f32 0.0, %v2725
    %v2727 = vpop.f32.mrb[0].mxu0
    %2728 = vmatprep.mubr.f32.mxu0 0.0
    %2729 = vmatmul.mubr.f32.gmra.mrb[0].mxu0 %v2657
    %v2730 = vpop.f32.mrb[0].mxu0
    %v2731 = vadd.f32 0.0, %v2730
    %v2732 = vpop.f32.mrb[0].mxu0
    %2733 = vdwg.mxu0
    %2736 = vrot.lane.b32.xlu0 %v2474, 32
    %v2737 = vpop.permute.xlu0 %2736
    %2738 = vrot.lane.b32.xlu0 %v2475, 32
    %v2739 = vpop.permute.xlu0 %2738
    %v2742 = vsel %vm294, %v2474, %v2737
    %v2743 = vsel %vm294, %v2475, %v2739
    %2746 = vrot.lane.b32.xlu0 %v2477, 32
    %v2747 = vpop.permute.xlu0 %2746
    %2748 = vrot.lane.b32.xlu0 %v2478, 32
    %v2749 = vpop.permute.xlu0 %2748
    %v2752 = vsel %vm294, %v2477, %v2747
    %v2753 = vsel %vm294, %v2478, %v2749
    %v2754 = vmul.f32 %v2726, %v2742
    %v2755 = vmul.f32 %v2731, %v2743
    %v2756 = vadd.f32 %v2754, %v2752
    %v2757 = vadd.f32 %v2755, %v2753
    %v2758 = vtanh.pop %v2756
    %v2759 = vtanh.pop %v2757
    %v2760 = vadd.f32 %v2168, %v2758
    %v2761 = vadd.f32 %v2169, %v2759
    %s2762 = scalar_lea.vmem %s5, 96
    %v2763 = vld [vmem:[%s2762] sm:$0xff]
    %v2764 = vld [vmem:[%s2762 + $0x8] sm:$0xff]
    %s2765 = scalar_lea.vmem [#allocation4], 192
    %v2766 = vld [vmem:[%s2765] sm:$0xff]
    %v2767 = vld [vmem:[%s2765 + $0x8] sm:$0xff]
    %v2768 = vld [vmem:[%s2765 + $0x10] sm:$0xff]
    %v2769 = vld [vmem:[%s2765 + $0x18] sm:$0xff]
    %s2770 = scalar_lea.vmem [#allocation6], 96
    %v2771 = vld [vmem:[%s2770] sm:$0xff]
    %v2772 = vld [vmem:[%s2770 + $0x8] sm:$0xff]
    %s2773 = scalar_lea.vmem [#allocation7], 96
    %v2774 = vld [vmem:[%s2773] sm:$0xff]
    %v2775 = vld [vmem:[%s2773 + $0x8] sm:$0xff]
    %v2777 = vsel %vm294, %v2760, 0
    %v2780 = vsel %vm294, %v2761, 0
    %2782 = vmatprep.subr.mxu0 0.0
    %2783 = vmatpush1.msra.mxu0 %v2766
    %2784 = vmatprep.subr.mxu0 0.0
    %2785 = vmatpush1.msra.mxu0 %v2767
    %2786 = vmatprep.subr.mxu0 0.0
    %2787 = vmatpush1.msra.mxu0 %v2768
    %2788 = vmatprep.subr.mxu0 0.0
    %2789 = vmatpush1.msra.mxu0 %v2769
    %2790 = vmatprep.subr.mxu0 0.0
    %2791 = vmatpush1.msra.mxu0 0.0
    %2792 = vmatprep.subr.mxu0 0.0
    %2793 = vmatpush1.msra.mxu0 0.0
    %2794 = vmatprep.subr.mxu0 0.0
    %2795 = vmatpush1.msra.mxu0 0.0
    %2796 = vmatprep.subr.mxu0 0.0
    %2797 = vmatpush1.msra.mxu0 0.0
    %2798 = vmatprep.subr.mxu0 0.0
    %2799 = vmatpush1.msra.mxu0 0.0
    %2800 = vmatprep.subr.mxu0 0.0
    %2801 = vmatpush1.msra.mxu0 0.0
    %2802 = vmatprep.subr.mxu0 0.0
    %2803 = vmatpush1.msra.mxu0 0.0
    %2804 = vmatprep.subr.mxu0 0.0
    %2805 = vmatpush1.msra.mxu0 0.0
    %2806 = vmatprep.subr.mxu0 0.0
    %2807 = vmatpush1.msra.mxu0 0.0
    %2808 = vmatprep.subr.mxu0 0.0
    %2809 = vmatpush1.msra.mxu0 0.0
    %2810 = vmatprep.subr.mxu0 0.0
    %2811 = vmatpush1.msra.mxu0 0.0
    %2812 = vmatprep.subr.mxu0 0.0
    %2813 = vmatpush1.msra.mxu0 0.0
    %2814 = vmatprep.subr.mxu0 0.0
    %2815 = vmatpush1.msra.mxu0 0.0
    %2816 = vmatprep.subr.mxu0 0.0
    %2817 = vmatpush1.msra.mxu0 0.0
    %2818 = vmatprep.subr.mxu0 0.0
    %2819 = vmatpush1.msra.mxu0 0.0
    %2820 = vmatprep.subr.mxu0 0.0
    %2821 = vmatpush1.msra.mxu0 0.0
    %2822 = vmatprep.subr.mxu0 0.0
    %2823 = vmatpush1.msra.mxu0 0.0
    %2824 = vmatprep.subr.mxu0 0.0
    %2825 = vmatpush1.msra.mxu0 0.0
    %2826 = vmatprep.subr.mxu0 0.0
    %2827 = vmatpush1.msra.mxu0 0.0
    %2828 = vmatprep.subr.mxu0 0.0
    %2829 = vmatpush1.msra.mxu0 0.0
    %2830 = vmatprep.subr.mxu0 0.0
    %2831 = vmatpush1.msra.mxu0 0.0
    %2832 = vmatprep.subr.mxu0 0.0
    %2833 = vmatpush1.msra.mxu0 0.0
    %2834 = vmatprep.subr.mxu0 0.0
    %2835 = vmatpush1.msra.mxu0 0.0
    %2836 = vmatprep.subr.mxu0 0.0
    %2837 = vmatpush1.msra.mxu0 0.0
    %2838 = vmatprep.subr.mxu0 0.0
    %2839 = vmatpush1.msra.mxu0 0.0
    %2840 = vmatprep.subr.mxu0 0.0
    %2841 = vmatpush1.msra.mxu0 0.0
    %2842 = vmatprep.subr.mxu0 0.0
    %2843 = vmatpush1.msra.mxu0 0.0
    %2844 = vmatprep.subr.mxu0 0.0
    %2845 = vmatpush1.msra.mxu0 0.0
    %2846 = vmatprep.mubr.f32.mxu0 0.0
    %2847 = vmatmul.mubr.f32.gmra.mrb[0].mxu0 %v2777
    %v2848 = vpop.f32.mrb[0].mxu0
    %v2849 = vadd.f32 0.0, %v2848
    %v2850 = vpop.f32.mrb[0].mxu0
    %2851 = vmatprep.mubr.f32.mxu0 0.0
    %2852 = vmatmul.mubr.f32.gmra.mrb[0].mxu0 %v2780
    %v2853 = vpop.f32.mrb[0].mxu0
    %v2854 = vadd.f32 0.0, %v2853
    %v2855 = vpop.f32.mrb[0].mxu0
    %2856 = vdwg.mxu0
    %2857 = vrot.lane.b32.xlu0 %v2760, 96
    %v2858 = vpop.permute.xlu0 %2857
    %2859 = vrot.lane.b32.xlu0 %v2761, 96
    %v2860 = vpop.permute.xlu0 %2859
    %v2861 = vsel %vm294, %v2858, 0
    %v2863 = vsel %vm294, %v2860, 0
    %2865 = vmatprep.subr.mxu0 0.0
    %2866 = vmatpush1.msra.mxu0 %v2766
    %2867 = vmatprep.subr.mxu0 0.0
    %2868 = vmatpush1.msra.mxu0 %v2767
    %2869 = vmatprep.subr.mxu0 0.0
    %2870 = vmatpush1.msra.mxu0 %v2768
    %2871 = vmatprep.subr.mxu0 0.0
    %2872 = vmatpush1.msra.mxu0 %v2769
    %2873 = vmatprep.subr.mxu0 0.0
    %2874 = vmatpush1.msra.mxu0 0.0
    %2875 = vmatprep.subr.mxu0 0.0
    %2876 = vmatpush1.msra.mxu0 0.0
    %2877 = vmatprep.subr.mxu0 0.0
    %2878 = vmatpush1.msra.mxu0 0.0
    %2879 = vmatprep.subr.mxu0 0.0
    %2880 = vmatpush1.msra.mxu0 0.0
    %2881 = vmatprep.subr.mxu0 0.0
    %2882 = vmatpush1.msra.mxu0 0.0
    %2883 = vmatprep.subr.mxu0 0.0
    %2884 = vmatpush1.msra.mxu0 0.0
    %2885 = vmatprep.subr.mxu0 0.0
    %2886 = vmatpush1.msra.mxu0 0.0
    %2887 = vmatprep.subr.mxu0 0.0
    %2888 = vmatpush1.msra.mxu0 0.0
    %2889 = vmatprep.subr.mxu0 0.0
    %2890 = vmatpush1.msra.mxu0 0.0
    %2891 = vmatprep.subr.mxu0 0.0
    %2892 = vmatpush1.msra.mxu0 0.0
    %2893 = vmatprep.subr.mxu0 0.0
    %2894 = vmatpush1.msra.mxu0 0.0
    %2895 = vmatprep.subr.mxu0 0.0
    %2896 = vmatpush1.msra.mxu0 0.0
    %2897 = vmatprep.subr.mxu0 0.0
    %2898 = vmatpush1.msra.mxu0 0.0
    %2899 = vmatprep.subr.mxu0 0.0
    %2900 = vmatpush1.msra.mxu0 0.0
    %2901 = vmatprep.subr.mxu0 0.0
    %2902 = vmatpush1.msra.mxu0 0.0
    %2903 = vmatprep.subr.mxu0 0.0
    %2904 = vmatpush1.msra.mxu0 0.0
    %2905 = vmatprep.subr.mxu0 0.0
    %2906 = vmatpush1.msra.mxu0 0.0
    %2907 = vmatprep.subr.mxu0 0.0
    %2908 = vmatpush1.msra.mxu0 0.0
    %2909 = vmatprep.subr.mxu0 0.0
    %2910 = vmatpush1.msra.mxu0 0.0
    %2911 = vmatprep.subr.mxu0 0.0
    %2912 = vmatpush1.msra.mxu0 0.0
    %2913 = vmatprep.subr.mxu0 0.0
    %2914 = vmatpush1.msra.mxu0 0.0
    %2915 = vmatprep.subr.mxu0 0.0
    %2916 = vmatpush1.msra.mxu0 0.0
    %2917 = vmatprep.subr.mxu0 0.0
    %2918 = vmatpush1.msra.mxu0 0.0
    %2919 = vmatprep.subr.mxu0 0.0
    %2920 = vmatpush1.msra.mxu0 0.0
    %2921 = vmatprep.subr.mxu0 0.0
    %2922 = vmatpush1.msra.mxu0 0.0
    %2923 = vmatprep.subr.mxu0 0.0
    %2924 = vmatpush1.msra.mxu0 0.0
    %2925 = vmatprep.subr.mxu0 0.0
    %2926 = vmatpush1.msra.mxu0 0.0
    %2927 = vmatprep.subr.mxu0 0.0
    %2928 = vmatpush1.msra.mxu0 0.0
    %2929 = vmatprep.mubr.f32.mxu0 0.0
    %2930 = vmatmul.mubr.f32.gmra.mrb[0].mxu0 %v2861
    %v2931 = vpop.f32.mrb[0].mxu0
    %v2932 = vadd.f32 0.0, %v2931
    %v2933 = vpop.f32.mrb[0].mxu0
    %2934 = vmatprep.mubr.f32.mxu0 0.0
    %2935 = vmatmul.mubr.f32.gmra.mrb[0].mxu0 %v2863
    %v2936 = vpop.f32.mrb[0].mxu0
    %v2937 = vadd.f32 0.0, %v2936
    %v2938 = vpop.f32.mrb[0].mxu0
    %2939 = vdwg.mxu0
    %2942 = vrot.lane.b32.xlu0 %v2932, 32
    %v2943 = vpop.permute.xlu0 %2942
    %2944 = vrot.lane.b32.xlu0 %v2937, 32
    %v2945 = vpop.permute.xlu0 %2944
    %v2948 = vsel %vm294, %v2849, %v2943
    %v2949 = vsel %vm294, %v2854, %v2945
    %v2951 = vsel %vm297, %v2763, 0
    %v2954 = vsel %vm297, %v2764, 0
    %2956 = vmatprep.subr.mxu0 0.0
    %2957 = vmatpush1.msra.mxu0 %v2948
    %2958 = vmatprep.subr.mxu0 0.0
    %2959 = vmatpush1.msra.mxu0 %v2949
    %2960 = vmatprep.subr.mxu0 0.0
    %2961 = vmatpush1.msra.mxu0 0.0
    %2962 = vmatprep.subr.mxu0 0.0
    %2963 = vmatpush1.msra.mxu0 0.0
    %2964 = vmatprep.subr.mxu0 0.0
    %2965 = vmatpush1.msra.mxu0 0.0
    %2966 = vmatprep.subr.mxu0 0.0
    %2967 = vmatpush1.msra.mxu0 0.0
    %2968 = vmatprep.subr.mxu0 0.0
    %2969 = vmatpush1.msra.mxu0 0.0
    %2970 = vmatprep.subr.mxu0 0.0
    %2971 = vmatpush1.msra.mxu0 0.0
    %2972 = vmatprep.subr.mxu0 0.0
    %2973 = vmatpush1.msra.mxu0 0.0
    %2974 = vmatprep.subr.mxu0 0.0
    %2975 = vmatpush1.msra.mxu0 0.0
    %2976 = vmatprep.subr.mxu0 0.0
    %2977 = vmatpush1.msra.mxu0 0.0
    %2978 = vmatprep.subr.mxu0 0.0
    %2979 = vmatpush1.msra.mxu0 0.0
    %2980 = vmatprep.subr.mxu0 0.0
    %2981 = vmatpush1.msra.mxu0 0.0
    %2982 = vmatprep.subr.mxu0 0.0
    %2983 = vmatpush1.msra.mxu0 0.0
    %2984 = vmatprep.subr.mxu0 0.0
    %2985 = vmatpush1.msra.mxu0 0.0
    %2986 = vmatprep.subr.mxu0 0.0
    %2987 = vmatpush1.msra.mxu0 0.0
    %2988 = vmatprep.subr.mxu0 0.0
    %2989 = vmatpush1.msra.mxu0 0.0
    %2990 = vmatprep.subr.mxu0 0.0
    %2991 = vmatpush1.msra.mxu0 0.0
    %2992 = vmatprep.subr.mxu0 0.0
    %2993 = vmatpush1.msra.mxu0 0.0
    %2994 = vmatprep.subr.mxu0 0.0
    %2995 = vmatpush1.msra.mxu0 0.0
    %2996 = vmatprep.subr.mxu0 0.0
    %2997 = vmatpush1.msra.mxu0 0.0
    %2998 = vmatprep.subr.mxu0 0.0
    %2999 = vmatpush1.msra.mxu0 0.0
    %3000 = vmatprep.subr.mxu0 0.0
    %3001 = vmatpush1.msra.mxu0 0.0
    %3002 = vmatprep.subr.mxu0 0.0
    %3003 = vmatpush1.msra.mxu0 0.0
    %3004 = vmatprep.subr.mxu0 0.0
    %3005 = vmatpush1.msra.mxu0 0.0
    %3006 = vmatprep.subr.mxu0 0.0
    %3007 = vmatpush1.msra.mxu0 0.0
    %3008 = vmatprep.subr.mxu0 0.0
    %3009 = vmatpush1.msra.mxu0 0.0
    %3010 = vmatprep.subr.mxu0 0.0
    %3011 = vmatpush1.msra.mxu0 0.0
    %3012 = vmatprep.subr.mxu0 0.0
    %3013 = vmatpush1.msra.mxu0 0.0
    %3014 = vmatprep.subr.mxu0 0.0
    %3015 = vmatpush1.msra.mxu0 0.0
    %3016 = vmatprep.subr.mxu0 0.0
    %3017 = vmatpush1.msra.mxu0 0.0
    %3018 = vmatprep.subr.mxu0 0.0
    %3019 = vmatpush1.msra.mxu0 0.0
    %3020 = vmatprep.mubr.f32.mxu0 0.0
    %3021 = vmatmul.mubr.f32.gmra.mrb[0].mxu0 %v2951
    %v3022 = vpop.f32.mrb[0].mxu0
    %v3023 = vadd.f32 0.0, %v3022
    %v3024 = vpop.f32.mrb[0].mxu0
    %3025 = vmatprep.mubr.f32.mxu0 0.0
    %3026 = vmatmul.mubr.f32.gmra.mrb[0].mxu0 %v2954
    %v3027 = vpop.f32.mrb[0].mxu0
    %v3028 = vadd.f32 0.0, %v3027
    %v3029 = vpop.f32.mrb[0].mxu0
    %3030 = vdwg.mxu0
    %3033 = vrot.lane.b32.xlu0 %v2771, 32
    %v3034 = vpop.permute.xlu0 %3033
    %3035 = vrot.lane.b32.xlu0 %v2772, 32
    %v3036 = vpop.permute.xlu0 %3035
    %v3039 = vsel %vm294, %v2771, %v3034
    %v3040 = vsel %vm294, %v2772, %v3036
    %3043 = vrot.lane.b32.xlu0 %v2774, 32
    %v3044 = vpop.permute.xlu0 %3043
    %3045 = vrot.lane.b32.xlu0 %v2775, 32
    %v3046 = vpop.permute.xlu0 %3045
    %v3049 = vsel %vm294, %v2774, %v3044
    %v3050 = vsel %vm294, %v2775, %v3046
    %v3051 = vmul.f32 %v3023, %v3039
    %v3052 = vmul.f32 %v3028, %v3040
    %v3053 = vadd.f32 %v3051, %v3049
    %v3054 = vadd.f32 %v3052, %v3050
    %v3055 = vtanh.pop %v3053
    %v3056 = vtanh.pop %v3054
    %s3057 = scalar_lea.vmem %s5, 112
    %v3058 = vld [vmem:[%s3057] sm:$0xff]
    %v3059 = vld [vmem:[%s3057 + $0x8] sm:$0xff]
    %s3060 = scalar_lea.vmem [#allocation4], 224
    %v3061 = vld [vmem:[%s3060] sm:$0xff]
    %v3062 = vld [vmem:[%s3060 + $0x8] sm:$0xff]
    %v3063 = vld [vmem:[%s3060 + $0x10] sm:$0xff]
    %v3064 = vld [vmem:[%s3060 + $0x18] sm:$0xff]
    %s3065 = scalar_lea.vmem [#allocation6], 112
    %v3066 = vld [vmem:[%s3065] sm:$0xff]
    %v3067 = vld [vmem:[%s3065 + $0x8] sm:$0xff]
    %s3068 = scalar_lea.vmem [#allocation7], 112
    %v3069 = vld [vmem:[%s3068] sm:$0xff]
    %v3070 = vld [vmem:[%s3068 + $0x8] sm:$0xff]
    %v3072 = vsel %vm294, %v3055, 0
    %v3075 = vsel %vm294, %v3056, 0
    %3077 = vmatprep.subr.mxu0 0.0
    %3078 = vmatpush1.msra.mxu0 %v3061
    %3079 = vmatprep.subr.mxu0 0.0
    %3080 = vmatpush1.msra.mxu0 %v3062
    %3081 = vmatprep.subr.mxu0 0.0
    %3082 = vmatpush1.msra.mxu0 %v3063
    %3083 = vmatprep.subr.mxu0 0.0
    %3084 = vmatpush1.msra.mxu0 %v3064
    %3085 = vmatprep.subr.mxu0 0.0
    %3086 = vmatpush1.msra.mxu0 0.0
    %3087 = vmatprep.subr.mxu0 0.0
    %3088 = vmatpush1.msra.mxu0 0.0
    %3089 = vmatprep.subr.mxu0 0.0
    %3090 = vmatpush1.msra.mxu0 0.0
    %3091 = vmatprep.subr.mxu0 0.0
    %3092 = vmatpush1.msra.mxu0 0.0
    %3093 = vmatprep.subr.mxu0 0.0
    %3094 = vmatpush1.msra.mxu0 0.0
    %3095 = vmatprep.subr.mxu0 0.0
    %3096 = vmatpush1.msra.mxu0 0.0
    %3097 = vmatprep.subr.mxu0 0.0
    %3098 = vmatpush1.msra.mxu0 0.0
    %3099 = vmatprep.subr.mxu0 0.0
    %3100 = vmatpush1.msra.mxu0 0.0
    %3101 = vmatprep.subr.mxu0 0.0
    %3102 = vmatpush1.msra.mxu0 0.0
    %3103 = vmatprep.subr.mxu0 0.0
    %3104 = vmatpush1.msra.mxu0 0.0
    %3105 = vmatprep.subr.mxu0 0.0
    %3106 = vmatpush1.msra.mxu0 0.0
    %3107 = vmatprep.subr.mxu0 0.0
    %3108 = vmatpush1.msra.mxu0 0.0
    %3109 = vmatprep.subr.mxu0 0.0
    %3110 = vmatpush1.msra.mxu0 0.0
    %3111 = vmatprep.subr.mxu0 0.0
    %3112 = vmatpush1.msra.mxu0 0.0
    %3113 = vmatprep.subr.mxu0 0.0
    %3114 = vmatpush1.msra.mxu0 0.0
    %3115 = vmatprep.subr.mxu0 0.0
    %3116 = vmatpush1.msra.mxu0 0.0
    %3117 = vmatprep.subr.mxu0 0.0
    %3118 = vmatpush1.msra.mxu0 0.0
    %3119 = vmatprep.subr.mxu0 0.0
    %3120 = vmatpush1.msra.mxu0 0.0
    %3121 = vmatprep.subr.mxu0 0.0
    %3122 = vmatpush1.msra.mxu0 0.0
    %3123 = vmatprep.subr.mxu0 0.0
    %3124 = vmatpush1.msra.mxu0 0.0
    %3125 = vmatprep.subr.mxu0 0.0
    %3126 = vmatpush1.msra.mxu0 0.0
    %3127 = vmatprep.subr.mxu0 0.0
    %3128 = vmatpush1.msra.mxu0 0.0
    %3129 = vmatprep.subr.mxu0 0.0
    %3130 = vmatpush1.msra.mxu0 0.0
    %3131 = vmatprep.subr.mxu0 0.0
    %3132 = vmatpush1.msra.mxu0 0.0
    %3133 = vmatprep.subr.mxu0 0.0
    %3134 = vmatpush1.msra.mxu0 0.0
    %3135 = vmatprep.subr.mxu0 0.0
    %3136 = vmatpush1.msra.mxu0 0.0
    %3137 = vmatprep.subr.mxu0 0.0
    %3138 = vmatpush1.msra.mxu0 0.0
    %3139 = vmatprep.subr.mxu0 0.0
    %3140 = vmatpush1.msra.mxu0 0.0
    %3141 = vmatprep.mubr.f32.mxu0 0.0
    %3142 = vmatmul.mubr.f32.gmra.mrb[0].mxu0 %v3072
    %v3143 = vpop.f32.mrb[0].mxu0
    %v3144 = vadd.f32 0.0, %v3143
    %v3145 = vpop.f32.mrb[0].mxu0
    %3146 = vmatprep.mubr.f32.mxu0 0.0
    %3147 = vmatmul.mubr.f32.gmra.mrb[0].mxu0 %v3075
    %v3148 = vpop.f32.mrb[0].mxu0
    %v3149 = vadd.f32 0.0, %v3148
    %v3150 = vpop.f32.mrb[0].mxu0
    %3151 = vdwg.mxu0
    %3152 = vrot.lane.b32.xlu0 %v3055, 96
    %v3153 = vpop.permute.xlu0 %3152
    %3154 = vrot.lane.b32.xlu0 %v3056, 96
    %v3155 = vpop.permute.xlu0 %3154
    %v3156 = vsel %vm294, %v3153, 0
    %v3158 = vsel %vm294, %v3155, 0
    %3160 = vmatprep.subr.mxu0 0.0
    %3161 = vmatpush1.msra.mxu0 %v3061
    %3162 = vmatprep.subr.mxu0 0.0
    %3163 = vmatpush1.msra.mxu0 %v3062
    %3164 = vmatprep.subr.mxu0 0.0
    %3165 = vmatpush1.msra.mxu0 %v3063
    %3166 = vmatprep.subr.mxu0 0.0
    %3167 = vmatpush1.msra.mxu0 %v3064
    %3168 = vmatprep.subr.mxu0 0.0
    %3169 = vmatpush1.msra.mxu0 0.0
    %3170 = vmatprep.subr.mxu0 0.0
    %3171 = vmatpush1.msra.mxu0 0.0
    %3172 = vmatprep.subr.mxu0 0.0
    %3173 = vmatpush1.msra.mxu0 0.0
    %3174 = vmatprep.subr.mxu0 0.0
    %3175 = vmatpush1.msra.mxu0 0.0
    %3176 = vmatprep.subr.mxu0 0.0
    %3177 = vmatpush1.msra.mxu0 0.0
    %3178 = vmatprep.subr.mxu0 0.0
    %3179 = vmatpush1.msra.mxu0 0.0
    %3180 = vmatprep.subr.mxu0 0.0
    %3181 = vmatpush1.msra.mxu0 0.0
    %3182 = vmatprep.subr.mxu0 0.0
    %3183 = vmatpush1.msra.mxu0 0.0
    %3184 = vmatprep.subr.mxu0 0.0
    %3185 = vmatpush1.msra.mxu0 0.0
    %3186 = vmatprep.subr.mxu0 0.0
    %3187 = vmatpush1.msra.mxu0 0.0
    %3188 = vmatprep.subr.mxu0 0.0
    %3189 = vmatpush1.msra.mxu0 0.0
    %3190 = vmatprep.subr.mxu0 0.0
    %3191 = vmatpush1.msra.mxu0 0.0
    %3192 = vmatprep.subr.mxu0 0.0
    %3193 = vmatpush1.msra.mxu0 0.0
    %3194 = vmatprep.subr.mxu0 0.0
    %3195 = vmatpush1.msra.mxu0 0.0
    %3196 = vmatprep.subr.mxu0 0.0
    %3197 = vmatpush1.msra.mxu0 0.0
    %3198 = vmatprep.subr.mxu0 0.0
    %3199 = vmatpush1.msra.mxu0 0.0
    %3200 = vmatprep.subr.mxu0 0.0
    %3201 = vmatpush1.msra.mxu0 0.0
    %3202 = vmatprep.subr.mxu0 0.0
    %3203 = vmatpush1.msra.mxu0 0.0
    %3204 = vmatprep.subr.mxu0 0.0
    %3205 = vmatpush1.msra.mxu0 0.0
    %3206 = vmatprep.subr.mxu0 0.0
    %3207 = vmatpush1.msra.mxu0 0.0
    %3208 = vmatprep.subr.mxu0 0.0
    %3209 = vmatpush1.msra.mxu0 0.0
    %3210 = vmatprep.subr.mxu0 0.0
    %3211 = vmatpush1.msra.mxu0 0.0
    %3212 = vmatprep.subr.mxu0 0.0
    %3213 = vmatpush1.msra.mxu0 0.0
    %3214 = vmatprep.subr.mxu0 0.0
    %3215 = vmatpush1.msra.mxu0 0.0
    %3216 = vmatprep.subr.mxu0 0.0
    %3217 = vmatpush1.msra.mxu0 0.0
    %3218 = vmatprep.subr.mxu0 0.0
    %3219 = vmatpush1.msra.mxu0 0.0
    %3220 = vmatprep.subr.mxu0 0.0
    %3221 = vmatpush1.msra.mxu0 0.0
    %3222 = vmatprep.subr.mxu0 0.0
    %3223 = vmatpush1.msra.mxu0 0.0
    %3224 = vmatprep.mubr.f32.mxu0 0.0
    %3225 = vmatmul.mubr.f32.gmra.mrb[0].mxu0 %v3156
    %v3226 = vpop.f32.mrb[0].mxu0
    %v3227 = vadd.f32 0.0, %v3226
    %v3228 = vpop.f32.mrb[0].mxu0
    %3229 = vmatprep.mubr.f32.mxu0 0.0
    %3230 = vmatmul.mubr.f32.gmra.mrb[0].mxu0 %v3158
    %v3231 = vpop.f32.mrb[0].mxu0
    %v3232 = vadd.f32 0.0, %v3231
    %v3233 = vpop.f32.mrb[0].mxu0
    %3234 = vdwg.mxu0
    %3237 = vrot.lane.b32.xlu0 %v3227, 32
    %v3238 = vpop.permute.xlu0 %3237
    %3239 = vrot.lane.b32.xlu0 %v3232, 32
    %v3240 = vpop.permute.xlu0 %3239
    %v3243 = vsel %vm294, %v3144, %v3238
    %v3244 = vsel %vm294, %v3149, %v3240
    %v3246 = vsel %vm297, %v3058, 0
    %v3249 = vsel %vm297, %v3059, 0
    %3251 = vmatprep.subr.mxu0 0.0
    %3252 = vmatpush1.msra.mxu0 %v3243
    %3253 = vmatprep.subr.mxu0 0.0
    %3254 = vmatpush1.msra.mxu0 %v3244
    %3255 = vmatprep.subr.mxu0 0.0
    %3256 = vmatpush1.msra.mxu0 0.0
    %3257 = vmatprep.subr.mxu0 0.0
    %3258 = vmatpush1.msra.mxu0 0.0
    %3259 = vmatprep.subr.mxu0 0.0
    %3260 = vmatpush1.msra.mxu0 0.0
    %3261 = vmatprep.subr.mxu0 0.0
    %3262 = vmatpush1.msra.mxu0 0.0
    %3263 = vmatprep.subr.mxu0 0.0
    %3264 = vmatpush1.msra.mxu0 0.0
    %3265 = vmatprep.subr.mxu0 0.0
    %3266 = vmatpush1.msra.mxu0 0.0
    %3267 = vmatprep.subr.mxu0 0.0
    %3268 = vmatpush1.msra.mxu0 0.0
    %3269 = vmatprep.subr.mxu0 0.0
    %3270 = vmatpush1.msra.mxu0 0.0
    %3271 = vmatprep.subr.mxu0 0.0
    %3272 = vmatpush1.msra.mxu0 0.0
    %3273 = vmatprep.subr.mxu0 0.0
    %3274 = vmatpush1.msra.mxu0 0.0
    %3275 = vmatprep.subr.mxu0 0.0
    %3276 = vmatpush1.msra.mxu0 0.0
    %3277 = vmatprep.subr.mxu0 0.0
    %3278 = vmatpush1.msra.mxu0 0.0
    %3279 = vmatprep.subr.mxu0 0.0
    %3280 = vmatpush1.msra.mxu0 0.0
    %3281 = vmatprep.subr.mxu0 0.0
    %3282 = vmatpush1.msra.mxu0 0.0
    %3283 = vmatprep.subr.mxu0 0.0
    %3284 = vmatpush1.msra.mxu0 0.0
    %3285 = vmatprep.subr.mxu0 0.0
    %3286 = vmatpush1.msra.mxu0 0.0
    %3287 = vmatprep.subr.mxu0 0.0
    %3288 = vmatpush1.msra.mxu0 0.0
    %3289 = vmatprep.subr.mxu0 0.0
    %3290 = vmatpush1.msra.mxu0 0.0
    %3291 = vmatprep.subr.mxu0 0.0
    %3292 = vmatpush1.msra.mxu0 0.0
    %3293 = vmatprep.subr.mxu0 0.0
    %3294 = vmatpush1.msra.mxu0 0.0
    %3295 = vmatprep.subr.mxu0 0.0
    %3296 = vmatpush1.msra.mxu0 0.0
    %3297 = vmatprep.subr.mxu0 0.0
    %3298 = vmatpush1.msra.mxu0 0.0
    %3299 = vmatprep.subr.mxu0 0.0
    %3300 = vmatpush1.msra.mxu0 0.0
    %3301 = vmatprep.subr.mxu0 0.0
    %3302 = vmatpush1.msra.mxu0 0.0
    %3303 = vmatprep.subr.mxu0 0.0
    %3304 = vmatpush1.msra.mxu0 0.0
    %3305 = vmatprep.subr.mxu0 0.0
    %3306 = vmatpush1.msra.mxu0 0.0
    %3307 = vmatprep.subr.mxu0 0.0
    %3308 = vmatpush1.msra.mxu0 0.0
    %3309 = vmatprep.subr.mxu0 0.0
    %3310 = vmatpush1.msra.mxu0 0.0
    %3311 = vmatprep.subr.mxu0 0.0
    %3312 = vmatpush1.msra.mxu0 0.0
    %3313 = vmatprep.subr.mxu0 0.0
    %3314 = vmatpush1.msra.mxu0 0.0
    %3315 = vmatprep.mubr.f32.mxu0 0.0
    %3316 = vmatmul.mubr.f32.gmra.mrb[0].mxu0 %v3246
    %v3317 = vpop.f32.mrb[0].mxu0
    %v3318 = vadd.f32 0.0, %v3317
    %v3319 = vpop.f32.mrb[0].mxu0
    %3320 = vmatprep.mubr.f32.mxu0 0.0
    %3321 = vmatmul.mubr.f32.gmra.mrb[0].mxu0 %v3249
    %v3322 = vpop.f32.mrb[0].mxu0
    %v3323 = vadd.f32 0.0, %v3322
    %v3324 = vpop.f32.mrb[0].mxu0
    %3325 = vdwg.mxu0
    %3328 = vrot.lane.b32.xlu0 %v3066, 32
    %v3329 = vpop.permute.xlu0 %3328
    %3330 = vrot.lane.b32.xlu0 %v3067, 32
    %v3331 = vpop.permute.xlu0 %3330
    %v3334 = vsel %vm294, %v3066, %v3329
    %v3335 = vsel %vm294, %v3067, %v3331
    %3338 = vrot.lane.b32.xlu0 %v3069, 32
    %v3339 = vpop.permute.xlu0 %3338
    %3340 = vrot.lane.b32.xlu0 %v3070, 32
    %v3341 = vpop.permute.xlu0 %3340
    %v3344 = vsel %vm294, %v3069, %v3339
    %v3345 = vsel %vm294, %v3070, %v3341
    %v3346 = vmul.f32 %v3318, %v3334
    %v3347 = vmul.f32 %v3323, %v3335
    %v3348 = vadd.f32 %v3346, %v3344
    %v3349 = vadd.f32 %v3347, %v3345
    %v3350 = vtanh.pop %v3348
    %v3351 = vtanh.pop %v3349
    %v3352 = vadd.f32 %v2760, %v3350
    %v3353 = vadd.f32 %v2761, %v3351
    %s3354 = scalar_lea.vmem [#allocation9], 16
    %v3355 = vld [vmem:[%s3354] sm:$0xff]
    %v3356 = vld [vmem:[%s3354 + $0x8] sm:$0xff]
    %s3357 = scalar_lea.vmem %s10, 32
    %v3358 = vld [vmem:[%s3357] sm:$0xff]
    %v3359 = vld [vmem:[%s3357 + $0x8] sm:$0xff]
    %v3360 = vld [vmem:[%s3357 + $0x10] sm:$0xff]
    %v3361 = vld [vmem:[%s3357 + $0x18] sm:$0xff]
    %s3362 = scalar_lea.vmem %s11, 16
    %v3363 = vld [vmem:[%s3362] sm:$0xff]
    %v3364 = vld [vmem:[%s3362 + $0x8] sm:$0xff]
    %s3365 = scalar_lea.vmem %s12, 16
    %v3366 = vld [vmem:[%s3365] sm:$0xff]
    %v3367 = vld [vmem:[%s3365 + $0x8] sm:$0xff]
    %v3369 = vsel %vm294, %v3352, 0
    %v3372 = vsel %vm294, %v3353, 0
    %3374 = vmatprep.subr.mxu0 0.0
    %3375 = vmatpush1.msra.mxu0 %v3358
    %3376 = vmatprep.subr.mxu0 0.0
    %3377 = vmatpush1.msra.mxu0 %v3359
    %3378 = vmatprep.subr.mxu0 0.0
    %3379 = vmatpush1.msra.mxu0 %v3360
    %3380 = vmatprep.subr.mxu0 0.0
    %3381 = vmatpush1.msra.mxu0 %v3361
    %3382 = vmatprep.subr.mxu0 0.0
    %3383 = vmatpush1.msra.mxu0 0.0
    %3384 = vmatprep.subr.mxu0 0.0
    %3385 = vmatpush1.msra.mxu0 0.0
    %3386 = vmatprep.subr.mxu0 0.0
    %3387 = vmatpush1.msra.mxu0 0.0
    %3388 = vmatprep.subr.mxu0 0.0
    %3389 = vmatpush1.msra.mxu0 0.0
    %3390 = vmatprep.subr.mxu0 0.0
    %3391 = vmatpush1.msra.mxu0 0.0
    %3392 = vmatprep.subr.mxu0 0.0
    %3393 = vmatpush1.msra.mxu0 0.0
    %3394 = vmatprep.subr.mxu0 0.0
    %3395 = vmatpush1.msra.mxu0 0.0
    %3396 = vmatprep.subr.mxu0 0.0
    %3397 = vmatpush1.msra.mxu0 0.0
    %3398 = vmatprep.subr.mxu0 0.0
    %3399 = vmatpush1.msra.mxu0 0.0
    %3400 = vmatprep.subr.mxu0 0.0
    %3401 = vmatpush1.msra.mxu0 0.0
    %3402 = vmatprep.subr.mxu0 0.0
    %3403 = vmatpush1.msra.mxu0 0.0
    %3404 = vmatprep.subr.mxu0 0.0
    %3405 = vmatpush1.msra.mxu0 0.0
    %3406 = vmatprep.subr.mxu0 0.0
    %3407 = vmatpush1.msra.mxu0 0.0
    %3408 = vmatprep.subr.mxu0 0.0
    %3409 = vmatpush1.msra.mxu0 0.0
    %3410 = vmatprep.subr.mxu0 0.0
    %3411 = vmatpush1.msra.mxu0 0.0
    %3412 = vmatprep.subr.mxu0 0.0
    %3413 = vmatpush1.msra.mxu0 0.0
    %3414 = vmatprep.subr.mxu0 0.0
    %3415 = vmatpush1.msra.mxu0 0.0
    %3416 = vmatprep.subr.mxu0 0.0
    %3417 = vmatpush1.msra.mxu0 0.0
    %3418 = vmatprep.subr.mxu0 0.0
    %3419 = vmatpush1.msra.mxu0 0.0
    %3420 = vmatprep.subr.mxu0 0.0
    %3421 = vmatpush1.msra.mxu0 0.0
    %3422 = vmatprep.subr.mxu0 0.0
    %3423 = vmatpush1.msra.mxu0 0.0
    %3424 = vmatprep.subr.mxu0 0.0
    %3425 = vmatpush1.msra.mxu0 0.0
    %3426 = vmatprep.subr.mxu0 0.0
    %3427 = vmatpush1.msra.mxu0 0.0
    %3428 = vmatprep.subr.mxu0 0.0
    %3429 = vmatpush1.msra.mxu0 0.0
    %3430 = vmatprep.subr.mxu0 0.0
    %3431 = vmatpush1.msra.mxu0 0.0
    %3432 = vmatprep.subr.mxu0 0.0
    %3433 = vmatpush1.msra.mxu0 0.0
    %3434 = vmatprep.subr.mxu0 0.0
    %3435 = vmatpush1.msra.mxu0 0.0
    %3436 = vmatprep.subr.mxu0 0.0
    %3437 = vmatpush1.msra.mxu0 0.0
    %3438 = vmatprep.mubr.f32.mxu0 0.0
    %3439 = vmatmul.mubr.f32.gmra.mrb[0].mxu0 %v3369
    %v3440 = vpop.f32.mrb[0].mxu0
    %v3441 = vadd.f32 0.0, %v3440
    %v3442 = vpop.f32.mrb[0].mxu0
    %3443 = vmatprep.mubr.f32.mxu0 0.0
    %3444 = vmatmul.mubr.f32.gmra.mrb[0].mxu0 %v3372
    %v3445 = vpop.f32.mrb[0].mxu0
    %v3446 = vadd.f32 0.0, %v3445
    %v3447 = vpop.f32.mrb[0].mxu0
    %3448 = vdwg.mxu0
    %3449 = vrot.lane.b32.xlu0 %v3352, 96
    %v3450 = vpop.permute.xlu0 %3449
    %3451 = vrot.lane.b32.xlu0 %v3353, 96
    %v3452 = vpop.permute.xlu0 %3451
    %v3453 = vsel %vm294, %v3450, 0
    %v3455 = vsel %vm294, %v3452, 0
    %3457 = vmatprep.subr.mxu0 0.0
    %3458 = vmatpush1.msra.mxu0 %v3358
    %3459 = vmatprep.subr.mxu0 0.0
    %3460 = vmatpush1.msra.mxu0 %v3359
    %3461 = vmatprep.subr.mxu0 0.0
    %3462 = vmatpush1.msra.mxu0 %v3360
    %3463 = vmatprep.subr.mxu0 0.0
    %3464 = vmatpush1.msra.mxu0 %v3361
    %3465 = vmatprep.subr.mxu0 0.0
    %3466 = vmatpush1.msra.mxu0 0.0
    %3467 = vmatprep.subr.mxu0 0.0
    %3468 = vmatpush1.msra.mxu0 0.0
    %3469 = vmatprep.subr.mxu0 0.0
    %3470 = vmatpush1.msra.mxu0 0.0
    %3471 = vmatprep.subr.mxu0 0.0
    %3472 = vmatpush1.msra.mxu0 0.0
    %3473 = vmatprep.subr.mxu0 0.0
    %3474 = vmatpush1.msra.mxu0 0.0
    %3475 = vmatprep.subr.mxu0 0.0
    %3476 = vmatpush1.msra.mxu0 0.0
    %3477 = vmatprep.subr.mxu0 0.0
    %3478 = vmatpush1.msra.mxu0 0.0
    %3479 = vmatprep.subr.mxu0 0.0
    %3480 = vmatpush1.msra.mxu0 0.0
    %3481 = vmatprep.subr.mxu0 0.0
    %3482 = vmatpush1.msra.mxu0 0.0
    %3483 = vmatprep.subr.mxu0 0.0
    %3484 = vmatpush1.msra.mxu0 0.0
    %3485 = vmatprep.subr.mxu0 0.0
    %3486 = vmatpush1.msra.mxu0 0.0
    %3487 = vmatprep.subr.mxu0 0.0
    %3488 = vmatpush1.msra.mxu0 0.0
    %3489 = vmatprep.subr.mxu0 0.0
    %3490 = vmatpush1.msra.mxu0 0.0
    %3491 = vmatprep.subr.mxu0 0.0
    %3492 = vmatpush1.msra.mxu0 0.0
    %3493 = vmatprep.subr.mxu0 0.0
    %3494 = vmatpush1.msra.mxu0 0.0
    %3495 = vmatprep.subr.mxu0 0.0
    %3496 = vmatpush1.msra.mxu0 0.0
    %3497 = vmatprep.subr.mxu0 0.0
    %3498 = vmatpush1.msra.mxu0 0.0
    %3499 = vmatprep.subr.mxu0 0.0
    %3500 = vmatpush1.msra.mxu0 0.0
    %3501 = vmatprep.subr.mxu0 0.0
    %3502 = vmatpush1.msra.mxu0 0.0
    %3503 = vmatprep.subr.mxu0 0.0
    %3504 = vmatpush1.msra.mxu0 0.0
    %3505 = vmatprep.subr.mxu0 0.0
    %3506 = vmatpush1.msra.mxu0 0.0
    %3507 = vmatprep.subr.mxu0 0.0
    %3508 = vmatpush1.msra.mxu0 0.0
    %3509 = vmatprep.subr.mxu0 0.0
    %3510 = vmatpush1.msra.mxu0 0.0
    %3511 = vmatprep.subr.mxu0 0.0
    %3512 = vmatpush1.msra.mxu0 0.0
    %3513 = vmatprep.subr.mxu0 0.0
    %3514 = vmatpush1.msra.mxu0 0.0
    %3515 = vmatprep.subr.mxu0 0.0
    %3516 = vmatpush1.msra.mxu0 0.0
    %3517 = vmatprep.subr.mxu0 0.0
    %3518 = vmatpush1.msra.mxu0 0.0
    %3519 = vmatprep.subr.mxu0 0.0
    %3520 = vmatpush1.msra.mxu0 0.0
    %3521 = vmatprep.mubr.f32.mxu0 0.0
    %3522 = vmatmul.mubr.f32.gmra.mrb[0].mxu0 %v3453
    %v3523 = vpop.f32.mrb[0].mxu0
    %v3524 = vadd.f32 0.0, %v3523
    %v3525 = vpop.f32.mrb[0].mxu0
    %3526 = vmatprep.mubr.f32.mxu0 0.0
    %3527 = vmatmul.mubr.f32.gmra.mrb[0].mxu0 %v3455
    %v3528 = vpop.f32.mrb[0].mxu0
    %v3529 = vadd.f32 0.0, %v3528
    %v3530 = vpop.f32.mrb[0].mxu0
    %3531 = vdwg.mxu0
    %3534 = vrot.lane.b32.xlu0 %v3524, 8
    %v3535 = vpop.permute.xlu0 %3534
    %3536 = vrot.lane.b32.xlu0 %v3529, 8
    %v3537 = vpop.permute.xlu0 %3536
    %v3540 = vsel %vm121, %v3441, %v3535
    %v3541 = vsel %vm121, %v3446, %v3537
    %v3543 = vsel %vm297, %v3355, 0
    %v3546 = vsel %vm297, %v3356, 0
    %3548 = vmatprep.subr.mxu0 0.0
    %3549 = vmatpush1.msra.mxu0 %v3540
    %3550 = vmatprep.subr.mxu0 0.0
    %3551 = vmatpush1.msra.mxu0 %v3541
    %3552 = vmatprep.subr.mxu0 0.0
    %3553 = vmatpush1.msra.mxu0 0.0
    %3554 = vmatprep.subr.mxu0 0.0
    %3555 = vmatpush1.msra.mxu0 0.0
    %3556 = vmatprep.subr.mxu0 0.0
    %3557 = vmatpush1.msra.mxu0 0.0
    %3558 = vmatprep.subr.mxu0 0.0
    %3559 = vmatpush1.msra.mxu0 0.0
    %3560 = vmatprep.subr.mxu0 0.0
    %3561 = vmatpush1.msra.mxu0 0.0
    %3562 = vmatprep.subr.mxu0 0.0
    %3563 = vmatpush1.msra.mxu0 0.0
    %3564 = vmatprep.subr.mxu0 0.0
    %3565 = vmatpush1.msra.mxu0 0.0
    %3566 = vmatprep.subr.mxu0 0.0
    %3567 = vmatpush1.msra.mxu0 0.0
    %3568 = vmatprep.subr.mxu0 0.0
    %3569 = vmatpush1.msra.mxu0 0.0
    %3570 = vmatprep.subr.mxu0 0.0
    %3571 = vmatpush1.msra.mxu0 0.0
    %3572 = vmatprep.subr.mxu0 0.0
    %3573 = vmatpush1.msra.mxu0 0.0
    %3574 = vmatprep.subr.mxu0 0.0
    %3575 = vmatpush1.msra.mxu0 0.0
    %3576 = vmatprep.subr.mxu0 0.0
    %3577 = vmatpush1.msra.mxu0 0.0
    %3578 = vmatprep.subr.mxu0 0.0
    %3579 = vmatpush1.msra.mxu0 0.0
    %3580 = vmatprep.subr.mxu0 0.0
    %3581 = vmatpush1.msra.mxu0 0.0
    %3582 = vmatprep.subr.mxu0 0.0
    %3583 = vmatpush1.msra.mxu0 0.0
    %3584 = vmatprep.subr.mxu0 0.0
    %3585 = vmatpush1.msra.mxu0 0.0
    %3586 = vmatprep.subr.mxu0 0.0
    %3587 = vmatpush1.msra.mxu0 0.0
    %3588 = vmatprep.subr.mxu0 0.0
    %3589 = vmatpush1.msra.mxu0 0.0
    %3590 = vmatprep.subr.mxu0 0.0
    %3591 = vmatpush1.msra.mxu0 0.0
    %3592 = vmatprep.subr.mxu0 0.0
    %3593 = vmatpush1.msra.mxu0 0.0
    %3594 = vmatprep.subr.mxu0 0.0
    %3595 = vmatpush1.msra.mxu0 0.0
    %3596 = vmatprep.subr.mxu0 0.0
    %3597 = vmatpush1.msra.mxu0 0.0
    %3598 = vmatprep.subr.mxu0 0.0
    %3599 = vmatpush1.msra.mxu0 0.0
    %3600 = vmatprep.subr.mxu0 0.0
    %3601 = vmatpush1.msra.mxu0 0.0
    %3602 = vmatprep.subr.mxu0 0.0
    %3603 = vmatpush1.msra.mxu0 0.0
    %3604 = vmatprep.subr.mxu0 0.0
    %3605 = vmatpush1.msra.mxu0 0.0
    %3606 = vmatprep.subr.mxu0 0.0
    %3607 = vmatpush1.msra.mxu0 0.0
    %3608 = vmatprep.subr.mxu0 0.0
    %3609 = vmatpush1.msra.mxu0 0.0
    %3610 = vmatprep.subr.mxu0 0.0
    %3611 = vmatpush1.msra.mxu0 0.0
    %3612 = vmatprep.mubr.f32.mxu0 0.0
    %3613 = vmatmul.mubr.f32.gmra.mrb[0].mxu0 %v3543
    %v3614 = vpop.f32.mrb[0].mxu0
    %v3615 = vadd.f32 0.0, %v3614
    %v3616 = vpop.f32.mrb[0].mxu0
    %3617 = vmatprep.mubr.f32.mxu0 0.0
    %3618 = vmatmul.mubr.f32.gmra.mrb[0].mxu0 %v3546
    %v3619 = vpop.f32.mrb[0].mxu0
    %v3620 = vadd.f32 0.0, %v3619
    %v3621 = vpop.f32.mrb[0].mxu0
    %3622 = vdwg.mxu0
    %3625 = vrot.lane.b32.xlu0 %v3363, 8
    %v3626 = vpop.permute.xlu0 %3625
    %3627 = vrot.lane.b32.xlu0 %v3364, 8
    %v3628 = vpop.permute.xlu0 %3627
    %v3631 = vsel %vm121, %v3363, %v3626
    %v3632 = vsel %vm121, %v3364, %v3628
    %3635 = vrot.lane.b32.xlu0 %v3366, 8
    %v3636 = vpop.permute.xlu0 %3635
    %3637 = vrot.lane.b32.xlu0 %v3367, 8
    %v3638 = vpop.permute.xlu0 %3637
    %v3641 = vsel %vm121, %v3366, %v3636
    %v3642 = vsel %vm121, %v3367, %v3638
    %v3643 = vmul.f32 %v3615, %v3631
    %v3644 = vmul.f32 %v3620, %v3632
    %v3645 = vadd.f32 %v3643, %v3641
    %v3646 = vadd.f32 %v3644, %v3642
    %v3647 = vadd.f32 %v3645, %v1874
    %v3648 = vadd.f32 %v3646, %v1875
    %s3649 = scalar_lea.vmem %s13, 16
    %3650 = vst.msk [vmem:[%s3649] sm:$0xff] %vm297, %v3647
    %3651 = vst.msk [vmem:[%s3649 + $0x8] sm:$0xff] %vm297, %v3648
    %s3652 = scalar_lea.vmem %s1, 32
    %v3653 = vld [vmem:[%s3652] sm:$0xff]
    %v3654 = vld [vmem:[%s3652 + $0x8] sm:$0xff]
    %s3655 = scalar_lea.vmem %s2, 16
    %v3656 = vld [vmem:[%s3655] sm:$0xff]
    %s3657 = scalar_lea.vmem %s3, 32
    %v3658 = vld [vmem:[%s3657] sm:$0xff]
    %v3659 = vld [vmem:[%s3657 + $0x8] sm:$0xff]
    %s3660 = scalar_lea.vmem [#allocation2], 32
    %v3661 = vld [vmem:[%s3660] sm:$0xff]
    %v3662 = vld [vmem:[%s3660 + $0x8] sm:$0xff]
    %v3664 = vsel %vm121, %v3647, 0
    %v3667 = vsel %vm121, %v3648, 0
    %3669 = vmatprep.subr.mxu0 0.0
    %3670 = vmatpush1.msra.mxu0 %v3656
    %3671 = vmatprep.subr.mxu0 0.0
    %3672 = vmatpush1.msra.mxu0 0.0
    %3673 = vmatprep.subr.mxu0 0.0
    %3674 = vmatpush1.msra.mxu0 0.0
    %3675 = vmatprep.subr.mxu0 0.0
    %3676 = vmatpush1.msra.mxu0 0.0
    %3677 = vmatprep.subr.mxu0 0.0
    %3678 = vmatpush1.msra.mxu0 0.0
    %3679 = vmatprep.subr.mxu0 0.0
    %3680 = vmatpush1.msra.mxu0 0.0
    %3681 = vmatprep.subr.mxu0 0.0
    %3682 = vmatpush1.msra.mxu0 0.0
    %3683 = vmatprep.subr.mxu0 0.0
    %3684 = vmatpush1.msra.mxu0 0.0
    %3685 = vmatprep.subr.mxu0 0.0
    %3686 = vmatpush1.msra.mxu0 0.0
    %3687 = vmatprep.subr.mxu0 0.0
    %3688 = vmatpush1.msra.mxu0 0.0
    %3689 = vmatprep.subr.mxu0 0.0
    %3690 = vmatpush1.msra.mxu0 0.0
    %3691 = vmatprep.subr.mxu0 0.0
    %3692 = vmatpush1.msra.mxu0 0.0
    %3693 = vmatprep.subr.mxu0 0.0
    %3694 = vmatpush1.msra.mxu0 0.0
    %3695 = vmatprep.subr.mxu0 0.0
    %3696 = vmatpush1.msra.mxu0 0.0
    %3697 = vmatprep.subr.mxu0 0.0
    %3698 = vmatpush1.msra.mxu0 0.0
    %3699 = vmatprep.subr.mxu0 0.0
    %3700 = vmatpush1.msra.mxu0 0.0
    %3701 = vmatprep.subr.mxu0 0.0
    %3702 = vmatpush1.msra.mxu0 0.0
    %3703 = vmatprep.subr.mxu0 0.0
    %3704 = vmatpush1.msra.mxu0 0.0
    %3705 = vmatprep.subr.mxu0 0.0
    %3706 = vmatpush1.msra.mxu0 0.0
    %3707 = vmatprep.subr.mxu0 0.0
    %3708 = vmatpush1.msra.mxu0 0.0
    %3709 = vmatprep.subr.mxu0 0.0
    %3710 = vmatpush1.msra.mxu0 0.0
    %3711 = vmatprep.subr.mxu0 0.0
    %3712 = vmatpush1.msra.mxu0 0.0
    %3713 = vmatprep.subr.mxu0 0.0
    %3714 = vmatpush1.msra.mxu0 0.0
    %3715 = vmatprep.subr.mxu0 0.0
    %3716 = vmatpush1.msra.mxu0 0.0
    %3717 = vmatprep.subr.mxu0 0.0
    %3718 = vmatpush1.msra.mxu0 0.0
    %3719 = vmatprep.subr.mxu0 0.0
    %3720 = vmatpush1.msra.mxu0 0.0
    %3721 = vmatprep.subr.mxu0 0.0
    %3722 = vmatpush1.msra.mxu0 0.0
    %3723 = vmatprep.subr.mxu0 0.0
    %3724 = vmatpush1.msra.mxu0 0.0
    %3725 = vmatprep.subr.mxu0 0.0
    %3726 = vmatpush1.msra.mxu0 0.0
    %3727 = vmatprep.subr.mxu0 0.0
    %3728 = vmatpush1.msra.mxu0 0.0
    %3729 = vmatprep.subr.mxu0 0.0
    %3730 = vmatpush1.msra.mxu0 0.0
    %3731 = vmatprep.subr.mxu0 0.0
    %3732 = vmatpush1.msra.mxu0 0.0
    %3733 = vmatprep.mubr.f32.mxu0 0.0
    %3734 = vmatmul.mubr.f32.gmra.mrb[0].mxu0 %v3664
    %v3735 = vpop.f32.mrb[0].mxu0
    %v3736 = vadd.f32 0.0, %v3735
    %v3737 = vpop.f32.mrb[0].mxu0
    %3738 = vmatprep.mubr.f32.mxu0 0.0
    %3739 = vmatmul.mubr.f32.gmra.mrb[0].mxu0 %v3667
    %v3740 = vpop.f32.mrb[0].mxu0
    %v3741 = vadd.f32 0.0, %v3740
    %v3742 = vpop.f32.mrb[0].mxu0
    %3743 = vdwg.mxu0
    %3744 = vrot.lane.b32.xlu0 %v3647, 120
    %v3745 = vpop.permute.xlu0 %3744
    %3746 = vrot.lane.b32.xlu0 %v3648, 120
    %v3747 = vpop.permute.xlu0 %3746
    %v3748 = vsel %vm121, %v3745, 0
    %v3750 = vsel %vm121, %v3747, 0
    %3752 = vmatprep.subr.mxu0 0.0
    %3753 = vmatpush1.msra.mxu0 %v3656
    %3754 = vmatprep.subr.mxu0 0.0
    %3755 = vmatpush1.msra.mxu0 0.0
    %3756 = vmatprep.subr.mxu0 0.0
    %3757 = vmatpush1.msra.mxu0 0.0
    %3758 = vmatprep.subr.mxu0 0.0
    %3759 = vmatpush1.msra.mxu0 0.0
    %3760 = vmatprep.subr.mxu0 0.0
    %3761 = vmatpush1.msra.mxu0 0.0
    %3762 = vmatprep.subr.mxu0 0.0
    %3763 = vmatpush1.msra.mxu0 0.0
    %3764 = vmatprep.subr.mxu0 0.0
    %3765 = vmatpush1.msra.mxu0 0.0
    %3766 = vmatprep.subr.mxu0 0.0
    %3767 = vmatpush1.msra.mxu0 0.0
    %3768 = vmatprep.subr.mxu0 0.0
    %3769 = vmatpush1.msra.mxu0 0.0
    %3770 = vmatprep.subr.mxu0 0.0
    %3771 = vmatpush1.msra.mxu0 0.0
    %3772 = vmatprep.subr.mxu0 0.0
    %3773 = vmatpush1.msra.mxu0 0.0
    %3774 = vmatprep.subr.mxu0 0.0
    %3775 = vmatpush1.msra.mxu0 0.0
    %3776 = vmatprep.subr.mxu0 0.0
    %3777 = vmatpush1.msra.mxu0 0.0
    %3778 = vmatprep.subr.mxu0 0.0
    %3779 = vmatpush1.msra.mxu0 0.0
    %3780 = vmatprep.subr.mxu0 0.0
    %3781 = vmatpush1.msra.mxu0 0.0
    %3782 = vmatprep.subr.mxu0 0.0
    %3783 = vmatpush1.msra.mxu0 0.0
    %3784 = vmatprep.subr.mxu0 0.0
    %3785 = vmatpush1.msra.mxu0 0.0
    %3786 = vmatprep.subr.mxu0 0.0
    %3787 = vmatpush1.msra.mxu0 0.0
    %3788 = vmatprep.subr.mxu0 0.0
    %3789 = vmatpush1.msra.mxu0 0.0
    %3790 = vmatprep.subr.mxu0 0.0
    %3791 = vmatpush1.msra.mxu0 0.0
    %3792 = vmatprep.subr.mxu0 0.0
    %3793 = vmatpush1.msra.mxu0 0.0
    %3794 = vmatprep.subr.mxu0 0.0
    %3795 = vmatpush1.msra.mxu0 0.0
    %3796 = vmatprep.subr.mxu0 0.0
    %3797 = vmatpush1.msra.mxu0 0.0
    %3798 = vmatprep.subr.mxu0 0.0
    %3799 = vmatpush1.msra.mxu0 0.0
    %3800 = vmatprep.subr.mxu0 0.0
    %3801 = vmatpush1.msra.mxu0 0.0
    %3802 = vmatprep.subr.mxu0 0.0
    %3803 = vmatpush1.msra.mxu0 0.0
    %3804 = vmatprep.subr.mxu0 0.0
    %3805 = vmatpush1.msra.mxu0 0.0
    %3806 = vmatprep.subr.mxu0 0.0
    %3807 = vmatpush1.msra.mxu0 0.0
    %3808 = vmatprep.subr.mxu0 0.0
    %3809 = vmatpush1.msra.mxu0 0.0
    %3810 = vmatprep.subr.mxu0 0.0
    %3811 = vmatpush1.msra.mxu0 0.0
    %3812 = vmatprep.subr.mxu0 0.0
    %3813 = vmatpush1.msra.mxu0 0.0
    %3814 = vmatprep.subr.mxu0 0.0
    %3815 = vmatpush1.msra.mxu0 0.0
    %3816 = vmatprep.mubr.f32.mxu0 0.0
    %3817 = vmatmul.mubr.f32.gmra.mrb[0].mxu0 %v3748
    %v3818 = vpop.f32.mrb[0].mxu0
    %v3819 = vadd.f32 0.0, %v3818
    %v3820 = vpop.f32.mrb[0].mxu0
    %3821 = vmatprep.mubr.f32.mxu0 0.0
    %3822 = vmatmul.mubr.f32.gmra.mrb[0].mxu0 %v3750
    %v3823 = vpop.f32.mrb[0].mxu0
    %v3824 = vadd.f32 0.0, %v3823
    %v3825 = vpop.f32.mrb[0].mxu0
    %3826 = vdwg.mxu0
    %3829 = vrot.lane.b32.xlu0 %v3819, 32
    %v3830 = vpop.permute.xlu0 %3829
    %3831 = vrot.lane.b32.xlu0 %v3824, 32
    %v3832 = vpop.permute.xlu0 %3831
    %v3835 = vsel %vm294, %v3736, %v3830
    %v3836 = vsel %vm294, %v3741, %v3832
    %v3838 = vsel %vm297, %v3653, 0
    %v3841 = vsel %vm297, %v3654, 0
    %3843 = vmatprep.subr.mxu0 0.0
    %3844 = vmatpush1.msra.mxu0 %v3835
    %3845 = vmatprep.subr.mxu0 0.0
    %3846 = vmatpush1.msra.mxu0 %v3836
    %3847 = vmatprep.subr.mxu0 0.0
    %3848 = vmatpush1.msra.mxu0 0.0
    %3849 = vmatprep.subr.mxu0 0.0
    %3850 = vmatpush1.msra.mxu0 0.0
    %3851 = vmatprep.subr.mxu0 0.0
    %3852 = vmatpush1.msra.mxu0 0.0
    %3853 = vmatprep.subr.mxu0 0.0
    %3854 = vmatpush1.msra.mxu0 0.0
    %3855 = vmatprep.subr.mxu0 0.0
    %3856 = vmatpush1.msra.mxu0 0.0
    %3857 = vmatprep.subr.mxu0 0.0
    %3858 = vmatpush1.msra.mxu0 0.0
    %3859 = vmatprep.subr.mxu0 0.0
    %3860 = vmatpush1.msra.mxu0 0.0
    %3861 = vmatprep.subr.mxu0 0.0
    %3862 = vmatpush1.msra.mxu0 0.0
    %3863 = vmatprep.subr.mxu0 0.0
    %3864 = vmatpush1.msra.mxu0 0.0
    %3865 = vmatprep.subr.mxu0 0.0
    %3866 = vmatpush1.msra.mxu0 0.0
    %3867 = vmatprep.subr.mxu0 0.0
    %3868 = vmatpush1.msra.mxu0 0.0
    %3869 = vmatprep.subr.mxu0 0.0
    %3870 = vmatpush1.msra.mxu0 0.0
    %3871 = vmatprep.subr.mxu0 0.0
    %3872 = vmatpush1.msra.mxu0 0.0
    %3873 = vmatprep.subr.mxu0 0.0
    %3874 = vmatpush1.msra.mxu0 0.0
    %3875 = vmatprep.subr.mxu0 0.0
    %3876 = vmatpush1.msra.mxu0 0.0
    %3877 = vmatprep.subr.mxu0 0.0
    %3878 = vmatpush1.msra.mxu0 0.0
    %3879 = vmatprep.subr.mxu0 0.0
    %3880 = vmatpush1.msra.mxu0 0.0
    %3881 = vmatprep.subr.mxu0 0.0
    %3882 = vmatpush1.msra.mxu0 0.0
    %3883 = vmatprep.subr.mxu0 0.0
    %3884 = vmatpush1.msra.mxu0 0.0
    %3885 = vmatprep.subr.mxu0 0.0
    %3886 = vmatpush1.msra.mxu0 0.0
    %3887 = vmatprep.subr.mxu0 0.0
    %3888 = vmatpush1.msra.mxu0 0.0
    %3889 = vmatprep.subr.mxu0 0.0
    %3890 = vmatpush1.msra.mxu0 0.0
    %3891 = vmatprep.subr.mxu0 0.0
    %3892 = vmatpush1.msra.mxu0 0.0
    %3893 = vmatprep.subr.mxu0 0.0
    %3894 = vmatpush1.msra.mxu0 0.0
    %3895 = vmatprep.subr.mxu0 0.0
    %3896 = vmatpush1.msra.mxu0 0.0
    %3897 = vmatprep.subr.mxu0 0.0
    %3898 = vmatpush1.msra.mxu0 0.0
    %3899 = vmatprep.subr.mxu0 0.0
    %3900 = vmatpush1.msra.mxu0 0.0
    %3901 = vmatprep.subr.mxu0 0.0
    %3902 = vmatpush1.msra.mxu0 0.0
    %3903 = vmatprep.subr.mxu0 0.0
    %3904 = vmatpush1.msra.mxu0 0.0
    %3905 = vmatprep.subr.mxu0 0.0
    %3906 = vmatpush1.msra.mxu0 0.0
    %3907 = vmatprep.mubr.f32.mxu0 0.0
    %3908 = vmatmul.mubr.f32.gmra.mrb[0].mxu0 %v3838
    %v3909 = vpop.f32.mrb[0].mxu0
    %v3910 = vadd.f32 0.0, %v3909
    %v3911 = vpop.f32.mrb[0].mxu0
    %3912 = vmatprep.mubr.f32.mxu0 0.0
    %3913 = vmatmul.mubr.f32.gmra.mrb[0].mxu0 %v3841
    %v3914 = vpop.f32.mrb[0].mxu0
    %v3915 = vadd.f32 0.0, %v3914
    %v3916 = vpop.f32.mrb[0].mxu0
    %3917 = vdwg.mxu0
    %3920 = vrot.lane.b32.xlu0 %v3658, 32
    %v3921 = vpop.permute.xlu0 %3920
    %3922 = vrot.lane.b32.xlu0 %v3659, 32
    %v3923 = vpop.permute.xlu0 %3922
    %v3926 = vsel %vm294, %v3658, %v3921
    %v3927 = vsel %vm294, %v3659, %v3923
    %3930 = vrot.lane.b32.xlu0 %v3661, 32
    %v3931 = vpop.permute.xlu0 %3930
    %3932 = vrot.lane.b32.xlu0 %v3662, 32
    %v3933 = vpop.permute.xlu0 %3932
    %v3936 = vsel %vm294, %v3661, %v3931
    %v3937 = vsel %vm294, %v3662, %v3933
    %v3938 = vmul.f32 %v3910, %v3926
    %v3939 = vmul.f32 %v3915, %v3927
    %v3940 = vadd.f32 %v3938, %v3936
    %v3941 = vadd.f32 %v3939, %v3937
    %v3942 = vtanh.pop %v3940
    %v3943 = vtanh.pop %v3941
    %s3944 = scalar_lea.vmem %s5, 128
    %v3945 = vld [vmem:[%s3944] sm:$0xff]
    %v3946 = vld [vmem:[%s3944 + $0x8] sm:$0xff]
    %s3947 = scalar_lea.vmem [#allocation4], 256
    %v3948 = vld [vmem:[%s3947] sm:$0xff]
    %v3949 = vld [vmem:[%s3947 + $0x8] sm:$0xff]
    %v3950 = vld [vmem:[%s3947 + $0x10] sm:$0xff]
    %v3951 = vld [vmem:[%s3947 + $0x18] sm:$0xff]
    %s3952 = scalar_lea.vmem [#allocation6], 128
    %v3953 = vld [vmem:[%s3952] sm:$0xff]
    %v3954 = vld [vmem:[%s3952 + $0x8] sm:$0xff]
    %s3955 = scalar_lea.vmem [#allocation7], 128
    %v3956 = vld [vmem:[%s3955] sm:$0xff]
    %v3957 = vld [vmem:[%s3955 + $0x8] sm:$0xff]
    %v3959 = vsel %vm294, %v3942, 0
    %v3962 = vsel %vm294, %v3943, 0
    %3964 = vmatprep.subr.mxu0 0.0
    %3965 = vmatpush1.msra.mxu0 %v3948
    %3966 = vmatprep.subr.mxu0 0.0
    %3967 = vmatpush1.msra.mxu0 %v3949
    %3968 = vmatprep.subr.mxu0 0.0
    %3969 = vmatpush1.msra.mxu0 %v3950
    %3970 = vmatprep.subr.mxu0 0.0
    %3971 = vmatpush1.msra.mxu0 %v3951
    %3972 = vmatprep.subr.mxu0 0.0
    %3973 = vmatpush1.msra.mxu0 0.0
    %3974 = vmatprep.subr.mxu0 0.0
    %3975 = vmatpush1.msra.mxu0 0.0
    %3976 = vmatprep.subr.mxu0 0.0
    %3977 = vmatpush1.msra.mxu0 0.0
    %3978 = vmatprep.subr.mxu0 0.0
    %3979 = vmatpush1.msra.mxu0 0.0
    %3980 = vmatprep.subr.mxu0 0.0
    %3981 = vmatpush1.msra.mxu0 0.0
    %3982 = vmatprep.subr.mxu0 0.0
    %3983 = vmatpush1.msra.mxu0 0.0
    %3984 = vmatprep.subr.mxu0 0.0
    %3985 = vmatpush1.msra.mxu0 0.0
    %3986 = vmatprep.subr.mxu0 0.0
    %3987 = vmatpush1.msra.mxu0 0.0
    %3988 = vmatprep.subr.mxu0 0.0
    %3989 = vmatpush1.msra.mxu0 0.0
    %3990 = vmatprep.subr.mxu0 0.0
    %3991 = vmatpush1.msra.mxu0 0.0
    %3992 = vmatprep.subr.mxu0 0.0
    %3993 = vmatpush1.msra.mxu0 0.0
    %3994 = vmatprep.subr.mxu0 0.0
    %3995 = vmatpush1.msra.mxu0 0.0
    %3996 = vmatprep.subr.mxu0 0.0
    %3997 = vmatpush1.msra.mxu0 0.0
    %3998 = vmatprep.subr.mxu0 0.0
    %3999 = vmatpush1.msra.mxu0 0.0
    %4000 = vmatprep.subr.mxu0 0.0
    %4001 = vmatpush1.msra.mxu0 0.0
    %4002 = vmatprep.subr.mxu0 0.0
    %4003 = vmatpush1.msra.mxu0 0.0
    %4004 = vmatprep.subr.mxu0 0.0
    %4005 = vmatpush1.msra.mxu0 0.0
    %4006 = vmatprep.subr.mxu0 0.0
    %4007 = vmatpush1.msra.mxu0 0.0
    %4008 = vmatprep.subr.mxu0 0.0
    %4009 = vmatpush1.msra.mxu0 0.0
    %4010 = vmatprep.subr.mxu0 0.0
    %4011 = vmatpush1.msra.mxu0 0.0
    %4012 = vmatprep.subr.mxu0 0.0
    %4013 = vmatpush1.msra.mxu0 0.0
    %4014 = vmatprep.subr.mxu0 0.0
    %4015 = vmatpush1.msra.mxu0 0.0
    %4016 = vmatprep.subr.mxu0 0.0
    %4017 = vmatpush1.msra.mxu0 0.0
    %4018 = vmatprep.subr.mxu0 0.0
    %4019 = vmatpush1.msra.mxu0 0.0
    %4020 = vmatprep.subr.mxu0 0.0
    %4021 = vmatpush1.msra.mxu0 0.0
    %4022 = vmatprep.subr.mxu0 0.0
    %4023 = vmatpush1.msra.mxu0 0.0
    %4024 = vmatprep.subr.mxu0 0.0
    %4025 = vmatpush1.msra.mxu0 0.0
    %4026 = vmatprep.subr.mxu0 0.0
    %4027 = vmatpush1.msra.mxu0 0.0
    %4028 = vmatprep.mubr.f32.mxu0 0.0
    %4029 = vmatmul.mubr.f32.gmra.mrb[0].mxu0 %v3959
    %v4030 = vpop.f32.mrb[0].mxu0
    %v4031 = vadd.f32 0.0, %v4030
    %v4032 = vpop.f32.mrb[0].mxu0
    %4033 = vmatprep.mubr.f32.mxu0 0.0
    %4034 = vmatmul.mubr.f32.gmra.mrb[0].mxu0 %v3962
    %v4035 = vpop.f32.mrb[0].mxu0
    %v4036 = vadd.f32 0.0, %v4035
    %v4037 = vpop.f32.mrb[0].mxu0
    %4038 = vdwg.mxu0
    %4039 = vrot.lane.b32.xlu0 %v3942, 96
    %v4040 = vpop.permute.xlu0 %4039
    %4041 = vrot.lane.b32.xlu0 %v3943, 96
    %v4042 = vpop.permute.xlu0 %4041
    %v4043 = vsel %vm294, %v4040, 0
    %v4045 = vsel %vm294, %v4042, 0
    %4047 = vmatprep.subr.mxu0 0.0
    %4048 = vmatpush1.msra.mxu0 %v3948
    %4049 = vmatprep.subr.mxu0 0.0
    %4050 = vmatpush1.msra.mxu0 %v3949
    %4051 = vmatprep.subr.mxu0 0.0
    %4052 = vmatpush1.msra.mxu0 %v3950
    %4053 = vmatprep.subr.mxu0 0.0
    %4054 = vmatpush1.msra.mxu0 %v3951
    %4055 = vmatprep.subr.mxu0 0.0
    %4056 = vmatpush1.msra.mxu0 0.0
    %4057 = vmatprep.subr.mxu0 0.0
    %4058 = vmatpush1.msra.mxu0 0.0
    %4059 = vmatprep.subr.mxu0 0.0
    %4060 = vmatpush1.msra.mxu0 0.0
    %4061 = vmatprep.subr.mxu0 0.0
    %4062 = vmatpush1.msra.mxu0 0.0
    %4063 = vmatprep.subr.mxu0 0.0
    %4064 = vmatpush1.msra.mxu0 0.0
    %4065 = vmatprep.subr.mxu0 0.0
    %4066 = vmatpush1.msra.mxu0 0.0
    %4067 = vmatprep.subr.mxu0 0.0
    %4068 = vmatpush1.msra.mxu0 0.0
    %4069 = vmatprep.subr.mxu0 0.0
    %4070 = vmatpush1.msra.mxu0 0.0
    %4071 = vmatprep.subr.mxu0 0.0
    %4072 = vmatpush1.msra.mxu0 0.0
    %4073 = vmatprep.subr.mxu0 0.0
    %4074 = vmatpush1.msra.mxu0 0.0
    %4075 = vmatprep.subr.mxu0 0.0
    %4076 = vmatpush1.msra.mxu0 0.0
    %4077 = vmatprep.subr.mxu0 0.0
    %4078 = vmatpush1.msra.mxu0 0.0
    %4079 = vmatprep.subr.mxu0 0.0
    %4080 = vmatpush1.msra.mxu0 0.0
    %4081 = vmatprep.subr.mxu0 0.0
    %4082 = vmatpush1.msra.mxu0 0.0
    %4083 = vmatprep.subr.mxu0 0.0
    %4084 = vmatpush1.msra.mxu0 0.0
    %4085 = vmatprep.subr.mxu0 0.0
    %4086 = vmatpush1.msra.mxu0 0.0
    %4087 = vmatprep.subr.mxu0 0.0
    %4088 = vmatpush1.msra.mxu0 0.0
    %4089 = vmatprep.subr.mxu0 0.0
    %4090 = vmatpush1.msra.mxu0 0.0
    %4091 = vmatprep.subr.mxu0 0.0
    %4092 = vmatpush1.msra.mxu0 0.0
    %4093 = vmatprep.subr.mxu0 0.0
    %4094 = vmatpush1.msra.mxu0 0.0
    %4095 = vmatprep.subr.mxu0 0.0
    %4096 = vmatpush1.msra.mxu0 0.0
    %4097 = vmatprep.subr.mxu0 0.0
    %4098 = vmatpush1.msra.mxu0 0.0
    %4099 = vmatprep.subr.mxu0 0.0
    %4100 = vmatpush1.msra.mxu0 0.0
    %4101 = vmatprep.subr.mxu0 0.0
    %4102 = vmatpush1.msra.mxu0 0.0
    %4103 = vmatprep.subr.mxu0 0.0
    %4104 = vmatpush1.msra.mxu0 0.0
    %4105 = vmatprep.subr.mxu0 0.0
    %4106 = vmatpush1.msra.mxu0 0.0
    %4107 = vmatprep.subr.mxu0 0.0
    %4108 = vmatpush1.msra.mxu0 0.0
    %4109 = vmatprep.subr.mxu0 0.0
    %4110 = vmatpush1.msra.mxu0 0.0
    %4111 = vmatprep.mubr.f32.mxu0 0.0
    %4112 = vmatmul.mubr.f32.gmra.mrb[0].mxu0 %v4043
    %v4113 = vpop.f32.mrb[0].mxu0
    %v4114 = vadd.f32 0.0, %v4113
    %v4115 = vpop.f32.mrb[0].mxu0
    %4116 = vmatprep.mubr.f32.mxu0 0.0
    %4117 = vmatmul.mubr.f32.gmra.mrb[0].mxu0 %v4045
    %v4118 = vpop.f32.mrb[0].mxu0
    %v4119 = vadd.f32 0.0, %v4118
    %v4120 = vpop.f32.mrb[0].mxu0
    %4121 = vdwg.mxu0
    %4124 = vrot.lane.b32.xlu0 %v4114, 32
    %v4125 = vpop.permute.xlu0 %4124
    %4126 = vrot.lane.b32.xlu0 %v4119, 32
    %v4127 = vpop.permute.xlu0 %4126
    %v4130 = vsel %vm294, %v4031, %v4125
    %v4131 = vsel %vm294, %v4036, %v4127
    %v4133 = vsel %vm297, %v3945, 0
    %v4136 = vsel %vm297, %v3946, 0
    %4138 = vmatprep.subr.mxu0 0.0
    %4139 = vmatpush1.msra.mxu0 %v4130
    %4140 = vmatprep.subr.mxu0 0.0
    %4141 = vmatpush1.msra.mxu0 %v4131
    %4142 = vmatprep.subr.mxu0 0.0
    %4143 = vmatpush1.msra.mxu0 0.0
    %4144 = vmatprep.subr.mxu0 0.0
    %4145 = vmatpush1.msra.mxu0 0.0
    %4146 = vmatprep.subr.mxu0 0.0
    %4147 = vmatpush1.msra.mxu0 0.0
    %4148 = vmatprep.subr.mxu0 0.0
    %4149 = vmatpush1.msra.mxu0 0.0
    %4150 = vmatprep.subr.mxu0 0.0
    %4151 = vmatpush1.msra.mxu0 0.0
    %4152 = vmatprep.subr.mxu0 0.0
    %4153 = vmatpush1.msra.mxu0 0.0
    %4154 = vmatprep.subr.mxu0 0.0
    %4155 = vmatpush1.msra.mxu0 0.0
    %4156 = vmatprep.subr.mxu0 0.0
    %4157 = vmatpush1.msra.mxu0 0.0
    %4158 = vmatprep.subr.mxu0 0.0
    %4159 = vmatpush1.msra.mxu0 0.0
    %4160 = vmatprep.subr.mxu0 0.0
    %4161 = vmatpush1.msra.mxu0 0.0
    %4162 = vmatprep.subr.mxu0 0.0
    %4163 = vmatpush1.msra.mxu0 0.0
    %4164 = vmatprep.subr.mxu0 0.0
    %4165 = vmatpush1.msra.mxu0 0.0
    %4166 = vmatprep.subr.mxu0 0.0
    %4167 = vmatpush1.msra.mxu0 0.0
    %4168 = vmatprep.subr.mxu0 0.0
    %4169 = vmatpush1.msra.mxu0 0.0
    %4170 = vmatprep.subr.mxu0 0.0
    %4171 = vmatpush1.msra.mxu0 0.0
    %4172 = vmatprep.subr.mxu0 0.0
    %4173 = vmatpush1.msra.mxu0 0.0
    %4174 = vmatprep.subr.mxu0 0.0
    %4175 = vmatpush1.msra.mxu0 0.0
    %4176 = vmatprep.subr.mxu0 0.0
    %4177 = vmatpush1.msra.mxu0 0.0
    %4178 = vmatprep.subr.mxu0 0.0
    %4179 = vmatpush1.msra.mxu0 0.0
    %4180 = vmatprep.subr.mxu0 0.0
    %4181 = vmatpush1.msra.mxu0 0.0
    %4182 = vmatprep.subr.mxu0 0.0
    %4183 = vmatpush1.msra.mxu0 0.0
    %4184 = vmatprep.subr.mxu0 0.0
    %4185 = vmatpush1.msra.mxu0 0.0
    %4186 = vmatprep.subr.mxu0 0.0
    %4187 = vmatpush1.msra.mxu0 0.0
    %4188 = vmatprep.subr.mxu0 0.0
    %4189 = vmatpush1.msra.mxu0 0.0
    %4190 = vmatprep.subr.mxu0 0.0
    %4191 = vmatpush1.msra.mxu0 0.0
    %4192 = vmatprep.subr.mxu0 0.0
    %4193 = vmatpush1.msra.mxu0 0.0
    %4194 = vmatprep.subr.mxu0 0.0
    %4195 = vmatpush1.msra.mxu0 0.0
    %4196 = vmatprep.subr.mxu0 0.0
    %4197 = vmatpush1.msra.mxu0 0.0
    %4198 = vmatprep.subr.mxu0 0.0
    %4199 = vmatpush1.msra.mxu0 0.0
    %4200 = vmatprep.subr.mxu0 0.0
    %4201 = vmatpush1.msra.mxu0 0.0
    %4202 = vmatprep.mubr.f32.mxu0 0.0
    %4203 = vmatmul.mubr.f32.gmra.mrb[0].mxu0 %v4133
    %v4204 = vpop.f32.mrb[0].mxu0
    %v4205 = vadd.f32 0.0, %v4204
    %v4206 = vpop.f32.mrb[0].mxu0
    %4207 = vmatprep.mubr.f32.mxu0 0.0
    %4208 = vmatmul.mubr.f32.gmra.mrb[0].mxu0 %v4136
    %v4209 = vpop.f32.mrb[0].mxu0
    %v4210 = vadd.f32 0.0, %v4209
    %v4211 = vpop.f32.mrb[0].mxu0
    %4212 = vdwg.mxu0
    %4215 = vrot.lane.b32.xlu0 %v3953, 32
    %v4216 = vpop.permute.xlu0 %4215
    %4217 = vrot.lane.b32.xlu0 %v3954, 32
    %v4218 = vpop.permute.xlu0 %4217
    %v4221 = vsel %vm294, %v3953, %v4216
    %v4222 = vsel %vm294, %v3954, %v4218
    %4225 = vrot.lane.b32.xlu0 %v3956, 32
    %v4226 = vpop.permute.xlu0 %4225
    %4227 = vrot.lane.b32.xlu0 %v3957, 32
    %v4228 = vpop.permute.xlu0 %4227
    %v4231 = vsel %vm294, %v3956, %v4226
    %v4232 = vsel %vm294, %v3957, %v4228
    %v4233 = vmul.f32 %v4205, %v4221
    %v4234 = vmul.f32 %v4210, %v4222
    %v4235 = vadd.f32 %v4233, %v4231
    %v4236 = vadd.f32 %v4234, %v4232
    %v4237 = vtanh.pop %v4235
    %v4238 = vtanh.pop %v4236
    %s4239 = scalar_lea.vmem %s5, 144
    %v4240 = vld [vmem:[%s4239] sm:$0xff]
    %v4241 = vld [vmem:[%s4239 + $0x8] sm:$0xff]
    %s4242 = scalar_lea.vmem [#allocation4], 288
    %v4243 = vld [vmem:[%s4242] sm:$0xff]
    %v4244 = vld [vmem:[%s4242 + $0x8] sm:$0xff]
    %v4245 = vld [vmem:[%s4242 + $0x10] sm:$0xff]
    %v4246 = vld [vmem:[%s4242 + $0x18] sm:$0xff]
    %s4247 = scalar_lea.vmem [#allocation6], 144
    %v4248 = vld [vmem:[%s4247] sm:$0xff]
    %v4249 = vld [vmem:[%s4247 + $0x8] sm:$0xff]
    %s4250 = scalar_lea.vmem [#allocation7], 144
    %v4251 = vld [vmem:[%s4250] sm:$0xff]
    %v4252 = vld [vmem:[%s4250 + $0x8] sm:$0xff]
    %v4254 = vsel %vm294, %v4237, 0
    %v4257 = vsel %vm294, %v4238, 0
    %4259 = vmatprep.subr.mxu0 0.0
    %4260 = vmatpush1.msra.mxu0 %v4243
    %4261 = vmatprep.subr.mxu0 0.0
    %4262 = vmatpush1.msra.mxu0 %v4244
    %4263 = vmatprep.subr.mxu0 0.0
    %4264 = vmatpush1.msra.mxu0 %v4245
    %4265 = vmatprep.subr.mxu0 0.0
    %4266 = vmatpush1.msra.mxu0 %v4246
    %4267 = vmatprep.subr.mxu0 0.0
    %4268 = vmatpush1.msra.mxu0 0.0
    %4269 = vmatprep.subr.mxu0 0.0
    %4270 = vmatpush1.msra.mxu0 0.0
    %4271 = vmatprep.subr.mxu0 0.0
    %4272 = vmatpush1.msra.mxu0 0.0
    %4273 = vmatprep.subr.mxu0 0.0
    %4274 = vmatpush1.msra.mxu0 0.0
    %4275 = vmatprep.subr.mxu0 0.0
    %4276 = vmatpush1.msra.mxu0 0.0
    %4277 = vmatprep.subr.mxu0 0.0
    %4278 = vmatpush1.msra.mxu0 0.0
    %4279 = vmatprep.subr.mxu0 0.0
    %4280 = vmatpush1.msra.mxu0 0.0
    %4281 = vmatprep.subr.mxu0 0.0
    %4282 = vmatpush1.msra.mxu0 0.0
    %4283 = vmatprep.subr.mxu0 0.0
    %4284 = vmatpush1.msra.mxu0 0.0
    %4285 = vmatprep.subr.mxu0 0.0
    %4286 = vmatpush1.msra.mxu0 0.0
    %4287 = vmatprep.subr.mxu0 0.0
    %4288 = vmatpush1.msra.mxu0 0.0
    %4289 = vmatprep.subr.mxu0 0.0
    %4290 = vmatpush1.msra.mxu0 0.0
    %4291 = vmatprep.subr.mxu0 0.0
    %4292 = vmatpush1.msra.mxu0 0.0
    %4293 = vmatprep.subr.mxu0 0.0
    %4294 = vmatpush1.msra.mxu0 0.0
    %4295 = vmatprep.subr.mxu0 0.0
    %4296 = vmatpush1.msra.mxu0 0.0
    %4297 = vmatprep.subr.mxu0 0.0
    %4298 = vmatpush1.msra.mxu0 0.0
    %4299 = vmatprep.subr.mxu0 0.0
    %4300 = vmatpush1.msra.mxu0 0.0
    %4301 = vmatprep.subr.mxu0 0.0
    %4302 = vmatpush1.msra.mxu0 0.0
    %4303 = vmatprep.subr.mxu0 0.0
    %4304 = vmatpush1.msra.mxu0 0.0
    %4305 = vmatprep.subr.mxu0 0.0
    %4306 = vmatpush1.msra.mxu0 0.0
    %4307 = vmatprep.subr.mxu0 0.0
    %4308 = vmatpush1.msra.mxu0 0.0
    %4309 = vmatprep.subr.mxu0 0.0
    %4310 = vmatpush1.msra.mxu0 0.0
    %4311 = vmatprep.subr.mxu0 0.0
    %4312 = vmatpush1.msra.mxu0 0.0
    %4313 = vmatprep.subr.mxu0 0.0
    %4314 = vmatpush1.msra.mxu0 0.0
    %4315 = vmatprep.subr.mxu0 0.0
    %4316 = vmatpush1.msra.mxu0 0.0
    %4317 = vmatprep.subr.mxu0 0.0
    %4318 = vmatpush1.msra.mxu0 0.0
    %4319 = vmatprep.subr.mxu0 0.0
    %4320 = vmatpush1.msra.mxu0 0.0
    %4321 = vmatprep.subr.mxu0 0.0
    %4322 = vmatpush1.msra.mxu0 0.0
    %4323 = vmatprep.mubr.f32.mxu0 0.0
    %4324 = vmatmul.mubr.f32.gmra.mrb[0].mxu0 %v4254
    %v4325 = vpop.f32.mrb[0].mxu0
    %v4326 = vadd.f32 0.0, %v4325
    %v4327 = vpop.f32.mrb[0].mxu0
    %4328 = vmatprep.mubr.f32.mxu0 0.0
    %4329 = vmatmul.mubr.f32.gmra.mrb[0].mxu0 %v4257
    %v4330 = vpop.f32.mrb[0].mxu0
    %v4331 = vadd.f32 0.0, %v4330
    %v4332 = vpop.f32.mrb[0].mxu0
    %4333 = vdwg.mxu0
    %4334 = vrot.lane.b32.xlu0 %v4237, 96
    %v4335 = vpop.permute.xlu0 %4334
    %4336 = vrot.lane.b32.xlu0 %v4238, 96
    %v4337 = vpop.permute.xlu0 %4336
    %v4338 = vsel %vm294, %v4335, 0
    %v4340 = vsel %vm294, %v4337, 0
    %4342 = vmatprep.subr.mxu0 0.0
    %4343 = vmatpush1.msra.mxu0 %v4243
    %4344 = vmatprep.subr.mxu0 0.0
    %4345 = vmatpush1.msra.mxu0 %v4244
    %4346 = vmatprep.subr.mxu0 0.0
    %4347 = vmatpush1.msra.mxu0 %v4245
    %4348 = vmatprep.subr.mxu0 0.0
    %4349 = vmatpush1.msra.mxu0 %v4246
    %4350 = vmatprep.subr.mxu0 0.0
    %4351 = vmatpush1.msra.mxu0 0.0
    %4352 = vmatprep.subr.mxu0 0.0
    %4353 = vmatpush1.msra.mxu0 0.0
    %4354 = vmatprep.subr.mxu0 0.0
    %4355 = vmatpush1.msra.mxu0 0.0
    %4356 = vmatprep.subr.mxu0 0.0
    %4357 = vmatpush1.msra.mxu0 0.0
    %4358 = vmatprep.subr.mxu0 0.0
    %4359 = vmatpush1.msra.mxu0 0.0
    %4360 = vmatprep.subr.mxu0 0.0
    %4361 = vmatpush1.msra.mxu0 0.0
    %4362 = vmatprep.subr.mxu0 0.0
    %4363 = vmatpush1.msra.mxu0 0.0
    %4364 = vmatprep.subr.mxu0 0.0
    %4365 = vmatpush1.msra.mxu0 0.0
    %4366 = vmatprep.subr.mxu0 0.0
    %4367 = vmatpush1.msra.mxu0 0.0
    %4368 = vmatprep.subr.mxu0 0.0
    %4369 = vmatpush1.msra.mxu0 0.0
    %4370 = vmatprep.subr.mxu0 0.0
    %4371 = vmatpush1.msra.mxu0 0.0
    %4372 = vmatprep.subr.mxu0 0.0
    %4373 = vmatpush1.msra.mxu0 0.0
    %4374 = vmatprep.subr.mxu0 0.0
    %4375 = vmatpush1.msra.mxu0 0.0
    %4376 = vmatprep.subr.mxu0 0.0
    %4377 = vmatpush1.msra.mxu0 0.0
    %4378 = vmatprep.subr.mxu0 0.0
    %4379 = vmatpush1.msra.mxu0 0.0
    %4380 = vmatprep.subr.mxu0 0.0
    %4381 = vmatpush1.msra.mxu0 0.0
    %4382 = vmatprep.subr.mxu0 0.0
    %4383 = vmatpush1.msra.mxu0 0.0
    %4384 = vmatprep.subr.mxu0 0.0
    %4385 = vmatpush1.msra.mxu0 0.0
    %4386 = vmatprep.subr.mxu0 0.0
    %4387 = vmatpush1.msra.mxu0 0.0
    %4388 = vmatprep.subr.mxu0 0.0
    %4389 = vmatpush1.msra.mxu0 0.0
    %4390 = vmatprep.subr.mxu0 0.0
    %4391 = vmatpush1.msra.mxu0 0.0
    %4392 = vmatprep.subr.mxu0 0.0
    %4393 = vmatpush1.msra.mxu0 0.0
    %4394 = vmatprep.subr.mxu0 0.0
    %4395 = vmatpush1.msra.mxu0 0.0
    %4396 = vmatprep.subr.mxu0 0.0
    %4397 = vmatpush1.msra.mxu0 0.0
    %4398 = vmatprep.subr.mxu0 0.0
    %4399 = vmatpush1.msra.mxu0 0.0
    %4400 = vmatprep.subr.mxu0 0.0
    %4401 = vmatpush1.msra.mxu0 0.0
    %4402 = vmatprep.subr.mxu0 0.0
    %4403 = vmatpush1.msra.mxu0 0.0
    %4404 = vmatprep.subr.mxu0 0.0
    %4405 = vmatpush1.msra.mxu0 0.0
    %4406 = vmatprep.mubr.f32.mxu0 0.0
    %4407 = vmatmul.mubr.f32.gmra.mrb[0].mxu0 %v4338
    %v4408 = vpop.f32.mrb[0].mxu0
    %v4409 = vadd.f32 0.0, %v4408
    %v4410 = vpop.f32.mrb[0].mxu0
    %4411 = vmatprep.mubr.f32.mxu0 0.0
    %4412 = vmatmul.mubr.f32.gmra.mrb[0].mxu0 %v4340
    %v4413 = vpop.f32.mrb[0].mxu0
    %v4414 = vadd.f32 0.0, %v4413
    %v4415 = vpop.f32.mrb[0].mxu0
    %4416 = vdwg.mxu0
    %4419 = vrot.lane.b32.xlu0 %v4409, 32
    %v4420 = vpop.permute.xlu0 %4419
    %4421 = vrot.lane.b32.xlu0 %v4414, 32
    %v4422 = vpop.permute.xlu0 %4421
    %v4425 = vsel %vm294, %v4326, %v4420
    %v4426 = vsel %vm294, %v4331, %v4422
    %v4428 = vsel %vm297, %v4240, 0
    %v4431 = vsel %vm297, %v4241, 0
    %4433 = vmatprep.subr.mxu0 0.0
    %4434 = vmatpush1.msra.mxu0 %v4425
    %4435 = vmatprep.subr.mxu0 0.0
    %4436 = vmatpush1.msra.mxu0 %v4426
    %4437 = vmatprep.subr.mxu0 0.0
    %4438 = vmatpush1.msra.mxu0 0.0
    %4439 = vmatprep.subr.mxu0 0.0
    %4440 = vmatpush1.msra.mxu0 0.0
    %4441 = vmatprep.subr.mxu0 0.0
    %4442 = vmatpush1.msra.mxu0 0.0
    %4443 = vmatprep.subr.mxu0 0.0
    %4444 = vmatpush1.msra.mxu0 0.0
    %4445 = vmatprep.subr.mxu0 0.0
    %4446 = vmatpush1.msra.mxu0 0.0
    %4447 = vmatprep.subr.mxu0 0.0
    %4448 = vmatpush1.msra.mxu0 0.0
    %4449 = vmatprep.subr.mxu0 0.0
    %4450 = vmatpush1.msra.mxu0 0.0
    %4451 = vmatprep.subr.mxu0 0.0
    %4452 = vmatpush1.msra.mxu0 0.0
    %4453 = vmatprep.subr.mxu0 0.0
    %4454 = vmatpush1.msra.mxu0 0.0
    %4455 = vmatprep.subr.mxu0 0.0
    %4456 = vmatpush1.msra.mxu0 0.0
    %4457 = vmatprep.subr.mxu0 0.0
    %4458 = vmatpush1.msra.mxu0 0.0
    %4459 = vmatprep.subr.mxu0 0.0
    %4460 = vmatpush1.msra.mxu0 0.0
    %4461 = vmatprep.subr.mxu0 0.0
    %4462 = vmatpush1.msra.mxu0 0.0
    %4463 = vmatprep.subr.mxu0 0.0
    %4464 = vmatpush1.msra.mxu0 0.0
    %4465 = vmatprep.subr.mxu0 0.0
    %4466 = vmatpush1.msra.mxu0 0.0
    %4467 = vmatprep.subr.mxu0 0.0
    %4468 = vmatpush1.msra.mxu0 0.0
    %4469 = vmatprep.subr.mxu0 0.0
    %4470 = vmatpush1.msra.mxu0 0.0
    %4471 = vmatprep.subr.mxu0 0.0
    %4472 = vmatpush1.msra.mxu0 0.0
    %4473 = vmatprep.subr.mxu0 0.0
    %4474 = vmatpush1.msra.mxu0 0.0
    %4475 = vmatprep.subr.mxu0 0.0
    %4476 = vmatpush1.msra.mxu0 0.0
    %4477 = vmatprep.subr.mxu0 0.0
    %4478 = vmatpush1.msra.mxu0 0.0
    %4479 = vmatprep.subr.mxu0 0.0
    %4480 = vmatpush1.msra.mxu0 0.0
    %4481 = vmatprep.subr.mxu0 0.0
    %4482 = vmatpush1.msra.mxu0 0.0
    %4483 = vmatprep.subr.mxu0 0.0
    %4484 = vmatpush1.msra.mxu0 0.0
    %4485 = vmatprep.subr.mxu0 0.0
    %4486 = vmatpush1.msra.mxu0 0.0
    %4487 = vmatprep.subr.mxu0 0.0
    %4488 = vmatpush1.msra.mxu0 0.0
    %4489 = vmatprep.subr.mxu0 0.0
    %4490 = vmatpush1.msra.mxu0 0.0
    %4491 = vmatprep.subr.mxu0 0.0
    %4492 = vmatpush1.msra.mxu0 0.0
    %4493 = vmatprep.subr.mxu0 0.0
    %4494 = vmatpush1.msra.mxu0 0.0
    %4495 = vmatprep.subr.mxu0 0.0
    %4496 = vmatpush1.msra.mxu0 0.0
    %4497 = vmatprep.mubr.f32.mxu0 0.0
    %4498 = vmatmul.mubr.f32.gmra.mrb[0].mxu0 %v4428
    %v4499 = vpop.f32.mrb[0].mxu0
    %v4500 = vadd.f32 0.0, %v4499
    %v4501 = vpop.f32.mrb[0].mxu0
    %4502 = vmatprep.mubr.f32.mxu0 0.0
    %4503 = vmatmul.mubr.f32.gmra.mrb[0].mxu0 %v4431
    %v4504 = vpop.f32.mrb[0].mxu0
    %v4505 = vadd.f32 0.0, %v4504
    %v4506 = vpop.f32.mrb[0].mxu0
    %4507 = vdwg.mxu0
    %4510 = vrot.lane.b32.xlu0 %v4248, 32
    %v4511 = vpop.permute.xlu0 %4510
    %4512 = vrot.lane.b32.xlu0 %v4249, 32
    %v4513 = vpop.permute.xlu0 %4512
    %v4516 = vsel %vm294, %v4248, %v4511
    %v4517 = vsel %vm294, %v4249, %v4513
    %4520 = vrot.lane.b32.xlu0 %v4251, 32
    %v4521 = vpop.permute.xlu0 %4520
    %4522 = vrot.lane.b32.xlu0 %v4252, 32
    %v4523 = vpop.permute.xlu0 %4522
    %v4526 = vsel %vm294, %v4251, %v4521
    %v4527 = vsel %vm294, %v4252, %v4523
    %v4528 = vmul.f32 %v4500, %v4516
    %v4529 = vmul.f32 %v4505, %v4517
    %v4530 = vadd.f32 %v4528, %v4526
    %v4531 = vadd.f32 %v4529, %v4527
    %v4532 = vtanh.pop %v4530
    %v4533 = vtanh.pop %v4531
    %v4534 = vadd.f32 %v3942, %v4532
    %v4535 = vadd.f32 %v3943, %v4533
    %s4536 = scalar_lea.vmem %s5, 160
    %v4537 = vld [vmem:[%s4536] sm:$0xff]
    %v4538 = vld [vmem:[%s4536 + $0x8] sm:$0xff]
    %s4539 = scalar_lea.vmem [#allocation4], 320
    %v4540 = vld [vmem:[%s4539] sm:$0xff]
    %v4541 = vld [vmem:[%s4539 + $0x8] sm:$0xff]
    %v4542 = vld [vmem:[%s4539 + $0x10] sm:$0xff]
    %v4543 = vld [vmem:[%s4539 + $0x18] sm:$0xff]
    %s4544 = scalar_lea.vmem [#allocation6], 160
    %v4545 = vld [vmem:[%s4544] sm:$0xff]
    %v4546 = vld [vmem:[%s4544 + $0x8] sm:$0xff]
    %s4547 = scalar_lea.vmem [#allocation7], 160
    %v4548 = vld [vmem:[%s4547] sm:$0xff]
    %v4549 = vld [vmem:[%s4547 + $0x8] sm:$0xff]
    %v4551 = vsel %vm294, %v4534, 0
    %v4554 = vsel %vm294, %v4535, 0
    %4556 = vmatprep.subr.mxu0 0.0
    %4557 = vmatpush1.msra.mxu0 %v4540
    %4558 = vmatprep.subr.mxu0 0.0
    %4559 = vmatpush1.msra.mxu0 %v4541
    %4560 = vmatprep.subr.mxu0 0.0
    %4561 = vmatpush1.msra.mxu0 %v4542
    %4562 = vmatprep.subr.mxu0 0.0
    %4563 = vmatpush1.msra.mxu0 %v4543
    %4564 = vmatprep.subr.mxu0 0.0
    %4565 = vmatpush1.msra.mxu0 0.0
    %4566 = vmatprep.subr.mxu0 0.0
    %4567 = vmatpush1.msra.mxu0 0.0
    %4568 = vmatprep.subr.mxu0 0.0
    %4569 = vmatpush1.msra.mxu0 0.0
    %4570 = vmatprep.subr.mxu0 0.0
    %4571 = vmatpush1.msra.mxu0 0.0
    %4572 = vmatprep.subr.mxu0 0.0
    %4573 = vmatpush1.msra.mxu0 0.0
    %4574 = vmatprep.subr.mxu0 0.0
    %4575 = vmatpush1.msra.mxu0 0.0
    %4576 = vmatprep.subr.mxu0 0.0
    %4577 = vmatpush1.msra.mxu0 0.0
    %4578 = vmatprep.subr.mxu0 0.0
    %4579 = vmatpush1.msra.mxu0 0.0
    %4580 = vmatprep.subr.mxu0 0.0
    %4581 = vmatpush1.msra.mxu0 0.0
    %4582 = vmatprep.subr.mxu0 0.0
    %4583 = vmatpush1.msra.mxu0 0.0
    %4584 = vmatprep.subr.mxu0 0.0
    %4585 = vmatpush1.msra.mxu0 0.0
    %4586 = vmatprep.subr.mxu0 0.0
    %4587 = vmatpush1.msra.mxu0 0.0
    %4588 = vmatprep.subr.mxu0 0.0
    %4589 = vmatpush1.msra.mxu0 0.0
    %4590 = vmatprep.subr.mxu0 0.0
    %4591 = vmatpush1.msra.mxu0 0.0
    %4592 = vmatprep.subr.mxu0 0.0
    %4593 = vmatpush1.msra.mxu0 0.0
    %4594 = vmatprep.subr.mxu0 0.0
    %4595 = vmatpush1.msra.mxu0 0.0
    %4596 = vmatprep.subr.mxu0 0.0
    %4597 = vmatpush1.msra.mxu0 0.0
    %4598 = vmatprep.subr.mxu0 0.0
    %4599 = vmatpush1.msra.mxu0 0.0
    %4600 = vmatprep.subr.mxu0 0.0
    %4601 = vmatpush1.msra.mxu0 0.0
    %4602 = vmatprep.subr.mxu0 0.0
    %4603 = vmatpush1.msra.mxu0 0.0
    %4604 = vmatprep.subr.mxu0 0.0
    %4605 = vmatpush1.msra.mxu0 0.0
    %4606 = vmatprep.subr.mxu0 0.0
    %4607 = vmatpush1.msra.mxu0 0.0
    %4608 = vmatprep.subr.mxu0 0.0
    %4609 = vmatpush1.msra.mxu0 0.0
    %4610 = vmatprep.subr.mxu0 0.0
    %4611 = vmatpush1.msra.mxu0 0.0
    %4612 = vmatprep.subr.mxu0 0.0
    %4613 = vmatpush1.msra.mxu0 0.0
    %4614 = vmatprep.subr.mxu0 0.0
    %4615 = vmatpush1.msra.mxu0 0.0
    %4616 = vmatprep.subr.mxu0 0.0
    %4617 = vmatpush1.msra.mxu0 0.0
    %4618 = vmatprep.subr.mxu0 0.0
    %4619 = vmatpush1.msra.mxu0 0.0
    %4620 = vmatprep.mubr.f32.mxu0 0.0
    %4621 = vmatmul.mubr.f32.gmra.mrb[0].mxu0 %v4551
    %v4622 = vpop.f32.mrb[0].mxu0
    %v4623 = vadd.f32 0.0, %v4622
    %v4624 = vpop.f32.mrb[0].mxu0
    %4625 = vmatprep.mubr.f32.mxu0 0.0
    %4626 = vmatmul.mubr.f32.gmra.mrb[0].mxu0 %v4554
    %v4627 = vpop.f32.mrb[0].mxu0
    %v4628 = vadd.f32 0.0, %v4627
    %v4629 = vpop.f32.mrb[0].mxu0
    %4630 = vdwg.mxu0
    %4631 = vrot.lane.b32.xlu0 %v4534, 96
    %v4632 = vpop.permute.xlu0 %4631
    %4633 = vrot.lane.b32.xlu0 %v4535, 96
    %v4634 = vpop.permute.xlu0 %4633
    %v4635 = vsel %vm294, %v4632, 0
    %v4637 = vsel %vm294, %v4634, 0
    %4639 = vmatprep.subr.mxu0 0.0
    %4640 = vmatpush1.msra.mxu0 %v4540
    %4641 = vmatprep.subr.mxu0 0.0
    %4642 = vmatpush1.msra.mxu0 %v4541
    %4643 = vmatprep.subr.mxu0 0.0
    %4644 = vmatpush1.msra.mxu0 %v4542
    %4645 = vmatprep.subr.mxu0 0.0
    %4646 = vmatpush1.msra.mxu0 %v4543
    %4647 = vmatprep.subr.mxu0 0.0
    %4648 = vmatpush1.msra.mxu0 0.0
    %4649 = vmatprep.subr.mxu0 0.0
    %4650 = vmatpush1.msra.mxu0 0.0
    %4651 = vmatprep.subr.mxu0 0.0
    %4652 = vmatpush1.msra.mxu0 0.0
    %4653 = vmatprep.subr.mxu0 0.0
    %4654 = vmatpush1.msra.mxu0 0.0
    %4655 = vmatprep.subr.mxu0 0.0
    %4656 = vmatpush1.msra.mxu0 0.0
    %4657 = vmatprep.subr.mxu0 0.0
    %4658 = vmatpush1.msra.mxu0 0.0
    %4659 = vmatprep.subr.mxu0 0.0
    %4660 = vmatpush1.msra.mxu0 0.0
    %4661 = vmatprep.subr.mxu0 0.0
    %4662 = vmatpush1.msra.mxu0 0.0
    %4663 = vmatprep.subr.mxu0 0.0
    %4664 = vmatpush1.msra.mxu0 0.0
    %4665 = vmatprep.subr.mxu0 0.0
    %4666 = vmatpush1.msra.mxu0 0.0
    %4667 = vmatprep.subr.mxu0 0.0
    %4668 = vmatpush1.msra.mxu0 0.0
    %4669 = vmatprep.subr.mxu0 0.0
    %4670 = vmatpush1.msra.mxu0 0.0
    %4671 = vmatprep.subr.mxu0 0.0
    %4672 = vmatpush1.msra.mxu0 0.0
    %4673 = vmatprep.subr.mxu0 0.0
    %4674 = vmatpush1.msra.mxu0 0.0
    %4675 = vmatprep.subr.mxu0 0.0
    %4676 = vmatpush1.msra.mxu0 0.0
    %4677 = vmatprep.subr.mxu0 0.0
    %4678 = vmatpush1.msra.mxu0 0.0
    %4679 = vmatprep.subr.mxu0 0.0
    %4680 = vmatpush1.msra.mxu0 0.0
    %4681 = vmatprep.subr.mxu0 0.0
    %4682 = vmatpush1.msra.mxu0 0.0
    %4683 = vmatprep.subr.mxu0 0.0
    %4684 = vmatpush1.msra.mxu0 0.0
    %4685 = vmatprep.subr.mxu0 0.0
    %4686 = vmatpush1.msra.mxu0 0.0
    %4687 = vmatprep.subr.mxu0 0.0
    %4688 = vmatpush1.msra.mxu0 0.0
    %4689 = vmatprep.subr.mxu0 0.0
    %4690 = vmatpush1.msra.mxu0 0.0
    %4691 = vmatprep.subr.mxu0 0.0
    %4692 = vmatpush1.msra.mxu0 0.0
    %4693 = vmatprep.subr.mxu0 0.0
    %4694 = vmatpush1.msra.mxu0 0.0
    %4695 = vmatprep.subr.mxu0 0.0
    %4696 = vmatpush1.msra.mxu0 0.0
    %4697 = vmatprep.subr.mxu0 0.0
    %4698 = vmatpush1.msra.mxu0 0.0
    %4699 = vmatprep.subr.mxu0 0.0
    %4700 = vmatpush1.msra.mxu0 0.0
    %4701 = vmatprep.subr.mxu0 0.0
    %4702 = vmatpush1.msra.mxu0 0.0
    %4703 = vmatprep.mubr.f32.mxu0 0.0
    %4704 = vmatmul.mubr.f32.gmra.mrb[0].mxu0 %v4635
    %v4705 = vpop.f32.mrb[0].mxu0
    %v4706 = vadd.f32 0.0, %v4705
    %v4707 = vpop.f32.mrb[0].mxu0
    %4708 = vmatprep.mubr.f32.mxu0 0.0
    %4709 = vmatmul.mubr.f32.gmra.mrb[0].mxu0 %v4637
    %v4710 = vpop.f32.mrb[0].mxu0
    %v4711 = vadd.f32 0.0, %v4710
    %v4712 = vpop.f32.mrb[0].mxu0
    %4713 = vdwg.mxu0
    %4716 = vrot.lane.b32.xlu0 %v4706, 32
    %v4717 = vpop.permute.xlu0 %4716
    %4718 = vrot.lane.b32.xlu0 %v4711, 32
    %v4719 = vpop.permute.xlu0 %4718
    %v4722 = vsel %vm294, %v4623, %v4717
    %v4723 = vsel %vm294, %v4628, %v4719
    %v4725 = vsel %vm297, %v4537, 0
    %v4728 = vsel %vm297, %v4538, 0
    %4730 = vmatprep.subr.mxu0 0.0
    %4731 = vmatpush1.msra.mxu0 %v4722
    %4732 = vmatprep.subr.mxu0 0.0
    %4733 = vmatpush1.msra.mxu0 %v4723
    %4734 = vmatprep.subr.mxu0 0.0
    %4735 = vmatpush1.msra.mxu0 0.0
    %4736 = vmatprep.subr.mxu0 0.0
    %4737 = vmatpush1.msra.mxu0 0.0
    %4738 = vmatprep.subr.mxu0 0.0
    %4739 = vmatpush1.msra.mxu0 0.0
    %4740 = vmatprep.subr.mxu0 0.0
    %4741 = vmatpush1.msra.mxu0 0.0
    %4742 = vmatprep.subr.mxu0 0.0
    %4743 = vmatpush1.msra.mxu0 0.0
    %4744 = vmatprep.subr.mxu0 0.0
    %4745 = vmatpush1.msra.mxu0 0.0
    %4746 = vmatprep.subr.mxu0 0.0
    %4747 = vmatpush1.msra.mxu0 0.0
    %4748 = vmatprep.subr.mxu0 0.0
    %4749 = vmatpush1.msra.mxu0 0.0
    %4750 = vmatprep.subr.mxu0 0.0
    %4751 = vmatpush1.msra.mxu0 0.0
    %4752 = vmatprep.subr.mxu0 0.0
    %4753 = vmatpush1.msra.mxu0 0.0
    %4754 = vmatprep.subr.mxu0 0.0
    %4755 = vmatpush1.msra.mxu0 0.0
    %4756 = vmatprep.subr.mxu0 0.0
    %4757 = vmatpush1.msra.mxu0 0.0
    %4758 = vmatprep.subr.mxu0 0.0
    %4759 = vmatpush1.msra.mxu0 0.0
    %4760 = vmatprep.subr.mxu0 0.0
    %4761 = vmatpush1.msra.mxu0 0.0
    %4762 = vmatprep.subr.mxu0 0.0
    %4763 = vmatpush1.msra.mxu0 0.0
    %4764 = vmatprep.subr.mxu0 0.0
    %4765 = vmatpush1.msra.mxu0 0.0
    %4766 = vmatprep.subr.mxu0 0.0
    %4767 = vmatpush1.msra.mxu0 0.0
    %4768 = vmatprep.subr.mxu0 0.0
    %4769 = vmatpush1.msra.mxu0 0.0
    %4770 = vmatprep.subr.mxu0 0.0
    %4771 = vmatpush1.msra.mxu0 0.0
    %4772 = vmatprep.subr.mxu0 0.0
    %4773 = vmatpush1.msra.mxu0 0.0
    %4774 = vmatprep.subr.mxu0 0.0
    %4775 = vmatpush1.msra.mxu0 0.0
    %4776 = vmatprep.subr.mxu0 0.0
    %4777 = vmatpush1.msra.mxu0 0.0
    %4778 = vmatprep.subr.mxu0 0.0
    %4779 = vmatpush1.msra.mxu0 0.0
    %4780 = vmatprep.subr.mxu0 0.0
    %4781 = vmatpush1.msra.mxu0 0.0
    %4782 = vmatprep.subr.mxu0 0.0
    %4783 = vmatpush1.msra.mxu0 0.0
    %4784 = vmatprep.subr.mxu0 0.0
    %4785 = vmatpush1.msra.mxu0 0.0
    %4786 = vmatprep.subr.mxu0 0.0
    %4787 = vmatpush1.msra.mxu0 0.0
    %4788 = vmatprep.subr.mxu0 0.0
    %4789 = vmatpush1.msra.mxu0 0.0
    %4790 = vmatprep.subr.mxu0 0.0
    %4791 = vmatpush1.msra.mxu0 0.0
    %4792 = vmatprep.subr.mxu0 0.0
    %4793 = vmatpush1.msra.mxu0 0.0
    %4794 = vmatprep.mubr.f32.mxu0 0.0
    %4795 = vmatmul.mubr.f32.gmra.mrb[0].mxu0 %v4725
    %v4796 = vpop.f32.mrb[0].mxu0
    %v4797 = vadd.f32 0.0, %v4796
    %v4798 = vpop.f32.mrb[0].mxu0
    %4799 = vmatprep.mubr.f32.mxu0 0.0
    %4800 = vmatmul.mubr.f32.gmra.mrb[0].mxu0 %v4728
    %v4801 = vpop.f32.mrb[0].mxu0
    %v4802 = vadd.f32 0.0, %v4801
    %v4803 = vpop.f32.mrb[0].mxu0
    %4804 = vdwg.mxu0
    %4807 = vrot.lane.b32.xlu0 %v4545, 32
    %v4808 = vpop.permute.xlu0 %4807
    %4809 = vrot.lane.b32.xlu0 %v4546, 32
    %v4810 = vpop.permute.xlu0 %4809
    %v4813 = vsel %vm294, %v4545, %v4808
    %v4814 = vsel %vm294, %v4546, %v4810
    %4817 = vrot.lane.b32.xlu0 %v4548, 32
    %v4818 = vpop.permute.xlu0 %4817
    %4819 = vrot.lane.b32.xlu0 %v4549, 32
    %v4820 = vpop.permute.xlu0 %4819
    %v4823 = vsel %vm294, %v4548, %v4818
    %v4824 = vsel %vm294, %v4549, %v4820
    %v4825 = vmul.f32 %v4797, %v4813
    %v4826 = vmul.f32 %v4802, %v4814
    %v4827 = vadd.f32 %v4825, %v4823
    %v4828 = vadd.f32 %v4826, %v4824
    %v4829 = vtanh.pop %v4827
    %v4830 = vtanh.pop %v4828
    %s4831 = scalar_lea.vmem %s5, 176
    %v4832 = vld [vmem:[%s4831] sm:$0xff]
    %v4833 = vld [vmem:[%s4831 + $0x8] sm:$0xff]
    %s4834 = scalar_lea.vmem [#allocation4], 352
    %v4835 = vld [vmem:[%s4834] sm:$0xff]
    %v4836 = vld [vmem:[%s4834 + $0x8] sm:$0xff]
    %v4837 = vld [vmem:[%s4834 + $0x10] sm:$0xff]
    %v4838 = vld [vmem:[%s4834 + $0x18] sm:$0xff]
    %s4839 = scalar_lea.vmem [#allocation6], 176
    %v4840 = vld [vmem:[%s4839] sm:$0xff]
    %v4841 = vld [vmem:[%s4839 + $0x8] sm:$0xff]
    %s4842 = scalar_lea.vmem [#allocation7], 176
    %v4843 = vld [vmem:[%s4842] sm:$0xff]
    %v4844 = vld [vmem:[%s4842 + $0x8] sm:$0xff]
    %v4846 = vsel %vm294, %v4829, 0
    %v4849 = vsel %vm294, %v4830, 0
    %4851 = vmatprep.subr.mxu0 0.0
    %4852 = vmatpush1.msra.mxu0 %v4835
    %4853 = vmatprep.subr.mxu0 0.0
    %4854 = vmatpush1.msra.mxu0 %v4836
    %4855 = vmatprep.subr.mxu0 0.0
    %4856 = vmatpush1.msra.mxu0 %v4837
    %4857 = vmatprep.subr.mxu0 0.0
    %4858 = vmatpush1.msra.mxu0 %v4838
    %4859 = vmatprep.subr.mxu0 0.0
    %4860 = vmatpush1.msra.mxu0 0.0
    %4861 = vmatprep.subr.mxu0 0.0
    %4862 = vmatpush1.msra.mxu0 0.0
    %4863 = vmatprep.subr.mxu0 0.0
    %4864 = vmatpush1.msra.mxu0 0.0
    %4865 = vmatprep.subr.mxu0 0.0
    %4866 = vmatpush1.msra.mxu0 0.0
    %4867 = vmatprep.subr.mxu0 0.0
    %4868 = vmatpush1.msra.mxu0 0.0
    %4869 = vmatprep.subr.mxu0 0.0
    %4870 = vmatpush1.msra.mxu0 0.0
    %4871 = vmatprep.subr.mxu0 0.0
    %4872 = vmatpush1.msra.mxu0 0.0
    %4873 = vmatprep.subr.mxu0 0.0
    %4874 = vmatpush1.msra.mxu0 0.0
    %4875 = vmatprep.subr.mxu0 0.0
    %4876 = vmatpush1.msra.mxu0 0.0
    %4877 = vmatprep.subr.mxu0 0.0
    %4878 = vmatpush1.msra.mxu0 0.0
    %4879 = vmatprep.subr.mxu0 0.0
    %4880 = vmatpush1.msra.mxu0 0.0
    %4881 = vmatprep.subr.mxu0 0.0
    %4882 = vmatpush1.msra.mxu0 0.0
    %4883 = vmatprep.subr.mxu0 0.0
    %4884 = vmatpush1.msra.mxu0 0.0
    %4885 = vmatprep.subr.mxu0 0.0
    %4886 = vmatpush1.msra.mxu0 0.0
    %4887 = vmatprep.subr.mxu0 0.0
    %4888 = vmatpush1.msra.mxu0 0.0
    %4889 = vmatprep.subr.mxu0 0.0
    %4890 = vmatpush1.msra.mxu0 0.0
    %4891 = vmatprep.subr.mxu0 0.0
    %4892 = vmatpush1.msra.mxu0 0.0
    %4893 = vmatprep.subr.mxu0 0.0
    %4894 = vmatpush1.msra.mxu0 0.0
    %4895 = vmatprep.subr.mxu0 0.0
    %4896 = vmatpush1.msra.mxu0 0.0
    %4897 = vmatprep.subr.mxu0 0.0
    %4898 = vmatpush1.msra.mxu0 0.0
    %4899 = vmatprep.subr.mxu0 0.0
    %4900 = vmatpush1.msra.mxu0 0.0
    %4901 = vmatprep.subr.mxu0 0.0
    %4902 = vmatpush1.msra.mxu0 0.0
    %4903 = vmatprep.subr.mxu0 0.0
    %4904 = vmatpush1.msra.mxu0 0.0
    %4905 = vmatprep.subr.mxu0 0.0
    %4906 = vmatpush1.msra.mxu0 0.0
    %4907 = vmatprep.subr.mxu0 0.0
    %4908 = vmatpush1.msra.mxu0 0.0
    %4909 = vmatprep.subr.mxu0 0.0
    %4910 = vmatpush1.msra.mxu0 0.0
    %4911 = vmatprep.subr.mxu0 0.0
    %4912 = vmatpush1.msra.mxu0 0.0
    %4913 = vmatprep.subr.mxu0 0.0
    %4914 = vmatpush1.msra.mxu0 0.0
    %4915 = vmatprep.mubr.f32.mxu0 0.0
    %4916 = vmatmul.mubr.f32.gmra.mrb[0].mxu0 %v4846
    %v4917 = vpop.f32.mrb[0].mxu0
    %v4918 = vadd.f32 0.0, %v4917
    %v4919 = vpop.f32.mrb[0].mxu0
    %4920 = vmatprep.mubr.f32.mxu0 0.0
    %4921 = vmatmul.mubr.f32.gmra.mrb[0].mxu0 %v4849
    %v4922 = vpop.f32.mrb[0].mxu0
    %v4923 = vadd.f32 0.0, %v4922
    %v4924 = vpop.f32.mrb[0].mxu0
    %4925 = vdwg.mxu0
    %4926 = vrot.lane.b32.xlu0 %v4829, 96
    %v4927 = vpop.permute.xlu0 %4926
    %4928 = vrot.lane.b32.xlu0 %v4830, 96
    %v4929 = vpop.permute.xlu0 %4928
    %v4930 = vsel %vm294, %v4927, 0
    %v4932 = vsel %vm294, %v4929, 0
    %4934 = vmatprep.subr.mxu0 0.0
    %4935 = vmatpush1.msra.mxu0 %v4835
    %4936 = vmatprep.subr.mxu0 0.0
    %4937 = vmatpush1.msra.mxu0 %v4836
    %4938 = vmatprep.subr.mxu0 0.0
    %4939 = vmatpush1.msra.mxu0 %v4837
    %4940 = vmatprep.subr.mxu0 0.0
    %4941 = vmatpush1.msra.mxu0 %v4838
    %4942 = vmatprep.subr.mxu0 0.0
    %4943 = vmatpush1.msra.mxu0 0.0
    %4944 = vmatprep.subr.mxu0 0.0
    %4945 = vmatpush1.msra.mxu0 0.0
    %4946 = vmatprep.subr.mxu0 0.0
    %4947 = vmatpush1.msra.mxu0 0.0
    %4948 = vmatprep.subr.mxu0 0.0
    %4949 = vmatpush1.msra.mxu0 0.0
    %4950 = vmatprep.subr.mxu0 0.0
    %4951 = vmatpush1.msra.mxu0 0.0
    %4952 = vmatprep.subr.mxu0 0.0
    %4953 = vmatpush1.msra.mxu0 0.0
    %4954 = vmatprep.subr.mxu0 0.0
    %4955 = vmatpush1.msra.mxu0 0.0
    %4956 = vmatprep.subr.mxu0 0.0
    %4957 = vmatpush1.msra.mxu0 0.0
    %4958 = vmatprep.subr.mxu0 0.0
    %4959 = vmatpush1.msra.mxu0 0.0
    %4960 = vmatprep.subr.mxu0 0.0
    %4961 = vmatpush1.msra.mxu0 0.0
    %4962 = vmatprep.subr.mxu0 0.0
    %4963 = vmatpush1.msra.mxu0 0.0
    %4964 = vmatprep.subr.mxu0 0.0
    %4965 = vmatpush1.msra.mxu0 0.0
    %4966 = vmatprep.subr.mxu0 0.0
    %4967 = vmatpush1.msra.mxu0 0.0
    %4968 = vmatprep.subr.mxu0 0.0
    %4969 = vmatpush1.msra.mxu0 0.0
    %4970 = vmatprep.subr.mxu0 0.0
    %4971 = vmatpush1.msra.mxu0 0.0
    %4972 = vmatprep.subr.mxu0 0.0
    %4973 = vmatpush1.msra.mxu0 0.0
    %4974 = vmatprep.subr.mxu0 0.0
    %4975 = vmatpush1.msra.mxu0 0.0
    %4976 = vmatprep.subr.mxu0 0.0
    %4977 = vmatpush1.msra.mxu0 0.0
    %4978 = vmatprep.subr.mxu0 0.0
    %4979 = vmatpush1.msra.mxu0 0.0
    %4980 = vmatprep.subr.mxu0 0.0
    %4981 = vmatpush1.msra.mxu0 0.0
    %4982 = vmatprep.subr.mxu0 0.0
    %4983 = vmatpush1.msra.mxu0 0.0
    %4984 = vmatprep.subr.mxu0 0.0
    %4985 = vmatpush1.msra.mxu0 0.0
    %4986 = vmatprep.subr.mxu0 0.0
    %4987 = vmatpush1.msra.mxu0 0.0
    %4988 = vmatprep.subr.mxu0 0.0
    %4989 = vmatpush1.msra.mxu0 0.0
    %4990 = vmatprep.subr.mxu0 0.0
    %4991 = vmatpush1.msra.mxu0 0.0
    %4992 = vmatprep.subr.mxu0 0.0
    %4993 = vmatpush1.msra.mxu0 0.0
    %4994 = vmatprep.subr.mxu0 0.0
    %4995 = vmatpush1.msra.mxu0 0.0
    %4996 = vmatprep.subr.mxu0 0.0
    %4997 = vmatpush1.msra.mxu0 0.0
    %4998 = vmatprep.mubr.f32.mxu0 0.0
    %4999 = vmatmul.mubr.f32.gmra.mrb[0].mxu0 %v4930
    %v5000 = vpop.f32.mrb[0].mxu0
    %v5001 = vadd.f32 0.0, %v5000
    %v5002 = vpop.f32.mrb[0].mxu0
    %5003 = vmatprep.mubr.f32.mxu0 0.0
    %5004 = vmatmul.mubr.f32.gmra.mrb[0].mxu0 %v4932
    %v5005 = vpop.f32.mrb[0].mxu0
    %v5006 = vadd.f32 0.0, %v5005
    %v5007 = vpop.f32.mrb[0].mxu0
    %5008 = vdwg.mxu0
    %5011 = vrot.lane.b32.xlu0 %v5001, 32
    %v5012 = vpop.permute.xlu0 %5011
    %5013 = vrot.lane.b32.xlu0 %v5006, 32
    %v5014 = vpop.permute.xlu0 %5013
    %v5017 = vsel %vm294, %v4918, %v5012
    %v5018 = vsel %vm294, %v4923, %v5014
    %v5020 = vsel %vm297, %v4832, 0
    %v5023 = vsel %vm297, %v4833, 0
    %5025 = vmatprep.subr.mxu0 0.0
    %5026 = vmatpush1.msra.mxu0 %v5017
    %5027 = vmatprep.subr.mxu0 0.0
    %5028 = vmatpush1.msra.mxu0 %v5018
    %5029 = vmatprep.subr.mxu0 0.0
    %5030 = vmatpush1.msra.mxu0 0.0
    %5031 = vmatprep.subr.mxu0 0.0
    %5032 = vmatpush1.msra.mxu0 0.0
    %5033 = vmatprep.subr.mxu0 0.0
    %5034 = vmatpush1.msra.mxu0 0.0
    %5035 = vmatprep.subr.mxu0 0.0
    %5036 = vmatpush1.msra.mxu0 0.0
    %5037 = vmatprep.subr.mxu0 0.0
    %5038 = vmatpush1.msra.mxu0 0.0
    %5039 = vmatprep.subr.mxu0 0.0
    %5040 = vmatpush1.msra.mxu0 0.0
    %5041 = vmatprep.subr.mxu0 0.0
    %5042 = vmatpush1.msra.mxu0 0.0
    %5043 = vmatprep.subr.mxu0 0.0
    %5044 = vmatpush1.msra.mxu0 0.0
    %5045 = vmatprep.subr.mxu0 0.0
    %5046 = vmatpush1.msra.mxu0 0.0
    %5047 = vmatprep.subr.mxu0 0.0
    %5048 = vmatpush1.msra.mxu0 0.0
    %5049 = vmatprep.subr.mxu0 0.0
    %5050 = vmatpush1.msra.mxu0 0.0
    %5051 = vmatprep.subr.mxu0 0.0
    %5052 = vmatpush1.msra.mxu0 0.0
    %5053 = vmatprep.subr.mxu0 0.0
    %5054 = vmatpush1.msra.mxu0 0.0
    %5055 = vmatprep.subr.mxu0 0.0
    %5056 = vmatpush1.msra.mxu0 0.0
    %5057 = vmatprep.subr.mxu0 0.0
    %5058 = vmatpush1.msra.mxu0 0.0
    %5059 = vmatprep.subr.mxu0 0.0
    %5060 = vmatpush1.msra.mxu0 0.0
    %5061 = vmatprep.subr.mxu0 0.0
    %5062 = vmatpush1.msra.mxu0 0.0
    %5063 = vmatprep.subr.mxu0 0.0
    %5064 = vmatpush1.msra.mxu0 0.0
    %5065 = vmatprep.subr.mxu0 0.0
    %5066 = vmatpush1.msra.mxu0 0.0
    %5067 = vmatprep.subr.mxu0 0.0
    %5068 = vmatpush1.msra.mxu0 0.0
    %5069 = vmatprep.subr.mxu0 0.0
    %5070 = vmatpush1.msra.mxu0 0.0
    %5071 = vmatprep.subr.mxu0 0.0
    %5072 = vmatpush1.msra.mxu0 0.0
    %5073 = vmatprep.subr.mxu0 0.0
    %5074 = vmatpush1.msra.mxu0 0.0
    %5075 = vmatprep.subr.mxu0 0.0
    %5076 = vmatpush1.msra.mxu0 0.0
    %5077 = vmatprep.subr.mxu0 0.0
    %5078 = vmatpush1.msra.mxu0 0.0
    %5079 = vmatprep.subr.mxu0 0.0
    %5080 = vmatpush1.msra.mxu0 0.0
    %5081 = vmatprep.subr.mxu0 0.0
    %5082 = vmatpush1.msra.mxu0 0.0
    %5083 = vmatprep.subr.mxu0 0.0
    %5084 = vmatpush1.msra.mxu0 0.0
    %5085 = vmatprep.subr.mxu0 0.0
    %5086 = vmatpush1.msra.mxu0 0.0
    %5087 = vmatprep.subr.mxu0 0.0
    %5088 = vmatpush1.msra.mxu0 0.0
    %5089 = vmatprep.mubr.f32.mxu0 0.0
    %5090 = vmatmul.mubr.f32.gmra.mrb[0].mxu0 %v5020
    %v5091 = vpop.f32.mrb[0].mxu0
    %v5092 = vadd.f32 0.0, %v5091
    %v5093 = vpop.f32.mrb[0].mxu0
    %5094 = vmatprep.mubr.f32.mxu0 0.0
    %5095 = vmatmul.mubr.f32.gmra.mrb[0].mxu0 %v5023
    %v5096 = vpop.f32.mrb[0].mxu0
    %v5097 = vadd.f32 0.0, %v5096
    %v5098 = vpop.f32.mrb[0].mxu0
    %5099 = vdwg.mxu0
    %5102 = vrot.lane.b32.xlu0 %v4840, 32
    %v5103 = vpop.permute.xlu0 %5102
    %5104 = vrot.lane.b32.xlu0 %v4841, 32
    %v5105 = vpop.permute.xlu0 %5104
    %v5108 = vsel %vm294, %v4840, %v5103
    %v5109 = vsel %vm294, %v4841, %v5105
    %5112 = vrot.lane.b32.xlu0 %v4843, 32
    %v5113 = vpop.permute.xlu0 %5112
    %5114 = vrot.lane.b32.xlu0 %v4844, 32
    %v5115 = vpop.permute.xlu0 %5114
    %v5118 = vsel %vm294, %v4843, %v5113
    %v5119 = vsel %vm294, %v4844, %v5115
    %v5120 = vmul.f32 %v5092, %v5108
    %v5121 = vmul.f32 %v5097, %v5109
    %v5122 = vadd.f32 %v5120, %v5118
    %v5123 = vadd.f32 %v5121, %v5119
    %v5124 = vtanh.pop %v5122
    %v5125 = vtanh.pop %v5123
    %v5126 = vadd.f32 %v4534, %v5124
    %v5127 = vadd.f32 %v4535, %v5125
    %s5128 = scalar_lea.vmem [#allocation9], 32
    %v5129 = vld [vmem:[%s5128] sm:$0xff]
    %v5130 = vld [vmem:[%s5128 + $0x8] sm:$0xff]
    %s5131 = scalar_lea.vmem %s10, 64
    %v5132 = vld [vmem:[%s5131] sm:$0xff]
    %v5133 = vld [vmem:[%s5131 + $0x8] sm:$0xff]
    %v5134 = vld [vmem:[%s5131 + $0x10] sm:$0xff]
    %v5135 = vld [vmem:[%s5131 + $0x18] sm:$0xff]
    %s5136 = scalar_lea.vmem %s11, 32
    %v5137 = vld [vmem:[%s5136] sm:$0xff]
    %v5138 = vld [vmem:[%s5136 + $0x8] sm:$0xff]
    %s5139 = scalar_lea.vmem %s12, 32
    %v5140 = vld [vmem:[%s5139] sm:$0xff]
    %v5141 = vld [vmem:[%s5139 + $0x8] sm:$0xff]
    %v5143 = vsel %vm294, %v5126, 0
    %v5146 = vsel %vm294, %v5127, 0
    %5148 = vmatprep.subr.mxu0 0.0
    %5149 = vmatpush1.msra.mxu0 %v5132
    %5150 = vmatprep.subr.mxu0 0.0
    %5151 = vmatpush1.msra.mxu0 %v5133
    %5152 = vmatprep.subr.mxu0 0.0
    %5153 = vmatpush1.msra.mxu0 %v5134
    %5154 = vmatprep.subr.mxu0 0.0
    %5155 = vmatpush1.msra.mxu0 %v5135
    %5156 = vmatprep.subr.mxu0 0.0
    %5157 = vmatpush1.msra.mxu0 0.0
    %5158 = vmatprep.subr.mxu0 0.0
    %5159 = vmatpush1.msra.mxu0 0.0
    %5160 = vmatprep.subr.mxu0 0.0
    %5161 = vmatpush1.msra.mxu0 0.0
    %5162 = vmatprep.subr.mxu0 0.0
    %5163 = vmatpush1.msra.mxu0 0.0
    %5164 = vmatprep.subr.mxu0 0.0
    %5165 = vmatpush1.msra.mxu0 0.0
    %5166 = vmatprep.subr.mxu0 0.0
    %5167 = vmatpush1.msra.mxu0 0.0
    %5168 = vmatprep.subr.mxu0 0.0
    %5169 = vmatpush1.msra.mxu0 0.0
    %5170 = vmatprep.subr.mxu0 0.0
    %5171 = vmatpush1.msra.mxu0 0.0
    %5172 = vmatprep.subr.mxu0 0.0
    %5173 = vmatpush1.msra.mxu0 0.0
    %5174 = vmatprep.subr.mxu0 0.0
    %5175 = vmatpush1.msra.mxu0 0.0
    %5176 = vmatprep.subr.mxu0 0.0
    %5177 = vmatpush1.msra.mxu0 0.0
    %5178 = vmatprep.subr.mxu0 0.0
    %5179 = vmatpush1.msra.mxu0 0.0
    %5180 = vmatprep.subr.mxu0 0.0
    %5181 = vmatpush1.msra.mxu0 0.0
    %5182 = vmatprep.subr.mxu0 0.0
    %5183 = vmatpush1.msra.mxu0 0.0
    %5184 = vmatprep.subr.mxu0 0.0
    %5185 = vmatpush1.msra.mxu0 0.0
    %5186 = vmatprep.subr.mxu0 0.0
    %5187 = vmatpush1.msra.mxu0 0.0
    %5188 = vmatprep.subr.mxu0 0.0
    %5189 = vmatpush1.msra.mxu0 0.0
    %5190 = vmatprep.subr.mxu0 0.0
    %5191 = vmatpush1.msra.mxu0 0.0
    %5192 = vmatprep.subr.mxu0 0.0
    %5193 = vmatpush1.msra.mxu0 0.0
    %5194 = vmatprep.subr.mxu0 0.0
    %5195 = vmatpush1.msra.mxu0 0.0
    %5196 = vmatprep.subr.mxu0 0.0
    %5197 = vmatpush1.msra.mxu0 0.0
    %5198 = vmatprep.subr.mxu0 0.0
    %5199 = vmatpush1.msra.mxu0 0.0
    %5200 = vmatprep.subr.mxu0 0.0
    %5201 = vmatpush1.msra.mxu0 0.0
    %5202 = vmatprep.subr.mxu0 0.0
    %5203 = vmatpush1.msra.mxu0 0.0
    %5204 = vmatprep.subr.mxu0 0.0
    %5205 = vmatpush1.msra.mxu0 0.0
    %5206 = vmatprep.subr.mxu0 0.0
    %5207 = vmatpush1.msra.mxu0 0.0
    %5208 = vmatprep.subr.mxu0 0.0
    %5209 = vmatpush1.msra.mxu0 0.0
    %5210 = vmatprep.subr.mxu0 0.0
    %5211 = vmatpush1.msra.mxu0 0.0
    %5212 = vmatprep.mubr.f32.mxu0 0.0
    %5213 = vmatmul.mubr.f32.gmra.mrb[0].mxu0 %v5143
    %v5214 = vpop.f32.mrb[0].mxu0
    %v5215 = vadd.f32 0.0, %v5214
    %v5216 = vpop.f32.mrb[0].mxu0
    %5217 = vmatprep.mubr.f32.mxu0 0.0
    %5218 = vmatmul.mubr.f32.gmra.mrb[0].mxu0 %v5146
    %v5219 = vpop.f32.mrb[0].mxu0
    %v5220 = vadd.f32 0.0, %v5219
    %v5221 = vpop.f32.mrb[0].mxu0
    %5222 = vdwg.mxu0
    %5223 = vrot.lane.b32.xlu0 %v5126, 96
    %v5224 = vpop.permute.xlu0 %5223
    %5225 = vrot.lane.b32.xlu0 %v5127, 96
    %v5226 = vpop.permute.xlu0 %5225
    %v5227 = vsel %vm294, %v5224, 0
    %v5229 = vsel %vm294, %v5226, 0
    %5231 = vmatprep.subr.mxu0 0.0
    %5232 = vmatpush1.msra.mxu0 %v5132
    %5233 = vmatprep.subr.mxu0 0.0
    %5234 = vmatpush1.msra.mxu0 %v5133
    %5235 = vmatprep.subr.mxu0 0.0
    %5236 = vmatpush1.msra.mxu0 %v5134
    %5237 = vmatprep.subr.mxu0 0.0
    %5238 = vmatpush1.msra.mxu0 %v5135
    %5239 = vmatprep.subr.mxu0 0.0
    %5240 = vmatpush1.msra.mxu0 0.0
    %5241 = vmatprep.subr.mxu0 0.0
    %5242 = vmatpush1.msra.mxu0 0.0
    %5243 = vmatprep.subr.mxu0 0.0
    %5244 = vmatpush1.msra.mxu0 0.0
    %5245 = vmatprep.subr.mxu0 0.0
    %5246 = vmatpush1.msra.mxu0 0.0
    %5247 = vmatprep.subr.mxu0 0.0
    %5248 = vmatpush1.msra.mxu0 0.0
    %5249 = vmatprep.subr.mxu0 0.0
    %5250 = vmatpush1.msra.mxu0 0.0
    %5251 = vmatprep.subr.mxu0 0.0
    %5252 = vmatpush1.msra.mxu0 0.0
    %5253 = vmatprep.subr.mxu0 0.0
    %5254 = vmatpush1.msra.mxu0 0.0
    %5255 = vmatprep.subr.mxu0 0.0
    %5256 = vmatpush1.msra.mxu0 0.0
    %5257 = vmatprep.subr.mxu0 0.0
    %5258 = vmatpush1.msra.mxu0 0.0
    %5259 = vmatprep.subr.mxu0 0.0
    %5260 = vmatpush1.msra.mxu0 0.0
    %5261 = vmatprep.subr.mxu0 0.0
    %5262 = vmatpush1.msra.mxu0 0.0
    %5263 = vmatprep.subr.mxu0 0.0
    %5264 = vmatpush1.msra.mxu0 0.0
    %5265 = vmatprep.subr.mxu0 0.0
    %5266 = vmatpush1.msra.mxu0 0.0
    %5267 = vmatprep.subr.mxu0 0.0
    %5268 = vmatpush1.msra.mxu0 0.0
    %5269 = vmatprep.subr.mxu0 0.0
    %5270 = vmatpush1.msra.mxu0 0.0
    %5271 = vmatprep.subr.mxu0 0.0
    %5272 = vmatpush1.msra.mxu0 0.0
    %5273 = vmatprep.subr.mxu0 0.0
    %5274 = vmatpush1.msra.mxu0 0.0
    %5275 = vmatprep.subr.mxu0 0.0
    %5276 = vmatpush1.msra.mxu0 0.0
    %5277 = vmatprep.subr.mxu0 0.0
    %5278 = vmatpush1.msra.mxu0 0.0
    %5279 = vmatprep.subr.mxu0 0.0
    %5280 = vmatpush1.msra.mxu0 0.0
    %5281 = vmatprep.subr.mxu0 0.0
    %5282 = vmatpush1.msra.mxu0 0.0
    %5283 = vmatprep.subr.mxu0 0.0
    %5284 = vmatpush1.msra.mxu0 0.0
    %5285 = vmatprep.subr.mxu0 0.0
    %5286 = vmatpush1.msra.mxu0 0.0
    %5287 = vmatprep.subr.mxu0 0.0
    %5288 = vmatpush1.msra.mxu0 0.0
    %5289 = vmatprep.subr.mxu0 0.0
    %5290 = vmatpush1.msra.mxu0 0.0
    %5291 = vmatprep.subr.mxu0 0.0
    %5292 = vmatpush1.msra.mxu0 0.0
    %5293 = vmatprep.subr.mxu0 0.0
    %5294 = vmatpush1.msra.mxu0 0.0
    %5295 = vmatprep.mubr.f32.mxu0 0.0
    %5296 = vmatmul.mubr.f32.gmra.mrb[0].mxu0 %v5227
    %v5297 = vpop.f32.mrb[0].mxu0
    %v5298 = vadd.f32 0.0, %v5297
    %v5299 = vpop.f32.mrb[0].mxu0
    %5300 = vmatprep.mubr.f32.mxu0 0.0
    %5301 = vmatmul.mubr.f32.gmra.mrb[0].mxu0 %v5229
    %v5302 = vpop.f32.mrb[0].mxu0
    %v5303 = vadd.f32 0.0, %v5302
    %v5304 = vpop.f32.mrb[0].mxu0
    %5305 = vdwg.mxu0
    %5308 = vrot.lane.b32.xlu0 %v5298, 8
    %v5309 = vpop.permute.xlu0 %5308
    %5310 = vrot.lane.b32.xlu0 %v5303, 8
    %v5311 = vpop.permute.xlu0 %5310
    %v5314 = vsel %vm121, %v5215, %v5309
    %v5315 = vsel %vm121, %v5220, %v5311
    %v5317 = vsel %vm297, %v5129, 0
    %v5320 = vsel %vm297, %v5130, 0
    %5322 = vmatprep.subr.mxu0 0.0
    %5323 = vmatpush1.msra.mxu0 %v5314
    %5324 = vmatprep.subr.mxu0 0.0
    %5325 = vmatpush1.msra.mxu0 %v5315
    %5326 = vmatprep.subr.mxu0 0.0
    %5327 = vmatpush1.msra.mxu0 0.0
    %5328 = vmatprep.subr.mxu0 0.0
    %5329 = vmatpush1.msra.mxu0 0.0
    %5330 = vmatprep.subr.mxu0 0.0
    %5331 = vmatpush1.msra.mxu0 0.0
    %5332 = vmatprep.subr.mxu0 0.0
    %5333 = vmatpush1.msra.mxu0 0.0
    %5334 = vmatprep.subr.mxu0 0.0
    %5335 = vmatpush1.msra.mxu0 0.0
    %5336 = vmatprep.subr.mxu0 0.0
    %5337 = vmatpush1.msra.mxu0 0.0
    %5338 = vmatprep.subr.mxu0 0.0
    %5339 = vmatpush1.msra.mxu0 0.0
    %5340 = vmatprep.subr.mxu0 0.0
    %5341 = vmatpush1.msra.mxu0 0.0
    %5342 = vmatprep.subr.mxu0 0.0
    %5343 = vmatpush1.msra.mxu0 0.0
    %5344 = vmatprep.subr.mxu0 0.0
    %5345 = vmatpush1.msra.mxu0 0.0
    %5346 = vmatprep.subr.mxu0 0.0
    %5347 = vmatpush1.msra.mxu0 0.0
    %5348 = vmatprep.subr.mxu0 0.0
    %5349 = vmatpush1.msra.mxu0 0.0
    %5350 = vmatprep.subr.mxu0 0.0
    %5351 = vmatpush1.msra.mxu0 0.0
    %5352 = vmatprep.subr.mxu0 0.0
    %5353 = vmatpush1.msra.mxu0 0.0
    %5354 = vmatprep.subr.mxu0 0.0
    %5355 = vmatpush1.msra.mxu0 0.0
    %5356 = vmatprep.subr.mxu0 0.0
    %5357 = vmatpush1.msra.mxu0 0.0
    %5358 = vmatprep.subr.mxu0 0.0
    %5359 = vmatpush1.msra.mxu0 0.0
    %5360 = vmatprep.subr.mxu0 0.0
    %5361 = vmatpush1.msra.mxu0 0.0
    %5362 = vmatprep.subr.mxu0 0.0
    %5363 = vmatpush1.msra.mxu0 0.0
    %5364 = vmatprep.subr.mxu0 0.0
    %5365 = vmatpush1.msra.mxu0 0.0
    %5366 = vmatprep.subr.mxu0 0.0
    %5367 = vmatpush1.msra.mxu0 0.0
    %5368 = vmatprep.subr.mxu0 0.0
    %5369 = vmatpush1.msra.mxu0 0.0
    %5370 = vmatprep.subr.mxu0 0.0
    %5371 = vmatpush1.msra.mxu0 0.0
    %5372 = vmatprep.subr.mxu0 0.0
    %5373 = vmatpush1.msra.mxu0 0.0
    %5374 = vmatprep.subr.mxu0 0.0
    %5375 = vmatpush1.msra.mxu0 0.0
    %5376 = vmatprep.subr.mxu0 0.0
    %5377 = vmatpush1.msra.mxu0 0.0
    %5378 = vmatprep.subr.mxu0 0.0
    %5379 = vmatpush1.msra.mxu0 0.0
    %5380 = vmatprep.subr.mxu0 0.0
    %5381 = vmatpush1.msra.mxu0 0.0
    %5382 = vmatprep.subr.mxu0 0.0
    %5383 = vmatpush1.msra.mxu0 0.0
    %5384 = vmatprep.subr.mxu0 0.0
    %5385 = vmatpush1.msra.mxu0 0.0
    %5386 = vmatprep.mubr.f32.mxu0 0.0
    %5387 = vmatmul.mubr.f32.gmra.mrb[0].mxu0 %v5317
    %v5388 = vpop.f32.mrb[0].mxu0
    %v5389 = vadd.f32 0.0, %v5388
    %v5390 = vpop.f32.mrb[0].mxu0
    %5391 = vmatprep.mubr.f32.mxu0 0.0
    %5392 = vmatmul.mubr.f32.gmra.mrb[0].mxu0 %v5320
    %v5393 = vpop.f32.mrb[0].mxu0
    %v5394 = vadd.f32 0.0, %v5393
    %v5395 = vpop.f32.mrb[0].mxu0
    %5396 = vdwg.mxu0
    %5399 = vrot.lane.b32.xlu0 %v5137, 8
    %v5400 = vpop.permute.xlu0 %5399
    %5401 = vrot.lane.b32.xlu0 %v5138, 8
    %v5402 = vpop.permute.xlu0 %5401
    %v5405 = vsel %vm121, %v5137, %v5400
    %v5406 = vsel %vm121, %v5138, %v5402
    %5409 = vrot.lane.b32.xlu0 %v5140, 8
    %v5410 = vpop.permute.xlu0 %5409
    %5411 = vrot.lane.b32.xlu0 %v5141, 8
    %v5412 = vpop.permute.xlu0 %5411
    %v5415 = vsel %vm121, %v5140, %v5410
    %v5416 = vsel %vm121, %v5141, %v5412
    %v5417 = vmul.f32 %v5389, %v5405
    %v5418 = vmul.f32 %v5394, %v5406
    %v5419 = vadd.f32 %v5417, %v5415
    %v5420 = vadd.f32 %v5418, %v5416
    %v5421 = vadd.f32 %v5419, %v3647
    %v5422 = vadd.f32 %v5420, %v3648
    %s5423 = scalar_lea.vmem %s13, 32
    %5424 = vst.msk [vmem:[%s5423] sm:$0xff] %vm297, %v5421
    %5425 = vst.msk [vmem:[%s5423 + $0x8] sm:$0xff] %vm297, %v5422
    %s5426 = scalar_lea.vmem %s1, 48
    %v5427 = vld [vmem:[%s5426] sm:$0xff]
    %v5428 = vld [vmem:[%s5426 + $0x8] sm:$0xff]
    %s5429 = scalar_lea.vmem %s2, 24
    %v5430 = vld [vmem:[%s5429] sm:$0xff]
    %s5431 = scalar_lea.vmem %s3, 48
    %v5432 = vld [vmem:[%s5431] sm:$0xff]
    %v5433 = vld [vmem:[%s5431 + $0x8] sm:$0xff]
    %s5434 = scalar_lea.vmem [#allocation2], 48
    %v5435 = vld [vmem:[%s5434] sm:$0xff]
    %v5436 = vld [vmem:[%s5434 + $0x8] sm:$0xff]
    %v5438 = vsel %vm121, %v5421, 0
    %v5441 = vsel %vm121, %v5422, 0
    %5443 = vmatprep.subr.mxu0 0.0
    %5444 = vmatpush1.msra.mxu0 %v5430
    %5445 = vmatprep.subr.mxu0 0.0
    %5446 = vmatpush1.msra.mxu0 0.0
    %5447 = vmatprep.subr.mxu0 0.0
    %5448 = vmatpush1.msra.mxu0 0.0
    %5449 = vmatprep.subr.mxu0 0.0
    %5450 = vmatpush1.msra.mxu0 0.0
    %5451 = vmatprep.subr.mxu0 0.0
    %5452 = vmatpush1.msra.mxu0 0.0
    %5453 = vmatprep.subr.mxu0 0.0
    %5454 = vmatpush1.msra.mxu0 0.0
    %5455 = vmatprep.subr.mxu0 0.0
    %5456 = vmatpush1.msra.mxu0 0.0
    %5457 = vmatprep.subr.mxu0 0.0
    %5458 = vmatpush1.msra.mxu0 0.0
    %5459 = vmatprep.subr.mxu0 0.0
    %5460 = vmatpush1.msra.mxu0 0.0
    %5461 = vmatprep.subr.mxu0 0.0
    %5462 = vmatpush1.msra.mxu0 0.0
    %5463 = vmatprep.subr.mxu0 0.0
    %5464 = vmatpush1.msra.mxu0 0.0
    %5465 = vmatprep.subr.mxu0 0.0
    %5466 = vmatpush1.msra.mxu0 0.0
    %5467 = vmatprep.subr.mxu0 0.0
    %5468 = vmatpush1.msra.mxu0 0.0
    %5469 = vmatprep.subr.mxu0 0.0
    %5470 = vmatpush1.msra.mxu0 0.0
    %5471 = vmatprep.subr.mxu0 0.0
    %5472 = vmatpush1.msra.mxu0 0.0
    %5473 = vmatprep.subr.mxu0 0.0
    %5474 = vmatpush1.msra.mxu0 0.0
    %5475 = vmatprep.subr.mxu0 0.0
    %5476 = vmatpush1.msra.mxu0 0.0
    %5477 = vmatprep.subr.mxu0 0.0
    %5478 = vmatpush1.msra.mxu0 0.0
    %5479 = vmatprep.subr.mxu0 0.0
    %5480 = vmatpush1.msra.mxu0 0.0
    %5481 = vmatprep.subr.mxu0 0.0
    %5482 = vmatpush1.msra.mxu0 0.0
    %5483 = vmatprep.subr.mxu0 0.0
    %5484 = vmatpush1.msra.mxu0 0.0
    %5485 = vmatprep.subr.mxu0 0.0
    %5486 = vmatpush1.msra.mxu0 0.0
    %5487 = vmatprep.subr.mxu0 0.0
    %5488 = vmatpush1.msra.mxu0 0.0
    %5489 = vmatprep.subr.mxu0 0.0
    %5490 = vmatpush1.msra.mxu0 0.0
    %5491 = vmatprep.subr.mxu0 0.0
    %5492 = vmatpush1.msra.mxu0 0.0
    %5493 = vmatprep.subr.mxu0 0.0
    %5494 = vmatpush1.msra.mxu0 0.0
    %5495 = vmatprep.subr.mxu0 0.0
    %5496 = vmatpush1.msra.mxu0 0.0
    %5497 = vmatprep.subr.mxu0 0.0
    %5498 = vmatpush1.msra.mxu0 0.0
    %5499 = vmatprep.subr.mxu0 0.0
    %5500 = vmatpush1.msra.mxu0 0.0
    %5501 = vmatprep.subr.mxu0 0.0
    %5502 = vmatpush1.msra.mxu0 0.0
    %5503 = vmatprep.subr.mxu0 0.0
    %5504 = vmatpush1.msra.mxu0 0.0
    %5505 = vmatprep.subr.mxu0 0.0
    %5506 = vmatpush1.msra.mxu0 0.0
    %5507 = vmatprep.mubr.f32.mxu0 0.0
    %5508 = vmatmul.mubr.f32.gmra.mrb[0].mxu0 %v5438
    %v5509 = vpop.f32.mrb[0].mxu0
    %v5510 = vadd.f32 0.0, %v5509
    %v5511 = vpop.f32.mrb[0].mxu0
    %5512 = vmatprep.mubr.f32.mxu0 0.0
    %5513 = vmatmul.mubr.f32.gmra.mrb[0].mxu0 %v5441
    %v5514 = vpop.f32.mrb[0].mxu0
    %v5515 = vadd.f32 0.0, %v5514
    %v5516 = vpop.f32.mrb[0].mxu0
    %5517 = vdwg.mxu0
    %5518 = vrot.lane.b32.xlu0 %v5421, 120
    %v5519 = vpop.permute.xlu0 %5518
    %5520 = vrot.lane.b32.xlu0 %v5422, 120
    %v5521 = vpop.permute.xlu0 %5520
    %v5522 = vsel %vm121, %v5519, 0
    %v5524 = vsel %vm121, %v5521, 0
    %5526 = vmatprep.subr.mxu0 0.0
    %5527 = vmatpush1.msra.mxu0 %v5430
    %5528 = vmatprep.subr.mxu0 0.0
    %5529 = vmatpush1.msra.mxu0 0.0
    %5530 = vmatprep.subr.mxu0 0.0
    %5531 = vmatpush1.msra.mxu0 0.0
    %5532 = vmatprep.subr.mxu0 0.0
    %5533 = vmatpush1.msra.mxu0 0.0
    %5534 = vmatprep.subr.mxu0 0.0
    %5535 = vmatpush1.msra.mxu0 0.0
    %5536 = vmatprep.subr.mxu0 0.0
    %5537 = vmatpush1.msra.mxu0 0.0
    %5538 = vmatprep.subr.mxu0 0.0
    %5539 = vmatpush1.msra.mxu0 0.0
    %5540 = vmatprep.subr.mxu0 0.0
    %5541 = vmatpush1.msra.mxu0 0.0
    %5542 = vmatprep.subr.mxu0 0.0
    %5543 = vmatpush1.msra.mxu0 0.0
    %5544 = vmatprep.subr.mxu0 0.0
    %5545 = vmatpush1.msra.mxu0 0.0
    %5546 = vmatprep.subr.mxu0 0.0
    %5547 = vmatpush1.msra.mxu0 0.0
    %5548 = vmatprep.subr.mxu0 0.0
    %5549 = vmatpush1.msra.mxu0 0.0
    %5550 = vmatprep.subr.mxu0 0.0
    %5551 = vmatpush1.msra.mxu0 0.0
    %5552 = vmatprep.subr.mxu0 0.0
    %5553 = vmatpush1.msra.mxu0 0.0
    %5554 = vmatprep.subr.mxu0 0.0
    %5555 = vmatpush1.msra.mxu0 0.0
    %5556 = vmatprep.subr.mxu0 0.0
    %5557 = vmatpush1.msra.mxu0 0.0
    %5558 = vmatprep.subr.mxu0 0.0
    %5559 = vmatpush1.msra.mxu0 0.0
    %5560 = vmatprep.subr.mxu0 0.0
    %5561 = vmatpush1.msra.mxu0 0.0
    %5562 = vmatprep.subr.mxu0 0.0
    %5563 = vmatpush1.msra.mxu0 0.0
    %5564 = vmatprep.subr.mxu0 0.0
    %5565 = vmatpush1.msra.mxu0 0.0
    %5566 = vmatprep.subr.mxu0 0.0
    %5567 = vmatpush1.msra.mxu0 0.0
    %5568 = vmatprep.subr.mxu0 0.0
    %5569 = vmatpush1.msra.mxu0 0.0
    %5570 = vmatprep.subr.mxu0 0.0
    %5571 = vmatpush1.msra.mxu0 0.0
    %5572 = vmatprep.subr.mxu0 0.0
    %5573 = vmatpush1.msra.mxu0 0.0
    %5574 = vmatprep.subr.mxu0 0.0
    %5575 = vmatpush1.msra.mxu0 0.0
    %5576 = vmatprep.subr.mxu0 0.0
    %5577 = vmatpush1.msra.mxu0 0.0
    %5578 = vmatprep.subr.mxu0 0.0
    %5579 = vmatpush1.msra.mxu0 0.0
    %5580 = vmatprep.subr.mxu0 0.0
    %5581 = vmatpush1.msra.mxu0 0.0
    %5582 = vmatprep.subr.mxu0 0.0
    %5583 = vmatpush1.msra.mxu0 0.0
    %5584 = vmatprep.subr.mxu0 0.0
    %5585 = vmatpush1.msra.mxu0 0.0
    %5586 = vmatprep.subr.mxu0 0.0
    %5587 = vmatpush1.msra.mxu0 0.0
    %5588 = vmatprep.subr.mxu0 0.0
    %5589 = vmatpush1.msra.mxu0 0.0
    %5590 = vmatprep.mubr.f32.mxu0 0.0
    %5591 = vmatmul.mubr.f32.gmra.mrb[0].mxu0 %v5522
    %v5592 = vpop.f32.mrb[0].mxu0
    %v5593 = vadd.f32 0.0, %v5592
    %v5594 = vpop.f32.mrb[0].mxu0
    %5595 = vmatprep.mubr.f32.mxu0 0.0
    %5596 = vmatmul.mubr.f32.gmra.mrb[0].mxu0 %v5524
    %v5597 = vpop.f32.mrb[0].mxu0
    %v5598 = vadd.f32 0.0, %v5597
    %v5599 = vpop.f32.mrb[0].mxu0
    %5600 = vdwg.mxu0
    %5603 = vrot.lane.b32.xlu0 %v5593, 32
    %v5604 = vpop.permute.xlu0 %5603
    %5605 = vrot.lane.b32.xlu0 %v5598, 32
    %v5606 = vpop.permute.xlu0 %5605
    %v5609 = vsel %vm294, %v5510, %v5604
    %v5610 = vsel %vm294, %v5515, %v5606
    %v5612 = vsel %vm297, %v5427, 0
    %v5615 = vsel %vm297, %v5428, 0
    %5617 = vmatprep.subr.mxu0 0.0
    %5618 = vmatpush1.msra.mxu0 %v5609
    %5619 = vmatprep.subr.mxu0 0.0
    %5620 = vmatpush1.msra.mxu0 %v5610
    %5621 = vmatprep.subr.mxu0 0.0
    %5622 = vmatpush1.msra.mxu0 0.0
    %5623 = vmatprep.subr.mxu0 0.0
    %5624 = vmatpush1.msra.mxu0 0.0
    %5625 = vmatprep.subr.mxu0 0.0
    %5626 = vmatpush1.msra.mxu0 0.0
    %5627 = vmatprep.subr.mxu0 0.0
    %5628 = vmatpush1.msra.mxu0 0.0
    %5629 = vmatprep.subr.mxu0 0.0
    %5630 = vmatpush1.msra.mxu0 0.0
    %5631 = vmatprep.subr.mxu0 0.0
    %5632 = vmatpush1.msra.mxu0 0.0
    %5633 = vmatprep.subr.mxu0 0.0
    %5634 = vmatpush1.msra.mxu0 0.0
    %5635 = vmatprep.subr.mxu0 0.0
    %5636 = vmatpush1.msra.mxu0 0.0
    %5637 = vmatprep.subr.mxu0 0.0
    %5638 = vmatpush1.msra.mxu0 0.0
    %5639 = vmatprep.subr.mxu0 0.0
    %5640 = vmatpush1.msra.mxu0 0.0
    %5641 = vmatprep.subr.mxu0 0.0
    %5642 = vmatpush1.msra.mxu0 0.0
    %5643 = vmatprep.subr.mxu0 0.0
    %5644 = vmatpush1.msra.mxu0 0.0
    %5645 = vmatprep.subr.mxu0 0.0
    %5646 = vmatpush1.msra.mxu0 0.0
    %5647 = vmatprep.subr.mxu0 0.0
    %5648 = vmatpush1.msra.mxu0 0.0
    %5649 = vmatprep.subr.mxu0 0.0
    %5650 = vmatpush1.msra.mxu0 0.0
    %5651 = vmatprep.subr.mxu0 0.0
    %5652 = vmatpush1.msra.mxu0 0.0
    %5653 = vmatprep.subr.mxu0 0.0
    %5654 = vmatpush1.msra.mxu0 0.0
    %5655 = vmatprep.subr.mxu0 0.0
    %5656 = vmatpush1.msra.mxu0 0.0
    %5657 = vmatprep.subr.mxu0 0.0
    %5658 = vmatpush1.msra.mxu0 0.0
    %5659 = vmatprep.subr.mxu0 0.0
    %5660 = vmatpush1.msra.mxu0 0.0
    %5661 = vmatprep.subr.mxu0 0.0
    %5662 = vmatpush1.msra.mxu0 0.0
    %5663 = vmatprep.subr.mxu0 0.0
    %5664 = vmatpush1.msra.mxu0 0.0
    %5665 = vmatprep.subr.mxu0 0.0
    %5666 = vmatpush1.msra.mxu0 0.0
    %5667 = vmatprep.subr.mxu0 0.0
    %5668 = vmatpush1.msra.mxu0 0.0
    %5669 = vmatprep.subr.mxu0 0.0
    %5670 = vmatpush1.msra.mxu0 0.0
    %5671 = vmatprep.subr.mxu0 0.0
    %5672 = vmatpush1.msra.mxu0 0.0
    %5673 = vmatprep.subr.mxu0 0.0
    %5674 = vmatpush1.msra.mxu0 0.0
    %5675 = vmatprep.subr.mxu0 0.0
    %5676 = vmatpush1.msra.mxu0 0.0
    %5677 = vmatprep.subr.mxu0 0.0
    %5678 = vmatpush1.msra.mxu0 0.0
    %5679 = vmatprep.subr.mxu0 0.0
    %5680 = vmatpush1.msra.mxu0 0.0
    %5681 = vmatprep.mubr.f32.mxu0 0.0
    %5682 = vmatmul.mubr.f32.gmra.mrb[0].mxu0 %v5612
    %v5683 = vpop.f32.mrb[0].mxu0
    %v5684 = vadd.f32 0.0, %v5683
    %v5685 = vpop.f32.mrb[0].mxu0
    %5686 = vmatprep.mubr.f32.mxu0 0.0
    %5687 = vmatmul.mubr.f32.gmra.mrb[0].mxu0 %v5615
    %v5688 = vpop.f32.mrb[0].mxu0
    %v5689 = vadd.f32 0.0, %v5688
    %v5690 = vpop.f32.mrb[0].mxu0
    %5691 = vdwg.mxu0
    %5694 = vrot.lane.b32.xlu0 %v5432, 32
    %v5695 = vpop.permute.xlu0 %5694
    %5696 = vrot.lane.b32.xlu0 %v5433, 32
    %v5697 = vpop.permute.xlu0 %5696
    %v5700 = vsel %vm294, %v5432, %v5695
    %v5701 = vsel %vm294, %v5433, %v5697
    %5704 = vrot.lane.b32.xlu0 %v5435, 32
    %v5705 = vpop.permute.xlu0 %5704
    %5706 = vrot.lane.b32.xlu0 %v5436, 32
    %v5707 = vpop.permute.xlu0 %5706
    %v5710 = vsel %vm294, %v5435, %v5705
    %v5711 = vsel %vm294, %v5436, %v5707
    %v5712 = vmul.f32 %v5684, %v5700
    %v5713 = vmul.f32 %v5689, %v5701
    %v5714 = vadd.f32 %v5712, %v5710
    %v5715 = vadd.f32 %v5713, %v5711
    %v5716 = vtanh.pop %v5714
    %v5717 = vtanh.pop %v5715
    %s5718 = scalar_lea.vmem %s5, 192
    %v5719 = vld [vmem:[%s5718] sm:$0xff]
    %v5720 = vld [vmem:[%s5718 + $0x8] sm:$0xff]
    %s5721 = scalar_lea.vmem [#allocation4], 384
    %v5722 = vld [vmem:[%s5721] sm:$0xff]
    %v5723 = vld [vmem:[%s5721 + $0x8] sm:$0xff]
    %v5724 = vld [vmem:[%s5721 + $0x10] sm:$0xff]
    %v5725 = vld [vmem:[%s5721 + $0x18] sm:$0xff]
    %s5726 = scalar_lea.vmem [#allocation6], 192
    %v5727 = vld [vmem:[%s5726] sm:$0xff]
    %v5728 = vld [vmem:[%s5726 + $0x8] sm:$0xff]
    %s5729 = scalar_lea.vmem [#allocation7], 192
    %v5730 = vld [vmem:[%s5729] sm:$0xff]
    %v5731 = vld [vmem:[%s5729 + $0x8] sm:$0xff]
    %v5733 = vsel %vm294, %v5716, 0
    %v5736 = vsel %vm294, %v5717, 0
    %5738 = vmatprep.subr.mxu0 0.0
    %5739 = vmatpush1.msra.mxu0 %v5722
    %5740 = vmatprep.subr.mxu0 0.0
    %5741 = vmatpush1.msra.mxu0 %v5723
    %5742 = vmatprep.subr.mxu0 0.0
    %5743 = vmatpush1.msra.mxu0 %v5724
    %5744 = vmatprep.subr.mxu0 0.0
    %5745 = vmatpush1.msra.mxu0 %v5725
    %5746 = vmatprep.subr.mxu0 0.0
    %5747 = vmatpush1.msra.mxu0 0.0
    %5748 = vmatprep.subr.mxu0 0.0
    %5749 = vmatpush1.msra.mxu0 0.0
    %5750 = vmatprep.subr.mxu0 0.0
    %5751 = vmatpush1.msra.mxu0 0.0
    %5752 = vmatprep.subr.mxu0 0.0
    %5753 = vmatpush1.msra.mxu0 0.0
    %5754 = vmatprep.subr.mxu0 0.0
    %5755 = vmatpush1.msra.mxu0 0.0
    %5756 = vmatprep.subr.mxu0 0.0
    %5757 = vmatpush1.msra.mxu0 0.0
    %5758 = vmatprep.subr.mxu0 0.0
    %5759 = vmatpush1.msra.mxu0 0.0
    %5760 = vmatprep.subr.mxu0 0.0
    %5761 = vmatpush1.msra.mxu0 0.0
    %5762 = vmatprep.subr.mxu0 0.0
    %5763 = vmatpush1.msra.mxu0 0.0
    %5764 = vmatprep.subr.mxu0 0.0
    %5765 = vmatpush1.msra.mxu0 0.0
    %5766 = vmatprep.subr.mxu0 0.0
    %5767 = vmatpush1.msra.mxu0 0.0
    %5768 = vmatprep.subr.mxu0 0.0
    %5769 = vmatpush1.msra.mxu0 0.0
    %5770 = vmatprep.subr.mxu0 0.0
    %5771 = vmatpush1.msra.mxu0 0.0
    %5772 = vmatprep.subr.mxu0 0.0
    %5773 = vmatpush1.msra.mxu0 0.0
    %5774 = vmatprep.subr.mxu0 0.0
    %5775 = vmatpush1.msra.mxu0 0.0
    %5776 = vmatprep.subr.mxu0 0.0
    %5777 = vmatpush1.msra.mxu0 0.0
    %5778 = vmatprep.subr.mxu0 0.0
    %5779 = vmatpush1.msra.mxu0 0.0
    %5780 = vmatprep.subr.mxu0 0.0
    %5781 = vmatpush1.msra.mxu0 0.0
    %5782 = vmatprep.subr.mxu0 0.0
    %5783 = vmatpush1.msra.mxu0 0.0
    %5784 = vmatprep.subr.mxu0 0.0
    %5785 = vmatpush1.msra.mxu0 0.0
    %5786 = vmatprep.subr.mxu0 0.0
    %5787 = vmatpush1.msra.mxu0 0.0
    %5788 = vmatprep.subr.mxu0 0.0
    %5789 = vmatpush1.msra.mxu0 0.0
    %5790 = vmatprep.subr.mxu0 0.0
    %5791 = vmatpush1.msra.mxu0 0.0
    %5792 = vmatprep.subr.mxu0 0.0
    %5793 = vmatpush1.msra.mxu0 0.0
    %5794 = vmatprep.subr.mxu0 0.0
    %5795 = vmatpush1.msra.mxu0 0.0
    %5796 = vmatprep.subr.mxu0 0.0
    %5797 = vmatpush1.msra.mxu0 0.0
    %5798 = vmatprep.subr.mxu0 0.0
    %5799 = vmatpush1.msra.mxu0 0.0
    %5800 = vmatprep.subr.mxu0 0.0
    %5801 = vmatpush1.msra.mxu0 0.0
    %5802 = vmatprep.mubr.f32.mxu0 0.0
    %5803 = vmatmul.mubr.f32.gmra.mrb[0].mxu0 %v5733
    %v5804 = vpop.f32.mrb[0].mxu0
    %v5805 = vadd.f32 0.0, %v5804
    %v5806 = vpop.f32.mrb[0].mxu0
    %5807 = vmatprep.mubr.f32.mxu0 0.0
    %5808 = vmatmul.mubr.f32.gmra.mrb[0].mxu0 %v5736
    %v5809 = vpop.f32.mrb[0].mxu0
    %v5810 = vadd.f32 0.0, %v5809
    %v5811 = vpop.f32.mrb[0].mxu0
    %5812 = vdwg.mxu0
    %5813 = vrot.lane.b32.xlu0 %v5716, 96
    %v5814 = vpop.permute.xlu0 %5813
    %5815 = vrot.lane.b32.xlu0 %v5717, 96
    %v5816 = vpop.permute.xlu0 %5815
    %v5817 = vsel %vm294, %v5814, 0
    %v5819 = vsel %vm294, %v5816, 0
    %5821 = vmatprep.subr.mxu0 0.0
    %5822 = vmatpush1.msra.mxu0 %v5722
    %5823 = vmatprep.subr.mxu0 0.0
    %5824 = vmatpush1.msra.mxu0 %v5723
    %5825 = vmatprep.subr.mxu0 0.0
    %5826 = vmatpush1.msra.mxu0 %v5724
    %5827 = vmatprep.subr.mxu0 0.0
    %5828 = vmatpush1.msra.mxu0 %v5725
    %5829 = vmatprep.subr.mxu0 0.0
    %5830 = vmatpush1.msra.mxu0 0.0
    %5831 = vmatprep.subr.mxu0 0.0
    %5832 = vmatpush1.msra.mxu0 0.0
    %5833 = vmatprep.subr.mxu0 0.0
    %5834 = vmatpush1.msra.mxu0 0.0
    %5835 = vmatprep.subr.mxu0 0.0
    %5836 = vmatpush1.msra.mxu0 0.0
    %5837 = vmatprep.subr.mxu0 0.0
    %5838 = vmatpush1.msra.mxu0 0.0
    %5839 = vmatprep.subr.mxu0 0.0
    %5840 = vmatpush1.msra.mxu0 0.0
    %5841 = vmatprep.subr.mxu0 0.0
    %5842 = vmatpush1.msra.mxu0 0.0
    %5843 = vmatprep.subr.mxu0 0.0
    %5844 = vmatpush1.msra.mxu0 0.0
    %5845 = vmatprep.subr.mxu0 0.0
    %5846 = vmatpush1.msra.mxu0 0.0
    %5847 = vmatprep.subr.mxu0 0.0
    %5848 = vmatpush1.msra.mxu0 0.0
    %5849 = vmatprep.subr.mxu0 0.0
    %5850 = vmatpush1.msra.mxu0 0.0
    %5851 = vmatprep.subr.mxu0 0.0
    %5852 = vmatpush1.msra.mxu0 0.0
    %5853 = vmatprep.subr.mxu0 0.0
    %5854 = vmatpush1.msra.mxu0 0.0
    %5855 = vmatprep.subr.mxu0 0.0
    %5856 = vmatpush1.msra.mxu0 0.0
    %5857 = vmatprep.subr.mxu0 0.0
    %5858 = vmatpush1.msra.mxu0 0.0
    %5859 = vmatprep.subr.mxu0 0.0
    %5860 = vmatpush1.msra.mxu0 0.0
    %5861 = vmatprep.subr.mxu0 0.0
    %5862 = vmatpush1.msra.mxu0 0.0
    %5863 = vmatprep.subr.mxu0 0.0
    %5864 = vmatpush1.msra.mxu0 0.0
    %5865 = vmatprep.subr.mxu0 0.0
    %5866 = vmatpush1.msra.mxu0 0.0
    %5867 = vmatprep.subr.mxu0 0.0
    %5868 = vmatpush1.msra.mxu0 0.0
    %5869 = vmatprep.subr.mxu0 0.0
    %5870 = vmatpush1.msra.mxu0 0.0
    %5871 = vmatprep.subr.mxu0 0.0
    %5872 = vmatpush1.msra.mxu0 0.0
    %5873 = vmatprep.subr.mxu0 0.0
    %5874 = vmatpush1.msra.mxu0 0.0
    %5875 = vmatprep.subr.mxu0 0.0
    %5876 = vmatpush1.msra.mxu0 0.0
    %5877 = vmatprep.subr.mxu0 0.0
    %5878 = vmatpush1.msra.mxu0 0.0
    %5879 = vmatprep.subr.mxu0 0.0
    %5880 = vmatpush1.msra.mxu0 0.0
    %5881 = vmatprep.subr.mxu0 0.0
    %5882 = vmatpush1.msra.mxu0 0.0
    %5883 = vmatprep.subr.mxu0 0.0
    %5884 = vmatpush1.msra.mxu0 0.0
    %5885 = vmatprep.mubr.f32.mxu0 0.0
    %5886 = vmatmul.mubr.f32.gmra.mrb[0].mxu0 %v5817
    %v5887 = vpop.f32.mrb[0].mxu0
    %v5888 = vadd.f32 0.0, %v5887
    %v5889 = vpop.f32.mrb[0].mxu0
    %5890 = vmatprep.mubr.f32.mxu0 0.0
    %5891 = vmatmul.mubr.f32.gmra.mrb[0].mxu0 %v5819
    %v5892 = vpop.f32.mrb[0].mxu0
    %v5893 = vadd.f32 0.0, %v5892
    %v5894 = vpop.f32.mrb[0].mxu0
    %5895 = vdwg.mxu0
    %5898 = vrot.lane.b32.xlu0 %v5888, 32
    %v5899 = vpop.permute.xlu0 %5898
    %5900 = vrot.lane.b32.xlu0 %v5893, 32
    %v5901 = vpop.permute.xlu0 %5900
    %v5904 = vsel %vm294, %v5805, %v5899
    %v5905 = vsel %vm294, %v5810, %v5901
    %v5907 = vsel %vm297, %v5719, 0
    %v5910 = vsel %vm297, %v5720, 0
    %5912 = vmatprep.subr.mxu0 0.0
    %5913 = vmatpush1.msra.mxu0 %v5904
    %5914 = vmatprep.subr.mxu0 0.0
    %5915 = vmatpush1.msra.mxu0 %v5905
    %5916 = vmatprep.subr.mxu0 0.0
    %5917 = vmatpush1.msra.mxu0 0.0
    %5918 = vmatprep.subr.mxu0 0.0
    %5919 = vmatpush1.msra.mxu0 0.0
    %5920 = vmatprep.subr.mxu0 0.0
    %5921 = vmatpush1.msra.mxu0 0.0
    %5922 = vmatprep.subr.mxu0 0.0
    %5923 = vmatpush1.msra.mxu0 0.0
    %5924 = vmatprep.subr.mxu0 0.0
    %5925 = vmatpush1.msra.mxu0 0.0
    %5926 = vmatprep.subr.mxu0 0.0
    %5927 = vmatpush1.msra.mxu0 0.0
    %5928 = vmatprep.subr.mxu0 0.0
    %5929 = vmatpush1.msra.mxu0 0.0
    %5930 = vmatprep.subr.mxu0 0.0
    %5931 = vmatpush1.msra.mxu0 0.0
    %5932 = vmatprep.subr.mxu0 0.0
    %5933 = vmatpush1.msra.mxu0 0.0
    %5934 = vmatprep.subr.mxu0 0.0
    %5935 = vmatpush1.msra.mxu0 0.0
    %5936 = vmatprep.subr.mxu0 0.0
    %5937 = vmatpush1.msra.mxu0 0.0
    %5938 = vmatprep.subr.mxu0 0.0
    %5939 = vmatpush1.msra.mxu0 0.0
    %5940 = vmatprep.subr.mxu0 0.0
    %5941 = vmatpush1.msra.mxu0 0.0
    %5942 = vmatprep.subr.mxu0 0.0
    %5943 = vmatpush1.msra.mxu0 0.0
    %5944 = vmatprep.subr.mxu0 0.0
    %5945 = vmatpush1.msra.mxu0 0.0
    %5946 = vmatprep.subr.mxu0 0.0
    %5947 = vmatpush1.msra.mxu0 0.0
    %5948 = vmatprep.subr.mxu0 0.0
    %5949 = vmatpush1.msra.mxu0 0.0
    %5950 = vmatprep.subr.mxu0 0.0
    %5951 = vmatpush1.msra.mxu0 0.0
    %5952 = vmatprep.subr.mxu0 0.0
    %5953 = vmatpush1.msra.mxu0 0.0
    %5954 = vmatprep.subr.mxu0 0.0
    %5955 = vmatpush1.msra.mxu0 0.0
    %5956 = vmatprep.subr.mxu0 0.0
    %5957 = vmatpush1.msra.mxu0 0.0
    %5958 = vmatprep.subr.mxu0 0.0
    %5959 = vmatpush1.msra.mxu0 0.0
    %5960 = vmatprep.subr.mxu0 0.0
    %5961 = vmatpush1.msra.mxu0 0.0
    %5962 = vmatprep.subr.mxu0 0.0
    %5963 = vmatpush1.msra.mxu0 0.0
    %5964 = vmatprep.subr.mxu0 0.0
    %5965 = vmatpush1.msra.mxu0 0.0
    %5966 = vmatprep.subr.mxu0 0.0
    %5967 = vmatpush1.msra.mxu0 0.0
    %5968 = vmatprep.subr.mxu0 0.0
    %5969 = vmatpush1.msra.mxu0 0.0
    %5970 = vmatprep.subr.mxu0 0.0
    %5971 = vmatpush1.msra.mxu0 0.0
    %5972 = vmatprep.subr.mxu0 0.0
    %5973 = vmatpush1.msra.mxu0 0.0
    %5974 = vmatprep.subr.mxu0 0.0
    %5975 = vmatpush1.msra.mxu0 0.0
    %5976 = vmatprep.mubr.f32.mxu0 0.0
    %5977 = vmatmul.mubr.f32.gmra.mrb[0].mxu0 %v5907
    %v5978 = vpop.f32.mrb[0].mxu0
    %v5979 = vadd.f32 0.0, %v5978
    %v5980 = vpop.f32.mrb[0].mxu0
    %5981 = vmatprep.mubr.f32.mxu0 0.0
    %5982 = vmatmul.mubr.f32.gmra.mrb[0].mxu0 %v5910
    %v5983 = vpop.f32.mrb[0].mxu0
    %v5984 = vadd.f32 0.0, %v5983
    %v5985 = vpop.f32.mrb[0].mxu0
    %5986 = vdwg.mxu0
    %5989 = vrot.lane.b32.xlu0 %v5727, 32
    %v5990 = vpop.permute.xlu0 %5989
    %5991 = vrot.lane.b32.xlu0 %v5728, 32
    %v5992 = vpop.permute.xlu0 %5991
    %v5995 = vsel %vm294, %v5727, %v5990
    %v5996 = vsel %vm294, %v5728, %v5992
    %5999 = vrot.lane.b32.xlu0 %v5730, 32
    %v6000 = vpop.permute.xlu0 %5999
    %6001 = vrot.lane.b32.xlu0 %v5731, 32
    %v6002 = vpop.permute.xlu0 %6001
    %v6005 = vsel %vm294, %v5730, %v6000
    %v6006 = vsel %vm294, %v5731, %v6002
    %v6007 = vmul.f32 %v5979, %v5995
    %v6008 = vmul.f32 %v5984, %v5996
    %v6009 = vadd.f32 %v6007, %v6005
    %v6010 = vadd.f32 %v6008, %v6006
    %v6011 = vtanh.pop %v6009
    %v6012 = vtanh.pop %v6010
    %s6013 = scalar_lea.vmem %s5, 208
    %v6014 = vld [vmem:[%s6013] sm:$0xff]
    %v6015 = vld [vmem:[%s6013 + $0x8] sm:$0xff]
    %s6016 = scalar_lea.vmem [#allocation4], 416
    %v6017 = vld [vmem:[%s6016] sm:$0xff]
    %v6018 = vld [vmem:[%s6016 + $0x8] sm:$0xff]
    %v6019 = vld [vmem:[%s6016 + $0x10] sm:$0xff]
    %v6020 = vld [vmem:[%s6016 + $0x18] sm:$0xff]
    %s6021 = scalar_lea.vmem [#allocation6], 208
    %v6022 = vld [vmem:[%s6021] sm:$0xff]
    %v6023 = vld [vmem:[%s6021 + $0x8] sm:$0xff]
    %s6024 = scalar_lea.vmem [#allocation7], 208
    %v6025 = vld [vmem:[%s6024] sm:$0xff]
    %v6026 = vld [vmem:[%s6024 + $0x8] sm:$0xff]
    %v6028 = vsel %vm294, %v6011, 0
    %v6031 = vsel %vm294, %v6012, 0
    %6033 = vmatprep.subr.mxu0 0.0
    %6034 = vmatpush1.msra.mxu0 %v6017
    %6035 = vmatprep.subr.mxu0 0.0
    %6036 = vmatpush1.msra.mxu0 %v6018
    %6037 = vmatprep.subr.mxu0 0.0
    %6038 = vmatpush1.msra.mxu0 %v6019
    %6039 = vmatprep.subr.mxu0 0.0
    %6040 = vmatpush1.msra.mxu0 %v6020
    %6041 = vmatprep.subr.mxu0 0.0
    %6042 = vmatpush1.msra.mxu0 0.0
    %6043 = vmatprep.subr.mxu0 0.0
    %6044 = vmatpush1.msra.mxu0 0.0
    %6045 = vmatprep.subr.mxu0 0.0
    %6046 = vmatpush1.msra.mxu0 0.0
    %6047 = vmatprep.subr.mxu0 0.0
    %6048 = vmatpush1.msra.mxu0 0.0
    %6049 = vmatprep.subr.mxu0 0.0
    %6050 = vmatpush1.msra.mxu0 0.0
    %6051 = vmatprep.subr.mxu0 0.0
    %6052 = vmatpush1.msra.mxu0 0.0
    %6053 = vmatprep.subr.mxu0 0.0
    %6054 = vmatpush1.msra.mxu0 0.0
    %6055 = vmatprep.subr.mxu0 0.0
    %6056 = vmatpush1.msra.mxu0 0.0
    %6057 = vmatprep.subr.mxu0 0.0
    %6058 = vmatpush1.msra.mxu0 0.0
    %6059 = vmatprep.subr.mxu0 0.0
    %6060 = vmatpush1.msra.mxu0 0.0
    %6061 = vmatprep.subr.mxu0 0.0
    %6062 = vmatpush1.msra.mxu0 0.0
    %6063 = vmatprep.subr.mxu0 0.0
    %6064 = vmatpush1.msra.mxu0 0.0
    %6065 = vmatprep.subr.mxu0 0.0
    %6066 = vmatpush1.msra.mxu0 0.0
    %6067 = vmatprep.subr.mxu0 0.0
    %6068 = vmatpush1.msra.mxu0 0.0
    %6069 = vmatprep.subr.mxu0 0.0
    %6070 = vmatpush1.msra.mxu0 0.0
    %6071 = vmatprep.subr.mxu0 0.0
    %6072 = vmatpush1.msra.mxu0 0.0
    %6073 = vmatprep.subr.mxu0 0.0
    %6074 = vmatpush1.msra.mxu0 0.0
    %6075 = vmatprep.subr.mxu0 0.0
    %6076 = vmatpush1.msra.mxu0 0.0
    %6077 = vmatprep.subr.mxu0 0.0
    %6078 = vmatpush1.msra.mxu0 0.0
    %6079 = vmatprep.subr.mxu0 0.0
    %6080 = vmatpush1.msra.mxu0 0.0
    %6081 = vmatprep.subr.mxu0 0.0
    %6082 = vmatpush1.msra.mxu0 0.0
    %6083 = vmatprep.subr.mxu0 0.0
    %6084 = vmatpush1.msra.mxu0 0.0
    %6085 = vmatprep.subr.mxu0 0.0
    %6086 = vmatpush1.msra.mxu0 0.0
    %6087 = vmatprep.subr.mxu0 0.0
    %6088 = vmatpush1.msra.mxu0 0.0
    %6089 = vmatprep.subr.mxu0 0.0
    %6090 = vmatpush1.msra.mxu0 0.0
    %6091 = vmatprep.subr.mxu0 0.0
    %6092 = vmatpush1.msra.mxu0 0.0
    %6093 = vmatprep.subr.mxu0 0.0
    %6094 = vmatpush1.msra.mxu0 0.0
    %6095 = vmatprep.subr.mxu0 0.0
    %6096 = vmatpush1.msra.mxu0 0.0
    %6097 = vmatprep.mubr.f32.mxu0 0.0
    %6098 = vmatmul.mubr.f32.gmra.mrb[0].mxu0 %v6028
    %v6099 = vpop.f32.mrb[0].mxu0
    %v6100 = vadd.f32 0.0, %v6099
    %v6101 = vpop.f32.mrb[0].mxu0
    %6102 = vmatprep.mubr.f32.mxu0 0.0
    %6103 = vmatmul.mubr.f32.gmra.mrb[0].mxu0 %v6031
    %v6104 = vpop.f32.mrb[0].mxu0
    %v6105 = vadd.f32 0.0, %v6104
    %v6106 = vpop.f32.mrb[0].mxu0
    %6107 = vdwg.mxu0
    %6108 = vrot.lane.b32.xlu0 %v6011, 96
    %v6109 = vpop.permute.xlu0 %6108
    %6110 = vrot.lane.b32.xlu0 %v6012, 96
    %v6111 = vpop.permute.xlu0 %6110
    %v6112 = vsel %vm294, %v6109, 0
    %v6114 = vsel %vm294, %v6111, 0
    %6116 = vmatprep.subr.mxu0 0.0
    %6117 = vmatpush1.msra.mxu0 %v6017
    %6118 = vmatprep.subr.mxu0 0.0
    %6119 = vmatpush1.msra.mxu0 %v6018
    %6120 = vmatprep.subr.mxu0 0.0
    %6121 = vmatpush1.msra.mxu0 %v6019
    %6122 = vmatprep.subr.mxu0 0.0
    %6123 = vmatpush1.msra.mxu0 %v6020
    %6124 = vmatprep.subr.mxu0 0.0
    %6125 = vmatpush1.msra.mxu0 0.0
    %6126 = vmatprep.subr.mxu0 0.0
    %6127 = vmatpush1.msra.mxu0 0.0
    %6128 = vmatprep.subr.mxu0 0.0
    %6129 = vmatpush1.msra.mxu0 0.0
    %6130 = vmatprep.subr.mxu0 0.0
    %6131 = vmatpush1.msra.mxu0 0.0
    %6132 = vmatprep.subr.mxu0 0.0
    %6133 = vmatpush1.msra.mxu0 0.0
    %6134 = vmatprep.subr.mxu0 0.0
    %6135 = vmatpush1.msra.mxu0 0.0
    %6136 = vmatprep.subr.mxu0 0.0
    %6137 = vmatpush1.msra.mxu0 0.0
    %6138 = vmatprep.subr.mxu0 0.0
    %6139 = vmatpush1.msra.mxu0 0.0
    %6140 = vmatprep.subr.mxu0 0.0
    %6141 = vmatpush1.msra.mxu0 0.0
    %6142 = vmatprep.subr.mxu0 0.0
    %6143 = vmatpush1.msra.mxu0 0.0
    %6144 = vmatprep.subr.mxu0 0.0
    %6145 = vmatpush1.msra.mxu0 0.0
    %6146 = vmatprep.subr.mxu0 0.0
    %6147 = vmatpush1.msra.mxu0 0.0
    %6148 = vmatprep.subr.mxu0 0.0
    %6149 = vmatpush1.msra.mxu0 0.0
    %6150 = vmatprep.subr.mxu0 0.0
    %6151 = vmatpush1.msra.mxu0 0.0
    %6152 = vmatprep.subr.mxu0 0.0
    %6153 = vmatpush1.msra.mxu0 0.0
    %6154 = vmatprep.subr.mxu0 0.0
    %6155 = vmatpush1.msra.mxu0 0.0
    %6156 = vmatprep.subr.mxu0 0.0
    %6157 = vmatpush1.msra.mxu0 0.0
    %6158 = vmatprep.subr.mxu0 0.0
    %6159 = vmatpush1.msra.mxu0 0.0
    %6160 = vmatprep.subr.mxu0 0.0
    %6161 = vmatpush1.msra.mxu0 0.0
    %6162 = vmatprep.subr.mxu0 0.0
    %6163 = vmatpush1.msra.mxu0 0.0
    %6164 = vmatprep.subr.mxu0 0.0
    %6165 = vmatpush1.msra.mxu0 0.0
    %6166 = vmatprep.subr.mxu0 0.0
    %6167 = vmatpush1.msra.mxu0 0.0
    %6168 = vmatprep.subr.mxu0 0.0
    %6169 = vmatpush1.msra.mxu0 0.0
    %6170 = vmatprep.subr.mxu0 0.0
    %6171 = vmatpush1.msra.mxu0 0.0
    %6172 = vmatprep.subr.mxu0 0.0
    %6173 = vmatpush1.msra.mxu0 0.0
    %6174 = vmatprep.subr.mxu0 0.0
    %6175 = vmatpush1.msra.mxu0 0.0
    %6176 = vmatprep.subr.mxu0 0.0
    %6177 = vmatpush1.msra.mxu0 0.0
    %6178 = vmatprep.subr.mxu0 0.0
    %6179 = vmatpush1.msra.mxu0 0.0
    %6180 = vmatprep.mubr.f32.mxu0 0.0
    %6181 = vmatmul.mubr.f32.gmra.mrb[0].mxu0 %v6112
    %v6182 = vpop.f32.mrb[0].mxu0
    %v6183 = vadd.f32 0.0, %v6182
    %v6184 = vpop.f32.mrb[0].mxu0
    %6185 = vmatprep.mubr.f32.mxu0 0.0
    %6186 = vmatmul.mubr.f32.gmra.mrb[0].mxu0 %v6114
    %v6187 = vpop.f32.mrb[0].mxu0
    %v6188 = vadd.f32 0.0, %v6187
    %v6189 = vpop.f32.mrb[0].mxu0
    %6190 = vdwg.mxu0
    %6193 = vrot.lane.b32.xlu0 %v6183, 32
    %v6194 = vpop.permute.xlu0 %6193
    %6195 = vrot.lane.b32.xlu0 %v6188, 32
    %v6196 = vpop.permute.xlu0 %6195
    %v6199 = vsel %vm294, %v6100, %v6194
    %v6200 = vsel %vm294, %v6105, %v6196
    %v6202 = vsel %vm297, %v6014, 0
    %v6205 = vsel %vm297, %v6015, 0
    %6207 = vmatprep.subr.mxu0 0.0
    %6208 = vmatpush1.msra.mxu0 %v6199
    %6209 = vmatprep.subr.mxu0 0.0
    %6210 = vmatpush1.msra.mxu0 %v6200
    %6211 = vmatprep.subr.mxu0 0.0
    %6212 = vmatpush1.msra.mxu0 0.0
    %6213 = vmatprep.subr.mxu0 0.0
    %6214 = vmatpush1.msra.mxu0 0.0
    %6215 = vmatprep.subr.mxu0 0.0
    %6216 = vmatpush1.msra.mxu0 0.0
    %6217 = vmatprep.subr.mxu0 0.0
    %6218 = vmatpush1.msra.mxu0 0.0
    %6219 = vmatprep.subr.mxu0 0.0
    %6220 = vmatpush1.msra.mxu0 0.0
    %6221 = vmatprep.subr.mxu0 0.0
    %6222 = vmatpush1.msra.mxu0 0.0
    %6223 = vmatprep.subr.mxu0 0.0
    %6224 = vmatpush1.msra.mxu0 0.0
    %6225 = vmatprep.subr.mxu0 0.0
    %6226 = vmatpush1.msra.mxu0 0.0
    %6227 = vmatprep.subr.mxu0 0.0
    %6228 = vmatpush1.msra.mxu0 0.0
    %6229 = vmatprep.subr.mxu0 0.0
    %6230 = vmatpush1.msra.mxu0 0.0
    %6231 = vmatprep.subr.mxu0 0.0
    %6232 = vmatpush1.msra.mxu0 0.0
    %6233 = vmatprep.subr.mxu0 0.0
    %6234 = vmatpush1.msra.mxu0 0.0
    %6235 = vmatprep.subr.mxu0 0.0
    %6236 = vmatpush1.msra.mxu0 0.0
    %6237 = vmatprep.subr.mxu0 0.0
    %6238 = vmatpush1.msra.mxu0 0.0
    %6239 = vmatprep.subr.mxu0 0.0
    %6240 = vmatpush1.msra.mxu0 0.0
    %6241 = vmatprep.subr.mxu0 0.0
    %6242 = vmatpush1.msra.mxu0 0.0
    %6243 = vmatprep.subr.mxu0 0.0
    %6244 = vmatpush1.msra.mxu0 0.0
    %6245 = vmatprep.subr.mxu0 0.0
    %6246 = vmatpush1.msra.mxu0 0.0
    %6247 = vmatprep.subr.mxu0 0.0
    %6248 = vmatpush1.msra.mxu0 0.0
    %6249 = vmatprep.subr.mxu0 0.0
    %6250 = vmatpush1.msra.mxu0 0.0
    %6251 = vmatprep.subr.mxu0 0.0
    %6252 = vmatpush1.msra.mxu0 0.0
    %6253 = vmatprep.subr.mxu0 0.0
    %6254 = vmatpush1.msra.mxu0 0.0
    %6255 = vmatprep.subr.mxu0 0.0
    %6256 = vmatpush1.msra.mxu0 0.0
    %6257 = vmatprep.subr.mxu0 0.0
    %6258 = vmatpush1.msra.mxu0 0.0
    %6259 = vmatprep.subr.mxu0 0.0
    %6260 = vmatpush1.msra.mxu0 0.0
    %6261 = vmatprep.subr.mxu0 0.0
    %6262 = vmatpush1.msra.mxu0 0.0
    %6263 = vmatprep.subr.mxu0 0.0
    %6264 = vmatpush1.msra.mxu0 0.0
    %6265 = vmatprep.subr.mxu0 0.0
    %6266 = vmatpush1.msra.mxu0 0.0
    %6267 = vmatprep.subr.mxu0 0.0
    %6268 = vmatpush1.msra.mxu0 0.0
    %6269 = vmatprep.subr.mxu0 0.0
    %6270 = vmatpush1.msra.mxu0 0.0
    %6271 = vmatprep.mubr.f32.mxu0 0.0
    %6272 = vmatmul.mubr.f32.gmra.mrb[0].mxu0 %v6202
    %v6273 = vpop.f32.mrb[0].mxu0
    %v6274 = vadd.f32 0.0, %v6273
    %v6275 = vpop.f32.mrb[0].mxu0
    %6276 = vmatprep.mubr.f32.mxu0 0.0
    %6277 = vmatmul.mubr.f32.gmra.mrb[0].mxu0 %v6205
    %v6278 = vpop.f32.mrb[0].mxu0
    %v6279 = vadd.f32 0.0, %v6278
    %v6280 = vpop.f32.mrb[0].mxu0
    %6281 = vdwg.mxu0
    %6284 = vrot.lane.b32.xlu0 %v6022, 32
    %v6285 = vpop.permute.xlu0 %6284
    %6286 = vrot.lane.b32.xlu0 %v6023, 32
    %v6287 = vpop.permute.xlu0 %6286
    %v6290 = vsel %vm294, %v6022, %v6285
    %v6291 = vsel %vm294, %v6023, %v6287
    %6294 = vrot.lane.b32.xlu0 %v6025, 32
    %v6295 = vpop.permute.xlu0 %6294
    %6296 = vrot.lane.b32.xlu0 %v6026, 32
    %v6297 = vpop.permute.xlu0 %6296
    %v6300 = vsel %vm294, %v6025, %v6295
    %v6301 = vsel %vm294, %v6026, %v6297
    %v6302 = vmul.f32 %v6274, %v6290
    %v6303 = vmul.f32 %v6279, %v6291
    %v6304 = vadd.f32 %v6302, %v6300
    %v6305 = vadd.f32 %v6303, %v6301
    %v6306 = vtanh.pop %v6304
    %v6307 = vtanh.pop %v6305
    %v6308 = vadd.f32 %v5716, %v6306
    %v6309 = vadd.f32 %v5717, %v6307
    %s6310 = scalar_lea.vmem %s5, 224
    %v6311 = vld [vmem:[%s6310] sm:$0xff]
    %v6312 = vld [vmem:[%s6310 + $0x8] sm:$0xff]
    %s6313 = scalar_lea.vmem [#allocation4], 448
    %v6314 = vld [vmem:[%s6313] sm:$0xff]
    %v6315 = vld [vmem:[%s6313 + $0x8] sm:$0xff]
    %v6316 = vld [vmem:[%s6313 + $0x10] sm:$0xff]
    %v6317 = vld [vmem:[%s6313 + $0x18] sm:$0xff]
    %s6318 = scalar_lea.vmem [#allocation6], 224
    %v6319 = vld [vmem:[%s6318] sm:$0xff]
    %v6320 = vld [vmem:[%s6318 + $0x8] sm:$0xff]
    %s6321 = scalar_lea.vmem [#allocation7], 224
    %v6322 = vld [vmem:[%s6321] sm:$0xff]
    %v6323 = vld [vmem:[%s6321 + $0x8] sm:$0xff]
    %v6325 = vsel %vm294, %v6308, 0
    %v6328 = vsel %vm294, %v6309, 0
    %6330 = vmatprep.subr.mxu0 0.0
    %6331 = vmatpush1.msra.mxu0 %v6314
    %6332 = vmatprep.subr.mxu0 0.0
    %6333 = vmatpush1.msra.mxu0 %v6315
    %6334 = vmatprep.subr.mxu0 0.0
    %6335 = vmatpush1.msra.mxu0 %v6316
    %6336 = vmatprep.subr.mxu0 0.0
    %6337 = vmatpush1.msra.mxu0 %v6317
    %6338 = vmatprep.subr.mxu0 0.0
    %6339 = vmatpush1.msra.mxu0 0.0
    %6340 = vmatprep.subr.mxu0 0.0
    %6341 = vmatpush1.msra.mxu0 0.0
    %6342 = vmatprep.subr.mxu0 0.0
    %6343 = vmatpush1.msra.mxu0 0.0
    %6344 = vmatprep.subr.mxu0 0.0
    %6345 = vmatpush1.msra.mxu0 0.0
    %6346 = vmatprep.subr.mxu0 0.0
    %6347 = vmatpush1.msra.mxu0 0.0
    %6348 = vmatprep.subr.mxu0 0.0
    %6349 = vmatpush1.msra.mxu0 0.0
    %6350 = vmatprep.subr.mxu0 0.0
    %6351 = vmatpush1.msra.mxu0 0.0
    %6352 = vmatprep.subr.mxu0 0.0
    %6353 = vmatpush1.msra.mxu0 0.0
    %6354 = vmatprep.subr.mxu0 0.0
    %6355 = vmatpush1.msra.mxu0 0.0
    %6356 = vmatprep.subr.mxu0 0.0
    %6357 = vmatpush1.msra.mxu0 0.0
    %6358 = vmatprep.subr.mxu0 0.0
    %6359 = vmatpush1.msra.mxu0 0.0
    %6360 = vmatprep.subr.mxu0 0.0
    %6361 = vmatpush1.msra.mxu0 0.0
    %6362 = vmatprep.subr.mxu0 0.0
    %6363 = vmatpush1.msra.mxu0 0.0
    %6364 = vmatprep.subr.mxu0 0.0
    %6365 = vmatpush1.msra.mxu0 0.0
    %6366 = vmatprep.subr.mxu0 0.0
    %6367 = vmatpush1.msra.mxu0 0.0
    %6368 = vmatprep.subr.mxu0 0.0
    %6369 = vmatpush1.msra.mxu0 0.0
    %6370 = vmatprep.subr.mxu0 0.0
    %6371 = vmatpush1.msra.mxu0 0.0
    %6372 = vmatprep.subr.mxu0 0.0
    %6373 = vmatpush1.msra.mxu0 0.0
    %6374 = vmatprep.subr.mxu0 0.0
    %6375 = vmatpush1.msra.mxu0 0.0
    %6376 = vmatprep.subr.mxu0 0.0
    %6377 = vmatpush1.msra.mxu0 0.0
    %6378 = vmatprep.subr.mxu0 0.0
    %6379 = vmatpush1.msra.mxu0 0.0
    %6380 = vmatprep.subr.mxu0 0.0
    %6381 = vmatpush1.msra.mxu0 0.0
    %6382 = vmatprep.subr.mxu0 0.0
    %6383 = vmatpush1.msra.mxu0 0.0
    %6384 = vmatprep.subr.mxu0 0.0
    %6385 = vmatpush1.msra.mxu0 0.0
    %6386 = vmatprep.subr.mxu0 0.0
    %6387 = vmatpush1.msra.mxu0 0.0
    %6388 = vmatprep.subr.mxu0 0.0
    %6389 = vmatpush1.msra.mxu0 0.0
    %6390 = vmatprep.subr.mxu0 0.0
    %6391 = vmatpush1.msra.mxu0 0.0
    %6392 = vmatprep.subr.mxu0 0.0
    %6393 = vmatpush1.msra.mxu0 0.0
    %6394 = vmatprep.mubr.f32.mxu0 0.0
    %6395 = vmatmul.mubr.f32.gmra.mrb[0].mxu0 %v6325
    %v6396 = vpop.f32.mrb[0].mxu0
    %v6397 = vadd.f32 0.0, %v6396
    %v6398 = vpop.f32.mrb[0].mxu0
    %6399 = vmatprep.mubr.f32.mxu0 0.0
    %6400 = vmatmul.mubr.f32.gmra.mrb[0].mxu0 %v6328
    %v6401 = vpop.f32.mrb[0].mxu0
    %v6402 = vadd.f32 0.0, %v6401
    %v6403 = vpop.f32.mrb[0].mxu0
    %6404 = vdwg.mxu0
    %6405 = vrot.lane.b32.xlu0 %v6308, 96
    %v6406 = vpop.permute.xlu0 %6405
    %6407 = vrot.lane.b32.xlu0 %v6309, 96
    %v6408 = vpop.permute.xlu0 %6407
    %v6409 = vsel %vm294, %v6406, 0
    %v6411 = vsel %vm294, %v6408, 0
    %6413 = vmatprep.subr.mxu0 0.0
    %6414 = vmatpush1.msra.mxu0 %v6314
    %6415 = vmatprep.subr.mxu0 0.0
    %6416 = vmatpush1.msra.mxu0 %v6315
    %6417 = vmatprep.subr.mxu0 0.0
    %6418 = vmatpush1.msra.mxu0 %v6316
    %6419 = vmatprep.subr.mxu0 0.0
    %6420 = vmatpush1.msra.mxu0 %v6317
    %6421 = vmatprep.subr.mxu0 0.0
    %6422 = vmatpush1.msra.mxu0 0.0
    %6423 = vmatprep.subr.mxu0 0.0
    %6424 = vmatpush1.msra.mxu0 0.0
    %6425 = vmatprep.subr.mxu0 0.0
    %6426 = vmatpush1.msra.mxu0 0.0
    %6427 = vmatprep.subr.mxu0 0.0
    %6428 = vmatpush1.msra.mxu0 0.0
    %6429 = vmatprep.subr.mxu0 0.0
    %6430 = vmatpush1.msra.mxu0 0.0
    %6431 = vmatprep.subr.mxu0 0.0
    %6432 = vmatpush1.msra.mxu0 0.0
    %6433 = vmatprep.subr.mxu0 0.0
    %6434 = vmatpush1.msra.mxu0 0.0
    %6435 = vmatprep.subr.mxu0 0.0
    %6436 = vmatpush1.msra.mxu0 0.0
    %6437 = vmatprep.subr.mxu0 0.0
    %6438 = vmatpush1.msra.mxu0 0.0
    %6439 = vmatprep.subr.mxu0 0.0
    %6440 = vmatpush1.msra.mxu0 0.0
    %6441 = vmatprep.subr.mxu0 0.0
    %6442 = vmatpush1.msra.mxu0 0.0
    %6443 = vmatprep.subr.mxu0 0.0
    %6444 = vmatpush1.msra.mxu0 0.0
    %6445 = vmatprep.subr.mxu0 0.0
    %6446 = vmatpush1.msra.mxu0 0.0
    %6447 = vmatprep.subr.mxu0 0.0
    %6448 = vmatpush1.msra.mxu0 0.0
    %6449 = vmatprep.subr.mxu0 0.0
    %6450 = vmatpush1.msra.mxu0 0.0
    %6451 = vmatprep.subr.mxu0 0.0
    %6452 = vmatpush1.msra.mxu0 0.0
    %6453 = vmatprep.subr.mxu0 0.0
    %6454 = vmatpush1.msra.mxu0 0.0
    %6455 = vmatprep.subr.mxu0 0.0
    %6456 = vmatpush1.msra.mxu0 0.0
    %6457 = vmatprep.subr.mxu0 0.0
    %6458 = vmatpush1.msra.mxu0 0.0
    %6459 = vmatprep.subr.mxu0 0.0
    %6460 = vmatpush1.msra.mxu0 0.0
    %6461 = vmatprep.subr.mxu0 0.0
    %6462 = vmatpush1.msra.mxu0 0.0
    %6463 = vmatprep.subr.mxu0 0.0
    %6464 = vmatpush1.msra.mxu0 0.0
    %6465 = vmatprep.subr.mxu0 0.0
    %6466 = vmatpush1.msra.mxu0 0.0
    %6467 = vmatprep.subr.mxu0 0.0
    %6468 = vmatpush1.msra.mxu0 0.0
    %6469 = vmatprep.subr.mxu0 0.0
    %6470 = vmatpush1.msra.mxu0 0.0
    %6471 = vmatprep.subr.mxu0 0.0
    %6472 = vmatpush1.msra.mxu0 0.0
    %6473 = vmatprep.subr.mxu0 0.0
    %6474 = vmatpush1.msra.mxu0 0.0
    %6475 = vmatprep.subr.mxu0 0.0
    %6476 = vmatpush1.msra.mxu0 0.0
    %6477 = vmatprep.mubr.f32.mxu0 0.0
    %6478 = vmatmul.mubr.f32.gmra.mrb[0].mxu0 %v6409
    %v6479 = vpop.f32.mrb[0].mxu0
    %v6480 = vadd.f32 0.0, %v6479
    %v6481 = vpop.f32.mrb[0].mxu0
    %6482 = vmatprep.mubr.f32.mxu0 0.0
    %6483 = vmatmul.mubr.f32.gmra.mrb[0].mxu0 %v6411
    %v6484 = vpop.f32.mrb[0].mxu0
    %v6485 = vadd.f32 0.0, %v6484
    %v6486 = vpop.f32.mrb[0].mxu0
    %6487 = vdwg.mxu0
    %6490 = vrot.lane.b32.xlu0 %v6480, 32
    %v6491 = vpop.permute.xlu0 %6490
    %6492 = vrot.lane.b32.xlu0 %v6485, 32
    %v6493 = vpop.permute.xlu0 %6492
    %v6496 = vsel %vm294, %v6397, %v6491
    %v6497 = vsel %vm294, %v6402, %v6493
    %v6499 = vsel %vm297, %v6311, 0
    %v6502 = vsel %vm297, %v6312, 0
    %6504 = vmatprep.subr.mxu0 0.0
    %6505 = vmatpush1.msra.mxu0 %v6496
    %6506 = vmatprep.subr.mxu0 0.0
    %6507 = vmatpush1.msra.mxu0 %v6497
    %6508 = vmatprep.subr.mxu0 0.0
    %6509 = vmatpush1.msra.mxu0 0.0
    %6510 = vmatprep.subr.mxu0 0.0
    %6511 = vmatpush1.msra.mxu0 0.0
    %6512 = vmatprep.subr.mxu0 0.0
    %6513 = vmatpush1.msra.mxu0 0.0
    %6514 = vmatprep.subr.mxu0 0.0
    %6515 = vmatpush1.msra.mxu0 0.0
    %6516 = vmatprep.subr.mxu0 0.0
    %6517 = vmatpush1.msra.mxu0 0.0
    %6518 = vmatprep.subr.mxu0 0.0
    %6519 = vmatpush1.msra.mxu0 0.0
    %6520 = vmatprep.subr.mxu0 0.0
    %6521 = vmatpush1.msra.mxu0 0.0
    %6522 = vmatprep.subr.mxu0 0.0
    %6523 = vmatpush1.msra.mxu0 0.0
    %6524 = vmatprep.subr.mxu0 0.0
    %6525 = vmatpush1.msra.mxu0 0.0
    %6526 = vmatprep.subr.mxu0 0.0
    %6527 = vmatpush1.msra.mxu0 0.0
    %6528 = vmatprep.subr.mxu0 0.0
    %6529 = vmatpush1.msra.mxu0 0.0
    %6530 = vmatprep.subr.mxu0 0.0
    %6531 = vmatpush1.msra.mxu0 0.0
    %6532 = vmatprep.subr.mxu0 0.0
    %6533 = vmatpush1.msra.mxu0 0.0
    %6534 = vmatprep.subr.mxu0 0.0
    %6535 = vmatpush1.msra.mxu0 0.0
    %6536 = vmatprep.subr.mxu0 0.0
    %6537 = vmatpush1.msra.mxu0 0.0
    %6538 = vmatprep.subr.mxu0 0.0
    %6539 = vmatpush1.msra.mxu0 0.0
    %6540 = vmatprep.subr.mxu0 0.0
    %6541 = vmatpush1.msra.mxu0 0.0
    %6542 = vmatprep.subr.mxu0 0.0
    %6543 = vmatpush1.msra.mxu0 0.0
    %6544 = vmatprep.subr.mxu0 0.0
    %6545 = vmatpush1.msra.mxu0 0.0
    %6546 = vmatprep.subr.mxu0 0.0
    %6547 = vmatpush1.msra.mxu0 0.0
    %6548 = vmatprep.subr.mxu0 0.0
    %6549 = vmatpush1.msra.mxu0 0.0
    %6550 = vmatprep.subr.mxu0 0.0
    %6551 = vmatpush1.msra.mxu0 0.0
    %6552 = vmatprep.subr.mxu0 0.0
    %6553 = vmatpush1.msra.mxu0 0.0
    %6554 = vmatprep.subr.mxu0 0.0
    %6555 = vmatpush1.msra.mxu0 0.0
    %6556 = vmatprep.subr.mxu0 0.0
    %6557 = vmatpush1.msra.mxu0 0.0
    %6558 = vmatprep.subr.mxu0 0.0
    %6559 = vmatpush1.msra.mxu0 0.0
    %6560 = vmatprep.subr.mxu0 0.0
    %6561 = vmatpush1.msra.mxu0 0.0
    %6562 = vmatprep.subr.mxu0 0.0
    %6563 = vmatpush1.msra.mxu0 0.0
    %6564 = vmatprep.subr.mxu0 0.0
    %6565 = vmatpush1.msra.mxu0 0.0
    %6566 = vmatprep.subr.mxu0 0.0
    %6567 = vmatpush1.msra.mxu0 0.0
    %6568 = vmatprep.mubr.f32.mxu0 0.0
    %6569 = vmatmul.mubr.f32.gmra.mrb[0].mxu0 %v6499
    %v6570 = vpop.f32.mrb[0].mxu0
    %v6571 = vadd.f32 0.0, %v6570
    %v6572 = vpop.f32.mrb[0].mxu0
    %6573 = vmatprep.mubr.f32.mxu0 0.0
    %6574 = vmatmul.mubr.f32.gmra.mrb[0].mxu0 %v6502
    %v6575 = vpop.f32.mrb[0].mxu0
    %v6576 = vadd.f32 0.0, %v6575
    %v6577 = vpop.f32.mrb[0].mxu0
    %6578 = vdwg.mxu0
    %6581 = vrot.lane.b32.xlu0 %v6319, 32
    %v6582 = vpop.permute.xlu0 %6581
    %6583 = vrot.lane.b32.xlu0 %v6320, 32
    %v6584 = vpop.permute.xlu0 %6583
    %v6587 = vsel %vm294, %v6319, %v6582
    %v6588 = vsel %vm294, %v6320, %v6584
    %6591 = vrot.lane.b32.xlu0 %v6322, 32
    %v6592 = vpop.permute.xlu0 %6591
    %6593 = vrot.lane.b32.xlu0 %v6323, 32
    %v6594 = vpop.permute.xlu0 %6593
    %v6597 = vsel %vm294, %v6322, %v6592
    %v6598 = vsel %vm294, %v6323, %v6594
    %v6599 = vmul.f32 %v6571, %v6587
    %v6600 = vmul.f32 %v6576, %v6588
    %v6601 = vadd.f32 %v6599, %v6597
    %v6602 = vadd.f32 %v6600, %v6598
    %v6603 = vtanh.pop %v6601
    %v6604 = vtanh.pop %v6602
    %s6605 = scalar_lea.vmem %s5, 240
    %v6606 = vld [vmem:[%s6605] sm:$0xff]
    %v6607 = vld [vmem:[%s6605 + $0x8] sm:$0xff]
    %s6608 = scalar_lea.vmem [#allocation4], 480
    %v6609 = vld [vmem:[%s6608] sm:$0xff]
    %v6610 = vld [vmem:[%s6608 + $0x8] sm:$0xff]
    %v6611 = vld [vmem:[%s6608 + $0x10] sm:$0xff]
    %v6612 = vld [vmem:[%s6608 + $0x18] sm:$0xff]
    %s6613 = scalar_lea.vmem [#allocation6], 240
    %v6614 = vld [vmem:[%s6613] sm:$0xff]
    %v6615 = vld [vmem:[%s6613 + $0x8] sm:$0xff]
    %s6616 = scalar_lea.vmem [#allocation7], 240
    %v6617 = vld [vmem:[%s6616] sm:$0xff]
    %v6618 = vld [vmem:[%s6616 + $0x8] sm:$0xff]
    %v6620 = vsel %vm294, %v6603, 0
    %v6623 = vsel %vm294, %v6604, 0
    %6625 = vmatprep.subr.mxu0 0.0
    %6626 = vmatpush1.msra.mxu0 %v6609
    %6627 = vmatprep.subr.mxu0 0.0
    %6628 = vmatpush1.msra.mxu0 %v6610
    %6629 = vmatprep.subr.mxu0 0.0
    %6630 = vmatpush1.msra.mxu0 %v6611
    %6631 = vmatprep.subr.mxu0 0.0
    %6632 = vmatpush1.msra.mxu0 %v6612
    %6633 = vmatprep.subr.mxu0 0.0
    %6634 = vmatpush1.msra.mxu0 0.0
    %6635 = vmatprep.subr.mxu0 0.0
    %6636 = vmatpush1.msra.mxu0 0.0
    %6637 = vmatprep.subr.mxu0 0.0
    %6638 = vmatpush1.msra.mxu0 0.0
    %6639 = vmatprep.subr.mxu0 0.0
    %6640 = vmatpush1.msra.mxu0 0.0
    %6641 = vmatprep.subr.mxu0 0.0
    %6642 = vmatpush1.msra.mxu0 0.0
    %6643 = vmatprep.subr.mxu0 0.0
    %6644 = vmatpush1.msra.mxu0 0.0
    %6645 = vmatprep.subr.mxu0 0.0
    %6646 = vmatpush1.msra.mxu0 0.0
    %6647 = vmatprep.subr.mxu0 0.0
    %6648 = vmatpush1.msra.mxu0 0.0
    %6649 = vmatprep.subr.mxu0 0.0
    %6650 = vmatpush1.msra.mxu0 0.0
    %6651 = vmatprep.subr.mxu0 0.0
    %6652 = vmatpush1.msra.mxu0 0.0
    %6653 = vmatprep.subr.mxu0 0.0
    %6654 = vmatpush1.msra.mxu0 0.0
    %6655 = vmatprep.subr.mxu0 0.0
    %6656 = vmatpush1.msra.mxu0 0.0
    %6657 = vmatprep.subr.mxu0 0.0
    %6658 = vmatpush1.msra.mxu0 0.0
    %6659 = vmatprep.subr.mxu0 0.0
    %6660 = vmatpush1.msra.mxu0 0.0
    %6661 = vmatprep.subr.mxu0 0.0
    %6662 = vmatpush1.msra.mxu0 0.0
    %6663 = vmatprep.subr.mxu0 0.0
    %6664 = vmatpush1.msra.mxu0 0.0
    %6665 = vmatprep.subr.mxu0 0.0
    %6666 = vmatpush1.msra.mxu0 0.0
    %6667 = vmatprep.subr.mxu0 0.0
    %6668 = vmatpush1.msra.mxu0 0.0
    %6669 = vmatprep.subr.mxu0 0.0
    %6670 = vmatpush1.msra.mxu0 0.0
    %6671 = vmatprep.subr.mxu0 0.0
    %6672 = vmatpush1.msra.mxu0 0.0
    %6673 = vmatprep.subr.mxu0 0.0
    %6674 = vmatpush1.msra.mxu0 0.0
    %6675 = vmatprep.subr.mxu0 0.0
    %6676 = vmatpush1.msra.mxu0 0.0
    %6677 = vmatprep.subr.mxu0 0.0
    %6678 = vmatpush1.msra.mxu0 0.0
    %6679 = vmatprep.subr.mxu0 0.0
    %6680 = vmatpush1.msra.mxu0 0.0
    %6681 = vmatprep.subr.mxu0 0.0
    %6682 = vmatpush1.msra.mxu0 0.0
    %6683 = vmatprep.subr.mxu0 0.0
    %6684 = vmatpush1.msra.mxu0 0.0
    %6685 = vmatprep.subr.mxu0 0.0
    %6686 = vmatpush1.msra.mxu0 0.0
    %6687 = vmatprep.subr.mxu0 0.0
    %6688 = vmatpush1.msra.mxu0 0.0
    %6689 = vmatprep.mubr.f32.mxu0 0.0
    %6690 = vmatmul.mubr.f32.gmra.mrb[0].mxu0 %v6620
    %v6691 = vpop.f32.mrb[0].mxu0
    %v6692 = vadd.f32 0.0, %v6691
    %v6693 = vpop.f32.mrb[0].mxu0
    %6694 = vmatprep.mubr.f32.mxu0 0.0
    %6695 = vmatmul.mubr.f32.gmra.mrb[0].mxu0 %v6623
    %v6696 = vpop.f32.mrb[0].mxu0
    %v6697 = vadd.f32 0.0, %v6696
    %v6698 = vpop.f32.mrb[0].mxu0
    %6699 = vdwg.mxu0
    %6700 = vrot.lane.b32.xlu0 %v6603, 96
    %v6701 = vpop.permute.xlu0 %6700
    %6702 = vrot.lane.b32.xlu0 %v6604, 96
    %v6703 = vpop.permute.xlu0 %6702
    %v6704 = vsel %vm294, %v6701, 0
    %v6706 = vsel %vm294, %v6703, 0
    %6708 = vmatprep.subr.mxu0 0.0
    %6709 = vmatpush1.msra.mxu0 %v6609
    %6710 = vmatprep.subr.mxu0 0.0
    %6711 = vmatpush1.msra.mxu0 %v6610
    %6712 = vmatprep.subr.mxu0 0.0
    %6713 = vmatpush1.msra.mxu0 %v6611
    %6714 = vmatprep.subr.mxu0 0.0
    %6715 = vmatpush1.msra.mxu0 %v6612
    %6716 = vmatprep.subr.mxu0 0.0
    %6717 = vmatpush1.msra.mxu0 0.0
    %6718 = vmatprep.subr.mxu0 0.0
    %6719 = vmatpush1.msra.mxu0 0.0
    %6720 = vmatprep.subr.mxu0 0.0
    %6721 = vmatpush1.msra.mxu0 0.0
    %6722 = vmatprep.subr.mxu0 0.0
    %6723 = vmatpush1.msra.mxu0 0.0
    %6724 = vmatprep.subr.mxu0 0.0
    %6725 = vmatpush1.msra.mxu0 0.0
    %6726 = vmatprep.subr.mxu0 0.0
    %6727 = vmatpush1.msra.mxu0 0.0
    %6728 = vmatprep.subr.mxu0 0.0
    %6729 = vmatpush1.msra.mxu0 0.0
    %6730 = vmatprep.subr.mxu0 0.0
    %6731 = vmatpush1.msra.mxu0 0.0
    %6732 = vmatprep.subr.mxu0 0.0
    %6733 = vmatpush1.msra.mxu0 0.0
    %6734 = vmatprep.subr.mxu0 0.0
    %6735 = vmatpush1.msra.mxu0 0.0
    %6736 = vmatprep.subr.mxu0 0.0
    %6737 = vmatpush1.msra.mxu0 0.0
    %6738 = vmatprep.subr.mxu0 0.0
    %6739 = vmatpush1.msra.mxu0 0.0
    %6740 = vmatprep.subr.mxu0 0.0
    %6741 = vmatpush1.msra.mxu0 0.0
    %6742 = vmatprep.subr.mxu0 0.0
    %6743 = vmatpush1.msra.mxu0 0.0
    %6744 = vmatprep.subr.mxu0 0.0
    %6745 = vmatpush1.msra.mxu0 0.0
    %6746 = vmatprep.subr.mxu0 0.0
    %6747 = vmatpush1.msra.mxu0 0.0
    %6748 = vmatprep.subr.mxu0 0.0
    %6749 = vmatpush1.msra.mxu0 0.0
    %6750 = vmatprep.subr.mxu0 0.0
    %6751 = vmatpush1.msra.mxu0 0.0
    %6752 = vmatprep.subr.mxu0 0.0
    %6753 = vmatpush1.msra.mxu0 0.0
    %6754 = vmatprep.subr.mxu0 0.0
    %6755 = vmatpush1.msra.mxu0 0.0
    %6756 = vmatprep.subr.mxu0 0.0
    %6757 = vmatpush1.msra.mxu0 0.0
    %6758 = vmatprep.subr.mxu0 0.0
    %6759 = vmatpush1.msra.mxu0 0.0
    %6760 = vmatprep.subr.mxu0 0.0
    %6761 = vmatpush1.msra.mxu0 0.0
    %6762 = vmatprep.subr.mxu0 0.0
    %6763 = vmatpush1.msra.mxu0 0.0
    %6764 = vmatprep.subr.mxu0 0.0
    %6765 = vmatpush1.msra.mxu0 0.0
    %6766 = vmatprep.subr.mxu0 0.0
    %6767 = vmatpush1.msra.mxu0 0.0
    %6768 = vmatprep.subr.mxu0 0.0
    %6769 = vmatpush1.msra.mxu0 0.0
    %6770 = vmatprep.subr.mxu0 0.0
    %6771 = vmatpush1.msra.mxu0 0.0
    %6772 = vmatprep.mubr.f32.mxu0 0.0
    %6773 = vmatmul.mubr.f32.gmra.mrb[0].mxu0 %v6704
    %v6774 = vpop.f32.mrb[0].mxu0
    %v6775 = vadd.f32 0.0, %v6774
    %v6776 = vpop.f32.mrb[0].mxu0
    %6777 = vmatprep.mubr.f32.mxu0 0.0
    %6778 = vmatmul.mubr.f32.gmra.mrb[0].mxu0 %v6706
    %v6779 = vpop.f32.mrb[0].mxu0
    %v6780 = vadd.f32 0.0, %v6779
    %v6781 = vpop.f32.mrb[0].mxu0
    %6782 = vdwg.mxu0
    %6785 = vrot.lane.b32.xlu0 %v6775, 32
    %v6786 = vpop.permute.xlu0 %6785
    %6787 = vrot.lane.b32.xlu0 %v6780, 32
    %v6788 = vpop.permute.xlu0 %6787
    %v6791 = vsel %vm294, %v6692, %v6786
    %v6792 = vsel %vm294, %v6697, %v6788
    %v6794 = vsel %vm297, %v6606, 0
    %v6797 = vsel %vm297, %v6607, 0
    %6799 = vmatprep.subr.mxu0 0.0
    %6800 = vmatpush1.msra.mxu0 %v6791
    %6801 = vmatprep.subr.mxu0 0.0
    %6802 = vmatpush1.msra.mxu0 %v6792
    %6803 = vmatprep.subr.mxu0 0.0
    %6804 = vmatpush1.msra.mxu0 0.0
    %6805 = vmatprep.subr.mxu0 0.0
    %6806 = vmatpush1.msra.mxu0 0.0
    %6807 = vmatprep.subr.mxu0 0.0
    %6808 = vmatpush1.msra.mxu0 0.0
    %6809 = vmatprep.subr.mxu0 0.0
    %6810 = vmatpush1.msra.mxu0 0.0
    %6811 = vmatprep.subr.mxu0 0.0
    %6812 = vmatpush1.msra.mxu0 0.0
    %6813 = vmatprep.subr.mxu0 0.0
    %6814 = vmatpush1.msra.mxu0 0.0
    %6815 = vmatprep.subr.mxu0 0.0
    %6816 = vmatpush1.msra.mxu0 0.0
    %6817 = vmatprep.subr.mxu0 0.0
    %6818 = vmatpush1.msra.mxu0 0.0
    %6819 = vmatprep.subr.mxu0 0.0
    %6820 = vmatpush1.msra.mxu0 0.0
    %6821 = vmatprep.subr.mxu0 0.0
    %6822 = vmatpush1.msra.mxu0 0.0
    %6823 = vmatprep.subr.mxu0 0.0
    %6824 = vmatpush1.msra.mxu0 0.0
    %6825 = vmatprep.subr.mxu0 0.0
    %6826 = vmatpush1.msra.mxu0 0.0
    %6827 = vmatprep.subr.mxu0 0.0
    %6828 = vmatpush1.msra.mxu0 0.0
    %6829 = vmatprep.subr.mxu0 0.0
    %6830 = vmatpush1.msra.mxu0 0.0
    %6831 = vmatprep.subr.mxu0 0.0
    %6832 = vmatpush1.msra.mxu0 0.0
    %6833 = vmatprep.subr.mxu0 0.0
    %6834 = vmatpush1.msra.mxu0 0.0
    %6835 = vmatprep.subr.mxu0 0.0
    %6836 = vmatpush1.msra.mxu0 0.0
    %6837 = vmatprep.subr.mxu0 0.0
    %6838 = vmatpush1.msra.mxu0 0.0
    %6839 = vmatprep.subr.mxu0 0.0
    %6840 = vmatpush1.msra.mxu0 0.0
    %6841 = vmatprep.subr.mxu0 0.0
    %6842 = vmatpush1.msra.mxu0 0.0
    %6843 = vmatprep.subr.mxu0 0.0
    %6844 = vmatpush1.msra.mxu0 0.0
    %6845 = vmatprep.subr.mxu0 0.0
    %6846 = vmatpush1.msra.mxu0 0.0
    %6847 = vmatprep.subr.mxu0 0.0
    %6848 = vmatpush1.msra.mxu0 0.0
    %6849 = vmatprep.subr.mxu0 0.0
    %6850 = vmatpush1.msra.mxu0 0.0
    %6851 = vmatprep.subr.mxu0 0.0
    %6852 = vmatpush1.msra.mxu0 0.0
    %6853 = vmatprep.subr.mxu0 0.0
    %6854 = vmatpush1.msra.mxu0 0.0
    %6855 = vmatprep.subr.mxu0 0.0
    %6856 = vmatpush1.msra.mxu0 0.0
    %6857 = vmatprep.subr.mxu0 0.0
    %6858 = vmatpush1.msra.mxu0 0.0
    %6859 = vmatprep.subr.mxu0 0.0
    %6860 = vmatpush1.msra.mxu0 0.0
    %6861 = vmatprep.subr.mxu0 0.0
    %6862 = vmatpush1.msra.mxu0 0.0
    %6863 = vmatprep.mubr.f32.mxu0 0.0
    %6864 = vmatmul.mubr.f32.gmra.mrb[0].mxu0 %v6794
    %v6865 = vpop.f32.mrb[0].mxu0
    %v6866 = vadd.f32 0.0, %v6865
    %v6867 = vpop.f32.mrb[0].mxu0
    %6868 = vmatprep.mubr.f32.mxu0 0.0
    %6869 = vmatmul.mubr.f32.gmra.mrb[0].mxu0 %v6797
    %v6870 = vpop.f32.mrb[0].mxu0
    %v6871 = vadd.f32 0.0, %v6870
    %v6872 = vpop.f32.mrb[0].mxu0
    %6873 = vdwg.mxu0
    %6876 = vrot.lane.b32.xlu0 %v6614, 32
    %v6877 = vpop.permute.xlu0 %6876
    %6878 = vrot.lane.b32.xlu0 %v6615, 32
    %v6879 = vpop.permute.xlu0 %6878
    %v6882 = vsel %vm294, %v6614, %v6877
    %v6883 = vsel %vm294, %v6615, %v6879
    %6886 = vrot.lane.b32.xlu0 %v6617, 32
    %v6887 = vpop.permute.xlu0 %6886
    %6888 = vrot.lane.b32.xlu0 %v6618, 32
    %v6889 = vpop.permute.xlu0 %6888
    %v6892 = vsel %vm294, %v6617, %v6887
    %v6893 = vsel %vm294, %v6618, %v6889
    %v6894 = vmul.f32 %v6866, %v6882
    %v6895 = vmul.f32 %v6871, %v6883
    %v6896 = vadd.f32 %v6894, %v6892
    %v6897 = vadd.f32 %v6895, %v6893
    %v6898 = vtanh.pop %v6896
    %v6899 = vtanh.pop %v6897
    %v6900 = vadd.f32 %v6308, %v6898
    %v6901 = vadd.f32 %v6309, %v6899
    %s6902 = scalar_lea.vmem [#allocation9], 48
    %v6903 = vld [vmem:[%s6902] sm:$0xff]
    %v6904 = vld [vmem:[%s6902 + $0x8] sm:$0xff]
    %s6905 = scalar_lea.vmem %s10, 96
    %v6906 = vld [vmem:[%s6905] sm:$0xff]
    %v6907 = vld [vmem:[%s6905 + $0x8] sm:$0xff]
    %v6908 = vld [vmem:[%s6905 + $0x10] sm:$0xff]
    %v6909 = vld [vmem:[%s6905 + $0x18] sm:$0xff]
    %s6910 = scalar_lea.vmem %s11, 48
    %v6911 = vld [vmem:[%s6910] sm:$0xff]
    %v6912 = vld [vmem:[%s6910 + $0x8] sm:$0xff]
    %s6913 = scalar_lea.vmem %s12, 48
    %v6914 = vld [vmem:[%s6913] sm:$0xff]
    %v6915 = vld [vmem:[%s6913 + $0x8] sm:$0xff]
    %v6917 = vsel %vm294, %v6900, 0
    %v6920 = vsel %vm294, %v6901, 0
    %6922 = vmatprep.subr.mxu0 0.0
    %6923 = vmatpush1.msra.mxu0 %v6906
    %6924 = vmatprep.subr.mxu0 0.0
    %6925 = vmatpush1.msra.mxu0 %v6907
    %6926 = vmatprep.subr.mxu0 0.0
    %6927 = vmatpush1.msra.mxu0 %v6908
    %6928 = vmatprep.subr.mxu0 0.0
    %6929 = vmatpush1.msra.mxu0 %v6909
    %6930 = vmatprep.subr.mxu0 0.0
    %6931 = vmatpush1.msra.mxu0 0.0
    %6932 = vmatprep.subr.mxu0 0.0
    %6933 = vmatpush1.msra.mxu0 0.0
    %6934 = vmatprep.subr.mxu0 0.0
    %6935 = vmatpush1.msra.mxu0 0.0
    %6936 = vmatprep.subr.mxu0 0.0
    %6937 = vmatpush1.msra.mxu0 0.0
    %6938 = vmatprep.subr.mxu0 0.0
    %6939 = vmatpush1.msra.mxu0 0.0
    %6940 = vmatprep.subr.mxu0 0.0
    %6941 = vmatpush1.msra.mxu0 0.0
    %6942 = vmatprep.subr.mxu0 0.0
    %6943 = vmatpush1.msra.mxu0 0.0
    %6944 = vmatprep.subr.mxu0 0.0
    %6945 = vmatpush1.msra.mxu0 0.0
    %6946 = vmatprep.subr.mxu0 0.0
    %6947 = vmatpush1.msra.mxu0 0.0
    %6948 = vmatprep.subr.mxu0 0.0
    %6949 = vmatpush1.msra.mxu0 0.0
    %6950 = vmatprep.subr.mxu0 0.0
    %6951 = vmatpush1.msra.mxu0 0.0
    %6952 = vmatprep.subr.mxu0 0.0
    %6953 = vmatpush1.msra.mxu0 0.0
    %6954 = vmatprep.subr.mxu0 0.0
    %6955 = vmatpush1.msra.mxu0 0.0
    %6956 = vmatprep.subr.mxu0 0.0
    %6957 = vmatpush1.msra.mxu0 0.0
    %6958 = vmatprep.subr.mxu0 0.0
    %6959 = vmatpush1.msra.mxu0 0.0
    %6960 = vmatprep.subr.mxu0 0.0
    %6961 = vmatpush1.msra.mxu0 0.0
    %6962 = vmatprep.subr.mxu0 0.0
    %6963 = vmatpush1.msra.mxu0 0.0
    %6964 = vmatprep.subr.mxu0 0.0
    %6965 = vmatpush1.msra.mxu0 0.0
    %6966 = vmatprep.subr.mxu0 0.0
    %6967 = vmatpush1.msra.mxu0 0.0
    %6968 = vmatprep.subr.mxu0 0.0
    %6969 = vmatpush1.msra.mxu0 0.0
    %6970 = vmatprep.subr.mxu0 0.0
    %6971 = vmatpush1.msra.mxu0 0.0
    %6972 = vmatprep.subr.mxu0 0.0
    %6973 = vmatpush1.msra.mxu0 0.0
    %6974 = vmatprep.subr.mxu0 0.0
    %6975 = vmatpush1.msra.mxu0 0.0
    %6976 = vmatprep.subr.mxu0 0.0
    %6977 = vmatpush1.msra.mxu0 0.0
    %6978 = vmatprep.subr.mxu0 0.0
    %6979 = vmatpush1.msra.mxu0 0.0
    %6980 = vmatprep.subr.mxu0 0.0
    %6981 = vmatpush1.msra.mxu0 0.0
    %6982 = vmatprep.subr.mxu0 0.0
    %6983 = vmatpush1.msra.mxu0 0.0
    %6984 = vmatprep.subr.mxu0 0.0
    %6985 = vmatpush1.msra.mxu0 0.0
    %6986 = vmatprep.mubr.f32.mxu0 0.0
    %6987 = vmatmul.mubr.f32.gmra.mrb[0].mxu0 %v6917
    %v6988 = vpop.f32.mrb[0].mxu0
    %v6989 = vadd.f32 0.0, %v6988
    %v6990 = vpop.f32.mrb[0].mxu0
    %6991 = vmatprep.mubr.f32.mxu0 0.0
    %6992 = vmatmul.mubr.f32.gmra.mrb[0].mxu0 %v6920
    %v6993 = vpop.f32.mrb[0].mxu0
    %v6994 = vadd.f32 0.0, %v6993
    %v6995 = vpop.f32.mrb[0].mxu0
    %6996 = vdwg.mxu0
    %6997 = vrot.lane.b32.xlu0 %v6900, 96
    %v6998 = vpop.permute.xlu0 %6997
    %6999 = vrot.lane.b32.xlu0 %v6901, 96
    %v7000 = vpop.permute.xlu0 %6999
    %v7001 = vsel %vm294, %v6998, 0
    %v7003 = vsel %vm294, %v7000, 0
    %7005 = vmatprep.subr.mxu0 0.0
    %7006 = vmatpush1.msra.mxu0 %v6906
    %7007 = vmatprep.subr.mxu0 0.0
    %7008 = vmatpush1.msra.mxu0 %v6907
    %7009 = vmatprep.subr.mxu0 0.0
    %7010 = vmatpush1.msra.mxu0 %v6908
    %7011 = vmatprep.subr.mxu0 0.0
    %7012 = vmatpush1.msra.mxu0 %v6909
    %7013 = vmatprep.subr.mxu0 0.0
    %7014 = vmatpush1.msra.mxu0 0.0
    %7015 = vmatprep.subr.mxu0 0.0
    %7016 = vmatpush1.msra.mxu0 0.0
    %7017 = vmatprep.subr.mxu0 0.0
    %7018 = vmatpush1.msra.mxu0 0.0
    %7019 = vmatprep.subr.mxu0 0.0
    %7020 = vmatpush1.msra.mxu0 0.0
    %7021 = vmatprep.subr.mxu0 0.0
    %7022 = vmatpush1.msra.mxu0 0.0
    %7023 = vmatprep.subr.mxu0 0.0
    %7024 = vmatpush1.msra.mxu0 0.0
    %7025 = vmatprep.subr.mxu0 0.0
    %7026 = vmatpush1.msra.mxu0 0.0
    %7027 = vmatprep.subr.mxu0 0.0
    %7028 = vmatpush1.msra.mxu0 0.0
    %7029 = vmatprep.subr.mxu0 0.0
    %7030 = vmatpush1.msra.mxu0 0.0
    %7031 = vmatprep.subr.mxu0 0.0
    %7032 = vmatpush1.msra.mxu0 0.0
    %7033 = vmatprep.subr.mxu0 0.0
    %7034 = vmatpush1.msra.mxu0 0.0
    %7035 = vmatprep.subr.mxu0 0.0
    %7036 = vmatpush1.msra.mxu0 0.0
    %7037 = vmatprep.subr.mxu0 0.0
    %7038 = vmatpush1.msra.mxu0 0.0
    %7039 = vmatprep.subr.mxu0 0.0
    %7040 = vmatpush1.msra.mxu0 0.0
    %7041 = vmatprep.subr.mxu0 0.0
    %7042 = vmatpush1.msra.mxu0 0.0
    %7043 = vmatprep.subr.mxu0 0.0
    %7044 = vmatpush1.msra.mxu0 0.0
    %7045 = vmatprep.subr.mxu0 0.0
    %7046 = vmatpush1.msra.mxu0 0.0
    %7047 = vmatprep.subr.mxu0 0.0
    %7048 = vmatpush1.msra.mxu0 0.0
    %7049 = vmatprep.subr.mxu0 0.0
    %7050 = vmatpush1.msra.mxu0 0.0
    %7051 = vmatprep.subr.mxu0 0.0
    %7052 = vmatpush1.msra.mxu0 0.0
    %7053 = vmatprep.subr.mxu0 0.0
    %7054 = vmatpush1.msra.mxu0 0.0
    %7055 = vmatprep.subr.mxu0 0.0
    %7056 = vmatpush1.msra.mxu0 0.0
    %7057 = vmatprep.subr.mxu0 0.0
    %7058 = vmatpush1.msra.mxu0 0.0
    %7059 = vmatprep.subr.mxu0 0.0
    %7060 = vmatpush1.msra.mxu0 0.0
    %7061 = vmatprep.subr.mxu0 0.0
    %7062 = vmatpush1.msra.mxu0 0.0
    %7063 = vmatprep.subr.mxu0 0.0
    %7064 = vmatpush1.msra.mxu0 0.0
    %7065 = vmatprep.subr.mxu0 0.0
    %7066 = vmatpush1.msra.mxu0 0.0
    %7067 = vmatprep.subr.mxu0 0.0
    %7068 = vmatpush1.msra.mxu0 0.0
    %7069 = vmatprep.mubr.f32.mxu0 0.0
    %7070 = vmatmul.mubr.f32.gmra.mrb[0].mxu0 %v7001
    %v7071 = vpop.f32.mrb[0].mxu0
    %v7072 = vadd.f32 0.0, %v7071
    %v7073 = vpop.f32.mrb[0].mxu0
    %7074 = vmatprep.mubr.f32.mxu0 0.0
    %7075 = vmatmul.mubr.f32.gmra.mrb[0].mxu0 %v7003
    %v7076 = vpop.f32.mrb[0].mxu0
    %v7077 = vadd.f32 0.0, %v7076
    %v7078 = vpop.f32.mrb[0].mxu0
    %7079 = vdwg.mxu0
    %7082 = vrot.lane.b32.xlu0 %v7072, 8
    %v7083 = vpop.permute.xlu0 %7082
    %7084 = vrot.lane.b32.xlu0 %v7077, 8
    %v7085 = vpop.permute.xlu0 %7084
    %v7088 = vsel %vm121, %v6989, %v7083
    %v7089 = vsel %vm121, %v6994, %v7085
    %v7091 = vsel %vm297, %v6903, 0
    %v7094 = vsel %vm297, %v6904, 0
    %7096 = vmatprep.subr.mxu0 0.0
    %7097 = vmatpush1.msra.mxu0 %v7088
    %7098 = vmatprep.subr.mxu0 0.0
    %7099 = vmatpush1.msra.mxu0 %v7089
    %7100 = vmatprep.subr.mxu0 0.0
    %7101 = vmatpush1.msra.mxu0 0.0
    %7102 = vmatprep.subr.mxu0 0.0
    %7103 = vmatpush1.msra.mxu0 0.0
    %7104 = vmatprep.subr.mxu0 0.0
    %7105 = vmatpush1.msra.mxu0 0.0
    %7106 = vmatprep.subr.mxu0 0.0
    %7107 = vmatpush1.msra.mxu0 0.0
    %7108 = vmatprep.subr.mxu0 0.0
    %7109 = vmatpush1.msra.mxu0 0.0
    %7110 = vmatprep.subr.mxu0 0.0
    %7111 = vmatpush1.msra.mxu0 0.0
    %7112 = vmatprep.subr.mxu0 0.0
    %7113 = vmatpush1.msra.mxu0 0.0
    %7114 = vmatprep.subr.mxu0 0.0
    %7115 = vmatpush1.msra.mxu0 0.0
    %7116 = vmatprep.subr.mxu0 0.0
    %7117 = vmatpush1.msra.mxu0 0.0
    %7118 = vmatprep.subr.mxu0 0.0
    %7119 = vmatpush1.msra.mxu0 0.0
    %7120 = vmatprep.subr.mxu0 0.0
    %7121 = vmatpush1.msra.mxu0 0.0
    %7122 = vmatprep.subr.mxu0 0.0
    %7123 = vmatpush1.msra.mxu0 0.0
    %7124 = vmatprep.subr.mxu0 0.0
    %7125 = vmatpush1.msra.mxu0 0.0
    %7126 = vmatprep.subr.mxu0 0.0
    %7127 = vmatpush1.msra.mxu0 0.0
    %7128 = vmatprep.subr.mxu0 0.0
    %7129 = vmatpush1.msra.mxu0 0.0
    %7130 = vmatprep.subr.mxu0 0.0
    %7131 = vmatpush1.msra.mxu0 0.0
    %7132 = vmatprep.subr.mxu0 0.0
    %7133 = vmatpush1.msra.mxu0 0.0
    %7134 = vmatprep.subr.mxu0 0.0
    %7135 = vmatpush1.msra.mxu0 0.0
    %7136 = vmatprep.subr.mxu0 0.0
    %7137 = vmatpush1.msra.mxu0 0.0
    %7138 = vmatprep.subr.mxu0 0.0
    %7139 = vmatpush1.msra.mxu0 0.0
    %7140 = vmatprep.subr.mxu0 0.0
    %7141 = vmatpush1.msra.mxu0 0.0
    %7142 = vmatprep.subr.mxu0 0.0
    %7143 = vmatpush1.msra.mxu0 0.0
    %7144 = vmatprep.subr.mxu0 0.0
    %7145 = vmatpush1.msra.mxu0 0.0
    %7146 = vmatprep.subr.mxu0 0.0
    %7147 = vmatpush1.msra.mxu0 0.0
    %7148 = vmatprep.subr.mxu0 0.0
    %7149 = vmatpush1.msra.mxu0 0.0
    %7150 = vmatprep.subr.mxu0 0.0
    %7151 = vmatpush1.msra.mxu0 0.0
    %7152 = vmatprep.subr.mxu0 0.0
    %7153 = vmatpush1.msra.mxu0 0.0
    %7154 = vmatprep.subr.mxu0 0.0
    %7155 = vmatpush1.msra.mxu0 0.0
    %7156 = vmatprep.subr.mxu0 0.0
    %7157 = vmatpush1.msra.mxu0 0.0
    %7158 = vmatprep.subr.mxu0 0.0
    %7159 = vmatpush1.msra.mxu0 0.0
    %7160 = vmatprep.mubr.f32.mxu0 0.0
    %7161 = vmatmul.mubr.f32.gmra.mrb[0].mxu0 %v7091
    %v7162 = vpop.f32.mrb[0].mxu0
    %v7163 = vadd.f32 0.0, %v7162
    %v7164 = vpop.f32.mrb[0].mxu0
    %7165 = vmatprep.mubr.f32.mxu0 0.0
    %7166 = vmatmul.mubr.f32.gmra.mrb[0].mxu0 %v7094
    %v7167 = vpop.f32.mrb[0].mxu0
    %v7168 = vadd.f32 0.0, %v7167
    %v7169 = vpop.f32.mrb[0].mxu0
    %7170 = vdwg.mxu0
    %7173 = vrot.lane.b32.xlu0 %v6911, 8
    %v7174 = vpop.permute.xlu0 %7173
    %7175 = vrot.lane.b32.xlu0 %v6912, 8
    %v7176 = vpop.permute.xlu0 %7175
    %v7179 = vsel %vm121, %v6911, %v7174
    %v7180 = vsel %vm121, %v6912, %v7176
    %7183 = vrot.lane.b32.xlu0 %v6914, 8
    %v7184 = vpop.permute.xlu0 %7183
    %7185 = vrot.lane.b32.xlu0 %v6915, 8
    %v7186 = vpop.permute.xlu0 %7185
    %v7189 = vsel %vm121, %v6914, %v7184
    %v7190 = vsel %vm121, %v6915, %v7186
    %v7191 = vmul.f32 %v7163, %v7179
    %v7192 = vmul.f32 %v7168, %v7180
    %v7193 = vadd.f32 %v7191, %v7189
    %v7194 = vadd.f32 %v7192, %v7190
    %v7195 = vadd.f32 %v7193, %v5421
    %v7196 = vadd.f32 %v7194, %v5422
    %s7197 = scalar_lea.vmem %s13, 48
    %7198 = vst.msk [vmem:[%s7197] sm:$0xff] %vm297, %v7195
    %7199 = vst.msk [vmem:[%s7197 + $0x8] sm:$0xff] %vm297, %v7196
    // Predicated region
    $region74: #{_multistage_forward_impl.1} parent=1 // pred_check
      _
    $region75: #{_multistage_forward_impl.1} parent=1 // pred_check_branch
      %7201 = sbr.rel (0) target = $region77
    $region76: #{_multistage_forward_impl.1} parent=1 // pred_region
      _
    $region77: #{_multistage_forward_impl.1} parent=1 // pred_fallthru
      _
    // Predicated region
    $region78: #{_multistage_forward_impl.1} parent=1 // pred_check
      _
    $region79: #{_multistage_forward_impl.1} parent=1 // pred_check_branch
      %7203 = sbr.rel (0) target = $region81
    $region80: #{_multistage_forward_impl.1} parent=1 // pred_region
      _
    $region81: #{_multistage_forward_impl.1} parent=1 // pred_fallthru
      _
    %7204 = vsyncpa [#allocation3], 1
    %7205 = vsyncpa [#allocation5], 1
    %7206 = vsyncpa [#allocation8], 1

</llo_original>
